<compile_context>
chip_gen: v7x
topology: tpu7x:2x2x1
jax: 0.10.0
libtpu: 0.0.40
codegen_flags: <defaults>
</compile_context>

<pallas_src>
import numpy as np

import jax
import jax.numpy as jnp
from jax.experimental import pallas as pl
from jax.experimental.pallas import tpu as pltpu


# ---------------------------------------------------------------------------
# Pallas kernels
# ---------------------------------------------------------------------------
def _gemm_bias_relu_kernel(x_ref, w_ref, b_ref, o_ref):
    # o = relu(x @ w + b)   with x:(M, K), w:(K, N), b:(1, N)
    acc = jnp.dot(x_ref[...], w_ref[...], preferred_element_type=jnp.float32)
    o_ref[...] = jnp.maximum(acc + b_ref[...], 0.0).astype(o_ref.dtype)


def _dueling_head_kernel(feat_ref, w1_ref, b1_ref,
                         wa2_ref, ba2_ref, wv2_ref, bv2_ref, o_ref):
    # Whole dueling head in one invocation; hidden activations never leave VMEM.
    #   h   = relu(feat @ W1 + b1)                (B, 1024)  bf16 x bf16 -> f32
    #   adv = h[:, :512] @ Wa2 + ba2              (B, A)
    #   val = h[:, 512:] @ Wv2 + bv2              (B, 1)
    #   out = val + adv - mean(adv)               (global mean, torch semantics)
    h = jnp.dot(feat_ref[...], w1_ref[...], preferred_element_type=jnp.float32)
    h = jnp.maximum(h + b1_ref[...], 0.0)
    H = wa2_ref.shape[0]                                   # 512 (lane-aligned)
    adv = jnp.dot(h[:, :H], wa2_ref[...],
                  preferred_element_type=jnp.float32) + ba2_ref[...]
    val = jnp.dot(h[:, H:], wv2_ref[...],
                  preferred_element_type=jnp.float32) + bv2_ref[...]
    out = val + adv - jnp.mean(adv, keepdims=True)         # (B, A)
    o_ref[0] = out.astype(o_ref.dtype)


# ---------------------------------------------------------------------------
# Pallas wrappers
# ---------------------------------------------------------------------------
_CPARAMS = pltpu.CompilerParams(
    dimension_semantics=("arbitrary",),       # single-step grids everywhere
    vmem_limit_bytes=32 * 1024 * 1024,        # safe vs v7x's 64 MiB/TC VMEM
)


def conv_gemm_bias_relu(patches, w_gemm, b_row, out_dtype=jnp.float32):
    """(M, K) @ (K, N) + b, ReLU.  Single block: no M-tiling (review: at these
    sizes extra grid steps are pure per-step overhead on 1-TC chips)."""
    M, K = patches.shape
    Kw, N = w_gemm.shape
    assert K == Kw
    return pl.pallas_call(
        _gemm_bias_relu_kernel,
        out_shape=jax.ShapeDtypeStruct((M, N), out_dtype),
        grid=(1,),
        in_specs=[
            pl.BlockSpec((M, K), lambda i: (0, 0)),
            pl.BlockSpec((K, N), lambda i: (0, 0)),
            pl.BlockSpec((1, N), lambda i: (0, 0)),
        ],
        out_specs=pl.BlockSpec((M, N), lambda i: (0, 0)),
        compiler_params=_CPARAMS,
    )(patches, w_gemm, b_row)


# ---------------------------------------------------------------------------
# Channels-last im2col glue (cheap: slices + one concat, no transposes)
# ---------------------------------------------------------------------------
def _im2col_nhwc(x, kh, kw, stride):
    """x: (B, H, W, C) -> patches (B*OH*OW, KH*KW*C), feature order (kh, kw, c)."""
    B, H, W, C = x.shape
    oh = (H - kh) // stride + 1
    ow = (W - kw) // stride + 1
    cols = [
        x[:, i:i + stride * (oh - 1) + 1:stride,
             j:j + stride * (ow - 1) + 1:stride, :]
        for i in range(kh) for j in range(kw)
    ]
    patches = jnp.concatenate(cols, axis=-1)          # (B, OH, OW, KH*KW*C)
    return patches.reshape(B * oh * ow, kh * kw * C), oh, ow


def _conv2d_relu(x_nhwc, w_gemm, b_row, k, stride, out_dtype=jnp.float32):
    B = x_nhwc.shape[0]
    patches, oh, ow = _im2col_nhwc(x_nhwc, k, k, stride)
    y = conv_gemm_bias_relu(patches, w_gemm, b_row, out_dtype)  # (B*OH*OW, OC)
    return y.reshape(B, oh, ow, w_gemm.shape[1])                # stays NHWC


# ---------------------------------------------------------------------------
# One-time parameter relayout (PyTorch layouts -> GEMM-ready layouts)
# ---------------------------------------------------------------------------
def prepare_params(torch_params):
    (w1, b1, w2, b2, w3, b3,
     wa1, ba1, wa2, ba2, wv1, bv1, wv2, bv2) = torch_params

    def conv_gemm_weight(w):                  # (OC, IC, KH, KW) -> (KH*KW*IC, OC)
        oc = w.shape[0]
        return jnp.transpose(w, (2, 3, 1, 0)).reshape(-1, oc)

    # fc1: concat adv1/val1 -> (1568, 1024); permute rows so a channels-last
    # (h, w, c) flatten equals torch's (c, h, w) flatten of the (B,32,7,7) map.
    # Stored in bf16: this is the dominant HBM stream of the whole forward.
    hh, ww, cc = np.meshgrid(np.arange(7), np.arange(7), np.arange(32), indexing="ij")
    perm = jnp.asarray((cc * 49 + hh * 7 + ww).reshape(-1))       # hwc -> chw index
    w_fc1 = jnp.concatenate([wa1.T, wv1.T], axis=1)[perm, :].astype(jnp.bfloat16)
    b_fc1 = jnp.concatenate([ba1, bv1]).reshape(1, -1)            # f32 (1, 1024)

    return {
        "cw1": conv_gemm_weight(w1), "cb1": b1.reshape(1, -1),
        "cw2": conv_gemm_weight(w2), "cb2": b2.reshape(1, -1),
        "cw3": conv_gemm_weight(w3), "cb3": b3.reshape(1, -1),
        "w_fc1": w_fc1, "b_fc1": b_fc1,
        "wa2t": wa2.T, "ba2": ba2.reshape(1, -1),                 # (512, A), (1, A)
        "wv2t": wv2.T, "bv2": bv2.reshape(1, -1),                 # (512, 1), (1, 1)
    }


# ---------------------------------------------------------------------------
# Forward pass
# ---------------------------------------------------------------------------
def qnetwork_forward(state, params):
    """state: (B, 4, 84, 84) float32 NCHW (PyTorch layout).  Returns (1, B, A)."""
    B = state.shape[0]
    K1, H2 = params["w_fc1"].shape            # (1568, 1024)
    Hh = H2 // 2                               # 512 per dueling branch
    A = params["wa2t"].shape[1]

    # Single relayout to channels-last; everything downstream stays NHWC.
    x = jnp.transpose(state, (0, 2, 3, 1))                          # (B, 84, 84, 4)

    x = _conv2d_relu(x, params["cw1"], params["cb1"], 8, 4)         # (B, 20, 20, 16)
    x = _conv2d_relu(x, params["cw2"], params["cb2"], 4, 2)         # (B,  9,  9, 32)
    # conv3 emits bf16: its output IS the FC1 input, so the head matmul gets
    # bf16 x bf16 operands (native MXU path) with f32 accumulation.
    x = _conv2d_relu(x, params["cw3"], params["cb3"], 3, 1,
                     out_dtype=jnp.bfloat16)                        # (B,  7,  7, 32)

    # NHWC flatten; the row permutation baked into w_fc1 makes this equivalent
    # to torch's x.view(-1, B, 32*7*7) NCHW flatten.
    feat = x.reshape(B, K1)                                         # (B, 1568) bf16

    # Fused dueling head + epilogue: adv1/val1/adv2/val2, biases, global
    # adv.mean() subtraction — all in one single-step kernel; the final
    # (1, B, A) tensor is written directly (no XLA epilogue ops).
    out = pl.pallas_call(
        _dueling_head_kernel,
        out_shape=jax.ShapeDtypeStruct((1, B, A), jnp.float32),
        grid=(1,),
        in_specs=[
            pl.BlockSpec((B, K1), lambda i: (0, 0)),
            pl.BlockSpec((K1, H2), lambda i: (0, 0)),
            pl.BlockSpec((1, H2), lambda i: (0, 0)),
            pl.BlockSpec((Hh, A), lambda i: (0, 0)),
            pl.BlockSpec((1, A), lambda i: (0, 0)),
            pl.BlockSpec((Hh, 1), lambda i: (0, 0)),
            pl.BlockSpec((1, 1), lambda i: (0, 0)),
        ],
        out_specs=pl.BlockSpec((1, B, A), lambda i: (0, 0, 0)),
        compiler_params=_CPARAMS,
    )(feat, params["w_fc1"], params["b_fc1"],
      params["wa2t"], params["ba2"], params["wv2t"], params["bv2"])
    return out


# ---------------------------------------------------------------------------
# Pure-JAX reference (PyTorch layouts / semantics) for a numerical self-check
# ---------------------------------------------------------------------------
def qnetwork_reference(state, torch_params):
    (w1, b1, w2, b2, w3, b3,
     wa1, ba1, wa2, ba2, wv1, bv1, wv2, bv2) = torch_params
    hi = jax.lax.Precision.HIGHEST

    def conv(x, w, b, s):
        y = jax.lax.conv_general_dilated(
            x, w, window_strides=(s, s), padding="VALID",
            dimension_numbers=("NCHW", "OIHW", "NCHW"), precision=hi)
        return jax.nn.relu(y + b.reshape(1, -1, 1, 1))

    x = conv(state, w1, b1, 4)
    x = conv(x, w2, b2, 2)
    x = conv(x, w3, b3, 1)
    B = state.shape[0]
    feat = x.reshape(B, 32 * 7 * 7)                    # torch .view (NCHW) order
    adv = jax.nn.relu(jnp.dot(feat, wa1.T, precision=hi) + ba1)
    adv = jnp.dot(adv, wa2.T, precision=hi) + ba2
    val = jax.nn.relu(jnp.dot(feat, wv1.T, precision=hi) + bv1)
    val = jnp.dot(val, wv2.T, precision=hi) + bv2
    return (val + adv - jnp.mean(adv)).reshape(1, B, -1)


# ---------------------------------------------------------------------------
# Main
# ---------------------------------------------------------------------------
if __name__ == "__main__":
    B = 2
    action_size = 6

    key = jax.random.PRNGKey(0)
    keys = jax.random.split(key, 16)

    def init(k, shape, scale=0.05):
        return jax.random.normal(k, shape, jnp.float32) * scale

    # Parameters in PyTorch layouts: conv (OC, IC, KH, KW), linear (OUT, IN).
    torch_params = (
        init(keys[0], (16, 4, 8, 8)),      init(keys[1], (16,)),            # conv1
        init(keys[2], (32, 16, 4, 4)),     init(keys[3], (32,)),            # conv2
        init(keys[4], (32, 32, 3, 3)),     init(keys[5], (32,)),            # conv3
        init(keys[6], (512, 1568)),        init(keys[7], (512,)),           # adv1
        init(keys[8], (action_size, 512)), init(keys[9], (action_size,)),   # adv2
        init(keys[10], (512, 1568)),       init(keys[11], (512,)),          # val1
        init(keys[12], (1, 512)),          init(keys[13], (1,)),            # val2
    )

    # 84x84 spatial is required by the 1568 = 32*7*7 flatten in the module.
    state = jax.random.normal(keys[14], (B, 4, 84, 84), jnp.float32)

    params = prepare_params(torch_params)     # one-time GEMM-ready relayout
    fwd = jax.jit(qnetwork_forward)

    out = fwd(state, params)
    jax.block_until_ready(out)
    assert out.shape == (1, B, action_size)

    ref = qnetwork_reference(state, torch_params)
    np.testing.assert_allclose(np.asarray(out), np.asarray(ref), rtol=2e-2, atol=2e-2)

    print("KERNEL_OK")
</pallas_src>

<mosaic_0001>
module attributes {stable_mosaic.version = 11 : i64} {
  func.func @_gemm_bias_relu_kernel(%arg0: i32, %arg1: memref<800x256xf32, #tpu.memory_space<vmem>>, %arg2: memref<256x16xf32, #tpu.memory_space<vmem>>, %arg3: memref<1x16xf32, #tpu.memory_space<vmem>>, %arg4: memref<800x16xf32, #tpu.memory_space<vmem>>) attributes {dimension_semantics = [#tpu.dimension_semantics<arbitrary>], iteration_bounds = array<i64: 1>, scalar_prefetch = 0 : i64, scratch_operands = 0 : i64, tpu.core_type = #tpu.core_type<tc>, window_params = [{pipeline_mode = #tpu.pipeline_mode<synchronous>, transform_indices = @transform_0, window_bounds = array<i64: 800, 256>}, {pipeline_mode = #tpu.pipeline_mode<synchronous>, transform_indices = @transform_1, window_bounds = array<i64: 256, 16>}, {pipeline_mode = #tpu.pipeline_mode<synchronous>, transform_indices = @transform_2, window_bounds = array<i64: 1, 16>}, {pipeline_mode = #tpu.pipeline_mode<synchronous>, transform_indices = @transform_3, window_bounds = array<i64: 800, 16>}]} {
    %c0 = arith.constant 0 : index
    %c0_0 = arith.constant 0 : index
    %0 = vector.load %arg1[%c0, %c0_0] : memref<800x256xf32, #tpu.memory_space<vmem>>, vector<800x256xf32>
    %c0_1 = arith.constant 0 : index
    %c0_2 = arith.constant 0 : index
    %1 = vector.load %arg2[%c0_1, %c0_2] : memref<256x16xf32, #tpu.memory_space<vmem>>, vector<256x16xf32>
    %cst = arith.constant dense<0.000000e+00> : vector<800x16xf32>
    %2 = tpu.matmul %0, %1, %cst {dimension_numbers = #tpu.dot_dimension_numbers<[1], [0], [0], [1], [0, 0, 1, 1], [], []>} : vector<800x256xf32>, vector<256x16xf32>, vector<800x16xf32> -> vector<800x16xf32>
    %c0_3 = arith.constant 0 : index
    %c0_4 = arith.constant 0 : index
    %3 = vector.load %arg3[%c0_3, %c0_4] : memref<1x16xf32, #tpu.memory_space<vmem>>, vector<1x16xf32>
    %4 = vector.broadcast %3 : vector<1x16xf32> to vector<800x16xf32>
    %5 = arith.addf %2, %4 : vector<800x16xf32>
    %cst_5 = arith.constant 0.000000e+00 : f32
    %6 = vector.broadcast %cst_5 : f32 to vector<800x16xf32>
    %7 = arith.maximumf %5, %6 : vector<800x16xf32>
    %c0_6 = arith.constant 0 : index
    %c0_7 = arith.constant 0 : index
    %8 = vector.load %arg4[%c0_6, %c0_7] : memref<800x16xf32, #tpu.memory_space<vmem>>, vector<800x16xf32>
    tpu.vector_store %arg4[%c0_6, %c0_7], %7 {strides = array<i32>} : memref<800x16xf32, #tpu.memory_space<vmem>>, vector<800x16xf32>,
    return
  }
  func.func @transform_0(%arg0: i32) -> (i32, i32) {
    %c0_i32 = arith.constant 0 : i32
    %c0_i32_0 = arith.constant 0 : i32
    %c0_i32_1 = arith.constant 0 : i32
    return %c0_i32, %c0_i32_0 : i32, i32
  }
  func.func @transform_1(%arg0: i32) -> (i32, i32) {
    %c0_i32 = arith.constant 0 : i32
    %c0_i32_0 = arith.constant 0 : i32
    %c0_i32_1 = arith.constant 0 : i32
    return %c0_i32, %c0_i32_0 : i32, i32
  }
  func.func @transform_2(%arg0: i32) -> (i32, i32) {
    %c0_i32 = arith.constant 0 : i32
    %c0_i32_0 = arith.constant 0 : i32
    %c0_i32_1 = arith.constant 0 : i32
    return %c0_i32, %c0_i32_0 : i32, i32
  }
  func.func @transform_3(%arg0: i32) -> (i32, i32) {
    %c0_i32 = arith.constant 0 : i32
    %c0_i32_0 = arith.constant 0 : i32
    %c0_i32_1 = arith.constant 0 : i32
    return %c0_i32, %c0_i32_0 : i32, i32
  }
}

module attributes {stable_mosaic.version = 11 : i64} {
  func.func @_gemm_bias_relu_kernel(%arg0: i32, %arg1: memref<162x256xf32, #tpu.memory_space<vmem>>, %arg2: memref<256x32xf32, #tpu.memory_space<vmem>>, %arg3: memref<1x32xf32, #tpu.memory_space<vmem>>, %arg4: memref<162x32xf32, #tpu.memory_space<vmem>>) attributes {dimension_semantics = [#tpu.dimension_semantics<arbitrary>], iteration_bounds = array<i64: 1>, scalar_prefetch = 0 : i64, scratch_operands = 0 : i64, tpu.core_type = #tpu.core_type<tc>, window_params = [{pipeline_mode = #tpu.pipeline_mode<synchronous>, transform_indices = @transform_0, window_bounds = array<i64: 162, 256>}, {pipeline_mode = #tpu.pipeline_mode<synchronous>, transform_indices = @transform_1, window_bounds = array<i64: 256, 32>}, {pipeline_mode = #tpu.pipeline_mode<synchronous>, transform_indices = @transform_2, window_bounds = array<i64: 1, 32>}, {pipeline_mode = #tpu.pipeline_mode<synchronous>, transform_indices = @transform_3, window_bounds = array<i64: 162, 32>}]} {
    %c0 = arith.constant 0 : index
    %c0_0 = arith.constant 0 : index
    %0 = vector.load %arg1[%c0, %c0_0] : memref<162x256xf32, #tpu.memory_space<vmem>>, vector<162x256xf32>
    %c0_1 = arith.constant 0 : index
    %c0_2 = arith.constant 0 : index
    %1 = vector.load %arg2[%c0_1, %c0_2] : memref<256x32xf32, #tpu.memory_space<vmem>>, vector<256x32xf32>
    %cst = arith.constant dense<0.000000e+00> : vector<162x32xf32>
    %2 = tpu.matmul %0, %1, %cst {dimension_numbers = #tpu.dot_dimension_numbers<[1], [0], [0], [1], [0, 0, 1, 1], [], []>} : vector<162x256xf32>, vector<256x32xf32>, vector<162x32xf32> -> vector<162x32xf32>
    %c0_3 = arith.constant 0 : index
    %c0_4 = arith.constant 0 : index
    %3 = vector.load %arg3[%c0_3, %c0_4] : memref<1x32xf32, #tpu.memory_space<vmem>>, vector<1x32xf32>
    %4 = vector.broadcast %3 : vector<1x32xf32> to vector<162x32xf32>
    %5 = arith.addf %2, %4 : vector<162x32xf32>
    %cst_5 = arith.constant 0.000000e+00 : f32
    %6 = vector.broadcast %cst_5 : f32 to vector<162x32xf32>
    %7 = arith.maximumf %5, %6 : vector<162x32xf32>
    %c0_6 = arith.constant 0 : index
    %c0_7 = arith.constant 0 : index
    %8 = vector.load %arg4[%c0_6, %c0_7] : memref<162x32xf32, #tpu.memory_space<vmem>>, vector<162x32xf32>
    tpu.vector_store %arg4[%c0_6, %c0_7], %7 {strides = array<i32>} : memref<162x32xf32, #tpu.memory_space<vmem>>, vector<162x32xf32>,
    return
  }
  func.func @transform_0(%arg0: i32) -> (i32, i32) {
    %c0_i32 = arith.constant 0 : i32
    %c0_i32_0 = arith.constant 0 : i32
    %c0_i32_1 = arith.constant 0 : i32
    return %c0_i32, %c0_i32_0 : i32, i32
  }
  func.func @transform_1(%arg0: i32) -> (i32, i32) {
    %c0_i32 = arith.constant 0 : i32
    %c0_i32_0 = arith.constant 0 : i32
    %c0_i32_1 = arith.constant 0 : i32
    return %c0_i32, %c0_i32_0 : i32, i32
  }
  func.func @transform_2(%arg0: i32) -> (i32, i32) {
    %c0_i32 = arith.constant 0 : i32
    %c0_i32_0 = arith.constant 0 : i32
    %c0_i32_1 = arith.constant 0 : i32
    return %c0_i32, %c0_i32_0 : i32, i32
  }
  func.func @transform_3(%arg0: i32) -> (i32, i32) {
    %c0_i32 = arith.constant 0 : i32
    %c0_i32_0 = arith.constant 0 : i32
    %c0_i32_1 = arith.constant 0 : i32
    return %c0_i32, %c0_i32_0 : i32, i32
  }
}

module attributes {stable_mosaic.version = 11 : i64} {
  func.func @_dueling_head_kernel(%arg0: i32, %arg1: memref<2x1568xbf16, #tpu.memory_space<vmem>>, %arg2: memref<1568x1024xbf16, #tpu.memory_space<vmem>>, %arg3: memref<1x1024xf32, #tpu.memory_space<vmem>>, %arg4: memref<512x6xf32, #tpu.memory_space<vmem>>, %arg5: memref<1x6xf32, #tpu.memory_space<vmem>>, %arg6: memref<512x1xf32, #tpu.memory_space<vmem>>, %arg7: memref<1x1xf32, #tpu.memory_space<vmem>>, %arg8: memref<1x2x6xf32, #tpu.memory_space<vmem>>) attributes {dimension_semantics = [#tpu.dimension_semantics<arbitrary>], iteration_bounds = array<i64: 1>, scalar_prefetch = 0 : i64, scratch_operands = 0 : i64, tpu.core_type = #tpu.core_type<tc>, window_params = [{pipeline_mode = #tpu.pipeline_mode<synchronous>, transform_indices = @transform_0, window_bounds = array<i64: 2, 1568>}, {pipeline_mode = #tpu.pipeline_mode<synchronous>, transform_indices = @transform_1, window_bounds = array<i64: 1568, 1024>}, {pipeline_mode = #tpu.pipeline_mode<synchronous>, transform_indices = @transform_2, window_bounds = array<i64: 1, 1024>}, {pipeline_mode = #tpu.pipeline_mode<synchronous>, transform_indices = @transform_3, window_bounds = array<i64: 512, 6>}, {pipeline_mode = #tpu.pipeline_mode<synchronous>, transform_indices = @transform_4, window_bounds = array<i64: 1, 6>}, {pipeline_mode = #tpu.pipeline_mode<synchronous>, transform_indices = @transform_5, window_bounds = array<i64: 512, 1>}, {pipeline_mode = #tpu.pipeline_mode<synchronous>, transform_indices = @transform_6, window_bounds = array<i64: 1, 1>}, {pipeline_mode = #tpu.pipeline_mode<synchronous>, transform_indices = @transform_7, window_bounds = array<i64: 1, 2, 6>}]} {
    %c0 = arith.constant 0 : index
    %c0_0 = arith.constant 0 : index
    %0 = vector.load %arg1[%c0, %c0_0] : memref<2x1568xbf16, #tpu.memory_space<vmem>>, vector<2x1568xbf16>
    %c0_1 = arith.constant 0 : index
    %c0_2 = arith.constant 0 : index
    %1 = vector.load %arg2[%c0_1, %c0_2] : memref<1568x1024xbf16, #tpu.memory_space<vmem>>, vector<1568x1024xbf16>
    %cst = arith.constant dense<0.000000e+00> : vector<2x1024xf32>
    %2 = tpu.matmul %0, %1, %cst {dimension_numbers = #tpu.dot_dimension_numbers<[1], [0], [0], [1], [0, 0, 1, 1], [], []>} : vector<2x1568xbf16>, vector<1568x1024xbf16>, vector<2x1024xf32> -> vector<2x1024xf32>
    %c0_3 = arith.constant 0 : index
    %c0_4 = arith.constant 0 : index
    %3 = vector.load %arg3[%c0_3, %c0_4] : memref<1x1024xf32, #tpu.memory_space<vmem>>, vector<1x1024xf32>
    %4 = vector.broadcast %3 : vector<1x1024xf32> to vector<2x1024xf32>
    %5 = arith.addf %2, %4 : vector<2x1024xf32>
    %cst_5 = arith.constant 0.000000e+00 : f32
    %6 = vector.broadcast %cst_5 : f32 to vector<2x1024xf32>
    %7 = arith.maximumf %5, %6 : vector<2x1024xf32>
    %8 = vector.extract_strided_slice %7 {offsets = [0, 0], sizes = [2, 512], strides = [1, 1]} : vector<2x1024xf32> to vector<2x512xf32>
    %c0_6 = arith.constant 0 : index
    %c0_7 = arith.constant 0 : index
    %9 = vector.load %arg4[%c0_6, %c0_7] : memref<512x6xf32, #tpu.memory_space<vmem>>, vector<512x6xf32>
    %cst_8 = arith.constant dense<0.000000e+00> : vector<2x6xf32>
    %10 = tpu.matmul %8, %9, %cst_8 {dimension_numbers = #tpu.dot_dimension_numbers<[1], [0], [0], [1], [0, 0, 1, 1], [], []>} : vector<2x512xf32>, vector<512x6xf32>, vector<2x6xf32> -> vector<2x6xf32>
    %c0_9 = arith.constant 0 : index
    %c0_10 = arith.constant 0 : index
    %11 = vector.load %arg5[%c0_9, %c0_10] : memref<1x6xf32, #tpu.memory_space<vmem>>, vector<1x6xf32>
    %12 = vector.broadcast %11 : vector<1x6xf32> to vector<2x6xf32>
    %13 = arith.addf %10, %12 : vector<2x6xf32>
    %14 = vector.extract_strided_slice %7 {offsets = [0, 512], sizes = [2, 512], strides = [1, 1]} : vector<2x1024xf32> to vector<2x512xf32>
    %c0_11 = arith.constant 0 : index
    %c0_12 = arith.constant 0 : index
    %15 = vector.load %arg6[%c0_11, %c0_12] : memref<512x1xf32, #tpu.memory_space<vmem>>, vector<512x1xf32>
    %cst_13 = arith.constant dense<0.000000e+00> : vector<2x1xf32>
    %16 = tpu.matmul %14, %15, %cst_13 {dimension_numbers = #tpu.dot_dimension_numbers<[1], [0], [0], [1], [0, 0, 1, 1], [], []>} : vector<2x512xf32>, vector<512x1xf32>, vector<2x1xf32> -> vector<2x1xf32>
    %c0_14 = arith.constant 0 : index
    %c0_15 = arith.constant 0 : index
    %17 = vector.load %arg7[%c0_14, %c0_15] : memref<1x1xf32, #tpu.memory_space<vmem>>, vector<1x1xf32>
    %18 = vector.broadcast %17 : vector<1x1xf32> to vector<2x1xf32>
    %19 = arith.addf %16, %18 : vector<2x1xf32>
    %20 = vector.broadcast %19 : vector<2x1xf32> to vector<2x6xf32>
    %21 = arith.addf %20, %13 : vector<2x6xf32>
    %22 = vector.shape_cast %13 : vector<2x6xf32> to vector<1x2x6xf32>
    %cst_16 = arith.constant dense<0.000000e+00> : vector<1xf32>
    %23 = vector.multi_reduction <add>, %22, %cst_16 [1, 2] : vector<1x2x6xf32> to vector<1xf32>
    %24 = vector.shape_cast %23 : vector<1xf32> to vector<1x1x1xf32>
    %25 = vector.extract %24[0, 0, 0] : f32 from vector<1x1x1xf32>
    %26 = vector.broadcast %25 : f32 to vector<1x1xf32>
    %cst_17 = arith.constant 1.200000e+01 : f32
    %27 = vector.broadcast %cst_17 : f32 to vector<1x1xf32>
    %28 = arith.divf %26, %27 : vector<1x1xf32>
    %29 = vector.broadcast %28 : vector<1x1xf32> to vector<2x6xf32>
    %30 = arith.subf %21, %29 : vector<2x6xf32>
    %c0_18 = arith.constant 0 : index
    %c0_19 = arith.constant 0 : index
    %c0_20 = arith.constant 0 : index
    %31 = vector.load %arg8[%c0_18, %c0_19, %c0_20] : memref<1x2x6xf32, #tpu.memory_space<vmem>>, vector<1x2x6xf32>
    %32 = vector.shape_cast %31 : vector<1x2x6xf32> to vector<2x6xf32>
    %33 = vector.shape_cast %30 : vector<2x6xf32> to vector<1x2x6xf32>
    tpu.vector_store %arg8[%c0_18, %c0_19, %c0_20], %33 {strides = array<i32>} : memref<1x2x6xf32, #tpu.memory_space<vmem>>, vector<1x2x6xf32>,
    return
  }
  func.func @transform_0(%arg0: i32) -> (i32, i32) {
    %c0_i32 = arith.constant 0 : i32
    %c0_i32_0 = arith.constant 0 : i32
    %c0_i32_1 = arith.constant 0 : i32
    return %c0_i32, %c0_i32_0 : i32, i32
  }
  func.func @transform_1(%arg0: i32) -> (i32, i32) {
    %c0_i32 = arith.constant 0 : i32
    %c0_i32_0 = arith.constant 0 : i32
    %c0_i32_1 = arith.constant 0 : i32
    return %c0_i32, %c0_i32_0 : i32, i32
  }
  func.func @transform_2(%arg0: i32) -> (i32, i32) {
    %c0_i32 = arith.constant 0 : i32
    %c0_i32_0 = arith.constant 0 : i32
    %c0_i32_1 = arith.constant 0 : i32
    return %c0_i32, %c0_i32_0 : i32, i32
  }
  func.func @transform_3(%arg0: i32) -> (i32, i32) {
    %c0_i32 = arith.constant 0 : i32
    %c0_i32_0 = arith.constant 0 : i32
    %c0_i32_1 = arith.constant 0 : i32
    return %c0_i32, %c0_i32_0 : i32, i32
  }
  func.func @transform_4(%arg0: i32) -> (i32, i32) {
    %c0_i32 = arith.constant 0 : i32
    %c0_i32_0 = arith.constant 0 : i32
    %c0_i32_1 = arith.constant 0 : i32
    return %c0_i32, %c0_i32_0 : i32, i32
  }
  func.func @transform_5(%arg0: i32) -> (i32, i32) {
    %c0_i32 = arith.constant 0 : i32
    %c0_i32_0 = arith.constant 0 : i32
    %c0_i32_1 = arith.constant 0 : i32
    return %c0_i32, %c0_i32_0 : i32, i32
  }
  func.func @transform_6(%arg0: i32) -> (i32, i32) {
    %c0_i32 = arith.constant 0 : i32
    %c0_i32_0 = arith.constant 0 : i32
    %c0_i32_1 = arith.constant 0 : i32
    return %c0_i32, %c0_i32_0 : i32, i32
  }
  func.func @transform_7(%arg0: i32) -> (i32, i32, i32) {
    %c0_i32 = arith.constant 0 : i32
    %c0_i32_0 = arith.constant 0 : i32
    %c0_i32_1 = arith.constant 0 : i32
    %c0_i32_2 = arith.constant 0 : i32
    return %c0_i32, %c0_i32_0, %c0_i32_1 : i32, i32, i32
  }
}

module attributes {stable_mosaic.version = 11 : i64} {
  func.func @_gemm_bias_relu_kernel(%arg0: i32, %arg1: memref<98x288xf32, #tpu.memory_space<vmem>>, %arg2: memref<288x32xf32, #tpu.memory_space<vmem>>, %arg3: memref<1x32xf32, #tpu.memory_space<vmem>>, %arg4: memref<98x32xbf16, #tpu.memory_space<vmem>>) attributes {dimension_semantics = [#tpu.dimension_semantics<arbitrary>], iteration_bounds = array<i64: 1>, scalar_prefetch = 0 : i64, scratch_operands = 0 : i64, tpu.core_type = #tpu.core_type<tc>, window_params = [{pipeline_mode = #tpu.pipeline_mode<synchronous>, transform_indices = @transform_0, window_bounds = array<i64: 98, 288>}, {pipeline_mode = #tpu.pipeline_mode<synchronous>, transform_indices = @transform_1, window_bounds = array<i64: 288, 32>}, {pipeline_mode = #tpu.pipeline_mode<synchronous>, transform_indices = @transform_2, window_bounds = array<i64: 1, 32>}, {pipeline_mode = #tpu.pipeline_mode<synchronous>, transform_indices = @transform_3, window_bounds = array<i64: 98, 32>}]} {
    %c0 = arith.constant 0 : index
    %c0_0 = arith.constant 0 : index
    %0 = vector.load %arg1[%c0, %c0_0] : memref<98x288xf32, #tpu.memory_space<vmem>>, vector<98x288xf32>
    %c0_1 = arith.constant 0 : index
    %c0_2 = arith.constant 0 : index
    %1 = vector.load %arg2[%c0_1, %c0_2] : memref<288x32xf32, #tpu.memory_space<vmem>>, vector<288x32xf32>
    %cst = arith.constant dense<0.000000e+00> : vector<98x32xf32>
    %2 = tpu.matmul %0, %1, %cst {dimension_numbers = #tpu.dot_dimension_numbers<[1], [0], [0], [1], [0, 0, 1, 1], [], []>} : vector<98x288xf32>, vector<288x32xf32>, vector<98x32xf32> -> vector<98x32xf32>
    %c0_3 = arith.constant 0 : index
    %c0_4 = arith.constant 0 : index
    %3 = vector.load %arg3[%c0_3, %c0_4] : memref<1x32xf32, #tpu.memory_space<vmem>>, vector<1x32xf32>
    %4 = vector.broadcast %3 : vector<1x32xf32> to vector<98x32xf32>
    %5 = arith.addf %2, %4 : vector<98x32xf32>
    %cst_5 = arith.constant 0.000000e+00 : f32
    %6 = vector.broadcast %cst_5 : f32 to vector<98x32xf32>
    %7 = arith.maximumf %5, %6 : vector<98x32xf32>
    %8 = arith.truncf %7 : vector<98x32xf32> to vector<98x32xbf16>
    %c0_6 = arith.constant 0 : index
    %c0_7 = arith.constant 0 : index
    %9 = vector.load %arg4[%c0_6, %c0_7] : memref<98x32xbf16, #tpu.memory_space<vmem>>, vector<98x32xbf16>
    tpu.vector_store %arg4[%c0_6, %c0_7], %8 {strides = array<i32>} : memref<98x32xbf16, #tpu.memory_space<vmem>>, vector<98x32xbf16>,
    return
  }
  func.func @transform_0(%arg0: i32) -> (i32, i32) {
    %c0_i32 = arith.constant 0 : i32
    %c0_i32_0 = arith.constant 0 : i32
    %c0_i32_1 = arith.constant 0 : i32
    return %c0_i32, %c0_i32_0 : i32, i32
  }
  func.func @transform_1(%arg0: i32) -> (i32, i32) {
    %c0_i32 = arith.constant 0 : i32
    %c0_i32_0 = arith.constant 0 : i32
    %c0_i32_1 = arith.constant 0 : i32
    return %c0_i32, %c0_i32_0 : i32, i32
  }
  func.func @transform_2(%arg0: i32) -> (i32, i32) {
    %c0_i32 = arith.constant 0 : i32
    %c0_i32_0 = arith.constant 0 : i32
    %c0_i32_1 = arith.constant 0 : i32
    return %c0_i32, %c0_i32_0 : i32, i32
  }
  func.func @transform_3(%arg0: i32) -> (i32, i32) {
    %c0_i32 = arith.constant 0 : i32
    %c0_i32_0 = arith.constant 0 : i32
    %c0_i32_1 = arith.constant 0 : i32
    return %c0_i32, %c0_i32_0 : i32, i32
  }
}

</mosaic_0001>

<llo_original>
// kernel: qnetwork_forward.4
$region0: #{qnetwork_forward.4}
  #allocation0 [shape = 'u32[]', space=smem, size = 0x4, offset = 0x4, fixed_abs, tag = 'smem constant byte address 0x4 - core index']
  #allocation1 [shape = 'u32[144,128]{1,0:T(1,128)}', space=vmem, size = 0x12000, scoped, tag = 'internal scratch']
  %s0 = inlined_call_operand.vmem [shape: f32[800,256], index: 0, kind: input, shape index: {}]
  %s1 = inlined_call_operand.vmem [shape: f32[256,16], index: 1, kind: input, shape index: {}]
  %s2 = inlined_call_operand.vmem [shape: f32[1,16], index: 2, kind: input, shape index: {}]
  %s3 = inlined_call_operand.vmem [shape: f32[800,16], index: 3, kind: output, shape index: {}]
  %s4 = sld [smem:[#allocation0]]
  $region22: #{qnetwork_forward.4} parent=0
    _
  %s6 = ssub.s32 1, %s4
  %s7 = scalar_select 0, %s6, %s4
  // Predicated region
  $region2: #{qnetwork_forward.4} parent=0 // pred_check
    _
  $region3: #{qnetwork_forward.4} parent=0 // pred_check_branch
    %9 = sbr.rel (0) target = $region5
  $region4: #{qnetwork_forward.4} parent=0 // pred_region
    _
  $region5: #{qnetwork_forward.4} parent=0 // pred_fallthru
    _
  // Predicated region
  $region6: #{qnetwork_forward.4} parent=0 // pred_check
    _
  $region7: #{qnetwork_forward.4} parent=0 // pred_check_branch
    %11 = sbr.rel (0) target = $region9
  $region8: #{qnetwork_forward.4} parent=0 // pred_region
    _
  $region9: #{qnetwork_forward.4} parent=0 // pred_fallthru
    _
  // Predicated region
  $region10: #{qnetwork_forward.4} parent=0 // pred_check
    _
  $region11: #{qnetwork_forward.4} parent=0 // pred_check_branch
    %13 = sbr.rel (0) target = $region13
  $region12: #{qnetwork_forward.4} parent=0 // pred_region
    _
  $region13: #{qnetwork_forward.4} parent=0 // pred_fallthru
    _
  %v14 = vld [vmem:[%s0] sm:$0xff]
  %v15 = vld [vmem:[%s0 + $0x8] sm:$0xff]
  %v16 = vld [vmem:[%s0 + $0x10] sm:$0xff]
  %v17 = vld [vmem:[%s0 + $0x18] sm:$0xff]
  %v18 = vld [vmem:[%s0 + $0x20] sm:$0xff]
  %v19 = vld [vmem:[%s0 + $0x28] sm:$0xff]
  %v20 = vld [vmem:[%s0 + $0x30] sm:$0xff]
  %v21 = vld [vmem:[%s0 + $0x38] sm:$0xff]
  %v22 = vld [vmem:[%s0 + $0x40] sm:$0xff]
  %v23 = vld [vmem:[%s0 + $0x48] sm:$0xff]
  %v24 = vld [vmem:[%s0 + $0x50] sm:$0xff]
  %v25 = vld [vmem:[%s0 + $0x58] sm:$0xff]
  %v26 = vld [vmem:[%s0 + $0x60] sm:$0xff]
  %v27 = vld [vmem:[%s0 + $0x68] sm:$0xff]
  %v28 = vld [vmem:[%s0 + $0x70] sm:$0xff]
  %v29 = vld [vmem:[%s0 + $0x78] sm:$0xff]
  %v30 = vld [vmem:[%s0 + $0x80] sm:$0xff]
  %v31 = vld [vmem:[%s0 + $0x88] sm:$0xff]
  %v32 = vld [vmem:[%s0 + $0x90] sm:$0xff]
  %v33 = vld [vmem:[%s0 + $0x98] sm:$0xff]
  %v34 = vld [vmem:[%s0 + $0xa0] sm:$0xff]
  %v35 = vld [vmem:[%s0 + $0xa8] sm:$0xff]
  %v36 = vld [vmem:[%s0 + $0xb0] sm:$0xff]
  %v37 = vld [vmem:[%s0 + $0xb8] sm:$0xff]
  %v38 = vld [vmem:[%s0 + $0xc0] sm:$0xff]
  %v39 = vld [vmem:[%s0 + $0xc8] sm:$0xff]
  %v40 = vld [vmem:[%s0 + $0xd0] sm:$0xff]
  %v41 = vld [vmem:[%s0 + $0xd8] sm:$0xff]
  %v42 = vld [vmem:[%s0 + $0xe0] sm:$0xff]
  %v43 = vld [vmem:[%s0 + $0xe8] sm:$0xff]
  %v44 = vld [vmem:[%s0 + $0xf0] sm:$0xff]
  %v45 = vld [vmem:[%s0 + $0xf8] sm:$0xff]
  %v46 = vld [vmem:[%s0 + $0x100] sm:$0xff]
  %v47 = vld [vmem:[%s0 + $0x108] sm:$0xff]
  %v48 = vld [vmem:[%s0 + $0x110] sm:$0xff]
  %v49 = vld [vmem:[%s0 + $0x118] sm:$0xff]
  %v50 = vld [vmem:[%s0 + $0x120] sm:$0xff]
  %v51 = vld [vmem:[%s0 + $0x128] sm:$0xff]
  %v52 = vld [vmem:[%s0 + $0x130] sm:$0xff]
  %v53 = vld [vmem:[%s0 + $0x138] sm:$0xff]
  %v54 = vld [vmem:[%s0 + $0x140] sm:$0xff]
  %v55 = vld [vmem:[%s0 + $0x148] sm:$0xff]
  %v56 = vld [vmem:[%s0 + $0x150] sm:$0xff]
  %v57 = vld [vmem:[%s0 + $0x158] sm:$0xff]
  %v58 = vld [vmem:[%s0 + $0x160] sm:$0xff]
  %v59 = vld [vmem:[%s0 + $0x168] sm:$0xff]
  %v60 = vld [vmem:[%s0 + $0x170] sm:$0xff]
  %v61 = vld [vmem:[%s0 + $0x178] sm:$0xff]
  %v62 = vld [vmem:[%s0 + $0x180] sm:$0xff]
  %v63 = vld [vmem:[%s0 + $0x188] sm:$0xff]
  %v64 = vld [vmem:[%s0 + $0x190] sm:$0xff]
  %v65 = vld [vmem:[%s0 + $0x198] sm:$0xff]
  %v66 = vld [vmem:[%s0 + $0x1a0] sm:$0xff]
  %v67 = vld [vmem:[%s0 + $0x1a8] sm:$0xff]
  %v68 = vld [vmem:[%s0 + $0x1b0] sm:$0xff]
  %v69 = vld [vmem:[%s0 + $0x1b8] sm:$0xff]
  %v70 = vld [vmem:[%s0 + $0x1c0] sm:$0xff]
  %v71 = vld [vmem:[%s0 + $0x1c8] sm:$0xff]
  %v72 = vld [vmem:[%s0 + $0x1d0] sm:$0xff]
  %v73 = vld [vmem:[%s0 + $0x1d8] sm:$0xff]
  %v74 = vld [vmem:[%s0 + $0x1e0] sm:$0xff]
  %v75 = vld [vmem:[%s0 + $0x1e8] sm:$0xff]
  %v76 = vld [vmem:[%s0 + $0x1f0] sm:$0xff]
  %v77 = vld [vmem:[%s0 + $0x1f8] sm:$0xff]
  %v78 = vld [vmem:[%s0 + $0x200] sm:$0xff]
  %v79 = vld [vmem:[%s0 + $0x208] sm:$0xff]
  %v80 = vld [vmem:[%s0 + $0x210] sm:$0xff]
  %v81 = vld [vmem:[%s0 + $0x218] sm:$0xff]
  %v82 = vld [vmem:[%s0 + $0x220] sm:$0xff]
  %v83 = vld [vmem:[%s0 + $0x228] sm:$0xff]
  %v84 = vld [vmem:[%s0 + $0x230] sm:$0xff]
  %v85 = vld [vmem:[%s0 + $0x238] sm:$0xff]
  %v86 = vld [vmem:[%s0 + $0x240] sm:$0xff]
  %v87 = vld [vmem:[%s0 + $0x248] sm:$0xff]
  %v88 = vld [vmem:[%s0 + $0x250] sm:$0xff]
  %v89 = vld [vmem:[%s0 + $0x258] sm:$0xff]
  %v90 = vld [vmem:[%s0 + $0x260] sm:$0xff]
  %v91 = vld [vmem:[%s0 + $0x268] sm:$0xff]
  %v92 = vld [vmem:[%s0 + $0x270] sm:$0xff]
  %v93 = vld [vmem:[%s0 + $0x278] sm:$0xff]
  %v94 = vld [vmem:[%s0 + $0x280] sm:$0xff]
  %v95 = vld [vmem:[%s0 + $0x288] sm:$0xff]
  %v96 = vld [vmem:[%s0 + $0x290] sm:$0xff]
  %v97 = vld [vmem:[%s0 + $0x298] sm:$0xff]
  %v98 = vld [vmem:[%s0 + $0x2a0] sm:$0xff]
  %v99 = vld [vmem:[%s0 + $0x2a8] sm:$0xff]
  %v100 = vld [vmem:[%s0 + $0x2b0] sm:$0xff]
  %v101 = vld [vmem:[%s0 + $0x2b8] sm:$0xff]
  %v102 = vld [vmem:[%s0 + $0x2c0] sm:$0xff]
  %v103 = vld [vmem:[%s0 + $0x2c8] sm:$0xff]
  %v104 = vld [vmem:[%s0 + $0x2d0] sm:$0xff]
  %v105 = vld [vmem:[%s0 + $0x2d8] sm:$0xff]
  %v106 = vld [vmem:[%s0 + $0x2e0] sm:$0xff]
  %v107 = vld [vmem:[%s0 + $0x2e8] sm:$0xff]
  %v108 = vld [vmem:[%s0 + $0x2f0] sm:$0xff]
  %v109 = vld [vmem:[%s0 + $0x2f8] sm:$0xff]
  %v110 = vld [vmem:[%s0 + $0x300] sm:$0xff]
  %v111 = vld [vmem:[%s0 + $0x308] sm:$0xff]
  %v112 = vld [vmem:[%s0 + $0x310] sm:$0xff]
  %v113 = vld [vmem:[%s0 + $0x318] sm:$0xff]
  %v114 = vld [vmem:[%s0 + $0x320] sm:$0xff]
  %v115 = vld [vmem:[%s0 + $0x328] sm:$0xff]
  %v116 = vld [vmem:[%s0 + $0x330] sm:$0xff]
  %v117 = vld [vmem:[%s0 + $0x338] sm:$0xff]
  %v118 = vld [vmem:[%s0 + $0x340] sm:$0xff]
  %v119 = vld [vmem:[%s0 + $0x348] sm:$0xff]
  %v120 = vld [vmem:[%s0 + $0x350] sm:$0xff]
  %v121 = vld [vmem:[%s0 + $0x358] sm:$0xff]
  %v122 = vld [vmem:[%s0 + $0x360] sm:$0xff]
  %v123 = vld [vmem:[%s0 + $0x368] sm:$0xff]
  %v124 = vld [vmem:[%s0 + $0x370] sm:$0xff]
  %v125 = vld [vmem:[%s0 + $0x378] sm:$0xff]
  %v126 = vld [vmem:[%s0 + $0x380] sm:$0xff]
  %v127 = vld [vmem:[%s0 + $0x388] sm:$0xff]
  %v128 = vld [vmem:[%s0 + $0x390] sm:$0xff]
  %v129 = vld [vmem:[%s0 + $0x398] sm:$0xff]
  %v130 = vld [vmem:[%s0 + $0x3a0] sm:$0xff]
  %v131 = vld [vmem:[%s0 + $0x3a8] sm:$0xff]
  %v132 = vld [vmem:[%s0 + $0x3b0] sm:$0xff]
  %v133 = vld [vmem:[%s0 + $0x3b8] sm:$0xff]
  %v134 = vld [vmem:[%s0 + $0x3c0] sm:$0xff]
  %v135 = vld [vmem:[%s0 + $0x3c8] sm:$0xff]
  %v136 = vld [vmem:[%s0 + $0x3d0] sm:$0xff]
  %v137 = vld [vmem:[%s0 + $0x3d8] sm:$0xff]
  %v138 = vld [vmem:[%s0 + $0x3e0] sm:$0xff]
  %v139 = vld [vmem:[%s0 + $0x3e8] sm:$0xff]
  %v140 = vld [vmem:[%s0 + $0x3f0] sm:$0xff]
  %v141 = vld [vmem:[%s0 + $0x3f8] sm:$0xff]
  %v142 = vld [vmem:[%s0 + $0x400] sm:$0xff]
  %v143 = vld [vmem:[%s0 + $0x408] sm:$0xff]
  %v144 = vld [vmem:[%s0 + $0x410] sm:$0xff]
  %v145 = vld [vmem:[%s0 + $0x418] sm:$0xff]
  %v146 = vld [vmem:[%s0 + $0x420] sm:$0xff]
  %v147 = vld [vmem:[%s0 + $0x428] sm:$0xff]
  %v148 = vld [vmem:[%s0 + $0x430] sm:$0xff]
  %v149 = vld [vmem:[%s0 + $0x438] sm:$0xff]
  %v150 = vld [vmem:[%s0 + $0x440] sm:$0xff]
  %v151 = vld [vmem:[%s0 + $0x448] sm:$0xff]
  %v152 = vld [vmem:[%s0 + $0x450] sm:$0xff]
  %v153 = vld [vmem:[%s0 + $0x458] sm:$0xff]
  %v154 = vld [vmem:[%s0 + $0x460] sm:$0xff]
  %v155 = vld [vmem:[%s0 + $0x468] sm:$0xff]
  %v156 = vld [vmem:[%s0 + $0x470] sm:$0xff]
  %v157 = vld [vmem:[%s0 + $0x478] sm:$0xff]
  %v158 = vld [vmem:[%s0 + $0x480] sm:$0xff]
  %v159 = vld [vmem:[%s0 + $0x488] sm:$0xff]
  %v160 = vld [vmem:[%s0 + $0x490] sm:$0xff]
  %v161 = vld [vmem:[%s0 + $0x498] sm:$0xff]
  %v162 = vld [vmem:[%s0 + $0x4a0] sm:$0xff]
  %v163 = vld [vmem:[%s0 + $0x4a8] sm:$0xff]
  %v164 = vld [vmem:[%s0 + $0x4b0] sm:$0xff]
  %v165 = vld [vmem:[%s0 + $0x4b8] sm:$0xff]
  %v166 = vld [vmem:[%s0 + $0x4c0] sm:$0xff]
  %v167 = vld [vmem:[%s0 + $0x4c8] sm:$0xff]
  %v168 = vld [vmem:[%s0 + $0x4d0] sm:$0xff]
  %v169 = vld [vmem:[%s0 + $0x4d8] sm:$0xff]
  %v170 = vld [vmem:[%s0 + $0x4e0] sm:$0xff]
  %v171 = vld [vmem:[%s0 + $0x4e8] sm:$0xff]
  %v172 = vld [vmem:[%s0 + $0x4f0] sm:$0xff]
  %v173 = vld [vmem:[%s0 + $0x4f8] sm:$0xff]
  %v174 = vld [vmem:[%s0 + $0x500] sm:$0xff]
  %v175 = vld [vmem:[%s0 + $0x508] sm:$0xff]
  %v176 = vld [vmem:[%s0 + $0x510] sm:$0xff]
  %v177 = vld [vmem:[%s0 + $0x518] sm:$0xff]
  %v178 = vld [vmem:[%s0 + $0x520] sm:$0xff]
  %v179 = vld [vmem:[%s0 + $0x528] sm:$0xff]
  %v180 = vld [vmem:[%s0 + $0x530] sm:$0xff]
  %v181 = vld [vmem:[%s0 + $0x538] sm:$0xff]
  %v182 = vld [vmem:[%s0 + $0x540] sm:$0xff]
  %v183 = vld [vmem:[%s0 + $0x548] sm:$0xff]
  %v184 = vld [vmem:[%s0 + $0x550] sm:$0xff]
  %v185 = vld [vmem:[%s0 + $0x558] sm:$0xff]
  %v186 = vld [vmem:[%s0 + $0x560] sm:$0xff]
  %v187 = vld [vmem:[%s0 + $0x568] sm:$0xff]
  %v188 = vld [vmem:[%s0 + $0x570] sm:$0xff]
  %v189 = vld [vmem:[%s0 + $0x578] sm:$0xff]
  %v190 = vld [vmem:[%s0 + $0x580] sm:$0xff]
  %v191 = vld [vmem:[%s0 + $0x588] sm:$0xff]
  %v192 = vld [vmem:[%s0 + $0x590] sm:$0xff]
  %v193 = vld [vmem:[%s0 + $0x598] sm:$0xff]
  %v194 = vld [vmem:[%s0 + $0x5a0] sm:$0xff]
  %v195 = vld [vmem:[%s0 + $0x5a8] sm:$0xff]
  %v196 = vld [vmem:[%s0 + $0x5b0] sm:$0xff]
  %v197 = vld [vmem:[%s0 + $0x5b8] sm:$0xff]
  %v198 = vld [vmem:[%s0 + $0x5c0] sm:$0xff]
  %v199 = vld [vmem:[%s0 + $0x5c8] sm:$0xff]
  %v200 = vld [vmem:[%s0 + $0x5d0] sm:$0xff]
  %v201 = vld [vmem:[%s0 + $0x5d8] sm:$0xff]
  %v202 = vld [vmem:[%s0 + $0x5e0] sm:$0xff]
  %v203 = vld [vmem:[%s0 + $0x5e8] sm:$0xff]
  %v204 = vld [vmem:[%s0 + $0x5f0] sm:$0xff]
  %v205 = vld [vmem:[%s0 + $0x5f8] sm:$0xff]
  %v206 = vld [vmem:[%s0 + $0x600] sm:$0xff]
  %v207 = vld [vmem:[%s0 + $0x608] sm:$0xff]
  %v208 = vld [vmem:[%s0 + $0x610] sm:$0xff]
  %v209 = vld [vmem:[%s0 + $0x618] sm:$0xff]
  %v210 = vld [vmem:[%s0 + $0x620] sm:$0xff]
  %v211 = vld [vmem:[%s0 + $0x628] sm:$0xff]
  %v212 = vld [vmem:[%s0 + $0x630] sm:$0xff]
  %v213 = vld [vmem:[%s0 + $0x638] sm:$0xff]
  %v214 = vld [vmem:[%s1] sm:$0xff]
  %v215 = vld [vmem:[%s1 + $0x8] sm:$0xff]
  %v216 = vld [vmem:[%s1 + $0x10] sm:$0xff]
  %v217 = vld [vmem:[%s1 + $0x18] sm:$0xff]
  %v218 = vld [vmem:[%s1 + $0x20] sm:$0xff]
  %v219 = vld [vmem:[%s1 + $0x28] sm:$0xff]
  %v220 = vld [vmem:[%s1 + $0x30] sm:$0xff]
  %v221 = vld [vmem:[%s1 + $0x38] sm:$0xff]
  %v222 = vld [vmem:[%s1 + $0x40] sm:$0xff]
  %v223 = vld [vmem:[%s1 + $0x48] sm:$0xff]
  %v224 = vld [vmem:[%s1 + $0x50] sm:$0xff]
  %v225 = vld [vmem:[%s1 + $0x58] sm:$0xff]
  %v226 = vld [vmem:[%s1 + $0x60] sm:$0xff]
  %v227 = vld [vmem:[%s1 + $0x68] sm:$0xff]
  %v228 = vld [vmem:[%s1 + $0x70] sm:$0xff]
  %v229 = vld [vmem:[%s1 + $0x78] sm:$0xff]
  %v230 = vld [vmem:[%s1 + $0x80] sm:$0xff]
  %v231 = vld [vmem:[%s1 + $0x88] sm:$0xff]
  %v232 = vld [vmem:[%s1 + $0x90] sm:$0xff]
  %v233 = vld [vmem:[%s1 + $0x98] sm:$0xff]
  %v234 = vld [vmem:[%s1 + $0xa0] sm:$0xff]
  %v235 = vld [vmem:[%s1 + $0xa8] sm:$0xff]
  %v236 = vld [vmem:[%s1 + $0xb0] sm:$0xff]
  %v237 = vld [vmem:[%s1 + $0xb8] sm:$0xff]
  %v238 = vld [vmem:[%s1 + $0xc0] sm:$0xff]
  %v239 = vld [vmem:[%s1 + $0xc8] sm:$0xff]
  %v240 = vld [vmem:[%s1 + $0xd0] sm:$0xff]
  %v241 = vld [vmem:[%s1 + $0xd8] sm:$0xff]
  %v242 = vld [vmem:[%s1 + $0xe0] sm:$0xff]
  %v243 = vld [vmem:[%s1 + $0xe8] sm:$0xff]
  %v244 = vld [vmem:[%s1 + $0xf0] sm:$0xff]
  %v245 = vld [vmem:[%s1 + $0xf8] sm:$0xff]
  %v246 = vld [vmem:[%s2] sm:$0x1]
  %v248 = vlaneseq
  %v249 = vshrl.u32 %v248, 7
  %v250 = vsub.s32 0, %v249
  %v251 = vrot.slane %v246, %v250
  %253 = vmatprep.subr.mxu0 0.0
  %254 = vmatpush1.msra.mxu0 %v214
  %255 = vmatprep.subr.mxu0 0.0
  %256 = vmatpush1.msra.mxu0 %v215
  %257 = vmatprep.subr.mxu0 0.0
  %258 = vmatpush1.msra.mxu0 %v216
  %259 = vmatprep.subr.mxu0 0.0
  %260 = vmatpush1.msra.mxu0 %v217
  %261 = vmatprep.subr.mxu0 0.0
  %262 = vmatpush1.msra.mxu0 %v218
  %263 = vmatprep.subr.mxu0 0.0
  %264 = vmatpush1.msra.mxu0 %v219
  %265 = vmatprep.subr.mxu0 0.0
  %266 = vmatpush1.msra.mxu0 %v220
  %267 = vmatprep.subr.mxu0 0.0
  %268 = vmatpush1.msra.mxu0 %v221
  %269 = vmatprep.subr.mxu0 0.0
  %270 = vmatpush1.msra.mxu0 %v222
  %271 = vmatprep.subr.mxu0 0.0
  %272 = vmatpush1.msra.mxu0 %v223
  %273 = vmatprep.subr.mxu0 0.0
  %274 = vmatpush1.msra.mxu0 %v224
  %275 = vmatprep.subr.mxu0 0.0
  %276 = vmatpush1.msra.mxu0 %v225
  %277 = vmatprep.subr.mxu0 0.0
  %278 = vmatpush1.msra.mxu0 %v226
  %279 = vmatprep.subr.mxu0 0.0
  %280 = vmatpush1.msra.mxu0 %v227
  %281 = vmatprep.subr.mxu0 0.0
  %282 = vmatpush1.msra.mxu0 %v228
  %283 = vmatprep.subr.mxu0 0.0
  %284 = vmatpush1.msra.mxu0 %v229
  %285 = vmatprep.subr.mxu0 0.0
  %286 = vmatpush1.msra.mxu0 %v230
  %287 = vmatprep.subr.mxu0 0.0
  %288 = vmatpush1.msra.mxu0 %v231
  %289 = vmatprep.subr.mxu0 0.0
  %290 = vmatpush1.msra.mxu0 %v232
  %291 = vmatprep.subr.mxu0 0.0
  %292 = vmatpush1.msra.mxu0 %v233
  %293 = vmatprep.subr.mxu0 0.0
  %294 = vmatpush1.msra.mxu0 %v234
  %295 = vmatprep.subr.mxu0 0.0
  %296 = vmatpush1.msra.mxu0 %v235
  %297 = vmatprep.subr.mxu0 0.0
  %298 = vmatpush1.msra.mxu0 %v236
  %299 = vmatprep.subr.mxu0 0.0
  %300 = vmatpush1.msra.mxu0 %v237
  %301 = vmatprep.subr.mxu0 0.0
  %302 = vmatpush1.msra.mxu0 %v238
  %303 = vmatprep.subr.mxu0 0.0
  %304 = vmatpush1.msra.mxu0 %v239
  %305 = vmatprep.subr.mxu0 0.0
  %306 = vmatpush1.msra.mxu0 %v240
  %307 = vmatprep.subr.mxu0 0.0
  %308 = vmatpush1.msra.mxu0 %v241
  %309 = vmatprep.subr.mxu0 0.0
  %310 = vmatpush1.msra.mxu0 %v242
  %311 = vmatprep.subr.mxu0 0.0
  %312 = vmatpush1.msra.mxu0 %v243
  %313 = vmatprep.subr.mxu0 0.0
  %314 = vmatpush1.msra.mxu0 %v244
  %315 = vmatprep.subr.mxu0 0.0
  %316 = vmatpush1.msra.mxu0 %v245
  %317 = vmatprep.mubr.f32.mxu0 %v15
  %318 = vmatmul.mubr.f32.gmra.mrb[0].mxu0 %v14
  %v319 = vpop.f32.mrb[0].mxu0
  %v320 = vadd.f32 %v251, %v319
  %v321 = vpop.f32.mrb[0].mxu0
  %322 = vmatprep.mubr.f32.mxu0 %v17
  %323 = vmatmul.mubr.f32.gmra.mrb[0].mxu0 %v16
  %v324 = vpop.f32.mrb[0].mxu0
  %v325 = vadd.f32 %v251, %v324
  %v326 = vpop.f32.mrb[0].mxu0
  %327 = vmatprep.mubr.f32.mxu0 %v19
  %328 = vmatmul.mubr.f32.gmra.mrb[0].mxu0 %v18
  %v329 = vpop.f32.mrb[0].mxu0
  %v330 = vadd.f32 %v251, %v329
  %v331 = vpop.f32.mrb[0].mxu0
  %332 = vmatprep.mubr.f32.mxu0 %v21
  %333 = vmatmul.mubr.f32.gmra.mrb[0].mxu0 %v20
  %v334 = vpop.f32.mrb[0].mxu0
  %v335 = vadd.f32 %v251, %v334
  %v336 = vpop.f32.mrb[0].mxu0
  %337 = vmatprep.mubr.f32.mxu0 %v23
  %338 = vmatmul.mubr.f32.gmra.mrb[0].mxu0 %v22
  %v339 = vpop.f32.mrb[0].mxu0
  %v340 = vadd.f32 %v251, %v339
  %v341 = vpop.f32.mrb[0].mxu0
  %342 = vmatprep.mubr.f32.mxu0 %v25
  %343 = vmatmul.mubr.f32.gmra.mrb[0].mxu0 %v24
  %v344 = vpop.f32.mrb[0].mxu0
  %v345 = vadd.f32 %v251, %v344
  %v346 = vpop.f32.mrb[0].mxu0
  %347 = vmatprep.mubr.f32.mxu0 %v27
  %348 = vmatmul.mubr.f32.gmra.mrb[0].mxu0 %v26
  %v349 = vpop.f32.mrb[0].mxu0
  %v350 = vadd.f32 %v251, %v349
  %v351 = vpop.f32.mrb[0].mxu0
  %352 = vmatprep.mubr.f32.mxu0 %v29
  %353 = vmatmul.mubr.f32.gmra.mrb[0].mxu0 %v28
  %v354 = vpop.f32.mrb[0].mxu0
  %v355 = vadd.f32 %v251, %v354
  %v356 = vpop.f32.mrb[0].mxu0
  %357 = vmatprep.mubr.f32.mxu0 %v31
  %358 = vmatmul.mubr.f32.gmra.mrb[0].mxu0 %v30
  %v359 = vpop.f32.mrb[0].mxu0
  %v360 = vadd.f32 %v251, %v359
  %v361 = vpop.f32.mrb[0].mxu0
  %362 = vmatprep.mubr.f32.mxu0 %v33
  %363 = vmatmul.mubr.f32.gmra.mrb[0].mxu0 %v32
  %v364 = vpop.f32.mrb[0].mxu0
  %v365 = vadd.f32 %v251, %v364
  %v366 = vpop.f32.mrb[0].mxu0
  %367 = vmatprep.mubr.f32.mxu0 %v35
  %368 = vmatmul.mubr.f32.gmra.mrb[0].mxu0 %v34
  %v369 = vpop.f32.mrb[0].mxu0
  %v370 = vadd.f32 %v251, %v369
  %v371 = vpop.f32.mrb[0].mxu0
  %372 = vmatprep.mubr.f32.mxu0 %v37
  %373 = vmatmul.mubr.f32.gmra.mrb[0].mxu0 %v36
  %v374 = vpop.f32.mrb[0].mxu0
  %v375 = vadd.f32 %v251, %v374
  %v376 = vpop.f32.mrb[0].mxu0
  %377 = vmatprep.mubr.f32.mxu0 %v39
  %378 = vmatmul.mubr.f32.gmra.mrb[0].mxu0 %v38
  %v379 = vpop.f32.mrb[0].mxu0
  %v380 = vadd.f32 %v251, %v379
  %v381 = vpop.f32.mrb[0].mxu0
  %382 = vmatprep.mubr.f32.mxu0 %v41
  %383 = vmatmul.mubr.f32.gmra.mrb[0].mxu0 %v40
  %v384 = vpop.f32.mrb[0].mxu0
  %v385 = vadd.f32 %v251, %v384
  %v386 = vpop.f32.mrb[0].mxu0
  %387 = vmatprep.mubr.f32.mxu0 %v43
  %388 = vmatmul.mubr.f32.gmra.mrb[0].mxu0 %v42
  %v389 = vpop.f32.mrb[0].mxu0
  %v390 = vadd.f32 %v251, %v389
  %v391 = vpop.f32.mrb[0].mxu0
  %392 = vmatprep.mubr.f32.mxu0 %v45
  %393 = vmatmul.mubr.f32.gmra.mrb[0].mxu0 %v44
  %v394 = vpop.f32.mrb[0].mxu0
  %v395 = vadd.f32 %v251, %v394
  %v396 = vpop.f32.mrb[0].mxu0
  %397 = vmatprep.mubr.f32.mxu0 %v47
  %398 = vmatmul.mubr.f32.gmra.mrb[0].mxu0 %v46
  %v399 = vpop.f32.mrb[0].mxu0
  %v400 = vadd.f32 %v251, %v399
  %v401 = vpop.f32.mrb[0].mxu0
  %402 = vmatprep.mubr.f32.mxu0 %v49
  %403 = vmatmul.mubr.f32.gmra.mrb[0].mxu0 %v48
  %v404 = vpop.f32.mrb[0].mxu0
  %v405 = vadd.f32 %v251, %v404
  %v406 = vpop.f32.mrb[0].mxu0
  %407 = vmatprep.mubr.f32.mxu0 %v51
  %408 = vmatmul.mubr.f32.gmra.mrb[0].mxu0 %v50
  %v409 = vpop.f32.mrb[0].mxu0
  %v410 = vadd.f32 %v251, %v409
  %v411 = vpop.f32.mrb[0].mxu0
  %412 = vmatprep.mubr.f32.mxu0 %v53
  %413 = vmatmul.mubr.f32.gmra.mrb[0].mxu0 %v52
  %v414 = vpop.f32.mrb[0].mxu0
  %v415 = vadd.f32 %v251, %v414
  %v416 = vpop.f32.mrb[0].mxu0
  %417 = vmatprep.mubr.f32.mxu0 %v55
  %418 = vmatmul.mubr.f32.gmra.mrb[0].mxu0 %v54
  %v419 = vpop.f32.mrb[0].mxu0
  %v420 = vadd.f32 %v251, %v419
  %v421 = vpop.f32.mrb[0].mxu0
  %422 = vmatprep.mubr.f32.mxu0 %v57
  %423 = vmatmul.mubr.f32.gmra.mrb[0].mxu0 %v56
  %v424 = vpop.f32.mrb[0].mxu0
  %v425 = vadd.f32 %v251, %v424
  %v426 = vpop.f32.mrb[0].mxu0
  %427 = vmatprep.mubr.f32.mxu0 %v59
  %428 = vmatmul.mubr.f32.gmra.mrb[0].mxu0 %v58
  %v429 = vpop.f32.mrb[0].mxu0
  %v430 = vadd.f32 %v251, %v429
  %v431 = vpop.f32.mrb[0].mxu0
  %432 = vmatprep.mubr.f32.mxu0 %v61
  %433 = vmatmul.mubr.f32.gmra.mrb[0].mxu0 %v60
  %v434 = vpop.f32.mrb[0].mxu0
  %v435 = vadd.f32 %v251, %v434
  %v436 = vpop.f32.mrb[0].mxu0
  %437 = vmatprep.mubr.f32.mxu0 %v63
  %438 = vmatmul.mubr.f32.gmra.mrb[0].mxu0 %v62
  %v439 = vpop.f32.mrb[0].mxu0
  %v440 = vadd.f32 %v251, %v439
  %v441 = vpop.f32.mrb[0].mxu0
  %442 = vmatprep.mubr.f32.mxu0 %v65
  %443 = vmatmul.mubr.f32.gmra.mrb[0].mxu0 %v64
  %v444 = vpop.f32.mrb[0].mxu0
  %v445 = vadd.f32 %v251, %v444
  %v446 = vpop.f32.mrb[0].mxu0
  %447 = vmatprep.mubr.f32.mxu0 %v67
  %448 = vmatmul.mubr.f32.gmra.mrb[0].mxu0 %v66
  %v449 = vpop.f32.mrb[0].mxu0
  %v450 = vadd.f32 %v251, %v449
  %v451 = vpop.f32.mrb[0].mxu0
  %452 = vmatprep.mubr.f32.mxu0 %v69
  %453 = vmatmul.mubr.f32.gmra.mrb[0].mxu0 %v68
  %v454 = vpop.f32.mrb[0].mxu0
  %v455 = vadd.f32 %v251, %v454
  %v456 = vpop.f32.mrb[0].mxu0
  %457 = vmatprep.mubr.f32.mxu0 %v71
  %458 = vmatmul.mubr.f32.gmra.mrb[0].mxu0 %v70
  %v459 = vpop.f32.mrb[0].mxu0
  %v460 = vadd.f32 %v251, %v459
  %v461 = vpop.f32.mrb[0].mxu0
  %462 = vmatprep.mubr.f32.mxu0 %v73
  %463 = vmatmul.mubr.f32.gmra.mrb[0].mxu0 %v72
  %v464 = vpop.f32.mrb[0].mxu0
  %v465 = vadd.f32 %v251, %v464
  %v466 = vpop.f32.mrb[0].mxu0
  %467 = vmatprep.mubr.f32.mxu0 %v75
  %468 = vmatmul.mubr.f32.gmra.mrb[0].mxu0 %v74
  %v469 = vpop.f32.mrb[0].mxu0
  %v470 = vadd.f32 %v251, %v469
  %v471 = vpop.f32.mrb[0].mxu0
  %472 = vmatprep.mubr.f32.mxu0 %v77
  %473 = vmatmul.mubr.f32.gmra.mrb[0].mxu0 %v76
  %v474 = vpop.f32.mrb[0].mxu0
  %v475 = vadd.f32 %v251, %v474
  %v476 = vpop.f32.mrb[0].mxu0
  %477 = vmatprep.mubr.f32.mxu0 %v79
  %478 = vmatmul.mubr.f32.gmra.mrb[0].mxu0 %v78
  %v479 = vpop.f32.mrb[0].mxu0
  %v480 = vadd.f32 %v251, %v479
  %v481 = vpop.f32.mrb[0].mxu0
  %482 = vmatprep.mubr.f32.mxu0 %v81
  %483 = vmatmul.mubr.f32.gmra.mrb[0].mxu0 %v80
  %v484 = vpop.f32.mrb[0].mxu0
  %v485 = vadd.f32 %v251, %v484
  %v486 = vpop.f32.mrb[0].mxu0
  %487 = vmatprep.mubr.f32.mxu0 %v83
  %488 = vmatmul.mubr.f32.gmra.mrb[0].mxu0 %v82
  %v489 = vpop.f32.mrb[0].mxu0
  %v490 = vadd.f32 %v251, %v489
  %v491 = vpop.f32.mrb[0].mxu0
  %492 = vmatprep.mubr.f32.mxu0 %v85
  %493 = vmatmul.mubr.f32.gmra.mrb[0].mxu0 %v84
  %v494 = vpop.f32.mrb[0].mxu0
  %v495 = vadd.f32 %v251, %v494
  %v496 = vpop.f32.mrb[0].mxu0
  %497 = vmatprep.mubr.f32.mxu0 %v87
  %498 = vmatmul.mubr.f32.gmra.mrb[0].mxu0 %v86
  %v499 = vpop.f32.mrb[0].mxu0
  %v500 = vadd.f32 %v251, %v499
  %v501 = vpop.f32.mrb[0].mxu0
  %502 = vmatprep.mubr.f32.mxu0 %v89
  %503 = vmatmul.mubr.f32.gmra.mrb[0].mxu0 %v88
  %v504 = vpop.f32.mrb[0].mxu0
  %v505 = vadd.f32 %v251, %v504
  %v506 = vpop.f32.mrb[0].mxu0
  %507 = vmatprep.mubr.f32.mxu0 %v91
  %508 = vmatmul.mubr.f32.gmra.mrb[0].mxu0 %v90
  %v509 = vpop.f32.mrb[0].mxu0
  %v510 = vadd.f32 %v251, %v509
  %v511 = vpop.f32.mrb[0].mxu0
  %512 = vmatprep.mubr.f32.mxu0 %v93
  %513 = vmatmul.mubr.f32.gmra.mrb[0].mxu0 %v92
  %v514 = vpop.f32.mrb[0].mxu0
  %v515 = vadd.f32 %v251, %v514
  %v516 = vpop.f32.mrb[0].mxu0
  %517 = vmatprep.mubr.f32.mxu0 %v95
  %518 = vmatmul.mubr.f32.gmra.mrb[0].mxu0 %v94
  %v519 = vpop.f32.mrb[0].mxu0
  %v520 = vadd.f32 %v251, %v519
  %v521 = vpop.f32.mrb[0].mxu0
  %522 = vmatprep.mubr.f32.mxu0 %v97
  %523 = vmatmul.mubr.f32.gmra.mrb[0].mxu0 %v96
  %v524 = vpop.f32.mrb[0].mxu0
  %v525 = vadd.f32 %v251, %v524
  %v526 = vpop.f32.mrb[0].mxu0
  %527 = vmatprep.mubr.f32.mxu0 %v99
  %528 = vmatmul.mubr.f32.gmra.mrb[0].mxu0 %v98
  %v529 = vpop.f32.mrb[0].mxu0
  %v530 = vadd.f32 %v251, %v529
  %v531 = vpop.f32.mrb[0].mxu0
  %532 = vmatprep.mubr.f32.mxu0 %v101
  %533 = vmatmul.mubr.f32.gmra.mrb[0].mxu0 %v100
  %v534 = vpop.f32.mrb[0].mxu0
  %v535 = vadd.f32 %v251, %v534
  %v536 = vpop.f32.mrb[0].mxu0
  %537 = vmatprep.mubr.f32.mxu0 %v103
  %538 = vmatmul.mubr.f32.gmra.mrb[0].mxu0 %v102
  %v539 = vpop.f32.mrb[0].mxu0
  %v540 = vadd.f32 %v251, %v539
  %v541 = vpop.f32.mrb[0].mxu0
  %542 = vmatprep.mubr.f32.mxu0 %v105
  %543 = vmatmul.mubr.f32.gmra.mrb[0].mxu0 %v104
  %v544 = vpop.f32.mrb[0].mxu0
  %v545 = vadd.f32 %v251, %v544
  %v546 = vpop.f32.mrb[0].mxu0
  %547 = vmatprep.mubr.f32.mxu0 %v107
  %548 = vmatmul.mubr.f32.gmra.mrb[0].mxu0 %v106
  %v549 = vpop.f32.mrb[0].mxu0
  %v550 = vadd.f32 %v251, %v549
  %v551 = vpop.f32.mrb[0].mxu0
  %552 = vmatprep.mubr.f32.mxu0 %v109
  %553 = vmatmul.mubr.f32.gmra.mrb[0].mxu0 %v108
  %v554 = vpop.f32.mrb[0].mxu0
  %v555 = vadd.f32 %v251, %v554
  %v556 = vpop.f32.mrb[0].mxu0
  %557 = vmatprep.mubr.f32.mxu0 %v111
  %558 = vmatmul.mubr.f32.gmra.mrb[0].mxu0 %v110
  %v559 = vpop.f32.mrb[0].mxu0
  %v560 = vadd.f32 %v251, %v559
  %v561 = vpop.f32.mrb[0].mxu0
  %562 = vmatprep.mubr.f32.mxu0 %v113
  %563 = vmatmul.mubr.f32.gmra.mrb[0].mxu0 %v112
  %v564 = vpop.f32.mrb[0].mxu0
  %v565 = vadd.f32 %v251, %v564
  %v566 = vpop.f32.mrb[0].mxu0
  %567 = vmatprep.mubr.f32.mxu0 %v115
  %568 = vmatmul.mubr.f32.gmra.mrb[0].mxu0 %v114
  %v569 = vpop.f32.mrb[0].mxu0
  %v570 = vadd.f32 %v251, %v569
  %v571 = vpop.f32.mrb[0].mxu0
  %572 = vmatprep.mubr.f32.mxu0 %v117
  %573 = vmatmul.mubr.f32.gmra.mrb[0].mxu0 %v116
  %v574 = vpop.f32.mrb[0].mxu0
  %v575 = vadd.f32 %v251, %v574
  %v576 = vpop.f32.mrb[0].mxu0
  %577 = vmatprep.mubr.f32.mxu0 %v119
  %578 = vmatmul.mubr.f32.gmra.mrb[0].mxu0 %v118
  %v579 = vpop.f32.mrb[0].mxu0
  %v580 = vadd.f32 %v251, %v579
  %v581 = vpop.f32.mrb[0].mxu0
  %582 = vmatprep.mubr.f32.mxu0 %v121
  %583 = vmatmul.mubr.f32.gmra.mrb[0].mxu0 %v120
  %v584 = vpop.f32.mrb[0].mxu0
  %v585 = vadd.f32 %v251, %v584
  %v586 = vpop.f32.mrb[0].mxu0
  %587 = vmatprep.mubr.f32.mxu0 %v123
  %588 = vmatmul.mubr.f32.gmra.mrb[0].mxu0 %v122
  %v589 = vpop.f32.mrb[0].mxu0
  %v590 = vadd.f32 %v251, %v589
  %v591 = vpop.f32.mrb[0].mxu0
  %592 = vmatprep.mubr.f32.mxu0 %v125
  %593 = vmatmul.mubr.f32.gmra.mrb[0].mxu0 %v124
  %v594 = vpop.f32.mrb[0].mxu0
  %v595 = vadd.f32 %v251, %v594
  %v596 = vpop.f32.mrb[0].mxu0
  %597 = vmatprep.mubr.f32.mxu0 %v127
  %598 = vmatmul.mubr.f32.gmra.mrb[0].mxu0 %v126
  %v599 = vpop.f32.mrb[0].mxu0
  %v600 = vadd.f32 %v251, %v599
  %v601 = vpop.f32.mrb[0].mxu0
  %602 = vmatprep.mubr.f32.mxu0 %v129
  %603 = vmatmul.mubr.f32.gmra.mrb[0].mxu0 %v128
  %v604 = vpop.f32.mrb[0].mxu0
  %v605 = vadd.f32 %v251, %v604
  %v606 = vpop.f32.mrb[0].mxu0
  %607 = vmatprep.mubr.f32.mxu0 %v131
  %608 = vmatmul.mubr.f32.gmra.mrb[0].mxu0 %v130
  %v609 = vpop.f32.mrb[0].mxu0
  %v610 = vadd.f32 %v251, %v609
  %v611 = vpop.f32.mrb[0].mxu0
  %612 = vmatprep.mubr.f32.mxu0 %v133
  %613 = vmatmul.mubr.f32.gmra.mrb[0].mxu0 %v132
  %v614 = vpop.f32.mrb[0].mxu0
  %v615 = vadd.f32 %v251, %v614
  %v616 = vpop.f32.mrb[0].mxu0
  %617 = vmatprep.mubr.f32.mxu0 %v135
  %618 = vmatmul.mubr.f32.gmra.mrb[0].mxu0 %v134
  %v619 = vpop.f32.mrb[0].mxu0
  %v620 = vadd.f32 %v251, %v619
  %v621 = vpop.f32.mrb[0].mxu0
  %622 = vmatprep.mubr.f32.mxu0 %v137
  %623 = vmatmul.mubr.f32.gmra.mrb[0].mxu0 %v136
  %v624 = vpop.f32.mrb[0].mxu0
  %v625 = vadd.f32 %v251, %v624
  %v626 = vpop.f32.mrb[0].mxu0
  %627 = vmatprep.mubr.f32.mxu0 %v139
  %628 = vmatmul.mubr.f32.gmra.mrb[0].mxu0 %v138
  %v629 = vpop.f32.mrb[0].mxu0
  %v630 = vadd.f32 %v251, %v629
  %v631 = vpop.f32.mrb[0].mxu0
  %632 = vmatprep.mubr.f32.mxu0 %v141
  %633 = vmatmul.mubr.f32.gmra.mrb[0].mxu0 %v140
  %v634 = vpop.f32.mrb[0].mxu0
  %v635 = vadd.f32 %v251, %v634
  %v636 = vpop.f32.mrb[0].mxu0
  %637 = vmatprep.mubr.f32.mxu0 %v143
  %638 = vmatmul.mubr.f32.gmra.mrb[0].mxu0 %v142
  %v639 = vpop.f32.mrb[0].mxu0
  %v640 = vadd.f32 %v251, %v639
  %v641 = vpop.f32.mrb[0].mxu0
  %642 = vmatprep.mubr.f32.mxu0 %v145
  %643 = vmatmul.mubr.f32.gmra.mrb[0].mxu0 %v144
  %v644 = vpop.f32.mrb[0].mxu0
  %v645 = vadd.f32 %v251, %v644
  %v646 = vpop.f32.mrb[0].mxu0
  %647 = vmatprep.mubr.f32.mxu0 %v147
  %648 = vmatmul.mubr.f32.gmra.mrb[0].mxu0 %v146
  %v649 = vpop.f32.mrb[0].mxu0
  %v650 = vadd.f32 %v251, %v649
  %v651 = vpop.f32.mrb[0].mxu0
  %652 = vmatprep.mubr.f32.mxu0 %v149
  %653 = vmatmul.mubr.f32.gmra.mrb[0].mxu0 %v148
  %v654 = vpop.f32.mrb[0].mxu0
  %v655 = vadd.f32 %v251, %v654
  %v656 = vpop.f32.mrb[0].mxu0
  %657 = vmatprep.mubr.f32.mxu0 %v151
  %658 = vmatmul.mubr.f32.gmra.mrb[0].mxu0 %v150
  %v659 = vpop.f32.mrb[0].mxu0
  %v660 = vadd.f32 %v251, %v659
  %v661 = vpop.f32.mrb[0].mxu0
  %662 = vmatprep.mubr.f32.mxu0 %v153
  %663 = vmatmul.mubr.f32.gmra.mrb[0].mxu0 %v152
  %v664 = vpop.f32.mrb[0].mxu0
  %v665 = vadd.f32 %v251, %v664
  %v666 = vpop.f32.mrb[0].mxu0
  %667 = vmatprep.mubr.f32.mxu0 %v155
  %668 = vmatmul.mubr.f32.gmra.mrb[0].mxu0 %v154
  %v669 = vpop.f32.mrb[0].mxu0
  %v670 = vadd.f32 %v251, %v669
  %v671 = vpop.f32.mrb[0].mxu0
  %672 = vmatprep.mubr.f32.mxu0 %v157
  %673 = vmatmul.mubr.f32.gmra.mrb[0].mxu0 %v156
  %v674 = vpop.f32.mrb[0].mxu0
  %v675 = vadd.f32 %v251, %v674
  %v676 = vpop.f32.mrb[0].mxu0
  %677 = vmatprep.mubr.f32.mxu0 %v159
  %678 = vmatmul.mubr.f32.gmra.mrb[0].mxu0 %v158
  %v679 = vpop.f32.mrb[0].mxu0
  %v680 = vadd.f32 %v251, %v679
  %v681 = vpop.f32.mrb[0].mxu0
  %682 = vmatprep.mubr.f32.mxu0 %v161
  %683 = vmatmul.mubr.f32.gmra.mrb[0].mxu0 %v160
  %v684 = vpop.f32.mrb[0].mxu0
  %v685 = vadd.f32 %v251, %v684
  %v686 = vpop.f32.mrb[0].mxu0
  %687 = vmatprep.mubr.f32.mxu0 %v163
  %688 = vmatmul.mubr.f32.gmra.mrb[0].mxu0 %v162
  %v689 = vpop.f32.mrb[0].mxu0
  %v690 = vadd.f32 %v251, %v689
  %v691 = vpop.f32.mrb[0].mxu0
  %692 = vmatprep.mubr.f32.mxu0 %v165
  %693 = vmatmul.mubr.f32.gmra.mrb[0].mxu0 %v164
  %v694 = vpop.f32.mrb[0].mxu0
  %v695 = vadd.f32 %v251, %v694
  %v696 = vpop.f32.mrb[0].mxu0
  %697 = vmatprep.mubr.f32.mxu0 %v167
  %698 = vmatmul.mubr.f32.gmra.mrb[0].mxu0 %v166
  %v699 = vpop.f32.mrb[0].mxu0
  %v700 = vadd.f32 %v251, %v699
  %v701 = vpop.f32.mrb[0].mxu0
  %702 = vmatprep.mubr.f32.mxu0 %v169
  %703 = vmatmul.mubr.f32.gmra.mrb[0].mxu0 %v168
  %v704 = vpop.f32.mrb[0].mxu0
  %v705 = vadd.f32 %v251, %v704
  %v706 = vpop.f32.mrb[0].mxu0
  %707 = vmatprep.mubr.f32.mxu0 %v171
  %708 = vmatmul.mubr.f32.gmra.mrb[0].mxu0 %v170
  %v709 = vpop.f32.mrb[0].mxu0
  %v710 = vadd.f32 %v251, %v709
  %v711 = vpop.f32.mrb[0].mxu0
  %712 = vmatprep.mubr.f32.mxu0 %v173
  %713 = vmatmul.mubr.f32.gmra.mrb[0].mxu0 %v172
  %v714 = vpop.f32.mrb[0].mxu0
  %v715 = vadd.f32 %v251, %v714
  %v716 = vpop.f32.mrb[0].mxu0
  %717 = vmatprep.mubr.f32.mxu0 %v175
  %718 = vmatmul.mubr.f32.gmra.mrb[0].mxu0 %v174
  %v719 = vpop.f32.mrb[0].mxu0
  %v720 = vadd.f32 %v251, %v719
  %v721 = vpop.f32.mrb[0].mxu0
  %722 = vmatprep.mubr.f32.mxu0 %v177
  %723 = vmatmul.mubr.f32.gmra.mrb[0].mxu0 %v176
  %v724 = vpop.f32.mrb[0].mxu0
  %v725 = vadd.f32 %v251, %v724
  %v726 = vpop.f32.mrb[0].mxu0
  %727 = vmatprep.mubr.f32.mxu0 %v179
  %728 = vmatmul.mubr.f32.gmra.mrb[0].mxu0 %v178
  %v729 = vpop.f32.mrb[0].mxu0
  %v730 = vadd.f32 %v251, %v729
  %v731 = vpop.f32.mrb[0].mxu0
  %732 = vmatprep.mubr.f32.mxu0 %v181
  %733 = vmatmul.mubr.f32.gmra.mrb[0].mxu0 %v180
  %v734 = vpop.f32.mrb[0].mxu0
  %v735 = vadd.f32 %v251, %v734
  %v736 = vpop.f32.mrb[0].mxu0
  %737 = vmatprep.mubr.f32.mxu0 %v183
  %738 = vmatmul.mubr.f32.gmra.mrb[0].mxu0 %v182
  %v739 = vpop.f32.mrb[0].mxu0
  %v740 = vadd.f32 %v251, %v739
  %v741 = vpop.f32.mrb[0].mxu0
  %742 = vmatprep.mubr.f32.mxu0 %v185
  %743 = vmatmul.mubr.f32.gmra.mrb[0].mxu0 %v184
  %v744 = vpop.f32.mrb[0].mxu0
  %v745 = vadd.f32 %v251, %v744
  %v746 = vpop.f32.mrb[0].mxu0
  %747 = vmatprep.mubr.f32.mxu0 %v187
  %748 = vmatmul.mubr.f32.gmra.mrb[0].mxu0 %v186
  %v749 = vpop.f32.mrb[0].mxu0
  %v750 = vadd.f32 %v251, %v749
  %v751 = vpop.f32.mrb[0].mxu0
  %752 = vmatprep.mubr.f32.mxu0 %v189
  %753 = vmatmul.mubr.f32.gmra.mrb[0].mxu0 %v188
  %v754 = vpop.f32.mrb[0].mxu0
  %v755 = vadd.f32 %v251, %v754
  %v756 = vpop.f32.mrb[0].mxu0
  %757 = vmatprep.mubr.f32.mxu0 %v191
  %758 = vmatmul.mubr.f32.gmra.mrb[0].mxu0 %v190
  %v759 = vpop.f32.mrb[0].mxu0
  %v760 = vadd.f32 %v251, %v759
  %v761 = vpop.f32.mrb[0].mxu0
  %762 = vmatprep.mubr.f32.mxu0 %v193
  %763 = vmatmul.mubr.f32.gmra.mrb[0].mxu0 %v192
  %v764 = vpop.f32.mrb[0].mxu0
  %v765 = vadd.f32 %v251, %v764
  %v766 = vpop.f32.mrb[0].mxu0
  %767 = vmatprep.mubr.f32.mxu0 %v195
  %768 = vmatmul.mubr.f32.gmra.mrb[0].mxu0 %v194
  %v769 = vpop.f32.mrb[0].mxu0
  %v770 = vadd.f32 %v251, %v769
  %v771 = vpop.f32.mrb[0].mxu0
  %772 = vmatprep.mubr.f32.mxu0 %v197
  %773 = vmatmul.mubr.f32.gmra.mrb[0].mxu0 %v196
  %v774 = vpop.f32.mrb[0].mxu0
  %v775 = vadd.f32 %v251, %v774
  %v776 = vpop.f32.mrb[0].mxu0
  %777 = vmatprep.mubr.f32.mxu0 %v199
  %778 = vmatmul.mubr.f32.gmra.mrb[0].mxu0 %v198
  %v779 = vpop.f32.mrb[0].mxu0
  %v780 = vadd.f32 %v251, %v779
  %v781 = vpop.f32.mrb[0].mxu0
  %782 = vmatprep.mubr.f32.mxu0 %v201
  %783 = vmatmul.mubr.f32.gmra.mrb[0].mxu0 %v200
  %v784 = vpop.f32.mrb[0].mxu0
  %v785 = vadd.f32 %v251, %v784
  %v786 = vpop.f32.mrb[0].mxu0
  %787 = vmatprep.mubr.f32.mxu0 %v203
  %788 = vmatmul.mubr.f32.gmra.mrb[0].mxu0 %v202
  %v789 = vpop.f32.mrb[0].mxu0
  %v790 = vadd.f32 %v251, %v789
  %v791 = vpop.f32.mrb[0].mxu0
  %792 = vmatprep.mubr.f32.mxu0 %v205
  %793 = vmatmul.mubr.f32.gmra.mrb[0].mxu0 %v204
  %v794 = vpop.f32.mrb[0].mxu0
  %v795 = vadd.f32 %v251, %v794
  %v796 = vpop.f32.mrb[0].mxu0
  %797 = vmatprep.mubr.f32.mxu0 %v207
  %798 = vmatmul.mubr.f32.gmra.mrb[0].mxu0 %v206
  %v799 = vpop.f32.mrb[0].mxu0
  %v800 = vadd.f32 %v251, %v799
  %v801 = vpop.f32.mrb[0].mxu0
  %802 = vmatprep.mubr.f32.mxu0 %v209
  %803 = vmatmul.mubr.f32.gmra.mrb[0].mxu0 %v208
  %v804 = vpop.f32.mrb[0].mxu0
  %v805 = vadd.f32 %v251, %v804
  %v806 = vpop.f32.mrb[0].mxu0
  %807 = vmatprep.mubr.f32.mxu0 %v211
  %808 = vmatmul.mubr.f32.gmra.mrb[0].mxu0 %v210
  %v809 = vpop.f32.mrb[0].mxu0
  %v810 = vadd.f32 %v251, %v809
  %v811 = vpop.f32.mrb[0].mxu0
  %812 = vmatprep.mubr.f32.mxu0 %v213
  %813 = vmatmul.mubr.f32.gmra.mrb[0].mxu0 %v212
  %v814 = vpop.f32.mrb[0].mxu0
  %v815 = vadd.f32 %v251, %v814
  %v816 = vpop.f32.mrb[0].mxu0
  %817 = vdwg.mxu0
  %v818 = vmax.f32 %v320, 0.0
  %v819 = vmax.f32 %v325, 0.0
  %v820 = vmax.f32 %v330, 0.0
  %v821 = vmax.f32 %v335, 0.0
  %v822 = vmax.f32 %v340, 0.0
  %v823 = vmax.f32 %v345, 0.0
  %v824 = vmax.f32 %v350, 0.0
  %v825 = vmax.f32 %v355, 0.0
  %v826 = vmax.f32 %v360, 0.0
  %v827 = vmax.f32 %v365, 0.0
  %v828 = vmax.f32 %v370, 0.0
  %v829 = vmax.f32 %v375, 0.0
  %v830 = vmax.f32 %v380, 0.0
  %v831 = vmax.f32 %v385, 0.0
  %v832 = vmax.f32 %v390, 0.0
  %v833 = vmax.f32 %v395, 0.0
  %v834 = vmax.f32 %v400, 0.0
  %v835 = vmax.f32 %v405, 0.0
  %v836 = vmax.f32 %v410, 0.0
  %v837 = vmax.f32 %v415, 0.0
  %v838 = vmax.f32 %v420, 0.0
  %v839 = vmax.f32 %v425, 0.0
  %v840 = vmax.f32 %v430, 0.0
  %v841 = vmax.f32 %v435, 0.0
  %v842 = vmax.f32 %v440, 0.0
  %v843 = vmax.f32 %v445, 0.0
  %v844 = vmax.f32 %v450, 0.0
  %v845 = vmax.f32 %v455, 0.0
  %v846 = vmax.f32 %v460, 0.0
  %v847 = vmax.f32 %v465, 0.0
  %v848 = vmax.f32 %v470, 0.0
  %v849 = vmax.f32 %v475, 0.0
  %v850 = vmax.f32 %v480, 0.0
  %v851 = vmax.f32 %v485, 0.0
  %v852 = vmax.f32 %v490, 0.0
  %v853 = vmax.f32 %v495, 0.0
  %v854 = vmax.f32 %v500, 0.0
  %v855 = vmax.f32 %v505, 0.0
  %v856 = vmax.f32 %v510, 0.0
  %v857 = vmax.f32 %v515, 0.0
  %v858 = vmax.f32 %v520, 0.0
  %v859 = vmax.f32 %v525, 0.0
  %v860 = vmax.f32 %v530, 0.0
  %v861 = vmax.f32 %v535, 0.0
  %v862 = vmax.f32 %v540, 0.0
  %v863 = vmax.f32 %v545, 0.0
  %v864 = vmax.f32 %v550, 0.0
  %v865 = vmax.f32 %v555, 0.0
  %v866 = vmax.f32 %v560, 0.0
  %v867 = vmax.f32 %v565, 0.0
  %v868 = vmax.f32 %v570, 0.0
  %v869 = vmax.f32 %v575, 0.0
  %v870 = vmax.f32 %v580, 0.0
  %v871 = vmax.f32 %v585, 0.0
  %v872 = vmax.f32 %v590, 0.0
  %v873 = vmax.f32 %v595, 0.0
  %v874 = vmax.f32 %v600, 0.0
  %v875 = vmax.f32 %v605, 0.0
  %v876 = vmax.f32 %v610, 0.0
  %v877 = vmax.f32 %v615, 0.0
  %v878 = vmax.f32 %v620, 0.0
  %v879 = vmax.f32 %v625, 0.0
  %v880 = vmax.f32 %v630, 0.0
  %v881 = vmax.f32 %v635, 0.0
  %v882 = vmax.f32 %v640, 0.0
  %v883 = vmax.f32 %v645, 0.0
  %v884 = vmax.f32 %v650, 0.0
  %v885 = vmax.f32 %v655, 0.0
  %v886 = vmax.f32 %v660, 0.0
  %v887 = vmax.f32 %v665, 0.0
  %v888 = vmax.f32 %v670, 0.0
  %v889 = vmax.f32 %v675, 0.0
  %v890 = vmax.f32 %v680, 0.0
  %v891 = vmax.f32 %v685, 0.0
  %v892 = vmax.f32 %v690, 0.0
  %v893 = vmax.f32 %v695, 0.0
  %v894 = vmax.f32 %v700, 0.0
  %v895 = vmax.f32 %v705, 0.0
  %v896 = vmax.f32 %v710, 0.0
  %v897 = vmax.f32 %v715, 0.0
  %v898 = vmax.f32 %v720, 0.0
  %v899 = vmax.f32 %v725, 0.0
  %v900 = vmax.f32 %v730, 0.0
  %v901 = vmax.f32 %v735, 0.0
  %v902 = vmax.f32 %v740, 0.0
  %v903 = vmax.f32 %v745, 0.0
  %v904 = vmax.f32 %v750, 0.0
  %v905 = vmax.f32 %v755, 0.0
  %v906 = vmax.f32 %v760, 0.0
  %v907 = vmax.f32 %v765, 0.0
  %v908 = vmax.f32 %v770, 0.0
  %v909 = vmax.f32 %v775, 0.0
  %v910 = vmax.f32 %v780, 0.0
  %v911 = vmax.f32 %v785, 0.0
  %v912 = vmax.f32 %v790, 0.0
  %v913 = vmax.f32 %v795, 0.0
  %v914 = vmax.f32 %v800, 0.0
  %v915 = vmax.f32 %v805, 0.0
  %v916 = vmax.f32 %v810, 0.0
  %v917 = vmax.f32 %v815, 0.0
  %vm918 = vcmask 130048
  %919 = vst.msk [vmem:[%s3] sm:$0xff] %vm918, %v818
  %920 = vst.msk [vmem:[%s3 + $0x8] sm:$0xff] %vm918, %v819
  %921 = vst.msk [vmem:[%s3 + $0x10] sm:$0xff] %vm918, %v820
  %922 = vst.msk [vmem:[%s3 + $0x18] sm:$0xff] %vm918, %v821
  %923 = vst.msk [vmem:[%s3 + $0x20] sm:$0xff] %vm918, %v822
  %924 = vst.msk [vmem:[%s3 + $0x28] sm:$0xff] %vm918, %v823
  %925 = vst.msk [vmem:[%s3 + $0x30] sm:$0xff] %vm918, %v824
  %926 = vst.msk [vmem:[%s3 + $0x38] sm:$0xff] %vm918, %v825
  %927 = vst.msk [vmem:[%s3 + $0x40] sm:$0xff] %vm918, %v826
  %928 = vst.msk [vmem:[%s3 + $0x48] sm:$0xff] %vm918, %v827
  %929 = vst.msk [vmem:[%s3 + $0x50] sm:$0xff] %vm918, %v828
  %930 = vst.msk [vmem:[%s3 + $0x58] sm:$0xff] %vm918, %v829
  %931 = vst.msk [vmem:[%s3 + $0x60] sm:$0xff] %vm918, %v830
  %932 = vst.msk [vmem:[%s3 + $0x68] sm:$0xff] %vm918, %v831
  %933 = vst.msk [vmem:[%s3 + $0x70] sm:$0xff] %vm918, %v832
  %934 = vst.msk [vmem:[%s3 + $0x78] sm:$0xff] %vm918, %v833
  %935 = vst.msk [vmem:[%s3 + $0x80] sm:$0xff] %vm918, %v834
  %936 = vst.msk [vmem:[%s3 + $0x88] sm:$0xff] %vm918, %v835
  %937 = vst.msk [vmem:[%s3 + $0x90] sm:$0xff] %vm918, %v836
  %938 = vst.msk [vmem:[%s3 + $0x98] sm:$0xff] %vm918, %v837
  %939 = vst.msk [vmem:[%s3 + $0xa0] sm:$0xff] %vm918, %v838
  %940 = vst.msk [vmem:[%s3 + $0xa8] sm:$0xff] %vm918, %v839
  %941 = vst.msk [vmem:[%s3 + $0xb0] sm:$0xff] %vm918, %v840
  %942 = vst.msk [vmem:[%s3 + $0xb8] sm:$0xff] %vm918, %v841
  %943 = vst.msk [vmem:[%s3 + $0xc0] sm:$0xff] %vm918, %v842
  %944 = vst.msk [vmem:[%s3 + $0xc8] sm:$0xff] %vm918, %v843
  %945 = vst.msk [vmem:[%s3 + $0xd0] sm:$0xff] %vm918, %v844
  %946 = vst.msk [vmem:[%s3 + $0xd8] sm:$0xff] %vm918, %v845
  %947 = vst.msk [vmem:[%s3 + $0xe0] sm:$0xff] %vm918, %v846
  %948 = vst.msk [vmem:[%s3 + $0xe8] sm:$0xff] %vm918, %v847
  %949 = vst.msk [vmem:[%s3 + $0xf0] sm:$0xff] %vm918, %v848
  %950 = vst.msk [vmem:[%s3 + $0xf8] sm:$0xff] %vm918, %v849
  %951 = vst.msk [vmem:[%s3 + $0x100] sm:$0xff] %vm918, %v850
  %952 = vst.msk [vmem:[%s3 + $0x108] sm:$0xff] %vm918, %v851
  %953 = vst.msk [vmem:[%s3 + $0x110] sm:$0xff] %vm918, %v852
  %954 = vst.msk [vmem:[%s3 + $0x118] sm:$0xff] %vm918, %v853
  %955 = vst.msk [vmem:[%s3 + $0x120] sm:$0xff] %vm918, %v854
  %956 = vst.msk [vmem:[%s3 + $0x128] sm:$0xff] %vm918, %v855
  %957 = vst.msk [vmem:[%s3 + $0x130] sm:$0xff] %vm918, %v856
  %958 = vst.msk [vmem:[%s3 + $0x138] sm:$0xff] %vm918, %v857
  %959 = vst.msk [vmem:[%s3 + $0x140] sm:$0xff] %vm918, %v858
  %960 = vst.msk [vmem:[%s3 + $0x148] sm:$0xff] %vm918, %v859
  %961 = vst.msk [vmem:[%s3 + $0x150] sm:$0xff] %vm918, %v860
  %962 = vst.msk [vmem:[%s3 + $0x158] sm:$0xff] %vm918, %v861
  %963 = vst.msk [vmem:[%s3 + $0x160] sm:$0xff] %vm918, %v862
  %964 = vst.msk [vmem:[%s3 + $0x168] sm:$0xff] %vm918, %v863
  %965 = vst.msk [vmem:[%s3 + $0x170] sm:$0xff] %vm918, %v864
  %966 = vst.msk [vmem:[%s3 + $0x178] sm:$0xff] %vm918, %v865
  %967 = vst.msk [vmem:[%s3 + $0x180] sm:$0xff] %vm918, %v866
  %968 = vst.msk [vmem:[%s3 + $0x188] sm:$0xff] %vm918, %v867
  %969 = vst.msk [vmem:[%s3 + $0x190] sm:$0xff] %vm918, %v868
  %970 = vst.msk [vmem:[%s3 + $0x198] sm:$0xff] %vm918, %v869
  %971 = vst.msk [vmem:[%s3 + $0x1a0] sm:$0xff] %vm918, %v870
  %972 = vst.msk [vmem:[%s3 + $0x1a8] sm:$0xff] %vm918, %v871
  %973 = vst.msk [vmem:[%s3 + $0x1b0] sm:$0xff] %vm918, %v872
  %974 = vst.msk [vmem:[%s3 + $0x1b8] sm:$0xff] %vm918, %v873
  %975 = vst.msk [vmem:[%s3 + $0x1c0] sm:$0xff] %vm918, %v874
  %976 = vst.msk [vmem:[%s3 + $0x1c8] sm:$0xff] %vm918, %v875
  %977 = vst.msk [vmem:[%s3 + $0x1d0] sm:$0xff] %vm918, %v876
  %978 = vst.msk [vmem:[%s3 + $0x1d8] sm:$0xff] %vm918, %v877
  %979 = vst.msk [vmem:[%s3 + $0x1e0] sm:$0xff] %vm918, %v878
  %980 = vst.msk [vmem:[%s3 + $0x1e8] sm:$0xff] %vm918, %v879
  %981 = vst.msk [vmem:[%s3 + $0x1f0] sm:$0xff] %vm918, %v880
  %982 = vst.msk [vmem:[%s3 + $0x1f8] sm:$0xff] %vm918, %v881
  %983 = vst.msk [vmem:[%s3 + $0x200] sm:$0xff] %vm918, %v882
  %984 = vst.msk [vmem:[%s3 + $0x208] sm:$0xff] %vm918, %v883
  %985 = vst.msk [vmem:[%s3 + $0x210] sm:$0xff] %vm918, %v884
  %986 = vst.msk [vmem:[%s3 + $0x218] sm:$0xff] %vm918, %v885
  %987 = vst.msk [vmem:[%s3 + $0x220] sm:$0xff] %vm918, %v886
  %988 = vst.msk [vmem:[%s3 + $0x228] sm:$0xff] %vm918, %v887
  %989 = vst.msk [vmem:[%s3 + $0x230] sm:$0xff] %vm918, %v888
  %990 = vst.msk [vmem:[%s3 + $0x238] sm:$0xff] %vm918, %v889
  %991 = vst.msk [vmem:[%s3 + $0x240] sm:$0xff] %vm918, %v890
  %992 = vst.msk [vmem:[%s3 + $0x248] sm:$0xff] %vm918, %v891
  %993 = vst.msk [vmem:[%s3 + $0x250] sm:$0xff] %vm918, %v892
  %994 = vst.msk [vmem:[%s3 + $0x258] sm:$0xff] %vm918, %v893
  %995 = vst.msk [vmem:[%s3 + $0x260] sm:$0xff] %vm918, %v894
  %996 = vst.msk [vmem:[%s3 + $0x268] sm:$0xff] %vm918, %v895
  %997 = vst.msk [vmem:[%s3 + $0x270] sm:$0xff] %vm918, %v896
  %998 = vst.msk [vmem:[%s3 + $0x278] sm:$0xff] %vm918, %v897
  %999 = vst.msk [vmem:[%s3 + $0x280] sm:$0xff] %vm918, %v898
  %1000 = vst.msk [vmem:[%s3 + $0x288] sm:$0xff] %vm918, %v899
  %1001 = vst.msk [vmem:[%s3 + $0x290] sm:$0xff] %vm918, %v900
  %1002 = vst.msk [vmem:[%s3 + $0x298] sm:$0xff] %vm918, %v901
  %1003 = vst.msk [vmem:[%s3 + $0x2a0] sm:$0xff] %vm918, %v902
  %1004 = vst.msk [vmem:[%s3 + $0x2a8] sm:$0xff] %vm918, %v903
  %1005 = vst.msk [vmem:[%s3 + $0x2b0] sm:$0xff] %vm918, %v904
  %1006 = vst.msk [vmem:[%s3 + $0x2b8] sm:$0xff] %vm918, %v905
  %1007 = vst.msk [vmem:[%s3 + $0x2c0] sm:$0xff] %vm918, %v906
  %1008 = vst.msk [vmem:[%s3 + $0x2c8] sm:$0xff] %vm918, %v907
  %1009 = vst.msk [vmem:[%s3 + $0x2d0] sm:$0xff] %vm918, %v908
  %1010 = vst.msk [vmem:[%s3 + $0x2d8] sm:$0xff] %vm918, %v909
  %1011 = vst.msk [vmem:[%s3 + $0x2e0] sm:$0xff] %vm918, %v910
  %1012 = vst.msk [vmem:[%s3 + $0x2e8] sm:$0xff] %vm918, %v911
  %1013 = vst.msk [vmem:[%s3 + $0x2f0] sm:$0xff] %vm918, %v912
  %1014 = vst.msk [vmem:[%s3 + $0x2f8] sm:$0xff] %vm918, %v913
  %1015 = vst.msk [vmem:[%s3 + $0x300] sm:$0xff] %vm918, %v914
  %1016 = vst.msk [vmem:[%s3 + $0x308] sm:$0xff] %vm918, %v915
  %1017 = vst.msk [vmem:[%s3 + $0x310] sm:$0xff] %vm918, %v916
  %1018 = vst.msk [vmem:[%s3 + $0x318] sm:$0xff] %vm918, %v917
  // Predicated region
  $region14: #{qnetwork_forward.4} parent=0 // pred_check
    _
  $region15: #{qnetwork_forward.4} parent=0 // pred_check_branch
    %1020 = sbr.rel (0) target = $region17
  $region16: #{qnetwork_forward.4} parent=0 // pred_region
    _
  $region17: #{qnetwork_forward.4} parent=0 // pred_fallthru
    _
  // Predicated region
  $region18: #{qnetwork_forward.4} parent=0 // pred_check
    _
  $region19: #{qnetwork_forward.4} parent=0 // pred_check_branch
    %1022 = sbr.rel (0) target = $region21
  $region20: #{qnetwork_forward.4} parent=0 // pred_region
    _
  $region21: #{qnetwork_forward.4} parent=0 // pred_fallthru
    _

// kernel: qnetwork_forward.5
$region0: #{qnetwork_forward.5}
  #allocation0 [shape = 'u32[]', space=smem, size = 0x4, offset = 0x4, fixed_abs, tag = 'smem constant byte address 0x4 - core index']
  #allocation1 [shape = 'u32[144,128]{1,0:T(1,128)}', space=vmem, size = 0x12000, scoped, tag = 'internal scratch']
  %s0 = inlined_call_operand.vmem [shape: f32[162,256], index: 0, kind: input, shape index: {}]
  %s1 = inlined_call_operand.vmem [shape: f32[256,32], index: 1, kind: input, shape index: {}]
  %s2 = inlined_call_operand.vmem [shape: f32[1,32], index: 2, kind: input, shape index: {}]
  %s3 = inlined_call_operand.vmem [shape: f32[162,32], index: 3, kind: output, shape index: {}]
  %s4 = sld [smem:[#allocation0]]
  $region22: #{qnetwork_forward.5} parent=0
    _
  %s6 = ssub.s32 1, %s4
  %s7 = scalar_select 0, %s6, %s4
  // Predicated region
  $region2: #{qnetwork_forward.5} parent=0 // pred_check
    _
  $region3: #{qnetwork_forward.5} parent=0 // pred_check_branch
    %9 = sbr.rel (0) target = $region5
  $region4: #{qnetwork_forward.5} parent=0 // pred_region
    _
  $region5: #{qnetwork_forward.5} parent=0 // pred_fallthru
    _
  // Predicated region
  $region6: #{qnetwork_forward.5} parent=0 // pred_check
    _
  $region7: #{qnetwork_forward.5} parent=0 // pred_check_branch
    %11 = sbr.rel (0) target = $region9
  $region8: #{qnetwork_forward.5} parent=0 // pred_region
    _
  $region9: #{qnetwork_forward.5} parent=0 // pred_fallthru
    _
  // Predicated region
  $region10: #{qnetwork_forward.5} parent=0 // pred_check
    _
  $region11: #{qnetwork_forward.5} parent=0 // pred_check_branch
    %13 = sbr.rel (0) target = $region13
  $region12: #{qnetwork_forward.5} parent=0 // pred_region
    _
  $region13: #{qnetwork_forward.5} parent=0 // pred_fallthru
    _
  %v14 = vld [vmem:[%s0] sm:$0xff]
  %v15 = vld [vmem:[%s0 + $0x8] sm:$0xff]
  %v16 = vld [vmem:[%s0 + $0x10] sm:$0xff]
  %v17 = vld [vmem:[%s0 + $0x18] sm:$0xff]
  %v18 = vld [vmem:[%s0 + $0x20] sm:$0xff]
  %v19 = vld [vmem:[%s0 + $0x28] sm:$0xff]
  %v20 = vld [vmem:[%s0 + $0x30] sm:$0xff]
  %v21 = vld [vmem:[%s0 + $0x38] sm:$0xff]
  %v22 = vld [vmem:[%s0 + $0x40] sm:$0xff]
  %v23 = vld [vmem:[%s0 + $0x48] sm:$0xff]
  %v24 = vld [vmem:[%s0 + $0x50] sm:$0xff]
  %v25 = vld [vmem:[%s0 + $0x58] sm:$0xff]
  %v26 = vld [vmem:[%s0 + $0x60] sm:$0xff]
  %v27 = vld [vmem:[%s0 + $0x68] sm:$0xff]
  %v28 = vld [vmem:[%s0 + $0x70] sm:$0xff]
  %v29 = vld [vmem:[%s0 + $0x78] sm:$0xff]
  %v30 = vld [vmem:[%s0 + $0x80] sm:$0xff]
  %v31 = vld [vmem:[%s0 + $0x88] sm:$0xff]
  %v32 = vld [vmem:[%s0 + $0x90] sm:$0xff]
  %v33 = vld [vmem:[%s0 + $0x98] sm:$0xff]
  %v34 = vld [vmem:[%s0 + $0xa0] sm:$0xff]
  %v35 = vld [vmem:[%s0 + $0xa8] sm:$0xff]
  %v36 = vld [vmem:[%s0 + $0xb0] sm:$0xff]
  %v37 = vld [vmem:[%s0 + $0xb8] sm:$0xff]
  %v38 = vld [vmem:[%s0 + $0xc0] sm:$0xff]
  %v39 = vld [vmem:[%s0 + $0xc8] sm:$0xff]
  %v40 = vld [vmem:[%s0 + $0xd0] sm:$0xff]
  %v41 = vld [vmem:[%s0 + $0xd8] sm:$0xff]
  %v42 = vld [vmem:[%s0 + $0xe0] sm:$0xff]
  %v43 = vld [vmem:[%s0 + $0xe8] sm:$0xff]
  %v44 = vld [vmem:[%s0 + $0xf0] sm:$0xff]
  %v45 = vld [vmem:[%s0 + $0xf8] sm:$0xff]
  %v46 = vld [vmem:[%s0 + $0x100] sm:$0xff]
  %v47 = vld [vmem:[%s0 + $0x108] sm:$0xff]
  %v48 = vld [vmem:[%s0 + $0x110] sm:$0xff]
  %v49 = vld [vmem:[%s0 + $0x118] sm:$0xff]
  %v50 = vld [vmem:[%s0 + $0x120] sm:$0xff]
  %v51 = vld [vmem:[%s0 + $0x128] sm:$0xff]
  %v52 = vld [vmem:[%s0 + $0x130] sm:$0xff]
  %v53 = vld [vmem:[%s0 + $0x138] sm:$0xff]
  %v54 = vld [vmem:[%s0 + $0x140] sm:$0x3]
  %v55 = vld [vmem:[%s0 + $0x148] sm:$0x3]
  %v56 = vld [vmem:[%s1] sm:$0xff]
  %v57 = vld [vmem:[%s1 + $0x8] sm:$0xff]
  %v58 = vld [vmem:[%s1 + $0x10] sm:$0xff]
  %v59 = vld [vmem:[%s1 + $0x18] sm:$0xff]
  %v60 = vld [vmem:[%s1 + $0x20] sm:$0xff]
  %v61 = vld [vmem:[%s1 + $0x28] sm:$0xff]
  %v62 = vld [vmem:[%s1 + $0x30] sm:$0xff]
  %v63 = vld [vmem:[%s1 + $0x38] sm:$0xff]
  %v64 = vld [vmem:[%s1 + $0x40] sm:$0xff]
  %v65 = vld [vmem:[%s1 + $0x48] sm:$0xff]
  %v66 = vld [vmem:[%s1 + $0x50] sm:$0xff]
  %v67 = vld [vmem:[%s1 + $0x58] sm:$0xff]
  %v68 = vld [vmem:[%s1 + $0x60] sm:$0xff]
  %v69 = vld [vmem:[%s1 + $0x68] sm:$0xff]
  %v70 = vld [vmem:[%s1 + $0x70] sm:$0xff]
  %v71 = vld [vmem:[%s1 + $0x78] sm:$0xff]
  %v72 = vld [vmem:[%s1 + $0x80] sm:$0xff]
  %v73 = vld [vmem:[%s1 + $0x88] sm:$0xff]
  %v74 = vld [vmem:[%s1 + $0x90] sm:$0xff]
  %v75 = vld [vmem:[%s1 + $0x98] sm:$0xff]
  %v76 = vld [vmem:[%s1 + $0xa0] sm:$0xff]
  %v77 = vld [vmem:[%s1 + $0xa8] sm:$0xff]
  %v78 = vld [vmem:[%s1 + $0xb0] sm:$0xff]
  %v79 = vld [vmem:[%s1 + $0xb8] sm:$0xff]
  %v80 = vld [vmem:[%s1 + $0xc0] sm:$0xff]
  %v81 = vld [vmem:[%s1 + $0xc8] sm:$0xff]
  %v82 = vld [vmem:[%s1 + $0xd0] sm:$0xff]
  %v83 = vld [vmem:[%s1 + $0xd8] sm:$0xff]
  %v84 = vld [vmem:[%s1 + $0xe0] sm:$0xff]
  %v85 = vld [vmem:[%s1 + $0xe8] sm:$0xff]
  %v86 = vld [vmem:[%s1 + $0xf0] sm:$0xff]
  %v87 = vld [vmem:[%s1 + $0xf8] sm:$0xff]
  %v88 = vld [vmem:[%s2] sm:$0x1]
  %v90 = vlaneseq
  %v91 = vshrl.u32 %v90, 7
  %v92 = vsub.s32 0, %v91
  %v93 = vrot.slane %v88, %v92
  %95 = vmatprep.subr.mxu0 0.0
  %96 = vmatpush1.msra.mxu0 %v56
  %97 = vmatprep.subr.mxu0 0.0
  %98 = vmatpush1.msra.mxu0 %v57
  %99 = vmatprep.subr.mxu0 0.0
  %100 = vmatpush1.msra.mxu0 %v58
  %101 = vmatprep.subr.mxu0 0.0
  %102 = vmatpush1.msra.mxu0 %v59
  %103 = vmatprep.subr.mxu0 0.0
  %104 = vmatpush1.msra.mxu0 %v60
  %105 = vmatprep.subr.mxu0 0.0
  %106 = vmatpush1.msra.mxu0 %v61
  %107 = vmatprep.subr.mxu0 0.0
  %108 = vmatpush1.msra.mxu0 %v62
  %109 = vmatprep.subr.mxu0 0.0
  %110 = vmatpush1.msra.mxu0 %v63
  %111 = vmatprep.subr.mxu0 0.0
  %112 = vmatpush1.msra.mxu0 %v64
  %113 = vmatprep.subr.mxu0 0.0
  %114 = vmatpush1.msra.mxu0 %v65
  %115 = vmatprep.subr.mxu0 0.0
  %116 = vmatpush1.msra.mxu0 %v66
  %117 = vmatprep.subr.mxu0 0.0
  %118 = vmatpush1.msra.mxu0 %v67
  %119 = vmatprep.subr.mxu0 0.0
  %120 = vmatpush1.msra.mxu0 %v68
  %121 = vmatprep.subr.mxu0 0.0
  %122 = vmatpush1.msra.mxu0 %v69
  %123 = vmatprep.subr.mxu0 0.0
  %124 = vmatpush1.msra.mxu0 %v70
  %125 = vmatprep.subr.mxu0 0.0
  %126 = vmatpush1.msra.mxu0 %v71
  %127 = vmatprep.subr.mxu0 0.0
  %128 = vmatpush1.msra.mxu0 %v72
  %129 = vmatprep.subr.mxu0 0.0
  %130 = vmatpush1.msra.mxu0 %v73
  %131 = vmatprep.subr.mxu0 0.0
  %132 = vmatpush1.msra.mxu0 %v74
  %133 = vmatprep.subr.mxu0 0.0
  %134 = vmatpush1.msra.mxu0 %v75
  %135 = vmatprep.subr.mxu0 0.0
  %136 = vmatpush1.msra.mxu0 %v76
  %137 = vmatprep.subr.mxu0 0.0
  %138 = vmatpush1.msra.mxu0 %v77
  %139 = vmatprep.subr.mxu0 0.0
  %140 = vmatpush1.msra.mxu0 %v78
  %141 = vmatprep.subr.mxu0 0.0
  %142 = vmatpush1.msra.mxu0 %v79
  %143 = vmatprep.subr.mxu0 0.0
  %144 = vmatpush1.msra.mxu0 %v80
  %145 = vmatprep.subr.mxu0 0.0
  %146 = vmatpush1.msra.mxu0 %v81
  %147 = vmatprep.subr.mxu0 0.0
  %148 = vmatpush1.msra.mxu0 %v82
  %149 = vmatprep.subr.mxu0 0.0
  %150 = vmatpush1.msra.mxu0 %v83
  %151 = vmatprep.subr.mxu0 0.0
  %152 = vmatpush1.msra.mxu0 %v84
  %153 = vmatprep.subr.mxu0 0.0
  %154 = vmatpush1.msra.mxu0 %v85
  %155 = vmatprep.subr.mxu0 0.0
  %156 = vmatpush1.msra.mxu0 %v86
  %157 = vmatprep.subr.mxu0 0.0
  %158 = vmatpush1.msra.mxu0 %v87
  %159 = vmatprep.mubr.f32.mxu0 %v15
  %160 = vmatmul.mubr.f32.gmra.mrb[0].mxu0 %v14
  %v161 = vpop.f32.mrb[0].mxu0
  %v162 = vadd.f32 %v93, %v161
  %v163 = vpop.f32.mrb[0].mxu0
  %164 = vmatprep.mubr.f32.mxu0 %v17
  %165 = vmatmul.mubr.f32.gmra.mrb[0].mxu0 %v16
  %v166 = vpop.f32.mrb[0].mxu0
  %v167 = vadd.f32 %v93, %v166
  %v168 = vpop.f32.mrb[0].mxu0
  %169 = vmatprep.mubr.f32.mxu0 %v19
  %170 = vmatmul.mubr.f32.gmra.mrb[0].mxu0 %v18
  %v171 = vpop.f32.mrb[0].mxu0
  %v172 = vadd.f32 %v93, %v171
  %v173 = vpop.f32.mrb[0].mxu0
  %174 = vmatprep.mubr.f32.mxu0 %v21
  %175 = vmatmul.mubr.f32.gmra.mrb[0].mxu0 %v20
  %v176 = vpop.f32.mrb[0].mxu0
  %v177 = vadd.f32 %v93, %v176
  %v178 = vpop.f32.mrb[0].mxu0
  %179 = vmatprep.mubr.f32.mxu0 %v23
  %180 = vmatmul.mubr.f32.gmra.mrb[0].mxu0 %v22
  %v181 = vpop.f32.mrb[0].mxu0
  %v182 = vadd.f32 %v93, %v181
  %v183 = vpop.f32.mrb[0].mxu0
  %184 = vmatprep.mubr.f32.mxu0 %v25
  %185 = vmatmul.mubr.f32.gmra.mrb[0].mxu0 %v24
  %v186 = vpop.f32.mrb[0].mxu0
  %v187 = vadd.f32 %v93, %v186
  %v188 = vpop.f32.mrb[0].mxu0
  %189 = vmatprep.mubr.f32.mxu0 %v27
  %190 = vmatmul.mubr.f32.gmra.mrb[0].mxu0 %v26
  %v191 = vpop.f32.mrb[0].mxu0
  %v192 = vadd.f32 %v93, %v191
  %v193 = vpop.f32.mrb[0].mxu0
  %194 = vmatprep.mubr.f32.mxu0 %v29
  %195 = vmatmul.mubr.f32.gmra.mrb[0].mxu0 %v28
  %v196 = vpop.f32.mrb[0].mxu0
  %v197 = vadd.f32 %v93, %v196
  %v198 = vpop.f32.mrb[0].mxu0
  %199 = vmatprep.mubr.f32.mxu0 %v31
  %200 = vmatmul.mubr.f32.gmra.mrb[0].mxu0 %v30
  %v201 = vpop.f32.mrb[0].mxu0
  %v202 = vadd.f32 %v93, %v201
  %v203 = vpop.f32.mrb[0].mxu0
  %204 = vmatprep.mubr.f32.mxu0 %v33
  %205 = vmatmul.mubr.f32.gmra.mrb[0].mxu0 %v32
  %v206 = vpop.f32.mrb[0].mxu0
  %v207 = vadd.f32 %v93, %v206
  %v208 = vpop.f32.mrb[0].mxu0
  %209 = vmatprep.mubr.f32.mxu0 %v35
  %210 = vmatmul.mubr.f32.gmra.mrb[0].mxu0 %v34
  %v211 = vpop.f32.mrb[0].mxu0
  %v212 = vadd.f32 %v93, %v211
  %v213 = vpop.f32.mrb[0].mxu0
  %214 = vmatprep.mubr.f32.mxu0 %v37
  %215 = vmatmul.mubr.f32.gmra.mrb[0].mxu0 %v36
  %v216 = vpop.f32.mrb[0].mxu0
  %v217 = vadd.f32 %v93, %v216
  %v218 = vpop.f32.mrb[0].mxu0
  %219 = vmatprep.mubr.f32.mxu0 %v39
  %220 = vmatmul.mubr.f32.gmra.mrb[0].mxu0 %v38
  %v221 = vpop.f32.mrb[0].mxu0
  %v222 = vadd.f32 %v93, %v221
  %v223 = vpop.f32.mrb[0].mxu0
  %224 = vmatprep.mubr.f32.mxu0 %v41
  %225 = vmatmul.mubr.f32.gmra.mrb[0].mxu0 %v40
  %v226 = vpop.f32.mrb[0].mxu0
  %v227 = vadd.f32 %v93, %v226
  %v228 = vpop.f32.mrb[0].mxu0
  %229 = vmatprep.mubr.f32.mxu0 %v43
  %230 = vmatmul.mubr.f32.gmra.mrb[0].mxu0 %v42
  %v231 = vpop.f32.mrb[0].mxu0
  %v232 = vadd.f32 %v93, %v231
  %v233 = vpop.f32.mrb[0].mxu0
  %234 = vmatprep.mubr.f32.mxu0 %v45
  %235 = vmatmul.mubr.f32.gmra.mrb[0].mxu0 %v44
  %v236 = vpop.f32.mrb[0].mxu0
  %v237 = vadd.f32 %v93, %v236
  %v238 = vpop.f32.mrb[0].mxu0
  %239 = vmatprep.mubr.f32.mxu0 %v47
  %240 = vmatmul.mubr.f32.gmra.mrb[0].mxu0 %v46
  %v241 = vpop.f32.mrb[0].mxu0
  %v242 = vadd.f32 %v93, %v241
  %v243 = vpop.f32.mrb[0].mxu0
  %244 = vmatprep.mubr.f32.mxu0 %v49
  %245 = vmatmul.mubr.f32.gmra.mrb[0].mxu0 %v48
  %v246 = vpop.f32.mrb[0].mxu0
  %v247 = vadd.f32 %v93, %v246
  %v248 = vpop.f32.mrb[0].mxu0
  %249 = vmatprep.mubr.f32.mxu0 %v51
  %250 = vmatmul.mubr.f32.gmra.mrb[0].mxu0 %v50
  %v251 = vpop.f32.mrb[0].mxu0
  %v252 = vadd.f32 %v93, %v251
  %v253 = vpop.f32.mrb[0].mxu0
  %254 = vmatprep.mubr.f32.mxu0 %v53
  %255 = vmatmul.mubr.f32.gmra.mrb[0].mxu0 %v52
  %v256 = vpop.f32.mrb[0].mxu0
  %v257 = vadd.f32 %v93, %v256
  %v258 = vpop.f32.mrb[0].mxu0
  %259 = vmatprep.mubr.f32.mxu0 %v55
  %260 = vmatmul.mubr.f32.gmra.mrb[0].mxu0 %v54
  %v261 = vpop.f32.mrb[0].mxu0
  %v262 = vadd.f32 %v93, %v261
  %v263 = vpop.f32.mrb[0].mxu0
  %264 = vdwg.mxu0
  %v265 = vmax.f32 %v162, 0.0
  %v266 = vmax.f32 %v167, 0.0
  %v267 = vmax.f32 %v172, 0.0
  %v268 = vmax.f32 %v177, 0.0
  %v269 = vmax.f32 %v182, 0.0
  %v270 = vmax.f32 %v187, 0.0
  %v271 = vmax.f32 %v192, 0.0
  %v272 = vmax.f32 %v197, 0.0
  %v273 = vmax.f32 %v202, 0.0
  %v274 = vmax.f32 %v207, 0.0
  %v275 = vmax.f32 %v212, 0.0
  %v276 = vmax.f32 %v217, 0.0
  %v277 = vmax.f32 %v222, 0.0
  %v278 = vmax.f32 %v227, 0.0
  %v279 = vmax.f32 %v232, 0.0
  %v280 = vmax.f32 %v237, 0.0
  %v281 = vmax.f32 %v242, 0.0
  %v282 = vmax.f32 %v247, 0.0
  %v283 = vmax.f32 %v252, 0.0
  %v284 = vmax.f32 %v257, 0.0
  %v285 = vmax.f32 %v262, 0.0
  %vm286 = vcmask 261120
  %287 = vst.msk [vmem:[%s3] sm:$0xff] %vm286, %v265
  %288 = vst.msk [vmem:[%s3 + $0x8] sm:$0xff] %vm286, %v266
  %289 = vst.msk [vmem:[%s3 + $0x10] sm:$0xff] %vm286, %v267
  %290 = vst.msk [vmem:[%s3 + $0x18] sm:$0xff] %vm286, %v268
  %291 = vst.msk [vmem:[%s3 + $0x20] sm:$0xff] %vm286, %v269
  %292 = vst.msk [vmem:[%s3 + $0x28] sm:$0xff] %vm286, %v270
  %293 = vst.msk [vmem:[%s3 + $0x30] sm:$0xff] %vm286, %v271
  %294 = vst.msk [vmem:[%s3 + $0x38] sm:$0xff] %vm286, %v272
  %295 = vst.msk [vmem:[%s3 + $0x40] sm:$0xff] %vm286, %v273
  %296 = vst.msk [vmem:[%s3 + $0x48] sm:$0xff] %vm286, %v274
  %297 = vst.msk [vmem:[%s3 + $0x50] sm:$0xff] %vm286, %v275
  %298 = vst.msk [vmem:[%s3 + $0x58] sm:$0xff] %vm286, %v276
  %299 = vst.msk [vmem:[%s3 + $0x60] sm:$0xff] %vm286, %v277
  %300 = vst.msk [vmem:[%s3 + $0x68] sm:$0xff] %vm286, %v278
  %301 = vst.msk [vmem:[%s3 + $0x70] sm:$0xff] %vm286, %v279
  %302 = vst.msk [vmem:[%s3 + $0x78] sm:$0xff] %vm286, %v280
  %303 = vst.msk [vmem:[%s3 + $0x80] sm:$0xff] %vm286, %v281
  %304 = vst.msk [vmem:[%s3 + $0x88] sm:$0xff] %vm286, %v282
  %305 = vst.msk [vmem:[%s3 + $0x90] sm:$0xff] %vm286, %v283
  %306 = vst.msk [vmem:[%s3 + $0x98] sm:$0xff] %vm286, %v284
  %vm307 = vcmask 254976
  %308 = vst.msk [vmem:[%s3 + $0xa0] sm:$0x3] %vm307, %v285
  // Predicated region
  $region14: #{qnetwork_forward.5} parent=0 // pred_check
    _
  $region15: #{qnetwork_forward.5} parent=0 // pred_check_branch
    %310 = sbr.rel (0) target = $region17
  $region16: #{qnetwork_forward.5} parent=0 // pred_region
    _
  $region17: #{qnetwork_forward.5} parent=0 // pred_fallthru
    _
  // Predicated region
  $region18: #{qnetwork_forward.5} parent=0 // pred_check
    _
  $region19: #{qnetwork_forward.5} parent=0 // pred_check_branch
    %312 = sbr.rel (0) target = $region21
  $region20: #{qnetwork_forward.5} parent=0 // pred_region
    _
  $region21: #{qnetwork_forward.5} parent=0 // pred_fallthru
    _

// kernel: qnetwork_forward.6
$region0: #{qnetwork_forward.6}
  #allocation0 [shape = 'u32[]', space=smem, size = 0x4, offset = 0x4, fixed_abs, tag = 'smem constant byte address 0x4 - core index']
  #allocation1 [shape = 'u32[144,128]{1,0:T(1,128)}', space=vmem, size = 0x12000, scoped, tag = 'internal scratch']
  %s0 = inlined_call_operand.vmem [shape: f32[98,288], index: 0, kind: input, shape index: {}]
  %s1 = inlined_call_operand.vmem [shape: f32[288,32], index: 1, kind: input, shape index: {}]
  %s2 = inlined_call_operand.vmem [shape: f32[1,32], index: 2, kind: input, shape index: {}]
  %s3 = inlined_call_operand.vmem [shape: bf16[98,32], index: 3, kind: output, shape index: {}]
  %s4 = sld [smem:[#allocation0]]
  $region22: #{qnetwork_forward.6} parent=0
    _
  %s6 = ssub.s32 1, %s4
  %s7 = scalar_select 0, %s6, %s4
  // Predicated region
  $region2: #{qnetwork_forward.6} parent=0 // pred_check
    _
  $region3: #{qnetwork_forward.6} parent=0 // pred_check_branch
    %9 = sbr.rel (0) target = $region5
  $region4: #{qnetwork_forward.6} parent=0 // pred_region
    _
  $region5: #{qnetwork_forward.6} parent=0 // pred_fallthru
    _
  // Predicated region
  $region6: #{qnetwork_forward.6} parent=0 // pred_check
    _
  $region7: #{qnetwork_forward.6} parent=0 // pred_check_branch
    %11 = sbr.rel (0) target = $region9
  $region8: #{qnetwork_forward.6} parent=0 // pred_region
    _
  $region9: #{qnetwork_forward.6} parent=0 // pred_fallthru
    _
  // Predicated region
  $region10: #{qnetwork_forward.6} parent=0 // pred_check
    _
  $region11: #{qnetwork_forward.6} parent=0 // pred_check_branch
    %13 = sbr.rel (0) target = $region13
  $region12: #{qnetwork_forward.6} parent=0 // pred_region
    _
  $region13: #{qnetwork_forward.6} parent=0 // pred_fallthru
    _
  %v14 = vld [vmem:[%s0] sm:$0xff]
  %v15 = vld [vmem:[%s0 + $0x8] sm:$0xff]
  %v16 = vld [vmem:[%s0 + $0x10] sm:$0xff]
  %v17 = vld [vmem:[%s0 + $0x18] sm:$0xff]
  %v18 = vld [vmem:[%s0 + $0x20] sm:$0xff]
  %v19 = vld [vmem:[%s0 + $0x28] sm:$0xff]
  %v20 = vld [vmem:[%s0 + $0x30] sm:$0xff]
  %v21 = vld [vmem:[%s0 + $0x38] sm:$0xff]
  %v22 = vld [vmem:[%s0 + $0x40] sm:$0xff]
  %v23 = vld [vmem:[%s0 + $0x48] sm:$0xff]
  %v24 = vld [vmem:[%s0 + $0x50] sm:$0xff]
  %v25 = vld [vmem:[%s0 + $0x58] sm:$0xff]
  %v26 = vld [vmem:[%s0 + $0x60] sm:$0xff]
  %v27 = vld [vmem:[%s0 + $0x68] sm:$0xff]
  %v28 = vld [vmem:[%s0 + $0x70] sm:$0xff]
  %v29 = vld [vmem:[%s0 + $0x78] sm:$0xff]
  %v30 = vld [vmem:[%s0 + $0x80] sm:$0xff]
  %v31 = vld [vmem:[%s0 + $0x88] sm:$0xff]
  %v32 = vld [vmem:[%s0 + $0x90] sm:$0xff]
  %v33 = vld [vmem:[%s0 + $0x98] sm:$0xff]
  %v34 = vld [vmem:[%s0 + $0xa0] sm:$0xff]
  %v35 = vld [vmem:[%s0 + $0xa8] sm:$0xff]
  %v36 = vld [vmem:[%s0 + $0xb0] sm:$0xff]
  %v37 = vld [vmem:[%s0 + $0xb8] sm:$0xff]
  %v38 = vld [vmem:[%s0 + $0xc0] sm:$0xff]
  %v39 = vld [vmem:[%s0 + $0xc8] sm:$0xff]
  %v40 = vld [vmem:[%s0 + $0xd0] sm:$0xff]
  %v41 = vld [vmem:[%s0 + $0xd8] sm:$0xff]
  %v42 = vld [vmem:[%s0 + $0xe0] sm:$0xff]
  %v43 = vld [vmem:[%s0 + $0xe8] sm:$0xff]
  %v44 = vld [vmem:[%s0 + $0xf0] sm:$0xff]
  %v45 = vld [vmem:[%s0 + $0xf8] sm:$0xff]
  %v46 = vld [vmem:[%s0 + $0x100] sm:$0xff]
  %v47 = vld [vmem:[%s0 + $0x108] sm:$0xff]
  %v48 = vld [vmem:[%s0 + $0x110] sm:$0xff]
  %v49 = vld [vmem:[%s0 + $0x118] sm:$0xff]
  %v50 = vld [vmem:[%s0 + $0x120] sm:$0x3]
  %v51 = vld [vmem:[%s0 + $0x128] sm:$0x3]
  %v52 = vld [vmem:[%s0 + $0x130] sm:$0x3]
  %v53 = vld [vmem:[%s1] sm:$0xff]
  %v54 = vld [vmem:[%s1 + $0x8] sm:$0xff]
  %v55 = vld [vmem:[%s1 + $0x10] sm:$0xff]
  %v56 = vld [vmem:[%s1 + $0x18] sm:$0xff]
  %v57 = vld [vmem:[%s1 + $0x20] sm:$0xff]
  %v58 = vld [vmem:[%s1 + $0x28] sm:$0xff]
  %v59 = vld [vmem:[%s1 + $0x30] sm:$0xff]
  %v60 = vld [vmem:[%s1 + $0x38] sm:$0xff]
  %v61 = vld [vmem:[%s1 + $0x40] sm:$0xff]
  %v62 = vld [vmem:[%s1 + $0x48] sm:$0xff]
  %v63 = vld [vmem:[%s1 + $0x50] sm:$0xff]
  %v64 = vld [vmem:[%s1 + $0x58] sm:$0xff]
  %v65 = vld [vmem:[%s1 + $0x60] sm:$0xff]
  %v66 = vld [vmem:[%s1 + $0x68] sm:$0xff]
  %v67 = vld [vmem:[%s1 + $0x70] sm:$0xff]
  %v68 = vld [vmem:[%s1 + $0x78] sm:$0xff]
  %v69 = vld [vmem:[%s1 + $0x80] sm:$0xff]
  %v70 = vld [vmem:[%s1 + $0x88] sm:$0xff]
  %v71 = vld [vmem:[%s1 + $0x90] sm:$0xff]
  %v72 = vld [vmem:[%s1 + $0x98] sm:$0xff]
  %v73 = vld [vmem:[%s1 + $0xa0] sm:$0xff]
  %v74 = vld [vmem:[%s1 + $0xa8] sm:$0xff]
  %v75 = vld [vmem:[%s1 + $0xb0] sm:$0xff]
  %v76 = vld [vmem:[%s1 + $0xb8] sm:$0xff]
  %v77 = vld [vmem:[%s1 + $0xc0] sm:$0xff]
  %v78 = vld [vmem:[%s1 + $0xc8] sm:$0xff]
  %v79 = vld [vmem:[%s1 + $0xd0] sm:$0xff]
  %v80 = vld [vmem:[%s1 + $0xd8] sm:$0xff]
  %v81 = vld [vmem:[%s1 + $0xe0] sm:$0xff]
  %v82 = vld [vmem:[%s1 + $0xe8] sm:$0xff]
  %v83 = vld [vmem:[%s1 + $0xf0] sm:$0xff]
  %v84 = vld [vmem:[%s1 + $0xf8] sm:$0xff]
  %v85 = vld [vmem:[%s1 + $0x100] sm:$0xff]
  %v86 = vld [vmem:[%s1 + $0x108] sm:$0xff]
  %v87 = vld [vmem:[%s1 + $0x110] sm:$0xff]
  %v88 = vld [vmem:[%s1 + $0x118] sm:$0xff]
  %v89 = vld [vmem:[%s2] sm:$0x1]
  %v91 = vlaneseq
  %v92 = vshrl.u32 %v91, 7
  %v93 = vsub.s32 0, %v92
  %v94 = vrot.slane %v89, %v93
  %vm96 = vcmask 261120
  %v98 = vsel %vm96, %v16, 0
  %v101 = vsel %vm96, %v19, 0
  %v104 = vsel %vm96, %v22, 0
  %v107 = vsel %vm96, %v25, 0
  %v110 = vsel %vm96, %v28, 0
  %v113 = vsel %vm96, %v31, 0
  %v116 = vsel %vm96, %v34, 0
  %v119 = vsel %vm96, %v37, 0
  %v122 = vsel %vm96, %v40, 0
  %v125 = vsel %vm96, %v43, 0
  %v128 = vsel %vm96, %v46, 0
  %v131 = vsel %vm96, %v49, 0
  %v134 = vsel %vm96, %v52, 0
  %136 = vmatprep.subr.mxu0 0.0
  %137 = vmatpush1.msra.mxu0 %v53
  %138 = vmatprep.subr.mxu0 0.0
  %139 = vmatpush1.msra.mxu0 %v54
  %140 = vmatprep.subr.mxu0 0.0
  %141 = vmatpush1.msra.mxu0 %v55
  %142 = vmatprep.subr.mxu0 0.0
  %143 = vmatpush1.msra.mxu0 %v56
  %144 = vmatprep.subr.mxu0 0.0
  %145 = vmatpush1.msra.mxu0 %v57
  %146 = vmatprep.subr.mxu0 0.0
  %147 = vmatpush1.msra.mxu0 %v58
  %148 = vmatprep.subr.mxu0 0.0
  %149 = vmatpush1.msra.mxu0 %v59
  %150 = vmatprep.subr.mxu0 0.0
  %151 = vmatpush1.msra.mxu0 %v60
  %152 = vmatprep.subr.mxu0 0.0
  %153 = vmatpush1.msra.mxu0 %v61
  %154 = vmatprep.subr.mxu0 0.0
  %155 = vmatpush1.msra.mxu0 %v62
  %156 = vmatprep.subr.mxu0 0.0
  %157 = vmatpush1.msra.mxu0 %v63
  %158 = vmatprep.subr.mxu0 0.0
  %159 = vmatpush1.msra.mxu0 %v64
  %160 = vmatprep.subr.mxu0 0.0
  %161 = vmatpush1.msra.mxu0 %v65
  %162 = vmatprep.subr.mxu0 0.0
  %163 = vmatpush1.msra.mxu0 %v66
  %164 = vmatprep.subr.mxu0 0.0
  %165 = vmatpush1.msra.mxu0 %v67
  %166 = vmatprep.subr.mxu0 0.0
  %167 = vmatpush1.msra.mxu0 %v68
  %168 = vmatprep.subr.mxu0 0.0
  %169 = vmatpush1.msra.mxu0 %v69
  %170 = vmatprep.subr.mxu0 0.0
  %171 = vmatpush1.msra.mxu0 %v70
  %172 = vmatprep.subr.mxu0 0.0
  %173 = vmatpush1.msra.mxu0 %v71
  %174 = vmatprep.subr.mxu0 0.0
  %175 = vmatpush1.msra.mxu0 %v72
  %176 = vmatprep.subr.mxu0 0.0
  %177 = vmatpush1.msra.mxu0 %v73
  %178 = vmatprep.subr.mxu0 0.0
  %179 = vmatpush1.msra.mxu0 %v74
  %180 = vmatprep.subr.mxu0 0.0
  %181 = vmatpush1.msra.mxu0 %v75
  %182 = vmatprep.subr.mxu0 0.0
  %183 = vmatpush1.msra.mxu0 %v76
  %184 = vmatprep.subr.mxu0 0.0
  %185 = vmatpush1.msra.mxu0 %v77
  %186 = vmatprep.subr.mxu0 0.0
  %187 = vmatpush1.msra.mxu0 %v78
  %188 = vmatprep.subr.mxu0 0.0
  %189 = vmatpush1.msra.mxu0 %v79
  %190 = vmatprep.subr.mxu0 0.0
  %191 = vmatpush1.msra.mxu0 %v80
  %192 = vmatprep.subr.mxu0 0.0
  %193 = vmatpush1.msra.mxu0 %v81
  %194 = vmatprep.subr.mxu0 0.0
  %195 = vmatpush1.msra.mxu0 %v82
  %196 = vmatprep.subr.mxu0 0.0
  %197 = vmatpush1.msra.mxu0 %v83
  %198 = vmatprep.subr.mxu0 0.0
  %199 = vmatpush1.msra.mxu0 %v84
  %200 = vmatprep.mubr.f32.mxu0 %v15
  %201 = vmatmul.mubr.f32.gmra.mrb[0].mxu0 %v14
  %v202 = vpop.f32.mrb[0].mxu0
  %v203 = vadd.f32 %v94, %v202
  %v204 = vpop.f32.mrb[0].mxu0
  %205 = vmatprep.mubr.f32.mxu0 %v18
  %206 = vmatmul.mubr.f32.gmra.mrb[0].mxu0 %v17
  %v207 = vpop.f32.mrb[0].mxu0
  %v208 = vadd.f32 %v94, %v207
  %v209 = vpop.f32.mrb[0].mxu0
  %210 = vmatprep.mubr.f32.mxu0 %v21
  %211 = vmatmul.mubr.f32.gmra.mrb[0].mxu0 %v20
  %v212 = vpop.f32.mrb[0].mxu0
  %v213 = vadd.f32 %v94, %v212
  %v214 = vpop.f32.mrb[0].mxu0
  %215 = vmatprep.mubr.f32.mxu0 %v24
  %216 = vmatmul.mubr.f32.gmra.mrb[0].mxu0 %v23
  %v217 = vpop.f32.mrb[0].mxu0
  %v218 = vadd.f32 %v94, %v217
  %v219 = vpop.f32.mrb[0].mxu0
  %220 = vmatprep.mubr.f32.mxu0 %v27
  %221 = vmatmul.mubr.f32.gmra.mrb[0].mxu0 %v26
  %v222 = vpop.f32.mrb[0].mxu0
  %v223 = vadd.f32 %v94, %v222
  %v224 = vpop.f32.mrb[0].mxu0
  %225 = vmatprep.mubr.f32.mxu0 %v30
  %226 = vmatmul.mubr.f32.gmra.mrb[0].mxu0 %v29
  %v227 = vpop.f32.mrb[0].mxu0
  %v228 = vadd.f32 %v94, %v227
  %v229 = vpop.f32.mrb[0].mxu0
  %230 = vmatprep.mubr.f32.mxu0 %v33
  %231 = vmatmul.mubr.f32.gmra.mrb[0].mxu0 %v32
  %v232 = vpop.f32.mrb[0].mxu0
  %v233 = vadd.f32 %v94, %v232
  %v234 = vpop.f32.mrb[0].mxu0
  %235 = vmatprep.mubr.f32.mxu0 %v36
  %236 = vmatmul.mubr.f32.gmra.mrb[0].mxu0 %v35
  %v237 = vpop.f32.mrb[0].mxu0
  %v238 = vadd.f32 %v94, %v237
  %v239 = vpop.f32.mrb[0].mxu0
  %240 = vmatprep.mubr.f32.mxu0 %v39
  %241 = vmatmul.mubr.f32.gmra.mrb[0].mxu0 %v38
  %v242 = vpop.f32.mrb[0].mxu0
  %v243 = vadd.f32 %v94, %v242
  %v244 = vpop.f32.mrb[0].mxu0
  %245 = vmatprep.mubr.f32.mxu0 %v42
  %246 = vmatmul.mubr.f32.gmra.mrb[0].mxu0 %v41
  %v247 = vpop.f32.mrb[0].mxu0
  %v248 = vadd.f32 %v94, %v247
  %v249 = vpop.f32.mrb[0].mxu0
  %250 = vmatprep.mubr.f32.mxu0 %v45
  %251 = vmatmul.mubr.f32.gmra.mrb[0].mxu0 %v44
  %v252 = vpop.f32.mrb[0].mxu0
  %v253 = vadd.f32 %v94, %v252
  %v254 = vpop.f32.mrb[0].mxu0
  %255 = vmatprep.mubr.f32.mxu0 %v48
  %256 = vmatmul.mubr.f32.gmra.mrb[0].mxu0 %v47
  %v257 = vpop.f32.mrb[0].mxu0
  %v258 = vadd.f32 %v94, %v257
  %v259 = vpop.f32.mrb[0].mxu0
  %260 = vmatprep.mubr.f32.mxu0 %v51
  %261 = vmatmul.mubr.f32.gmra.mrb[0].mxu0 %v50
  %v262 = vpop.f32.mrb[0].mxu0
  %v263 = vadd.f32 %v94, %v262
  %v264 = vpop.f32.mrb[0].mxu0
  %265 = vdwg.mxu0
  %266 = vmatprep.subr.mxu0 0.0
  %267 = vmatpush1.msra.mxu0 %v85
  %268 = vmatprep.subr.mxu0 0.0
  %269 = vmatpush1.msra.mxu0 %v86
  %270 = vmatprep.subr.mxu0 0.0
  %271 = vmatpush1.msra.mxu0 %v87
  %272 = vmatprep.subr.mxu0 0.0
  %273 = vmatpush1.msra.mxu0 %v88
  %274 = vmatprep.subr.mxu0 0.0
  %275 = vmatpush1.msra.mxu0 0.0
  %276 = vmatprep.subr.mxu0 0.0
  %277 = vmatpush1.msra.mxu0 0.0
  %278 = vmatprep.subr.mxu0 0.0
  %279 = vmatpush1.msra.mxu0 0.0
  %280 = vmatprep.subr.mxu0 0.0
  %281 = vmatpush1.msra.mxu0 0.0
  %282 = vmatprep.subr.mxu0 0.0
  %283 = vmatpush1.msra.mxu0 0.0
  %284 = vmatprep.subr.mxu0 0.0
  %285 = vmatpush1.msra.mxu0 0.0
  %286 = vmatprep.subr.mxu0 0.0
  %287 = vmatpush1.msra.mxu0 0.0
  %288 = vmatprep.subr.mxu0 0.0
  %289 = vmatpush1.msra.mxu0 0.0
  %290 = vmatprep.subr.mxu0 0.0
  %291 = vmatpush1.msra.mxu0 0.0
  %292 = vmatprep.subr.mxu0 0.0
  %293 = vmatpush1.msra.mxu0 0.0
  %294 = vmatprep.subr.mxu0 0.0
  %295 = vmatpush1.msra.mxu0 0.0
  %296 = vmatprep.subr.mxu0 0.0
  %297 = vmatpush1.msra.mxu0 0.0
  %298 = vmatprep.subr.mxu0 0.0
  %299 = vmatpush1.msra.mxu0 0.0
  %300 = vmatprep.subr.mxu0 0.0
  %301 = vmatpush1.msra.mxu0 0.0
  %302 = vmatprep.subr.mxu0 0.0
  %303 = vmatpush1.msra.mxu0 0.0
  %304 = vmatprep.subr.mxu0 0.0
  %305 = vmatpush1.msra.mxu0 0.0
  %306 = vmatprep.subr.mxu0 0.0
  %307 = vmatpush1.msra.mxu0 0.0
  %308 = vmatprep.subr.mxu0 0.0
  %309 = vmatpush1.msra.mxu0 0.0
  %310 = vmatprep.subr.mxu0 0.0
  %311 = vmatpush1.msra.mxu0 0.0
  %312 = vmatprep.subr.mxu0 0.0
  %313 = vmatpush1.msra.mxu0 0.0
  %314 = vmatprep.subr.mxu0 0.0
  %315 = vmatpush1.msra.mxu0 0.0
  %316 = vmatprep.subr.mxu0 0.0
  %317 = vmatpush1.msra.mxu0 0.0
  %318 = vmatprep.subr.mxu0 0.0
  %319 = vmatpush1.msra.mxu0 0.0
  %320 = vmatprep.subr.mxu0 0.0
  %321 = vmatpush1.msra.mxu0 0.0
  %322 = vmatprep.subr.mxu0 0.0
  %323 = vmatpush1.msra.mxu0 0.0
  %324 = vmatprep.subr.mxu0 0.0
  %325 = vmatpush1.msra.mxu0 0.0
  %326 = vmatprep.subr.mxu0 0.0
  %327 = vmatpush1.msra.mxu0 0.0
  %328 = vmatprep.subr.mxu0 0.0
  %329 = vmatpush1.msra.mxu0 0.0
  %330 = vmatprep.mubr.f32.mxu0 0.0
  %331 = vmatmul.mubr.f32.gmra.mrb[0].mxu0 %v98
  %v332 = vpop.f32.mrb[0].mxu0
  %v333 = vadd.f32 %v203, %v332
  %v334 = vpop.f32.mrb[0].mxu0
  %335 = vmatprep.mubr.f32.mxu0 0.0
  %336 = vmatmul.mubr.f32.gmra.mrb[0].mxu0 %v101
  %v337 = vpop.f32.mrb[0].mxu0
  %v338 = vadd.f32 %v208, %v337
  %v339 = vpop.f32.mrb[0].mxu0
  %340 = vmatprep.mubr.f32.mxu0 0.0
  %341 = vmatmul.mubr.f32.gmra.mrb[0].mxu0 %v104
  %v342 = vpop.f32.mrb[0].mxu0
  %v343 = vadd.f32 %v213, %v342
  %v344 = vpop.f32.mrb[0].mxu0
  %345 = vmatprep.mubr.f32.mxu0 0.0
  %346 = vmatmul.mubr.f32.gmra.mrb[0].mxu0 %v107
  %v347 = vpop.f32.mrb[0].mxu0
  %v348 = vadd.f32 %v218, %v347
  %v349 = vpop.f32.mrb[0].mxu0
  %350 = vmatprep.mubr.f32.mxu0 0.0
  %351 = vmatmul.mubr.f32.gmra.mrb[0].mxu0 %v110
  %v352 = vpop.f32.mrb[0].mxu0
  %v353 = vadd.f32 %v223, %v352
  %v354 = vpop.f32.mrb[0].mxu0
  %355 = vmatprep.mubr.f32.mxu0 0.0
  %356 = vmatmul.mubr.f32.gmra.mrb[0].mxu0 %v113
  %v357 = vpop.f32.mrb[0].mxu0
  %v358 = vadd.f32 %v228, %v357
  %v359 = vpop.f32.mrb[0].mxu0
  %360 = vmatprep.mubr.f32.mxu0 0.0
  %361 = vmatmul.mubr.f32.gmra.mrb[0].mxu0 %v116
  %v362 = vpop.f32.mrb[0].mxu0
  %v363 = vadd.f32 %v233, %v362
  %v364 = vpop.f32.mrb[0].mxu0
  %365 = vmatprep.mubr.f32.mxu0 0.0
  %366 = vmatmul.mubr.f32.gmra.mrb[0].mxu0 %v119
  %v367 = vpop.f32.mrb[0].mxu0
  %v368 = vadd.f32 %v238, %v367
  %v369 = vpop.f32.mrb[0].mxu0
  %370 = vmatprep.mubr.f32.mxu0 0.0
  %371 = vmatmul.mubr.f32.gmra.mrb[0].mxu0 %v122
  %v372 = vpop.f32.mrb[0].mxu0
  %v373 = vadd.f32 %v243, %v372
  %v374 = vpop.f32.mrb[0].mxu0
  %375 = vmatprep.mubr.f32.mxu0 0.0
  %376 = vmatmul.mubr.f32.gmra.mrb[0].mxu0 %v125
  %v377 = vpop.f32.mrb[0].mxu0
  %v378 = vadd.f32 %v248, %v377
  %v379 = vpop.f32.mrb[0].mxu0
  %380 = vmatprep.mubr.f32.mxu0 0.0
  %381 = vmatmul.mubr.f32.gmra.mrb[0].mxu0 %v128
  %v382 = vpop.f32.mrb[0].mxu0
  %v383 = vadd.f32 %v253, %v382
  %v384 = vpop.f32.mrb[0].mxu0
  %385 = vmatprep.mubr.f32.mxu0 0.0
  %386 = vmatmul.mubr.f32.gmra.mrb[0].mxu0 %v131
  %v387 = vpop.f32.mrb[0].mxu0
  %v388 = vadd.f32 %v258, %v387
  %v389 = vpop.f32.mrb[0].mxu0
  %390 = vmatprep.mubr.f32.mxu0 0.0
  %391 = vmatmul.mubr.f32.gmra.mrb[0].mxu0 %v134
  %v392 = vpop.f32.mrb[0].mxu0
  %v393 = vadd.f32 %v263, %v392
  %v394 = vpop.f32.mrb[0].mxu0
  %395 = vdwg.mxu0
  %v396 = vmax.f32 %v333, 0.0
  %v397 = vmax.f32 %v338, 0.0
  %v398 = vmax.f32 %v343, 0.0
  %v399 = vmax.f32 %v348, 0.0
  %v400 = vmax.f32 %v353, 0.0
  %v401 = vmax.f32 %v358, 0.0
  %v402 = vmax.f32 %v363, 0.0
  %v403 = vmax.f32 %v368, 0.0
  %v404 = vmax.f32 %v373, 0.0
  %v405 = vmax.f32 %v378, 0.0
  %v406 = vmax.f32 %v383, 0.0
  %v407 = vmax.f32 %v388, 0.0
  %v408 = vmax.f32 %v393, 0.0
  %v409 = vpack.c.bf16 %v397, %v396
  %v410 = vpack.c.bf16 %v399, %v398
  %v411 = vpack.c.bf16 %v401, %v400
  %v412 = vpack.c.bf16 %v403, %v402
  %v413 = vpack.c.bf16 %v405, %v404
  %v414 = vpack.c.bf16 %v407, %v406
  %v415 = vpack.c.bf16 %v408, %v408
  %v423 = vunpack.c.l.b16 %v409
  %v424 = vunpack.c.h.b16 %v409
  %v425 = vunpack.c.l.b16 %v410
  %v426 = vunpack.c.h.b16 %v410
  %v427 = vunpack.c.l.b16 %v411
  %v428 = vunpack.c.h.b16 %v411
  %v429 = vunpack.c.l.b16 %v412
  %v430 = vunpack.c.h.b16 %v412
  %v431 = vunpack.c.l.b16 %v413
  %v432 = vunpack.c.h.b16 %v413
  %v433 = vunpack.c.l.b16 %v414
  %v434 = vunpack.c.h.b16 %v414
  %v435 = vunpack.c.l.b16 %v415
  %v436 = vpack.c.b16 %v423, %v423
  %v437 = vpack.c.b16 %v424, %v424
  %v438 = vpack.c.b16 %v425, %v425
  %v439 = vpack.c.b16 %v426, %v426
  %v440 = vpack.c.b16 %v427, %v427
  %v441 = vpack.c.b16 %v428, %v428
  %v442 = vpack.c.b16 %v429, %v429
  %v443 = vpack.c.b16 %v430, %v430
  %v444 = vpack.c.b16 %v431, %v431
  %v445 = vpack.c.b16 %v432, %v432
  %v446 = vpack.c.b16 %v433, %v433
  %v447 = vpack.c.b16 %v434, %v434
  %v448 = vpack.c.b16 %v435, %v435
  %vm462 = vcmask 257024
  %463 = vst.msk [vmem:[%s3] sm:$0xf] %vm462, %v436
  %464 = vst.msk [vmem:[%s3 + $0x4] sm:$0xf] %vm462, %v437
  %465 = vst.msk [vmem:[%s3 + $0x8] sm:$0xf] %vm462, %v438
  %466 = vst.msk [vmem:[%s3 + $0xc] sm:$0xf] %vm462, %v439
  %467 = vst.msk [vmem:[%s3 + $0x10] sm:$0xf] %vm462, %v440
  %468 = vst.msk [vmem:[%s3 + $0x14] sm:$0xf] %vm462, %v441
  %469 = vst.msk [vmem:[%s3 + $0x18] sm:$0xf] %vm462, %v442
  %470 = vst.msk [vmem:[%s3 + $0x1c] sm:$0xf] %vm462, %v443
  %471 = vst.msk [vmem:[%s3 + $0x20] sm:$0xf] %vm462, %v444
  %472 = vst.msk [vmem:[%s3 + $0x24] sm:$0xf] %vm462, %v445
  %473 = vst.msk [vmem:[%s3 + $0x28] sm:$0xf] %vm462, %v446
  %474 = vst.msk [vmem:[%s3 + $0x2c] sm:$0xf] %vm462, %v447
  %vm475 = vcmask 253952
  %476 = vst.msk [vmem:[%s3 + $0x30] sm:$0x1] %vm475, %v448
  // Predicated region
  $region14: #{qnetwork_forward.6} parent=0 // pred_check
    _
  $region15: #{qnetwork_forward.6} parent=0 // pred_check_branch
    %478 = sbr.rel (0) target = $region17
  $region16: #{qnetwork_forward.6} parent=0 // pred_region
    _
  $region17: #{qnetwork_forward.6} parent=0 // pred_fallthru
    _
  // Predicated region
  $region18: #{qnetwork_forward.6} parent=0 // pred_check
    _
  $region19: #{qnetwork_forward.6} parent=0 // pred_check_branch
    %480 = sbr.rel (0) target = $region21
  $region20: #{qnetwork_forward.6} parent=0 // pred_region
    _
  $region21: #{qnetwork_forward.6} parent=0 // pred_fallthru
    _

// kernel: qnetwork_forward.7
$region0: #{qnetwork_forward.7}
  #allocation0 [shape = 'u32[]', space=smem, size = 0x4, offset = 0x4, fixed_abs, tag = 'smem constant byte address 0x4 - core index']
  #allocation1 [shape = 'u32[144,128]{1,0:T(1,128)}', space=vmem, size = 0x12000, scoped, tag = 'internal scratch']
  #allocation2 [shape = 'f32[1,1]{1,0:T(1,128)S(1)}', space=vmem, size = 0x200, scoped, tag = 'scoped memory for qnetwork_forward.7']
  %s0 = inlined_call_operand.vmem [shape: bf16[2,1568], index: 0, kind: input, shape index: {}]
  %s1 = inlined_call_operand.vmem [shape: bf16[1568,1024], index: 1, kind: input, shape index: {}]
  %s2 = inlined_call_operand.vmem [shape: f32[1,1024], index: 2, kind: input, shape index: {}]
  %s3 = inlined_call_operand.vmem [shape: f32[512,6], index: 3, kind: input, shape index: {}]
  %s4 = inlined_call_operand.vmem [shape: f32[1,6], index: 4, kind: input, shape index: {}]
  %s5 = inlined_call_operand.vmem [shape: f32[512,1], index: 5, kind: input, shape index: {}]
  %s6 = inlined_call_operand.<no memory space> [shape: f32[1,1], index: 6, kind: input, shape index: {}]
  %s7 = inlined_call_operand.hbm [shape: f32[1,2,6], index: 7, kind: output, shape index: {}]
  %s8 = sld [smem:[#allocation0]]
  $region38: #{qnetwork_forward.7} parent=0
    _
  %s10 = ssub.s32 1, %s8
  %s11 = scalar_select 0, %s10, %s8
  %v12 = vstv %s6
  %13 = vst [vmem:[#allocation2] sm:$0x1] %v12
  $region1: #{qnetwork_forward.7} parent=0
    #allocation3 [shape = 'u8[1024]{0}', space=vmem, size = 0x400, scoped, tag = 'output window, operand 0, single buffered']
    #allocation4 [shape = 's32[1]{0}', space=sflag, size = 0x4, scoped, tag = 'scoped memory for qnetwork_forward.7']
    %14 = vsyncpa [#allocation4], 0
    // Predicated region
    $region2: #{qnetwork_forward.7} parent=1 // pred_check
      _
    $region3: #{qnetwork_forward.7} parent=1 // pred_check_branch
      %16 = sbr.rel (0) target = $region5
    $region4: #{qnetwork_forward.7} parent=1 // pred_region
      _
    $region5: #{qnetwork_forward.7} parent=1 // pred_fallthru
      _
    // Predicated region
    $region6: #{qnetwork_forward.7} parent=1 // pred_check
      _
    $region7: #{qnetwork_forward.7} parent=1 // pred_check_branch
      %18 = sbr.rel (0) target = $region9
    $region8: #{qnetwork_forward.7} parent=1 // pred_region
      _
    $region9: #{qnetwork_forward.7} parent=1 // pred_fallthru
      _
    // Predicated region
    $region10: #{qnetwork_forward.7} parent=1 // pred_check
      _
    $region11: #{qnetwork_forward.7} parent=1 // pred_check_branch
      %20 = sbr.rel (0) target = $region13
    $region12: #{qnetwork_forward.7} parent=1 // pred_region
      _
    $region13: #{qnetwork_forward.7} parent=1 // pred_fallthru
      _
    // Predicated region
    $region14: #{qnetwork_forward.7} parent=1 // pred_check
      _
    $region15: #{qnetwork_forward.7} parent=1 // pred_check_branch
      %22 = sbr.rel (0) target = $region17
    $region16: #{qnetwork_forward.7} parent=1 // pred_region
      _
    $region17: #{qnetwork_forward.7} parent=1 // pred_fallthru
      _
    // Predicated region
    $region18: #{qnetwork_forward.7} parent=1 // pred_check
      _
    $region19: #{qnetwork_forward.7} parent=1 // pred_check_branch
      %24 = sbr.rel (0) target = $region21
    $region20: #{qnetwork_forward.7} parent=1 // pred_region
      _
    $region21: #{qnetwork_forward.7} parent=1 // pred_fallthru
      _
    // Predicated region
    $region22: #{qnetwork_forward.7} parent=1 // pred_check
      _
    $region23: #{qnetwork_forward.7} parent=1 // pred_check_branch
      %26 = sbr.rel (0) target = $region25
    $region24: #{qnetwork_forward.7} parent=1 // pred_region
      _
    $region25: #{qnetwork_forward.7} parent=1 // pred_fallthru
      _
    // Predicated region
    $region26: #{qnetwork_forward.7} parent=1 // pred_check
      _
    $region27: #{qnetwork_forward.7} parent=1 // pred_check_branch
      %28 = sbr.rel (0) target = $region29
    $region28: #{qnetwork_forward.7} parent=1 // pred_region
      _
    $region29: #{qnetwork_forward.7} parent=1 // pred_fallthru
      _
    %v30 = vld [vmem:[%s0] sm:$0xff]
    %v31 = vld [vmem:[%s0 + $0x8] sm:$0x1f]
    %v32 = vld [vmem:[%s1] sm:$0xff]
    %v33 = vld [vmem:[%s1 + $0x8] sm:$0xff]
    %v34 = vld [vmem:[%s1 + $0x10] sm:$0xff]
    %v35 = vld [vmem:[%s1 + $0x18] sm:$0xff]
    %v36 = vld [vmem:[%s1 + $0x20] sm:$0xff]
    %v37 = vld [vmem:[%s1 + $0x28] sm:$0xff]
    %v38 = vld [vmem:[%s1 + $0x30] sm:$0xff]
    %v39 = vld [vmem:[%s1 + $0x38] sm:$0xff]
    %v40 = vld [vmem:[%s1 + $0x40] sm:$0xff]
    %v41 = vld [vmem:[%s1 + $0x48] sm:$0xff]
    %v42 = vld [vmem:[%s1 + $0x50] sm:$0xff]
    %v43 = vld [vmem:[%s1 + $0x58] sm:$0xff]
    %v44 = vld [vmem:[%s1 + $0x60] sm:$0xff]
    %v45 = vld [vmem:[%s1 + $0x68] sm:$0xff]
    %v46 = vld [vmem:[%s1 + $0x70] sm:$0xff]
    %v47 = vld [vmem:[%s1 + $0x78] sm:$0xff]
    %v48 = vld [vmem:[%s1 + $0x80] sm:$0xff]
    %v49 = vld [vmem:[%s1 + $0x88] sm:$0xff]
    %v50 = vld [vmem:[%s1 + $0x90] sm:$0xff]
    %v51 = vld [vmem:[%s1 + $0x98] sm:$0xff]
    %v52 = vld [vmem:[%s1 + $0xa0] sm:$0xff]
    %v53 = vld [vmem:[%s1 + $0xa8] sm:$0xff]
    %v54 = vld [vmem:[%s1 + $0xb0] sm:$0xff]
    %v55 = vld [vmem:[%s1 + $0xb8] sm:$0xff]
    %v56 = vld [vmem:[%s1 + $0xc0] sm:$0xff]
    %v57 = vld [vmem:[%s1 + $0xc8] sm:$0xff]
    %v58 = vld [vmem:[%s1 + $0xd0] sm:$0xff]
    %v59 = vld [vmem:[%s1 + $0xd8] sm:$0xff]
    %v60 = vld [vmem:[%s1 + $0xe0] sm:$0xff]
    %v61 = vld [vmem:[%s1 + $0xe8] sm:$0xff]
    %v62 = vld [vmem:[%s1 + $0xf0] sm:$0xff]
    %v63 = vld [vmem:[%s1 + $0xf8] sm:$0xff]
    %v64 = vld [vmem:[%s1 + $0x100] sm:$0xff]
    %v65 = vld [vmem:[%s1 + $0x108] sm:$0xff]
    %v66 = vld [vmem:[%s1 + $0x110] sm:$0xff]
    %v67 = vld [vmem:[%s1 + $0x118] sm:$0xff]
    %v68 = vld [vmem:[%s1 + $0x120] sm:$0xff]
    %v69 = vld [vmem:[%s1 + $0x128] sm:$0xff]
    %v70 = vld [vmem:[%s1 + $0x130] sm:$0xff]
    %v71 = vld [vmem:[%s1 + $0x138] sm:$0xff]
    %v72 = vld [vmem:[%s1 + $0x140] sm:$0xff]
    %v73 = vld [vmem:[%s1 + $0x148] sm:$0xff]
    %v74 = vld [vmem:[%s1 + $0x150] sm:$0xff]
    %v75 = vld [vmem:[%s1 + $0x158] sm:$0xff]
    %v76 = vld [vmem:[%s1 + $0x160] sm:$0xff]
    %v77 = vld [vmem:[%s1 + $0x168] sm:$0xff]
    %v78 = vld [vmem:[%s1 + $0x170] sm:$0xff]
    %v79 = vld [vmem:[%s1 + $0x178] sm:$0xff]
    %v80 = vld [vmem:[%s1 + $0x180] sm:$0xff]
    %v81 = vld [vmem:[%s1 + $0x188] sm:$0xff]
    %v82 = vld [vmem:[%s1 + $0x190] sm:$0xff]
    %v83 = vld [vmem:[%s1 + $0x198] sm:$0xff]
    %v84 = vld [vmem:[%s1 + $0x1a0] sm:$0xff]
    %v85 = vld [vmem:[%s1 + $0x1a8] sm:$0xff]
    %v86 = vld [vmem:[%s1 + $0x1b0] sm:$0xff]
    %v87 = vld [vmem:[%s1 + $0x1b8] sm:$0xff]
    %v88 = vld [vmem:[%s1 + $0x1c0] sm:$0xff]
    %v89 = vld [vmem:[%s1 + $0x1c8] sm:$0xff]
    %v90 = vld [vmem:[%s1 + $0x1d0] sm:$0xff]
    %v91 = vld [vmem:[%s1 + $0x1d8] sm:$0xff]
    %v92 = vld [vmem:[%s1 + $0x1e0] sm:$0xff]
    %v93 = vld [vmem:[%s1 + $0x1e8] sm:$0xff]
    %v94 = vld [vmem:[%s1 + $0x1f0] sm:$0xff]
    %v95 = vld [vmem:[%s1 + $0x1f8] sm:$0xff]
    %v96 = vld [vmem:[%s1 + $0x200] sm:$0xff]
    %v97 = vld [vmem:[%s1 + $0x208] sm:$0xff]
    %v98 = vld [vmem:[%s1 + $0x210] sm:$0xff]
    %v99 = vld [vmem:[%s1 + $0x218] sm:$0xff]
    %v100 = vld [vmem:[%s1 + $0x220] sm:$0xff]
    %v101 = vld [vmem:[%s1 + $0x228] sm:$0xff]
    %v102 = vld [vmem:[%s1 + $0x230] sm:$0xff]
    %v103 = vld [vmem:[%s1 + $0x238] sm:$0xff]
    %v104 = vld [vmem:[%s1 + $0x240] sm:$0xff]
    %v105 = vld [vmem:[%s1 + $0x248] sm:$0xff]
    %v106 = vld [vmem:[%s1 + $0x250] sm:$0xff]
    %v107 = vld [vmem:[%s1 + $0x258] sm:$0xff]
    %v108 = vld [vmem:[%s1 + $0x260] sm:$0xff]
    %v109 = vld [vmem:[%s1 + $0x268] sm:$0xff]
    %v110 = vld [vmem:[%s1 + $0x270] sm:$0xff]
    %v111 = vld [vmem:[%s1 + $0x278] sm:$0xff]
    %v112 = vld [vmem:[%s1 + $0x280] sm:$0xff]
    %v113 = vld [vmem:[%s1 + $0x288] sm:$0xff]
    %v114 = vld [vmem:[%s1 + $0x290] sm:$0xff]
    %v115 = vld [vmem:[%s1 + $0x298] sm:$0xff]
    %v116 = vld [vmem:[%s1 + $0x2a0] sm:$0xff]
    %v117 = vld [vmem:[%s1 + $0x2a8] sm:$0xff]
    %v118 = vld [vmem:[%s1 + $0x2b0] sm:$0xff]
    %v119 = vld [vmem:[%s1 + $0x2b8] sm:$0xff]
    %v120 = vld [vmem:[%s1 + $0x2c0] sm:$0xff]
    %v121 = vld [vmem:[%s1 + $0x2c8] sm:$0xff]
    %v122 = vld [vmem:[%s1 + $0x2d0] sm:$0xff]
    %v123 = vld [vmem:[%s1 + $0x2d8] sm:$0xff]
    %v124 = vld [vmem:[%s1 + $0x2e0] sm:$0xff]
    %v125 = vld [vmem:[%s1 + $0x2e8] sm:$0xff]
    %v126 = vld [vmem:[%s1 + $0x2f0] sm:$0xff]
    %v127 = vld [vmem:[%s1 + $0x2f8] sm:$0xff]
    %v128 = vld [vmem:[%s1 + $0x300] sm:$0xff]
    %v129 = vld [vmem:[%s1 + $0x308] sm:$0xff]
    %v130 = vld [vmem:[%s1 + $0x310] sm:$0xff]
    %v131 = vld [vmem:[%s1 + $0x318] sm:$0xff]
    %v132 = vld [vmem:[%s1 + $0x320] sm:$0xff]
    %v133 = vld [vmem:[%s1 + $0x328] sm:$0xff]
    %v134 = vld [vmem:[%s1 + $0x330] sm:$0xff]
    %v135 = vld [vmem:[%s1 + $0x338] sm:$0xff]
    %v136 = vld [vmem:[%s1 + $0x340] sm:$0xff]
    %v137 = vld [vmem:[%s1 + $0x348] sm:$0xff]
    %v138 = vld [vmem:[%s1 + $0x350] sm:$0xff]
    %v139 = vld [vmem:[%s1 + $0x358] sm:$0xff]
    %v140 = vld [vmem:[%s1 + $0x360] sm:$0xff]
    %v141 = vld [vmem:[%s1 + $0x368] sm:$0xff]
    %v142 = vld [vmem:[%s1 + $0x370] sm:$0xff]
    %v143 = vld [vmem:[%s1 + $0x378] sm:$0xff]
    %v144 = vld [vmem:[%s1 + $0x380] sm:$0xff]
    %v145 = vld [vmem:[%s1 + $0x388] sm:$0xff]
    %v146 = vld [vmem:[%s1 + $0x390] sm:$0xff]
    %v147 = vld [vmem:[%s1 + $0x398] sm:$0xff]
    %v148 = vld [vmem:[%s1 + $0x3a0] sm:$0xff]
    %v149 = vld [vmem:[%s1 + $0x3a8] sm:$0xff]
    %v150 = vld [vmem:[%s1 + $0x3b0] sm:$0xff]
    %v151 = vld [vmem:[%s1 + $0x3b8] sm:$0xff]
    %v152 = vld [vmem:[%s1 + $0x3c0] sm:$0xff]
    %v153 = vld [vmem:[%s1 + $0x3c8] sm:$0xff]
    %v154 = vld [vmem:[%s1 + $0x3d0] sm:$0xff]
    %v155 = vld [vmem:[%s1 + $0x3d8] sm:$0xff]
    %v156 = vld [vmem:[%s1 + $0x3e0] sm:$0xff]
    %v157 = vld [vmem:[%s1 + $0x3e8] sm:$0xff]
    %v158 = vld [vmem:[%s1 + $0x3f0] sm:$0xff]
    %v159 = vld [vmem:[%s1 + $0x3f8] sm:$0xff]
    %v160 = vld [vmem:[%s1 + $0x400] sm:$0xff]
    %v161 = vld [vmem:[%s1 + $0x408] sm:$0xff]
    %v162 = vld [vmem:[%s1 + $0x410] sm:$0xff]
    %v163 = vld [vmem:[%s1 + $0x418] sm:$0xff]
    %v164 = vld [vmem:[%s1 + $0x420] sm:$0xff]
    %v165 = vld [vmem:[%s1 + $0x428] sm:$0xff]
    %v166 = vld [vmem:[%s1 + $0x430] sm:$0xff]
    %v167 = vld [vmem:[%s1 + $0x438] sm:$0xff]
    %v168 = vld [vmem:[%s1 + $0x440] sm:$0xff]
    %v169 = vld [vmem:[%s1 + $0x448] sm:$0xff]
    %v170 = vld [vmem:[%s1 + $0x450] sm:$0xff]
    %v171 = vld [vmem:[%s1 + $0x458] sm:$0xff]
    %v172 = vld [vmem:[%s1 + $0x460] sm:$0xff]
    %v173 = vld [vmem:[%s1 + $0x468] sm:$0xff]
    %v174 = vld [vmem:[%s1 + $0x470] sm:$0xff]
    %v175 = vld [vmem:[%s1 + $0x478] sm:$0xff]
    %v176 = vld [vmem:[%s1 + $0x480] sm:$0xff]
    %v177 = vld [vmem:[%s1 + $0x488] sm:$0xff]
    %v178 = vld [vmem:[%s1 + $0x490] sm:$0xff]
    %v179 = vld [vmem:[%s1 + $0x498] sm:$0xff]
    %v180 = vld [vmem:[%s1 + $0x4a0] sm:$0xff]
    %v181 = vld [vmem:[%s1 + $0x4a8] sm:$0xff]
    %v182 = vld [vmem:[%s1 + $0x4b0] sm:$0xff]
    %v183 = vld [vmem:[%s1 + $0x4b8] sm:$0xff]
    %v184 = vld [vmem:[%s1 + $0x4c0] sm:$0xff]
    %v185 = vld [vmem:[%s1 + $0x4c8] sm:$0xff]
    %v186 = vld [vmem:[%s1 + $0x4d0] sm:$0xff]
    %v187 = vld [vmem:[%s1 + $0x4d8] sm:$0xff]
    %v188 = vld [vmem:[%s1 + $0x4e0] sm:$0xff]
    %v189 = vld [vmem:[%s1 + $0x4e8] sm:$0xff]
    %v190 = vld [vmem:[%s1 + $0x4f0] sm:$0xff]
    %v191 = vld [vmem:[%s1 + $0x4f8] sm:$0xff]
    %v192 = vld [vmem:[%s1 + $0x500] sm:$0xff]
    %v193 = vld [vmem:[%s1 + $0x508] sm:$0xff]
    %v194 = vld [vmem:[%s1 + $0x510] sm:$0xff]
    %v195 = vld [vmem:[%s1 + $0x518] sm:$0xff]
    %v196 = vld [vmem:[%s1 + $0x520] sm:$0xff]
    %v197 = vld [vmem:[%s1 + $0x528] sm:$0xff]
    %v198 = vld [vmem:[%s1 + $0x530] sm:$0xff]
    %v199 = vld [vmem:[%s1 + $0x538] sm:$0xff]
    %v200 = vld [vmem:[%s1 + $0x540] sm:$0xff]
    %v201 = vld [vmem:[%s1 + $0x548] sm:$0xff]
    %v202 = vld [vmem:[%s1 + $0x550] sm:$0xff]
    %v203 = vld [vmem:[%s1 + $0x558] sm:$0xff]
    %v204 = vld [vmem:[%s1 + $0x560] sm:$0xff]
    %v205 = vld [vmem:[%s1 + $0x568] sm:$0xff]
    %v206 = vld [vmem:[%s1 + $0x570] sm:$0xff]
    %v207 = vld [vmem:[%s1 + $0x578] sm:$0xff]
    %v208 = vld [vmem:[%s1 + $0x580] sm:$0xff]
    %v209 = vld [vmem:[%s1 + $0x588] sm:$0xff]
    %v210 = vld [vmem:[%s1 + $0x590] sm:$0xff]
    %v211 = vld [vmem:[%s1 + $0x598] sm:$0xff]
    %v212 = vld [vmem:[%s1 + $0x5a0] sm:$0xff]
    %v213 = vld [vmem:[%s1 + $0x5a8] sm:$0xff]
    %v214 = vld [vmem:[%s1 + $0x5b0] sm:$0xff]
    %v215 = vld [vmem:[%s1 + $0x5b8] sm:$0xff]
    %v216 = vld [vmem:[%s1 + $0x5c0] sm:$0xff]
    %v217 = vld [vmem:[%s1 + $0x5c8] sm:$0xff]
    %v218 = vld [vmem:[%s1 + $0x5d0] sm:$0xff]
    %v219 = vld [vmem:[%s1 + $0x5d8] sm:$0xff]
    %v220 = vld [vmem:[%s1 + $0x5e0] sm:$0xff]
    %v221 = vld [vmem:[%s1 + $0x5e8] sm:$0xff]
    %v222 = vld [vmem:[%s1 + $0x5f0] sm:$0xff]
    %v223 = vld [vmem:[%s1 + $0x5f8] sm:$0xff]
    %v224 = vld [vmem:[%s1 + $0x600] sm:$0xff]
    %v225 = vld [vmem:[%s1 + $0x608] sm:$0xff]
    %v226 = vld [vmem:[%s1 + $0x610] sm:$0xff]
    %v227 = vld [vmem:[%s1 + $0x618] sm:$0xff]
    %v228 = vld [vmem:[%s1 + $0x620] sm:$0xff]
    %v229 = vld [vmem:[%s1 + $0x628] sm:$0xff]
    %v230 = vld [vmem:[%s1 + $0x630] sm:$0xff]
    %v231 = vld [vmem:[%s1 + $0x638] sm:$0xff]
    %v232 = vld [vmem:[%s1 + $0x640] sm:$0xff]
    %v233 = vld [vmem:[%s1 + $0x648] sm:$0xff]
    %v234 = vld [vmem:[%s1 + $0x650] sm:$0xff]
    %v235 = vld [vmem:[%s1 + $0x658] sm:$0xff]
    %v236 = vld [vmem:[%s1 + $0x660] sm:$0xff]
    %v237 = vld [vmem:[%s1 + $0x668] sm:$0xff]
    %v238 = vld [vmem:[%s1 + $0x670] sm:$0xff]
    %v239 = vld [vmem:[%s1 + $0x678] sm:$0xff]
    %v240 = vld [vmem:[%s1 + $0x680] sm:$0xff]
    %v241 = vld [vmem:[%s1 + $0x688] sm:$0xff]
    %v242 = vld [vmem:[%s1 + $0x690] sm:$0xff]
    %v243 = vld [vmem:[%s1 + $0x698] sm:$0xff]
    %v244 = vld [vmem:[%s1 + $0x6a0] sm:$0xff]
    %v245 = vld [vmem:[%s1 + $0x6a8] sm:$0xff]
    %v246 = vld [vmem:[%s1 + $0x6b0] sm:$0xff]
    %v247 = vld [vmem:[%s1 + $0x6b8] sm:$0xff]
    %v248 = vld [vmem:[%s1 + $0x6c0] sm:$0xff]
    %v249 = vld [vmem:[%s1 + $0x6c8] sm:$0xff]
    %v250 = vld [vmem:[%s1 + $0x6d0] sm:$0xff]
    %v251 = vld [vmem:[%s1 + $0x6d8] sm:$0xff]
    %v252 = vld [vmem:[%s1 + $0x6e0] sm:$0xff]
    %v253 = vld [vmem:[%s1 + $0x6e8] sm:$0xff]
    %v254 = vld [vmem:[%s1 + $0x6f0] sm:$0xff]
    %v255 = vld [vmem:[%s1 + $0x6f8] sm:$0xff]
    %v256 = vld [vmem:[%s1 + $0x700] sm:$0xff]
    %v257 = vld [vmem:[%s1 + $0x708] sm:$0xff]
    %v258 = vld [vmem:[%s1 + $0x710] sm:$0xff]
    %v259 = vld [vmem:[%s1 + $0x718] sm:$0xff]
    %v260 = vld [vmem:[%s1 + $0x720] sm:$0xff]
    %v261 = vld [vmem:[%s1 + $0x728] sm:$0xff]
    %v262 = vld [vmem:[%s1 + $0x730] sm:$0xff]
    %v263 = vld [vmem:[%s1 + $0x738] sm:$0xff]
    %v264 = vld [vmem:[%s1 + $0x740] sm:$0xff]
    %v265 = vld [vmem:[%s1 + $0x748] sm:$0xff]
    %v266 = vld [vmem:[%s1 + $0x750] sm:$0xff]
    %v267 = vld [vmem:[%s1 + $0x758] sm:$0xff]
    %v268 = vld [vmem:[%s1 + $0x760] sm:$0xff]
    %v269 = vld [vmem:[%s1 + $0x768] sm:$0xff]
    %v270 = vld [vmem:[%s1 + $0x770] sm:$0xff]
    %v271 = vld [vmem:[%s1 + $0x778] sm:$0xff]
    %v272 = vld [vmem:[%s1 + $0x780] sm:$0xff]
    %v273 = vld [vmem:[%s1 + $0x788] sm:$0xff]
    %v274 = vld [vmem:[%s1 + $0x790] sm:$0xff]
    %v275 = vld [vmem:[%s1 + $0x798] sm:$0xff]
    %v276 = vld [vmem:[%s1 + $0x7a0] sm:$0xff]
    %v277 = vld [vmem:[%s1 + $0x7a8] sm:$0xff]
    %v278 = vld [vmem:[%s1 + $0x7b0] sm:$0xff]
    %v279 = vld [vmem:[%s1 + $0x7b8] sm:$0xff]
    %v280 = vld [vmem:[%s1 + $0x7c0] sm:$0xff]
    %v281 = vld [vmem:[%s1 + $0x7c8] sm:$0xff]
    %v282 = vld [vmem:[%s1 + $0x7d0] sm:$0xff]
    %v283 = vld [vmem:[%s1 + $0x7d8] sm:$0xff]
    %v284 = vld [vmem:[%s1 + $0x7e0] sm:$0xff]
    %v285 = vld [vmem:[%s1 + $0x7e8] sm:$0xff]
    %v286 = vld [vmem:[%s1 + $0x7f0] sm:$0xff]
    %v287 = vld [vmem:[%s1 + $0x7f8] sm:$0xff]
    %v288 = vld [vmem:[%s1 + $0x800] sm:$0xff]
    %v289 = vld [vmem:[%s1 + $0x808] sm:$0xff]
    %v290 = vld [vmem:[%s1 + $0x810] sm:$0xff]
    %v291 = vld [vmem:[%s1 + $0x818] sm:$0xff]
    %v292 = vld [vmem:[%s1 + $0x820] sm:$0xff]
    %v293 = vld [vmem:[%s1 + $0x828] sm:$0xff]
    %v294 = vld [vmem:[%s1 + $0x830] sm:$0xff]
    %v295 = vld [vmem:[%s1 + $0x838] sm:$0xff]
    %v296 = vld [vmem:[%s1 + $0x840] sm:$0xff]
    %v297 = vld [vmem:[%s1 + $0x848] sm:$0xff]
    %v298 = vld [vmem:[%s1 + $0x850] sm:$0xff]
    %v299 = vld [vmem:[%s1 + $0x858] sm:$0xff]
    %v300 = vld [vmem:[%s1 + $0x860] sm:$0xff]
    %v301 = vld [vmem:[%s1 + $0x868] sm:$0xff]
    %v302 = vld [vmem:[%s1 + $0x870] sm:$0xff]
    %v303 = vld [vmem:[%s1 + $0x878] sm:$0xff]
    %v304 = vld [vmem:[%s1 + $0x880] sm:$0xff]
    %v305 = vld [vmem:[%s1 + $0x888] sm:$0xff]
    %v306 = vld [vmem:[%s1 + $0x890] sm:$0xff]
    %v307 = vld [vmem:[%s1 + $0x898] sm:$0xff]
    %v308 = vld [vmem:[%s1 + $0x8a0] sm:$0xff]
    %v309 = vld [vmem:[%s1 + $0x8a8] sm:$0xff]
    %v310 = vld [vmem:[%s1 + $0x8b0] sm:$0xff]
    %v311 = vld [vmem:[%s1 + $0x8b8] sm:$0xff]
    %v312 = vld [vmem:[%s1 + $0x8c0] sm:$0xff]
    %v313 = vld [vmem:[%s1 + $0x8c8] sm:$0xff]
    %v314 = vld [vmem:[%s1 + $0x8d0] sm:$0xff]
    %v315 = vld [vmem:[%s1 + $0x8d8] sm:$0xff]
    %v316 = vld [vmem:[%s1 + $0x8e0] sm:$0xff]
    %v317 = vld [vmem:[%s1 + $0x8e8] sm:$0xff]
    %v318 = vld [vmem:[%s1 + $0x8f0] sm:$0xff]
    %v319 = vld [vmem:[%s1 + $0x8f8] sm:$0xff]
    %v320 = vld [vmem:[%s1 + $0x900] sm:$0xff]
    %v321 = vld [vmem:[%s1 + $0x908] sm:$0xff]
    %v322 = vld [vmem:[%s1 + $0x910] sm:$0xff]
    %v323 = vld [vmem:[%s1 + $0x918] sm:$0xff]
    %v324 = vld [vmem:[%s1 + $0x920] sm:$0xff]
    %v325 = vld [vmem:[%s1 + $0x928] sm:$0xff]
    %v326 = vld [vmem:[%s1 + $0x930] sm:$0xff]
    %v327 = vld [vmem:[%s1 + $0x938] sm:$0xff]
    %v328 = vld [vmem:[%s1 + $0x940] sm:$0xff]
    %v329 = vld [vmem:[%s1 + $0x948] sm:$0xff]
    %v330 = vld [vmem:[%s1 + $0x950] sm:$0xff]
    %v331 = vld [vmem:[%s1 + $0x958] sm:$0xff]
    %v332 = vld [vmem:[%s1 + $0x960] sm:$0xff]
    %v333 = vld [vmem:[%s1 + $0x968] sm:$0xff]
    %v334 = vld [vmem:[%s1 + $0x970] sm:$0xff]
    %v335 = vld [vmem:[%s1 + $0x978] sm:$0xff]
    %v336 = vld [vmem:[%s1 + $0x980] sm:$0xff]
    %v337 = vld [vmem:[%s1 + $0x988] sm:$0xff]
    %v338 = vld [vmem:[%s1 + $0x990] sm:$0xff]
    %v339 = vld [vmem:[%s1 + $0x998] sm:$0xff]
    %v340 = vld [vmem:[%s1 + $0x9a0] sm:$0xff]
    %v341 = vld [vmem:[%s1 + $0x9a8] sm:$0xff]
    %v342 = vld [vmem:[%s1 + $0x9b0] sm:$0xff]
    %v343 = vld [vmem:[%s1 + $0x9b8] sm:$0xff]
    %v344 = vld [vmem:[%s1 + $0x9c0] sm:$0xff]
    %v345 = vld [vmem:[%s1 + $0x9c8] sm:$0xff]
    %v346 = vld [vmem:[%s1 + $0x9d0] sm:$0xff]
    %v347 = vld [vmem:[%s1 + $0x9d8] sm:$0xff]
    %v348 = vld [vmem:[%s1 + $0x9e0] sm:$0xff]
    %v349 = vld [vmem:[%s1 + $0x9e8] sm:$0xff]
    %v350 = vld [vmem:[%s1 + $0x9f0] sm:$0xff]
    %v351 = vld [vmem:[%s1 + $0x9f8] sm:$0xff]
    %v352 = vld [vmem:[%s1 + $0xa00] sm:$0xff]
    %v353 = vld [vmem:[%s1 + $0xa08] sm:$0xff]
    %v354 = vld [vmem:[%s1 + $0xa10] sm:$0xff]
    %v355 = vld [vmem:[%s1 + $0xa18] sm:$0xff]
    %v356 = vld [vmem:[%s1 + $0xa20] sm:$0xff]
    %v357 = vld [vmem:[%s1 + $0xa28] sm:$0xff]
    %v358 = vld [vmem:[%s1 + $0xa30] sm:$0xff]
    %v359 = vld [vmem:[%s1 + $0xa38] sm:$0xff]
    %v360 = vld [vmem:[%s1 + $0xa40] sm:$0xff]
    %v361 = vld [vmem:[%s1 + $0xa48] sm:$0xff]
    %v362 = vld [vmem:[%s1 + $0xa50] sm:$0xff]
    %v363 = vld [vmem:[%s1 + $0xa58] sm:$0xff]
    %v364 = vld [vmem:[%s1 + $0xa60] sm:$0xff]
    %v365 = vld [vmem:[%s1 + $0xa68] sm:$0xff]
    %v366 = vld [vmem:[%s1 + $0xa70] sm:$0xff]
    %v367 = vld [vmem:[%s1 + $0xa78] sm:$0xff]
    %v368 = vld [vmem:[%s1 + $0xa80] sm:$0xff]
    %v369 = vld [vmem:[%s1 + $0xa88] sm:$0xff]
    %v370 = vld [vmem:[%s1 + $0xa90] sm:$0xff]
    %v371 = vld [vmem:[%s1 + $0xa98] sm:$0xff]
    %v372 = vld [vmem:[%s1 + $0xaa0] sm:$0xff]
    %v373 = vld [vmem:[%s1 + $0xaa8] sm:$0xff]
    %v374 = vld [vmem:[%s1 + $0xab0] sm:$0xff]
    %v375 = vld [vmem:[%s1 + $0xab8] sm:$0xff]
    %v376 = vld [vmem:[%s1 + $0xac0] sm:$0xff]
    %v377 = vld [vmem:[%s1 + $0xac8] sm:$0xff]
    %v378 = vld [vmem:[%s1 + $0xad0] sm:$0xff]
    %v379 = vld [vmem:[%s1 + $0xad8] sm:$0xff]
    %v380 = vld [vmem:[%s1 + $0xae0] sm:$0xff]
    %v381 = vld [vmem:[%s1 + $0xae8] sm:$0xff]
    %v382 = vld [vmem:[%s1 + $0xaf0] sm:$0xff]
    %v383 = vld [vmem:[%s1 + $0xaf8] sm:$0xff]
    %v384 = vld [vmem:[%s1 + $0xb00] sm:$0xff]
    %v385 = vld [vmem:[%s1 + $0xb08] sm:$0xff]
    %v386 = vld [vmem:[%s1 + $0xb10] sm:$0xff]
    %v387 = vld [vmem:[%s1 + $0xb18] sm:$0xff]
    %v388 = vld [vmem:[%s1 + $0xb20] sm:$0xff]
    %v389 = vld [vmem:[%s1 + $0xb28] sm:$0xff]
    %v390 = vld [vmem:[%s1 + $0xb30] sm:$0xff]
    %v391 = vld [vmem:[%s1 + $0xb38] sm:$0xff]
    %v392 = vld [vmem:[%s1 + $0xb40] sm:$0xff]
    %v393 = vld [vmem:[%s1 + $0xb48] sm:$0xff]
    %v394 = vld [vmem:[%s1 + $0xb50] sm:$0xff]
    %v395 = vld [vmem:[%s1 + $0xb58] sm:$0xff]
    %v396 = vld [vmem:[%s1 + $0xb60] sm:$0xff]
    %v397 = vld [vmem:[%s1 + $0xb68] sm:$0xff]
    %v398 = vld [vmem:[%s1 + $0xb70] sm:$0xff]
    %v399 = vld [vmem:[%s1 + $0xb78] sm:$0xff]
    %v400 = vld [vmem:[%s1 + $0xb80] sm:$0xff]
    %v401 = vld [vmem:[%s1 + $0xb88] sm:$0xff]
    %v402 = vld [vmem:[%s1 + $0xb90] sm:$0xff]
    %v403 = vld [vmem:[%s1 + $0xb98] sm:$0xff]
    %v404 = vld [vmem:[%s1 + $0xba0] sm:$0xff]
    %v405 = vld [vmem:[%s1 + $0xba8] sm:$0xff]
    %v406 = vld [vmem:[%s1 + $0xbb0] sm:$0xff]
    %v407 = vld [vmem:[%s1 + $0xbb8] sm:$0xff]
    %v408 = vld [vmem:[%s1 + $0xbc0] sm:$0xff]
    %v409 = vld [vmem:[%s1 + $0xbc8] sm:$0xff]
    %v410 = vld [vmem:[%s1 + $0xbd0] sm:$0xff]
    %v411 = vld [vmem:[%s1 + $0xbd8] sm:$0xff]
    %v412 = vld [vmem:[%s1 + $0xbe0] sm:$0xff]
    %v413 = vld [vmem:[%s1 + $0xbe8] sm:$0xff]
    %v414 = vld [vmem:[%s1 + $0xbf0] sm:$0xff]
    %v415 = vld [vmem:[%s1 + $0xbf8] sm:$0xff]
    %v416 = vld [vmem:[%s1 + $0xc00] sm:$0xff]
    %v417 = vld [vmem:[%s1 + $0xc08] sm:$0xff]
    %v418 = vld [vmem:[%s1 + $0xc10] sm:$0xff]
    %v419 = vld [vmem:[%s1 + $0xc18] sm:$0xff]
    %v420 = vld [vmem:[%s1 + $0xc20] sm:$0xff]
    %v421 = vld [vmem:[%s1 + $0xc28] sm:$0xff]
    %v422 = vld [vmem:[%s1 + $0xc30] sm:$0xff]
    %v423 = vld [vmem:[%s1 + $0xc38] sm:$0xff]
    %v424 = vld [vmem:[%s1 + $0xc40] sm:$0xff]
    %v425 = vld [vmem:[%s1 + $0xc48] sm:$0xff]
    %v426 = vld [vmem:[%s1 + $0xc50] sm:$0xff]
    %v427 = vld [vmem:[%s1 + $0xc58] sm:$0xff]
    %v428 = vld [vmem:[%s1 + $0xc60] sm:$0xff]
    %v429 = vld [vmem:[%s1 + $0xc68] sm:$0xff]
    %v430 = vld [vmem:[%s1 + $0xc70] sm:$0xff]
    %v431 = vld [vmem:[%s1 + $0xc78] sm:$0xff]
    %v432 = vld [vmem:[%s1 + $0xc80] sm:$0xff]
    %v433 = vld [vmem:[%s1 + $0xc88] sm:$0xff]
    %v434 = vld [vmem:[%s1 + $0xc90] sm:$0xff]
    %v435 = vld [vmem:[%s1 + $0xc98] sm:$0xff]
    %v436 = vld [vmem:[%s1 + $0xca0] sm:$0xff]
    %v437 = vld [vmem:[%s1 + $0xca8] sm:$0xff]
    %v438 = vld [vmem:[%s1 + $0xcb0] sm:$0xff]
    %v439 = vld [vmem:[%s1 + $0xcb8] sm:$0xff]
    %v440 = vld [vmem:[%s1 + $0xcc0] sm:$0xff]
    %v441 = vld [vmem:[%s1 + $0xcc8] sm:$0xff]
    %v442 = vld [vmem:[%s1 + $0xcd0] sm:$0xff]
    %v443 = vld [vmem:[%s1 + $0xcd8] sm:$0xff]
    %v444 = vld [vmem:[%s1 + $0xce0] sm:$0xff]
    %v445 = vld [vmem:[%s1 + $0xce8] sm:$0xff]
    %v446 = vld [vmem:[%s1 + $0xcf0] sm:$0xff]
    %v447 = vld [vmem:[%s1 + $0xcf8] sm:$0xff]
    %v448 = vld [vmem:[%s1 + $0xd00] sm:$0xff]
    %v449 = vld [vmem:[%s1 + $0xd08] sm:$0xff]
    %v450 = vld [vmem:[%s1 + $0xd10] sm:$0xff]
    %v451 = vld [vmem:[%s1 + $0xd18] sm:$0xff]
    %v452 = vld [vmem:[%s1 + $0xd20] sm:$0xff]
    %v453 = vld [vmem:[%s1 + $0xd28] sm:$0xff]
    %v454 = vld [vmem:[%s1 + $0xd30] sm:$0xff]
    %v455 = vld [vmem:[%s1 + $0xd38] sm:$0xff]
    %v456 = vld [vmem:[%s1 + $0xd40] sm:$0xff]
    %v457 = vld [vmem:[%s1 + $0xd48] sm:$0xff]
    %v458 = vld [vmem:[%s1 + $0xd50] sm:$0xff]
    %v459 = vld [vmem:[%s1 + $0xd58] sm:$0xff]
    %v460 = vld [vmem:[%s1 + $0xd60] sm:$0xff]
    %v461 = vld [vmem:[%s1 + $0xd68] sm:$0xff]
    %v462 = vld [vmem:[%s1 + $0xd70] sm:$0xff]
    %v463 = vld [vmem:[%s1 + $0xd78] sm:$0xff]
    %v464 = vld [vmem:[%s1 + $0xd80] sm:$0xff]
    %v465 = vld [vmem:[%s1 + $0xd88] sm:$0xff]
    %v466 = vld [vmem:[%s1 + $0xd90] sm:$0xff]
    %v467 = vld [vmem:[%s1 + $0xd98] sm:$0xff]
    %v468 = vld [vmem:[%s1 + $0xda0] sm:$0xff]
    %v469 = vld [vmem:[%s1 + $0xda8] sm:$0xff]
    %v470 = vld [vmem:[%s1 + $0xdb0] sm:$0xff]
    %v471 = vld [vmem:[%s1 + $0xdb8] sm:$0xff]
    %v472 = vld [vmem:[%s1 + $0xdc0] sm:$0xff]
    %v473 = vld [vmem:[%s1 + $0xdc8] sm:$0xff]
    %v474 = vld [vmem:[%s1 + $0xdd0] sm:$0xff]
    %v475 = vld [vmem:[%s1 + $0xdd8] sm:$0xff]
    %v476 = vld [vmem:[%s1 + $0xde0] sm:$0xff]
    %v477 = vld [vmem:[%s1 + $0xde8] sm:$0xff]
    %v478 = vld [vmem:[%s1 + $0xdf0] sm:$0xff]
    %v479 = vld [vmem:[%s1 + $0xdf8] sm:$0xff]
    %v480 = vld [vmem:[%s1 + $0xe00] sm:$0xff]
    %v481 = vld [vmem:[%s1 + $0xe08] sm:$0xff]
    %v482 = vld [vmem:[%s1 + $0xe10] sm:$0xff]
    %v483 = vld [vmem:[%s1 + $0xe18] sm:$0xff]
    %v484 = vld [vmem:[%s1 + $0xe20] sm:$0xff]
    %v485 = vld [vmem:[%s1 + $0xe28] sm:$0xff]
    %v486 = vld [vmem:[%s1 + $0xe30] sm:$0xff]
    %v487 = vld [vmem:[%s1 + $0xe38] sm:$0xff]
    %v488 = vld [vmem:[%s1 + $0xe40] sm:$0xff]
    %v489 = vld [vmem:[%s1 + $0xe48] sm:$0xff]
    %v490 = vld [vmem:[%s1 + $0xe50] sm:$0xff]
    %v491 = vld [vmem:[%s1 + $0xe58] sm:$0xff]
    %v492 = vld [vmem:[%s1 + $0xe60] sm:$0xff]
    %v493 = vld [vmem:[%s1 + $0xe68] sm:$0xff]
    %v494 = vld [vmem:[%s1 + $0xe70] sm:$0xff]
    %v495 = vld [vmem:[%s1 + $0xe78] sm:$0xff]
    %v496 = vld [vmem:[%s1 + $0xe80] sm:$0xff]
    %v497 = vld [vmem:[%s1 + $0xe88] sm:$0xff]
    %v498 = vld [vmem:[%s1 + $0xe90] sm:$0xff]
    %v499 = vld [vmem:[%s1 + $0xe98] sm:$0xff]
    %v500 = vld [vmem:[%s1 + $0xea0] sm:$0xff]
    %v501 = vld [vmem:[%s1 + $0xea8] sm:$0xff]
    %v502 = vld [vmem:[%s1 + $0xeb0] sm:$0xff]
    %v503 = vld [vmem:[%s1 + $0xeb8] sm:$0xff]
    %v504 = vld [vmem:[%s1 + $0xec0] sm:$0xff]
    %v505 = vld [vmem:[%s1 + $0xec8] sm:$0xff]
    %v506 = vld [vmem:[%s1 + $0xed0] sm:$0xff]
    %v507 = vld [vmem:[%s1 + $0xed8] sm:$0xff]
    %v508 = vld [vmem:[%s1 + $0xee0] sm:$0xff]
    %v509 = vld [vmem:[%s1 + $0xee8] sm:$0xff]
    %v510 = vld [vmem:[%s1 + $0xef0] sm:$0xff]
    %v511 = vld [vmem:[%s1 + $0xef8] sm:$0xff]
    %v512 = vld [vmem:[%s1 + $0xf00] sm:$0xff]
    %v513 = vld [vmem:[%s1 + $0xf08] sm:$0xff]
    %v514 = vld [vmem:[%s1 + $0xf10] sm:$0xff]
    %v515 = vld [vmem:[%s1 + $0xf18] sm:$0xff]
    %v516 = vld [vmem:[%s1 + $0xf20] sm:$0xff]
    %v517 = vld [vmem:[%s1 + $0xf28] sm:$0xff]
    %v518 = vld [vmem:[%s1 + $0xf30] sm:$0xff]
    %v519 = vld [vmem:[%s1 + $0xf38] sm:$0xff]
    %v520 = vld [vmem:[%s1 + $0xf40] sm:$0xff]
    %v521 = vld [vmem:[%s1 + $0xf48] sm:$0xff]
    %v522 = vld [vmem:[%s1 + $0xf50] sm:$0xff]
    %v523 = vld [vmem:[%s1 + $0xf58] sm:$0xff]
    %v524 = vld [vmem:[%s1 + $0xf60] sm:$0xff]
    %v525 = vld [vmem:[%s1 + $0xf68] sm:$0xff]
    %v526 = vld [vmem:[%s1 + $0xf70] sm:$0xff]
    %v527 = vld [vmem:[%s1 + $0xf78] sm:$0xff]
    %v528 = vld [vmem:[%s1 + $0xf80] sm:$0xff]
    %v529 = vld [vmem:[%s1 + $0xf88] sm:$0xff]
    %v530 = vld [vmem:[%s1 + $0xf90] sm:$0xff]
    %v531 = vld [vmem:[%s1 + $0xf98] sm:$0xff]
    %v532 = vld [vmem:[%s1 + $0xfa0] sm:$0xff]
    %v533 = vld [vmem:[%s1 + $0xfa8] sm:$0xff]
    %v534 = vld [vmem:[%s1 + $0xfb0] sm:$0xff]
    %v535 = vld [vmem:[%s1 + $0xfb8] sm:$0xff]
    %v536 = vld [vmem:[%s1 + $0xfc0] sm:$0xff]
    %v537 = vld [vmem:[%s1 + $0xfc8] sm:$0xff]
    %v538 = vld [vmem:[%s1 + $0xfd0] sm:$0xff]
    %v539 = vld [vmem:[%s1 + $0xfd8] sm:$0xff]
    %v540 = vld [vmem:[%s1 + $0xfe0] sm:$0xff]
    %v541 = vld [vmem:[%s1 + $0xfe8] sm:$0xff]
    %v542 = vld [vmem:[%s1 + $0xff0] sm:$0xff]
    %v543 = vld [vmem:[%s1 + $0xff8] sm:$0xff]
    %v544 = vld [vmem:[%s1 + $0x1000] sm:$0xff]
    %v545 = vld [vmem:[%s1 + $0x1008] sm:$0xff]
    %v546 = vld [vmem:[%s1 + $0x1010] sm:$0xff]
    %v547 = vld [vmem:[%s1 + $0x1018] sm:$0xff]
    %v548 = vld [vmem:[%s1 + $0x1020] sm:$0xff]
    %v549 = vld [vmem:[%s1 + $0x1028] sm:$0xff]
    %v550 = vld [vmem:[%s1 + $0x1030] sm:$0xff]
    %v551 = vld [vmem:[%s1 + $0x1038] sm:$0xff]
    %v552 = vld [vmem:[%s1 + $0x1040] sm:$0xff]
    %v553 = vld [vmem:[%s1 + $0x1048] sm:$0xff]
    %v554 = vld [vmem:[%s1 + $0x1050] sm:$0xff]
    %v555 = vld [vmem:[%s1 + $0x1058] sm:$0xff]
    %v556 = vld [vmem:[%s1 + $0x1060] sm:$0xff]
    %v557 = vld [vmem:[%s1 + $0x1068] sm:$0xff]
    %v558 = vld [vmem:[%s1 + $0x1070] sm:$0xff]
    %v559 = vld [vmem:[%s1 + $0x1078] sm:$0xff]
    %v560 = vld [vmem:[%s1 + $0x1080] sm:$0xff]
    %v561 = vld [vmem:[%s1 + $0x1088] sm:$0xff]
    %v562 = vld [vmem:[%s1 + $0x1090] sm:$0xff]
    %v563 = vld [vmem:[%s1 + $0x1098] sm:$0xff]
    %v564 = vld [vmem:[%s1 + $0x10a0] sm:$0xff]
    %v565 = vld [vmem:[%s1 + $0x10a8] sm:$0xff]
    %v566 = vld [vmem:[%s1 + $0x10b0] sm:$0xff]
    %v567 = vld [vmem:[%s1 + $0x10b8] sm:$0xff]
    %v568 = vld [vmem:[%s1 + $0x10c0] sm:$0xff]
    %v569 = vld [vmem:[%s1 + $0x10c8] sm:$0xff]
    %v570 = vld [vmem:[%s1 + $0x10d0] sm:$0xff]
    %v571 = vld [vmem:[%s1 + $0x10d8] sm:$0xff]
    %v572 = vld [vmem:[%s1 + $0x10e0] sm:$0xff]
    %v573 = vld [vmem:[%s1 + $0x10e8] sm:$0xff]
    %v574 = vld [vmem:[%s1 + $0x10f0] sm:$0xff]
    %v575 = vld [vmem:[%s1 + $0x10f8] sm:$0xff]
    %v576 = vld [vmem:[%s1 + $0x1100] sm:$0xff]
    %v577 = vld [vmem:[%s1 + $0x1108] sm:$0xff]
    %v578 = vld [vmem:[%s1 + $0x1110] sm:$0xff]
    %v579 = vld [vmem:[%s1 + $0x1118] sm:$0xff]
    %v580 = vld [vmem:[%s1 + $0x1120] sm:$0xff]
    %v581 = vld [vmem:[%s1 + $0x1128] sm:$0xff]
    %v582 = vld [vmem:[%s1 + $0x1130] sm:$0xff]
    %v583 = vld [vmem:[%s1 + $0x1138] sm:$0xff]
    %v584 = vld [vmem:[%s1 + $0x1140] sm:$0xff]
    %v585 = vld [vmem:[%s1 + $0x1148] sm:$0xff]
    %v586 = vld [vmem:[%s1 + $0x1150] sm:$0xff]
    %v587 = vld [vmem:[%s1 + $0x1158] sm:$0xff]
    %v588 = vld [vmem:[%s1 + $0x1160] sm:$0xff]
    %v589 = vld [vmem:[%s1 + $0x1168] sm:$0xff]
    %v590 = vld [vmem:[%s1 + $0x1170] sm:$0xff]
    %v591 = vld [vmem:[%s1 + $0x1178] sm:$0xff]
    %v592 = vld [vmem:[%s1 + $0x1180] sm:$0xff]
    %v593 = vld [vmem:[%s1 + $0x1188] sm:$0xff]
    %v594 = vld [vmem:[%s1 + $0x1190] sm:$0xff]
    %v595 = vld [vmem:[%s1 + $0x1198] sm:$0xff]
    %v596 = vld [vmem:[%s1 + $0x11a0] sm:$0xff]
    %v597 = vld [vmem:[%s1 + $0x11a8] sm:$0xff]
    %v598 = vld [vmem:[%s1 + $0x11b0] sm:$0xff]
    %v599 = vld [vmem:[%s1 + $0x11b8] sm:$0xff]
    %v600 = vld [vmem:[%s1 + $0x11c0] sm:$0xff]
    %v601 = vld [vmem:[%s1 + $0x11c8] sm:$0xff]
    %v602 = vld [vmem:[%s1 + $0x11d0] sm:$0xff]
    %v603 = vld [vmem:[%s1 + $0x11d8] sm:$0xff]
    %v604 = vld [vmem:[%s1 + $0x11e0] sm:$0xff]
    %v605 = vld [vmem:[%s1 + $0x11e8] sm:$0xff]
    %v606 = vld [vmem:[%s1 + $0x11f0] sm:$0xff]
    %v607 = vld [vmem:[%s1 + $0x11f8] sm:$0xff]
    %v608 = vld [vmem:[%s1 + $0x1200] sm:$0xff]
    %v609 = vld [vmem:[%s1 + $0x1208] sm:$0xff]
    %v610 = vld [vmem:[%s1 + $0x1210] sm:$0xff]
    %v611 = vld [vmem:[%s1 + $0x1218] sm:$0xff]
    %v612 = vld [vmem:[%s1 + $0x1220] sm:$0xff]
    %v613 = vld [vmem:[%s1 + $0x1228] sm:$0xff]
    %v614 = vld [vmem:[%s1 + $0x1230] sm:$0xff]
    %v615 = vld [vmem:[%s1 + $0x1238] sm:$0xff]
    %v616 = vld [vmem:[%s1 + $0x1240] sm:$0xff]
    %v617 = vld [vmem:[%s1 + $0x1248] sm:$0xff]
    %v618 = vld [vmem:[%s1 + $0x1250] sm:$0xff]
    %v619 = vld [vmem:[%s1 + $0x1258] sm:$0xff]
    %v620 = vld [vmem:[%s1 + $0x1260] sm:$0xff]
    %v621 = vld [vmem:[%s1 + $0x1268] sm:$0xff]
    %v622 = vld [vmem:[%s1 + $0x1270] sm:$0xff]
    %v623 = vld [vmem:[%s1 + $0x1278] sm:$0xff]
    %v624 = vld [vmem:[%s1 + $0x1280] sm:$0xff]
    %v625 = vld [vmem:[%s1 + $0x1288] sm:$0xff]
    %v626 = vld [vmem:[%s1 + $0x1290] sm:$0xff]
    %v627 = vld [vmem:[%s1 + $0x1298] sm:$0xff]
    %v628 = vld [vmem:[%s1 + $0x12a0] sm:$0xff]
    %v629 = vld [vmem:[%s1 + $0x12a8] sm:$0xff]
    %v630 = vld [vmem:[%s1 + $0x12b0] sm:$0xff]
    %v631 = vld [vmem:[%s1 + $0x12b8] sm:$0xff]
    %v632 = vld [vmem:[%s1 + $0x12c0] sm:$0xff]
    %v633 = vld [vmem:[%s1 + $0x12c8] sm:$0xff]
    %v634 = vld [vmem:[%s1 + $0x12d0] sm:$0xff]
    %v635 = vld [vmem:[%s1 + $0x12d8] sm:$0xff]
    %v636 = vld [vmem:[%s1 + $0x12e0] sm:$0xff]
    %v637 = vld [vmem:[%s1 + $0x12e8] sm:$0xff]
    %v638 = vld [vmem:[%s1 + $0x12f0] sm:$0xff]
    %v639 = vld [vmem:[%s1 + $0x12f8] sm:$0xff]
    %v640 = vld [vmem:[%s1 + $0x1300] sm:$0xff]
    %v641 = vld [vmem:[%s1 + $0x1308] sm:$0xff]
    %v642 = vld [vmem:[%s1 + $0x1310] sm:$0xff]
    %v643 = vld [vmem:[%s1 + $0x1318] sm:$0xff]
    %v644 = vld [vmem:[%s1 + $0x1320] sm:$0xff]
    %v645 = vld [vmem:[%s1 + $0x1328] sm:$0xff]
    %v646 = vld [vmem:[%s1 + $0x1330] sm:$0xff]
    %v647 = vld [vmem:[%s1 + $0x1338] sm:$0xff]
    %v648 = vld [vmem:[%s1 + $0x1340] sm:$0xff]
    %v649 = vld [vmem:[%s1 + $0x1348] sm:$0xff]
    %v650 = vld [vmem:[%s1 + $0x1350] sm:$0xff]
    %v651 = vld [vmem:[%s1 + $0x1358] sm:$0xff]
    %v652 = vld [vmem:[%s1 + $0x1360] sm:$0xff]
    %v653 = vld [vmem:[%s1 + $0x1368] sm:$0xff]
    %v654 = vld [vmem:[%s1 + $0x1370] sm:$0xff]
    %v655 = vld [vmem:[%s1 + $0x1378] sm:$0xff]
    %v656 = vld [vmem:[%s1 + $0x1380] sm:$0xff]
    %v657 = vld [vmem:[%s1 + $0x1388] sm:$0xff]
    %v658 = vld [vmem:[%s1 + $0x1390] sm:$0xff]
    %v659 = vld [vmem:[%s1 + $0x1398] sm:$0xff]
    %v660 = vld [vmem:[%s1 + $0x13a0] sm:$0xff]
    %v661 = vld [vmem:[%s1 + $0x13a8] sm:$0xff]
    %v662 = vld [vmem:[%s1 + $0x13b0] sm:$0xff]
    %v663 = vld [vmem:[%s1 + $0x13b8] sm:$0xff]
    %v664 = vld [vmem:[%s1 + $0x13c0] sm:$0xff]
    %v665 = vld [vmem:[%s1 + $0x13c8] sm:$0xff]
    %v666 = vld [vmem:[%s1 + $0x13d0] sm:$0xff]
    %v667 = vld [vmem:[%s1 + $0x13d8] sm:$0xff]
    %v668 = vld [vmem:[%s1 + $0x13e0] sm:$0xff]
    %v669 = vld [vmem:[%s1 + $0x13e8] sm:$0xff]
    %v670 = vld [vmem:[%s1 + $0x13f0] sm:$0xff]
    %v671 = vld [vmem:[%s1 + $0x13f8] sm:$0xff]
    %v672 = vld [vmem:[%s1 + $0x1400] sm:$0xff]
    %v673 = vld [vmem:[%s1 + $0x1408] sm:$0xff]
    %v674 = vld [vmem:[%s1 + $0x1410] sm:$0xff]
    %v675 = vld [vmem:[%s1 + $0x1418] sm:$0xff]
    %v676 = vld [vmem:[%s1 + $0x1420] sm:$0xff]
    %v677 = vld [vmem:[%s1 + $0x1428] sm:$0xff]
    %v678 = vld [vmem:[%s1 + $0x1430] sm:$0xff]
    %v679 = vld [vmem:[%s1 + $0x1438] sm:$0xff]
    %v680 = vld [vmem:[%s1 + $0x1440] sm:$0xff]
    %v681 = vld [vmem:[%s1 + $0x1448] sm:$0xff]
    %v682 = vld [vmem:[%s1 + $0x1450] sm:$0xff]
    %v683 = vld [vmem:[%s1 + $0x1458] sm:$0xff]
    %v684 = vld [vmem:[%s1 + $0x1460] sm:$0xff]
    %v685 = vld [vmem:[%s1 + $0x1468] sm:$0xff]
    %v686 = vld [vmem:[%s1 + $0x1470] sm:$0xff]
    %v687 = vld [vmem:[%s1 + $0x1478] sm:$0xff]
    %v688 = vld [vmem:[%s1 + $0x1480] sm:$0xff]
    %v689 = vld [vmem:[%s1 + $0x1488] sm:$0xff]
    %v690 = vld [vmem:[%s1 + $0x1490] sm:$0xff]
    %v691 = vld [vmem:[%s1 + $0x1498] sm:$0xff]
    %v692 = vld [vmem:[%s1 + $0x14a0] sm:$0xff]
    %v693 = vld [vmem:[%s1 + $0x14a8] sm:$0xff]
    %v694 = vld [vmem:[%s1 + $0x14b0] sm:$0xff]
    %v695 = vld [vmem:[%s1 + $0x14b8] sm:$0xff]
    %v696 = vld [vmem:[%s1 + $0x14c0] sm:$0xff]
    %v697 = vld [vmem:[%s1 + $0x14c8] sm:$0xff]
    %v698 = vld [vmem:[%s1 + $0x14d0] sm:$0xff]
    %v699 = vld [vmem:[%s1 + $0x14d8] sm:$0xff]
    %v700 = vld [vmem:[%s1 + $0x14e0] sm:$0xff]
    %v701 = vld [vmem:[%s1 + $0x14e8] sm:$0xff]
    %v702 = vld [vmem:[%s1 + $0x14f0] sm:$0xff]
    %v703 = vld [vmem:[%s1 + $0x14f8] sm:$0xff]
    %v704 = vld [vmem:[%s1 + $0x1500] sm:$0xff]
    %v705 = vld [vmem:[%s1 + $0x1508] sm:$0xff]
    %v706 = vld [vmem:[%s1 + $0x1510] sm:$0xff]
    %v707 = vld [vmem:[%s1 + $0x1518] sm:$0xff]
    %v708 = vld [vmem:[%s1 + $0x1520] sm:$0xff]
    %v709 = vld [vmem:[%s1 + $0x1528] sm:$0xff]
    %v710 = vld [vmem:[%s1 + $0x1530] sm:$0xff]
    %v711 = vld [vmem:[%s1 + $0x1538] sm:$0xff]
    %v712 = vld [vmem:[%s1 + $0x1540] sm:$0xff]
    %v713 = vld [vmem:[%s1 + $0x1548] sm:$0xff]
    %v714 = vld [vmem:[%s1 + $0x1550] sm:$0xff]
    %v715 = vld [vmem:[%s1 + $0x1558] sm:$0xff]
    %v716 = vld [vmem:[%s1 + $0x1560] sm:$0xff]
    %v717 = vld [vmem:[%s1 + $0x1568] sm:$0xff]
    %v718 = vld [vmem:[%s1 + $0x1570] sm:$0xff]
    %v719 = vld [vmem:[%s1 + $0x1578] sm:$0xff]
    %v720 = vld [vmem:[%s1 + $0x1580] sm:$0xff]
    %v721 = vld [vmem:[%s1 + $0x1588] sm:$0xff]
    %v722 = vld [vmem:[%s1 + $0x1590] sm:$0xff]
    %v723 = vld [vmem:[%s1 + $0x1598] sm:$0xff]
    %v724 = vld [vmem:[%s1 + $0x15a0] sm:$0xff]
    %v725 = vld [vmem:[%s1 + $0x15a8] sm:$0xff]
    %v726 = vld [vmem:[%s1 + $0x15b0] sm:$0xff]
    %v727 = vld [vmem:[%s1 + $0x15b8] sm:$0xff]
    %v728 = vld [vmem:[%s1 + $0x15c0] sm:$0xff]
    %v729 = vld [vmem:[%s1 + $0x15c8] sm:$0xff]
    %v730 = vld [vmem:[%s1 + $0x15d0] sm:$0xff]
    %v731 = vld [vmem:[%s1 + $0x15d8] sm:$0xff]
    %v732 = vld [vmem:[%s1 + $0x15e0] sm:$0xff]
    %v733 = vld [vmem:[%s1 + $0x15e8] sm:$0xff]
    %v734 = vld [vmem:[%s1 + $0x15f0] sm:$0xff]
    %v735 = vld [vmem:[%s1 + $0x15f8] sm:$0xff]
    %v736 = vld [vmem:[%s1 + $0x1600] sm:$0xff]
    %v737 = vld [vmem:[%s1 + $0x1608] sm:$0xff]
    %v738 = vld [vmem:[%s1 + $0x1610] sm:$0xff]
    %v739 = vld [vmem:[%s1 + $0x1618] sm:$0xff]
    %v740 = vld [vmem:[%s1 + $0x1620] sm:$0xff]
    %v741 = vld [vmem:[%s1 + $0x1628] sm:$0xff]
    %v742 = vld [vmem:[%s1 + $0x1630] sm:$0xff]
    %v743 = vld [vmem:[%s1 + $0x1638] sm:$0xff]
    %v744 = vld [vmem:[%s1 + $0x1640] sm:$0xff]
    %v745 = vld [vmem:[%s1 + $0x1648] sm:$0xff]
    %v746 = vld [vmem:[%s1 + $0x1650] sm:$0xff]
    %v747 = vld [vmem:[%s1 + $0x1658] sm:$0xff]
    %v748 = vld [vmem:[%s1 + $0x1660] sm:$0xff]
    %v749 = vld [vmem:[%s1 + $0x1668] sm:$0xff]
    %v750 = vld [vmem:[%s1 + $0x1670] sm:$0xff]
    %v751 = vld [vmem:[%s1 + $0x1678] sm:$0xff]
    %v752 = vld [vmem:[%s1 + $0x1680] sm:$0xff]
    %v753 = vld [vmem:[%s1 + $0x1688] sm:$0xff]
    %v754 = vld [vmem:[%s1 + $0x1690] sm:$0xff]
    %v755 = vld [vmem:[%s1 + $0x1698] sm:$0xff]
    %v756 = vld [vmem:[%s1 + $0x16a0] sm:$0xff]
    %v757 = vld [vmem:[%s1 + $0x16a8] sm:$0xff]
    %v758 = vld [vmem:[%s1 + $0x16b0] sm:$0xff]
    %v759 = vld [vmem:[%s1 + $0x16b8] sm:$0xff]
    %v760 = vld [vmem:[%s1 + $0x16c0] sm:$0xff]
    %v761 = vld [vmem:[%s1 + $0x16c8] sm:$0xff]
    %v762 = vld [vmem:[%s1 + $0x16d0] sm:$0xff]
    %v763 = vld [vmem:[%s1 + $0x16d8] sm:$0xff]
    %v764 = vld [vmem:[%s1 + $0x16e0] sm:$0xff]
    %v765 = vld [vmem:[%s1 + $0x16e8] sm:$0xff]
    %v766 = vld [vmem:[%s1 + $0x16f0] sm:$0xff]
    %v767 = vld [vmem:[%s1 + $0x16f8] sm:$0xff]
    %v768 = vld [vmem:[%s1 + $0x1700] sm:$0xff]
    %v769 = vld [vmem:[%s1 + $0x1708] sm:$0xff]
    %v770 = vld [vmem:[%s1 + $0x1710] sm:$0xff]
    %v771 = vld [vmem:[%s1 + $0x1718] sm:$0xff]
    %v772 = vld [vmem:[%s1 + $0x1720] sm:$0xff]
    %v773 = vld [vmem:[%s1 + $0x1728] sm:$0xff]
    %v774 = vld [vmem:[%s1 + $0x1730] sm:$0xff]
    %v775 = vld [vmem:[%s1 + $0x1738] sm:$0xff]
    %v776 = vld [vmem:[%s1 + $0x1740] sm:$0xff]
    %v777 = vld [vmem:[%s1 + $0x1748] sm:$0xff]
    %v778 = vld [vmem:[%s1 + $0x1750] sm:$0xff]
    %v779 = vld [vmem:[%s1 + $0x1758] sm:$0xff]
    %v780 = vld [vmem:[%s1 + $0x1760] sm:$0xff]
    %v781 = vld [vmem:[%s1 + $0x1768] sm:$0xff]
    %v782 = vld [vmem:[%s1 + $0x1770] sm:$0xff]
    %v783 = vld [vmem:[%s1 + $0x1778] sm:$0xff]
    %v784 = vld [vmem:[%s1 + $0x1780] sm:$0xff]
    %v785 = vld [vmem:[%s1 + $0x1788] sm:$0xff]
    %v786 = vld [vmem:[%s1 + $0x1790] sm:$0xff]
    %v787 = vld [vmem:[%s1 + $0x1798] sm:$0xff]
    %v788 = vld [vmem:[%s1 + $0x17a0] sm:$0xff]
    %v789 = vld [vmem:[%s1 + $0x17a8] sm:$0xff]
    %v790 = vld [vmem:[%s1 + $0x17b0] sm:$0xff]
    %v791 = vld [vmem:[%s1 + $0x17b8] sm:$0xff]
    %v792 = vld [vmem:[%s1 + $0x17c0] sm:$0xff]
    %v793 = vld [vmem:[%s1 + $0x17c8] sm:$0xff]
    %v794 = vld [vmem:[%s1 + $0x17d0] sm:$0xff]
    %v795 = vld [vmem:[%s1 + $0x17d8] sm:$0xff]
    %v796 = vld [vmem:[%s1 + $0x17e0] sm:$0xff]
    %v797 = vld [vmem:[%s1 + $0x17e8] sm:$0xff]
    %v798 = vld [vmem:[%s1 + $0x17f0] sm:$0xff]
    %v799 = vld [vmem:[%s1 + $0x17f8] sm:$0xff]
    %v800 = vld [vmem:[%s1 + $0x1800] sm:$0xff]
    %v801 = vld [vmem:[%s1 + $0x1808] sm:$0xff]
    %v802 = vld [vmem:[%s1 + $0x1810] sm:$0xff]
    %v803 = vld [vmem:[%s1 + $0x1818] sm:$0xff]
    %v804 = vld [vmem:[%s1 + $0x1820] sm:$0xff]
    %v805 = vld [vmem:[%s1 + $0x1828] sm:$0xff]
    %v806 = vld [vmem:[%s1 + $0x1830] sm:$0xff]
    %v807 = vld [vmem:[%s1 + $0x1838] sm:$0xff]
    %v808 = vld [vmem:[%s1 + $0x1840] sm:$0xff]
    %v809 = vld [vmem:[%s1 + $0x1848] sm:$0xff]
    %v810 = vld [vmem:[%s1 + $0x1850] sm:$0xff]
    %v811 = vld [vmem:[%s1 + $0x1858] sm:$0xff]
    %v812 = vld [vmem:[%s1 + $0x1860] sm:$0xff]
    %v813 = vld [vmem:[%s1 + $0x1868] sm:$0xff]
    %v814 = vld [vmem:[%s1 + $0x1870] sm:$0xff]
    %v815 = vld [vmem:[%s1 + $0x1878] sm:$0xff]
    %v816 = vld [vmem:[%s2] sm:$0xff]
    %v818 = vlaneseq
    %v819 = vshrl.u32 %v818, 7
    %v820 = vsub.s32 0, %v819
    %v821 = vrot.slane %v816, %v820
    %v822 = vlaneseq
    %v823 = vshrl.u32 %v822, 7
    %v824 = vsub.s32 1, %v823
    %v825 = vrot.slane %v816, %v824
    %v826 = vlaneseq
    %v827 = vshrl.u32 %v826, 7
    %v828 = vsub.s32 2, %v827
    %v829 = vrot.slane %v816, %v828
    %v830 = vlaneseq
    %v831 = vshrl.u32 %v830, 7
    %v832 = vsub.s32 3, %v831
    %v833 = vrot.slane %v816, %v832
    %v834 = vlaneseq
    %v835 = vshrl.u32 %v834, 7
    %v836 = vsub.s32 4, %v835
    %v837 = vrot.slane %v816, %v836
    %v838 = vlaneseq
    %v839 = vshrl.u32 %v838, 7
    %v840 = vsub.s32 5, %v839
    %v841 = vrot.slane %v816, %v840
    %v842 = vlaneseq
    %v843 = vshrl.u32 %v842, 7
    %v844 = vsub.s32 6, %v843
    %v845 = vrot.slane %v816, %v844
    %v846 = vlaneseq
    %v847 = vshrl.u32 %v846, 7
    %v848 = vsub.s32 7, %v847
    %v849 = vrot.slane %v816, %v848
    %v860 = vcombine.high %v30, %v30
    %v862 = vunpack.c.l.s4 1966171168
    %v863 = vunpack.c.0.s8 %v862
    %v864 = vlaneseq
    %v865 = vshrl.u32 %v864, 7
    %v866 = vsub.s32 %v863, %v865
    %v867 = vrot.slane %v30, %v866
    %v869 = vunpack.c.l.s4 1966171168
    %v870 = vunpack.c.0.s8 %v869
    %v871 = vlaneseq
    %v872 = vshrl.u32 %v871, 7
    %v873 = vsub.s32 %v870, %v872
    %v874 = vrot.slane %v860, %v873
    %v875 = vcombine.high %v867, %v867
    %v876 = vcombine.high %v874, %v874
    %v878 = vunpack.c.l.s4 1966171168
    %v879 = vunpack.c.0.s8 %v878
    %v880 = vlaneseq
    %v881 = vshrl.u32 %v880, 7
    %v882 = vsub.s32 %v879, %v881
    %v883 = vrot.slane %v867, %v882
    %v885 = vunpack.c.l.s4 1966171168
    %v886 = vunpack.c.0.s8 %v885
    %v887 = vlaneseq
    %v888 = vshrl.u32 %v887, 7
    %v889 = vsub.s32 %v886, %v888
    %v890 = vrot.slane %v874, %v889
    %v892 = vunpack.c.l.s4 1966171168
    %v893 = vunpack.c.0.s8 %v892
    %v894 = vlaneseq
    %v895 = vshrl.u32 %v894, 7
    %v896 = vsub.s32 %v893, %v895
    %v897 = vrot.slane %v875, %v896
    %v899 = vunpack.c.l.s4 1966171168
    %v900 = vunpack.c.0.s8 %v899
    %v901 = vlaneseq
    %v902 = vshrl.u32 %v901, 7
    %v903 = vsub.s32 %v900, %v902
    %v904 = vrot.slane %v876, %v903
    %v905 = vcombine.high %v883, %v883
    %v906 = vcombine.high %v890, %v890
    %v907 = vcombine.high %v897, %v897
    %v908 = vcombine.high %v904, %v904
    %v909 = vcombine.high %v31, %v31
    %v911 = vunpack.c.l.s4 1966171168
    %v912 = vunpack.c.0.s8 %v911
    %v913 = vlaneseq
    %v914 = vshrl.u32 %v913, 7
    %v915 = vsub.s32 %v912, %v914
    %v916 = vrot.slane %v31, %v915
    %v918 = vunpack.c.l.s4 1966171168
    %v919 = vunpack.c.0.s8 %v918
    %v920 = vlaneseq
    %v921 = vshrl.u32 %v920, 7
    %v922 = vsub.s32 %v919, %v921
    %v923 = vrot.slane %v909, %v922
    %v924 = vcombine.high %v916, %v916
    %v926 = vunpack.c.l.s4 1966171168
    %v927 = vunpack.c.0.s8 %v926
    %v928 = vlaneseq
    %v929 = vshrl.u32 %v928, 7
    %v930 = vsub.s32 %v927, %v929
    %v931 = vrot.slane %v916, %v930
    %v933 = vunpack.c.l.s4 1966171168
    %v934 = vunpack.c.0.s8 %v933
    %v935 = vlaneseq
    %v936 = vshrl.u32 %v935, 7
    %v937 = vsub.s32 %v934, %v936
    %v938 = vrot.slane %v923, %v937
    %v940 = vunpack.c.l.s4 1966171168
    %v941 = vunpack.c.0.s8 %v940
    %v942 = vlaneseq
    %v943 = vshrl.u32 %v942, 7
    %v944 = vsub.s32 %v941, %v943
    %v945 = vrot.slane %v924, %v944
    %v946 = vcombine.high %v931, %v931
    %v947 = vcombine.high %v945, %v945
    %v1744 = vunpack.c.l.b16 %v32
    %v1745 = vunpack.c.h.b16 %v32
    %v1746 = vunpack.c.l.b16 %v33
    %v1747 = vunpack.c.h.b16 %v33
    %v1748 = vunpack.c.l.b16 %v34
    %v1749 = vunpack.c.h.b16 %v34
    %v1750 = vunpack.c.l.b16 %v35
    %v1751 = vunpack.c.h.b16 %v35
    %v1752 = vunpack.c.l.b16 %v36
    %v1753 = vunpack.c.h.b16 %v36
    %v1754 = vunpack.c.l.b16 %v37
    %v1755 = vunpack.c.h.b16 %v37
    %v1756 = vunpack.c.l.b16 %v38
    %v1757 = vunpack.c.h.b16 %v38
    %v1758 = vunpack.c.l.b16 %v39
    %v1759 = vunpack.c.h.b16 %v39
    %v1760 = vunpack.c.l.b16 %v40
    %v1761 = vunpack.c.h.b16 %v40
    %v1762 = vunpack.c.l.b16 %v41
    %v1763 = vunpack.c.h.b16 %v41
    %v1764 = vunpack.c.l.b16 %v42
    %v1765 = vunpack.c.h.b16 %v42
    %v1766 = vunpack.c.l.b16 %v43
    %v1767 = vunpack.c.h.b16 %v43
    %v1768 = vunpack.c.l.b16 %v44
    %v1769 = vunpack.c.h.b16 %v44
    %v1770 = vunpack.c.l.b16 %v45
    %v1771 = vunpack.c.h.b16 %v45
    %v1772 = vunpack.c.l.b16 %v46
    %v1773 = vunpack.c.h.b16 %v46
    %v1774 = vunpack.c.l.b16 %v47
    %v1775 = vunpack.c.h.b16 %v47
    %v1776 = vunpack.c.l.b16 %v48
    %v1777 = vunpack.c.h.b16 %v48
    %v1778 = vunpack.c.l.b16 %v49
    %v1779 = vunpack.c.h.b16 %v49
    %v1780 = vunpack.c.l.b16 %v50
    %v1781 = vunpack.c.h.b16 %v50
    %v1782 = vunpack.c.l.b16 %v51
    %v1783 = vunpack.c.h.b16 %v51
    %v1784 = vunpack.c.l.b16 %v52
    %v1785 = vunpack.c.h.b16 %v52
    %v1786 = vunpack.c.l.b16 %v53
    %v1787 = vunpack.c.h.b16 %v53
    %v1788 = vunpack.c.l.b16 %v54
    %v1789 = vunpack.c.h.b16 %v54
    %v1790 = vunpack.c.l.b16 %v55
    %v1791 = vunpack.c.h.b16 %v55
    %v1792 = vunpack.c.l.b16 %v56
    %v1793 = vunpack.c.h.b16 %v56
    %v1794 = vunpack.c.l.b16 %v57
    %v1795 = vunpack.c.h.b16 %v57
    %v1796 = vunpack.c.l.b16 %v58
    %v1797 = vunpack.c.h.b16 %v58
    %v1798 = vunpack.c.l.b16 %v59
    %v1799 = vunpack.c.h.b16 %v59
    %v1800 = vunpack.c.l.b16 %v60
    %v1801 = vunpack.c.h.b16 %v60
    %v1802 = vunpack.c.l.b16 %v61
    %v1803 = vunpack.c.h.b16 %v61
    %v1804 = vunpack.c.l.b16 %v62
    %v1805 = vunpack.c.h.b16 %v62
    %v1806 = vunpack.c.l.b16 %v63
    %v1807 = vunpack.c.h.b16 %v63
    %v1808 = vunpack.c.l.b16 %v64
    %v1809 = vunpack.c.h.b16 %v64
    %v1810 = vunpack.c.l.b16 %v65
    %v1811 = vunpack.c.h.b16 %v65
    %v1812 = vunpack.c.l.b16 %v66
    %v1813 = vunpack.c.h.b16 %v66
    %v1814 = vunpack.c.l.b16 %v67
    %v1815 = vunpack.c.h.b16 %v67
    %v1816 = vunpack.c.l.b16 %v68
    %v1817 = vunpack.c.h.b16 %v68
    %v1818 = vunpack.c.l.b16 %v69
    %v1819 = vunpack.c.h.b16 %v69
    %v1820 = vunpack.c.l.b16 %v70
    %v1821 = vunpack.c.h.b16 %v70
    %v1822 = vunpack.c.l.b16 %v71
    %v1823 = vunpack.c.h.b16 %v71
    %v1824 = vunpack.c.l.b16 %v72
    %v1825 = vunpack.c.h.b16 %v72
    %v1826 = vunpack.c.l.b16 %v73
    %v1827 = vunpack.c.h.b16 %v73
    %v1828 = vunpack.c.l.b16 %v74
    %v1829 = vunpack.c.h.b16 %v74
    %v1830 = vunpack.c.l.b16 %v75
    %v1831 = vunpack.c.h.b16 %v75
    %v1832 = vunpack.c.l.b16 %v76
    %v1833 = vunpack.c.h.b16 %v76
    %v1834 = vunpack.c.l.b16 %v77
    %v1835 = vunpack.c.h.b16 %v77
    %v1836 = vunpack.c.l.b16 %v78
    %v1837 = vunpack.c.h.b16 %v78
    %v1838 = vunpack.c.l.b16 %v79
    %v1839 = vunpack.c.h.b16 %v79
    %v1840 = vunpack.c.l.b16 %v80
    %v1841 = vunpack.c.h.b16 %v80
    %v1842 = vunpack.c.l.b16 %v81
    %v1843 = vunpack.c.h.b16 %v81
    %v1844 = vunpack.c.l.b16 %v82
    %v1845 = vunpack.c.h.b16 %v82
    %v1846 = vunpack.c.l.b16 %v83
    %v1847 = vunpack.c.h.b16 %v83
    %v1848 = vunpack.c.l.b16 %v84
    %v1849 = vunpack.c.h.b16 %v84
    %v1850 = vunpack.c.l.b16 %v85
    %v1851 = vunpack.c.h.b16 %v85
    %v1852 = vunpack.c.l.b16 %v86
    %v1853 = vunpack.c.h.b16 %v86
    %v1854 = vunpack.c.l.b16 %v87
    %v1855 = vunpack.c.h.b16 %v87
    %v1856 = vunpack.c.l.b16 %v88
    %v1857 = vunpack.c.h.b16 %v88
    %v1858 = vunpack.c.l.b16 %v89
    %v1859 = vunpack.c.h.b16 %v89
    %v1860 = vunpack.c.l.b16 %v90
    %v1861 = vunpack.c.h.b16 %v90
    %v1862 = vunpack.c.l.b16 %v91
    %v1863 = vunpack.c.h.b16 %v91
    %v1864 = vunpack.c.l.b16 %v92
    %v1865 = vunpack.c.h.b16 %v92
    %v1866 = vunpack.c.l.b16 %v93
    %v1867 = vunpack.c.h.b16 %v93
    %v1868 = vunpack.c.l.b16 %v94
    %v1869 = vunpack.c.h.b16 %v94
    %v1870 = vunpack.c.l.b16 %v95
    %v1871 = vunpack.c.h.b16 %v95
    %v1872 = vunpack.c.l.b16 %v96
    %v1873 = vunpack.c.h.b16 %v96
    %v1874 = vunpack.c.l.b16 %v97
    %v1875 = vunpack.c.h.b16 %v97
    %v1876 = vunpack.c.l.b16 %v98
    %v1877 = vunpack.c.h.b16 %v98
    %v1878 = vunpack.c.l.b16 %v99
    %v1879 = vunpack.c.h.b16 %v99
    %v1880 = vunpack.c.l.b16 %v100
    %v1881 = vunpack.c.h.b16 %v100
    %v1882 = vunpack.c.l.b16 %v101
    %v1883 = vunpack.c.h.b16 %v101
    %v1884 = vunpack.c.l.b16 %v102
    %v1885 = vunpack.c.h.b16 %v102
    %v1886 = vunpack.c.l.b16 %v103
    %v1887 = vunpack.c.h.b16 %v103
    %v1888 = vunpack.c.l.b16 %v104
    %v1889 = vunpack.c.h.b16 %v104
    %v1890 = vunpack.c.l.b16 %v105
    %v1891 = vunpack.c.h.b16 %v105
    %v1892 = vunpack.c.l.b16 %v106
    %v1893 = vunpack.c.h.b16 %v106
    %v1894 = vunpack.c.l.b16 %v107
    %v1895 = vunpack.c.h.b16 %v107
    %v1896 = vunpack.c.l.b16 %v108
    %v1897 = vunpack.c.h.b16 %v108
    %v1898 = vunpack.c.l.b16 %v109
    %v1899 = vunpack.c.h.b16 %v109
    %v1900 = vunpack.c.l.b16 %v110
    %v1901 = vunpack.c.h.b16 %v110
    %v1902 = vunpack.c.l.b16 %v111
    %v1903 = vunpack.c.h.b16 %v111
    %v1904 = vunpack.c.l.b16 %v112
    %v1905 = vunpack.c.h.b16 %v112
    %v1906 = vunpack.c.l.b16 %v113
    %v1907 = vunpack.c.h.b16 %v113
    %v1908 = vunpack.c.l.b16 %v114
    %v1909 = vunpack.c.h.b16 %v114
    %v1910 = vunpack.c.l.b16 %v115
    %v1911 = vunpack.c.h.b16 %v115
    %v1912 = vunpack.c.l.b16 %v116
    %v1913 = vunpack.c.h.b16 %v116
    %v1914 = vunpack.c.l.b16 %v117
    %v1915 = vunpack.c.h.b16 %v117
    %v1916 = vunpack.c.l.b16 %v118
    %v1917 = vunpack.c.h.b16 %v118
    %v1918 = vunpack.c.l.b16 %v119
    %v1919 = vunpack.c.h.b16 %v119
    %v1920 = vunpack.c.l.b16 %v120
    %v1921 = vunpack.c.h.b16 %v120
    %v1922 = vunpack.c.l.b16 %v121
    %v1923 = vunpack.c.h.b16 %v121
    %v1924 = vunpack.c.l.b16 %v122
    %v1925 = vunpack.c.h.b16 %v122
    %v1926 = vunpack.c.l.b16 %v123
    %v1927 = vunpack.c.h.b16 %v123
    %v1928 = vunpack.c.l.b16 %v124
    %v1929 = vunpack.c.h.b16 %v124
    %v1930 = vunpack.c.l.b16 %v125
    %v1931 = vunpack.c.h.b16 %v125
    %v1932 = vunpack.c.l.b16 %v126
    %v1933 = vunpack.c.h.b16 %v126
    %v1934 = vunpack.c.l.b16 %v127
    %v1935 = vunpack.c.h.b16 %v127
    %v1936 = vunpack.c.l.b16 %v128
    %v1937 = vunpack.c.h.b16 %v128
    %v1938 = vunpack.c.l.b16 %v129
    %v1939 = vunpack.c.h.b16 %v129
    %v1940 = vunpack.c.l.b16 %v130
    %v1941 = vunpack.c.h.b16 %v130
    %v1942 = vunpack.c.l.b16 %v131
    %v1943 = vunpack.c.h.b16 %v131
    %v1944 = vunpack.c.l.b16 %v132
    %v1945 = vunpack.c.h.b16 %v132
    %v1946 = vunpack.c.l.b16 %v133
    %v1947 = vunpack.c.h.b16 %v133
    %v1948 = vunpack.c.l.b16 %v134
    %v1949 = vunpack.c.h.b16 %v134
    %v1950 = vunpack.c.l.b16 %v135
    %v1951 = vunpack.c.h.b16 %v135
    %v1952 = vunpack.c.l.b16 %v136
    %v1953 = vunpack.c.h.b16 %v136
    %v1954 = vunpack.c.l.b16 %v137
    %v1955 = vunpack.c.h.b16 %v137
    %v1956 = vunpack.c.l.b16 %v138
    %v1957 = vunpack.c.h.b16 %v138
    %v1958 = vunpack.c.l.b16 %v139
    %v1959 = vunpack.c.h.b16 %v139
    %v1960 = vunpack.c.l.b16 %v140
    %v1961 = vunpack.c.h.b16 %v140
    %v1962 = vunpack.c.l.b16 %v141
    %v1963 = vunpack.c.h.b16 %v141
    %v1964 = vunpack.c.l.b16 %v142
    %v1965 = vunpack.c.h.b16 %v142
    %v1966 = vunpack.c.l.b16 %v143
    %v1967 = vunpack.c.h.b16 %v143
    %v1968 = vunpack.c.l.b16 %v144
    %v1969 = vunpack.c.h.b16 %v144
    %v1970 = vunpack.c.l.b16 %v145
    %v1971 = vunpack.c.h.b16 %v145
    %v1972 = vunpack.c.l.b16 %v146
    %v1973 = vunpack.c.h.b16 %v146
    %v1974 = vunpack.c.l.b16 %v147
    %v1975 = vunpack.c.h.b16 %v147
    %v1976 = vunpack.c.l.b16 %v148
    %v1977 = vunpack.c.h.b16 %v148
    %v1978 = vunpack.c.l.b16 %v149
    %v1979 = vunpack.c.h.b16 %v149
    %v1980 = vunpack.c.l.b16 %v150
    %v1981 = vunpack.c.h.b16 %v150
    %v1982 = vunpack.c.l.b16 %v151
    %v1983 = vunpack.c.h.b16 %v151
    %v1984 = vunpack.c.l.b16 %v152
    %v1985 = vunpack.c.h.b16 %v152
    %v1986 = vunpack.c.l.b16 %v153
    %v1987 = vunpack.c.h.b16 %v153
    %v1988 = vunpack.c.l.b16 %v154
    %v1989 = vunpack.c.h.b16 %v154
    %v1990 = vunpack.c.l.b16 %v155
    %v1991 = vunpack.c.h.b16 %v155
    %v1992 = vunpack.c.l.b16 %v156
    %v1993 = vunpack.c.h.b16 %v156
    %v1994 = vunpack.c.l.b16 %v157
    %v1995 = vunpack.c.h.b16 %v157
    %v1996 = vunpack.c.l.b16 %v158
    %v1997 = vunpack.c.h.b16 %v158
    %v1998 = vunpack.c.l.b16 %v159
    %v1999 = vunpack.c.h.b16 %v159
    %v2000 = vunpack.c.l.b16 %v160
    %v2001 = vunpack.c.h.b16 %v160
    %v2002 = vunpack.c.l.b16 %v161
    %v2003 = vunpack.c.h.b16 %v161
    %v2004 = vunpack.c.l.b16 %v162
    %v2005 = vunpack.c.h.b16 %v162
    %v2006 = vunpack.c.l.b16 %v163
    %v2007 = vunpack.c.h.b16 %v163
    %v2008 = vunpack.c.l.b16 %v164
    %v2009 = vunpack.c.h.b16 %v164
    %v2010 = vunpack.c.l.b16 %v165
    %v2011 = vunpack.c.h.b16 %v165
    %v2012 = vunpack.c.l.b16 %v166
    %v2013 = vunpack.c.h.b16 %v166
    %v2014 = vunpack.c.l.b16 %v167
    %v2015 = vunpack.c.h.b16 %v167
    %v2016 = vunpack.c.l.b16 %v168
    %v2017 = vunpack.c.h.b16 %v168
    %v2018 = vunpack.c.l.b16 %v169
    %v2019 = vunpack.c.h.b16 %v169
    %v2020 = vunpack.c.l.b16 %v170
    %v2021 = vunpack.c.h.b16 %v170
    %v2022 = vunpack.c.l.b16 %v171
    %v2023 = vunpack.c.h.b16 %v171
    %v2024 = vunpack.c.l.b16 %v172
    %v2025 = vunpack.c.h.b16 %v172
    %v2026 = vunpack.c.l.b16 %v173
    %v2027 = vunpack.c.h.b16 %v173
    %v2028 = vunpack.c.l.b16 %v174
    %v2029 = vunpack.c.h.b16 %v174
    %v2030 = vunpack.c.l.b16 %v175
    %v2031 = vunpack.c.h.b16 %v175
    %v2032 = vunpack.c.l.b16 %v176
    %v2033 = vunpack.c.h.b16 %v176
    %v2034 = vunpack.c.l.b16 %v177
    %v2035 = vunpack.c.h.b16 %v177
    %v2036 = vunpack.c.l.b16 %v178
    %v2037 = vunpack.c.h.b16 %v178
    %v2038 = vunpack.c.l.b16 %v179
    %v2039 = vunpack.c.h.b16 %v179
    %v2040 = vunpack.c.l.b16 %v180
    %v2041 = vunpack.c.h.b16 %v180
    %v2042 = vunpack.c.l.b16 %v181
    %v2043 = vunpack.c.h.b16 %v181
    %v2044 = vunpack.c.l.b16 %v182
    %v2045 = vunpack.c.h.b16 %v182
    %v2046 = vunpack.c.l.b16 %v183
    %v2047 = vunpack.c.h.b16 %v183
    %v2048 = vunpack.c.l.b16 %v184
    %v2049 = vunpack.c.h.b16 %v184
    %v2050 = vunpack.c.l.b16 %v185
    %v2051 = vunpack.c.h.b16 %v185
    %v2052 = vunpack.c.l.b16 %v186
    %v2053 = vunpack.c.h.b16 %v186
    %v2054 = vunpack.c.l.b16 %v187
    %v2055 = vunpack.c.h.b16 %v187
    %v2056 = vunpack.c.l.b16 %v188
    %v2057 = vunpack.c.h.b16 %v188
    %v2058 = vunpack.c.l.b16 %v189
    %v2059 = vunpack.c.h.b16 %v189
    %v2060 = vunpack.c.l.b16 %v190
    %v2061 = vunpack.c.h.b16 %v190
    %v2062 = vunpack.c.l.b16 %v191
    %v2063 = vunpack.c.h.b16 %v191
    %v2064 = vunpack.c.l.b16 %v192
    %v2065 = vunpack.c.h.b16 %v192
    %v2066 = vunpack.c.l.b16 %v193
    %v2067 = vunpack.c.h.b16 %v193
    %v2068 = vunpack.c.l.b16 %v194
    %v2069 = vunpack.c.h.b16 %v194
    %v2070 = vunpack.c.l.b16 %v195
    %v2071 = vunpack.c.h.b16 %v195
    %v2072 = vunpack.c.l.b16 %v196
    %v2073 = vunpack.c.h.b16 %v196
    %v2074 = vunpack.c.l.b16 %v197
    %v2075 = vunpack.c.h.b16 %v197
    %v2076 = vunpack.c.l.b16 %v198
    %v2077 = vunpack.c.h.b16 %v198
    %v2078 = vunpack.c.l.b16 %v199
    %v2079 = vunpack.c.h.b16 %v199
    %v2080 = vunpack.c.l.b16 %v200
    %v2081 = vunpack.c.h.b16 %v200
    %v2082 = vunpack.c.l.b16 %v201
    %v2083 = vunpack.c.h.b16 %v201
    %v2084 = vunpack.c.l.b16 %v202
    %v2085 = vunpack.c.h.b16 %v202
    %v2086 = vunpack.c.l.b16 %v203
    %v2087 = vunpack.c.h.b16 %v203
    %v2088 = vunpack.c.l.b16 %v204
    %v2089 = vunpack.c.h.b16 %v204
    %v2090 = vunpack.c.l.b16 %v205
    %v2091 = vunpack.c.h.b16 %v205
    %v2092 = vunpack.c.l.b16 %v206
    %v2093 = vunpack.c.h.b16 %v206
    %v2094 = vunpack.c.l.b16 %v207
    %v2095 = vunpack.c.h.b16 %v207
    %v2096 = vunpack.c.l.b16 %v208
    %v2097 = vunpack.c.h.b16 %v208
    %v2098 = vunpack.c.l.b16 %v209
    %v2099 = vunpack.c.h.b16 %v209
    %v2100 = vunpack.c.l.b16 %v210
    %v2101 = vunpack.c.h.b16 %v210
    %v2102 = vunpack.c.l.b16 %v211
    %v2103 = vunpack.c.h.b16 %v211
    %v2104 = vunpack.c.l.b16 %v212
    %v2105 = vunpack.c.h.b16 %v212
    %v2106 = vunpack.c.l.b16 %v213
    %v2107 = vunpack.c.h.b16 %v213
    %v2108 = vunpack.c.l.b16 %v214
    %v2109 = vunpack.c.h.b16 %v214
    %v2110 = vunpack.c.l.b16 %v215
    %v2111 = vunpack.c.h.b16 %v215
    %v2112 = vunpack.c.l.b16 %v216
    %v2113 = vunpack.c.h.b16 %v216
    %v2114 = vunpack.c.l.b16 %v217
    %v2115 = vunpack.c.h.b16 %v217
    %v2116 = vunpack.c.l.b16 %v218
    %v2117 = vunpack.c.h.b16 %v218
    %v2118 = vunpack.c.l.b16 %v219
    %v2119 = vunpack.c.h.b16 %v219
    %v2120 = vunpack.c.l.b16 %v220
    %v2121 = vunpack.c.h.b16 %v220
    %v2122 = vunpack.c.l.b16 %v221
    %v2123 = vunpack.c.h.b16 %v221
    %v2124 = vunpack.c.l.b16 %v222
    %v2125 = vunpack.c.h.b16 %v222
    %v2126 = vunpack.c.l.b16 %v223
    %v2127 = vunpack.c.h.b16 %v223
    %v2128 = vunpack.c.l.b16 %v224
    %v2129 = vunpack.c.h.b16 %v224
    %v2130 = vunpack.c.l.b16 %v225
    %v2131 = vunpack.c.h.b16 %v225
    %v2132 = vunpack.c.l.b16 %v226
    %v2133 = vunpack.c.h.b16 %v226
    %v2134 = vunpack.c.l.b16 %v227
    %v2135 = vunpack.c.h.b16 %v227
    %v2136 = vunpack.c.l.b16 %v228
    %v2137 = vunpack.c.h.b16 %v228
    %v2138 = vunpack.c.l.b16 %v229
    %v2139 = vunpack.c.h.b16 %v229
    %v2140 = vunpack.c.l.b16 %v230
    %v2141 = vunpack.c.h.b16 %v230
    %v2142 = vunpack.c.l.b16 %v231
    %v2143 = vunpack.c.h.b16 %v231
    %v2144 = vunpack.c.l.b16 %v232
    %v2145 = vunpack.c.h.b16 %v232
    %v2146 = vunpack.c.l.b16 %v233
    %v2147 = vunpack.c.h.b16 %v233
    %v2148 = vunpack.c.l.b16 %v234
    %v2149 = vunpack.c.h.b16 %v234
    %v2150 = vunpack.c.l.b16 %v235
    %v2151 = vunpack.c.h.b16 %v235
    %v2152 = vunpack.c.l.b16 %v236
    %v2153 = vunpack.c.h.b16 %v236
    %v2154 = vunpack.c.l.b16 %v237
    %v2155 = vunpack.c.h.b16 %v237
    %v2156 = vunpack.c.l.b16 %v238
    %v2157 = vunpack.c.h.b16 %v238
    %v2158 = vunpack.c.l.b16 %v239
    %v2159 = vunpack.c.h.b16 %v239
    %v2160 = vunpack.c.l.b16 %v240
    %v2161 = vunpack.c.h.b16 %v240
    %v2162 = vunpack.c.l.b16 %v241
    %v2163 = vunpack.c.h.b16 %v241
    %v2164 = vunpack.c.l.b16 %v242
    %v2165 = vunpack.c.h.b16 %v242
    %v2166 = vunpack.c.l.b16 %v243
    %v2167 = vunpack.c.h.b16 %v243
    %v2168 = vunpack.c.l.b16 %v244
    %v2169 = vunpack.c.h.b16 %v244
    %v2170 = vunpack.c.l.b16 %v245
    %v2171 = vunpack.c.h.b16 %v245
    %v2172 = vunpack.c.l.b16 %v246
    %v2173 = vunpack.c.h.b16 %v246
    %v2174 = vunpack.c.l.b16 %v247
    %v2175 = vunpack.c.h.b16 %v247
    %v2176 = vunpack.c.l.b16 %v248
    %v2177 = vunpack.c.h.b16 %v248
    %v2178 = vunpack.c.l.b16 %v249
    %v2179 = vunpack.c.h.b16 %v249
    %v2180 = vunpack.c.l.b16 %v250
    %v2181 = vunpack.c.h.b16 %v250
    %v2182 = vunpack.c.l.b16 %v251
    %v2183 = vunpack.c.h.b16 %v251
    %v2184 = vunpack.c.l.b16 %v252
    %v2185 = vunpack.c.h.b16 %v252
    %v2186 = vunpack.c.l.b16 %v253
    %v2187 = vunpack.c.h.b16 %v253
    %v2188 = vunpack.c.l.b16 %v254
    %v2189 = vunpack.c.h.b16 %v254
    %v2190 = vunpack.c.l.b16 %v255
    %v2191 = vunpack.c.h.b16 %v255
    %v2192 = vunpack.c.l.b16 %v256
    %v2193 = vunpack.c.h.b16 %v256
    %v2194 = vunpack.c.l.b16 %v257
    %v2195 = vunpack.c.h.b16 %v257
    %v2196 = vunpack.c.l.b16 %v258
    %v2197 = vunpack.c.h.b16 %v258
    %v2198 = vunpack.c.l.b16 %v259
    %v2199 = vunpack.c.h.b16 %v259
    %v2200 = vunpack.c.l.b16 %v260
    %v2201 = vunpack.c.h.b16 %v260
    %v2202 = vunpack.c.l.b16 %v261
    %v2203 = vunpack.c.h.b16 %v261
    %v2204 = vunpack.c.l.b16 %v262
    %v2205 = vunpack.c.h.b16 %v262
    %v2206 = vunpack.c.l.b16 %v263
    %v2207 = vunpack.c.h.b16 %v263
    %v2208 = vunpack.c.l.b16 %v264
    %v2209 = vunpack.c.h.b16 %v264
    %v2210 = vunpack.c.l.b16 %v265
    %v2211 = vunpack.c.h.b16 %v265
    %v2212 = vunpack.c.l.b16 %v266
    %v2213 = vunpack.c.h.b16 %v266
    %v2214 = vunpack.c.l.b16 %v267
    %v2215 = vunpack.c.h.b16 %v267
    %v2216 = vunpack.c.l.b16 %v268
    %v2217 = vunpack.c.h.b16 %v268
    %v2218 = vunpack.c.l.b16 %v269
    %v2219 = vunpack.c.h.b16 %v269
    %v2220 = vunpack.c.l.b16 %v270
    %v2221 = vunpack.c.h.b16 %v270
    %v2222 = vunpack.c.l.b16 %v271
    %v2223 = vunpack.c.h.b16 %v271
    %v2224 = vunpack.c.l.b16 %v272
    %v2225 = vunpack.c.h.b16 %v272
    %v2226 = vunpack.c.l.b16 %v273
    %v2227 = vunpack.c.h.b16 %v273
    %v2228 = vunpack.c.l.b16 %v274
    %v2229 = vunpack.c.h.b16 %v274
    %v2230 = vunpack.c.l.b16 %v275
    %v2231 = vunpack.c.h.b16 %v275
    %v2232 = vunpack.c.l.b16 %v276
    %v2233 = vunpack.c.h.b16 %v276
    %v2234 = vunpack.c.l.b16 %v277
    %v2235 = vunpack.c.h.b16 %v277
    %v2236 = vunpack.c.l.b16 %v278
    %v2237 = vunpack.c.h.b16 %v278
    %v2238 = vunpack.c.l.b16 %v279
    %v2239 = vunpack.c.h.b16 %v279
    %v2240 = vunpack.c.l.b16 %v280
    %v2241 = vunpack.c.h.b16 %v280
    %v2242 = vunpack.c.l.b16 %v281
    %v2243 = vunpack.c.h.b16 %v281
    %v2244 = vunpack.c.l.b16 %v282
    %v2245 = vunpack.c.h.b16 %v282
    %v2246 = vunpack.c.l.b16 %v283
    %v2247 = vunpack.c.h.b16 %v283
    %v2248 = vunpack.c.l.b16 %v284
    %v2249 = vunpack.c.h.b16 %v284
    %v2250 = vunpack.c.l.b16 %v285
    %v2251 = vunpack.c.h.b16 %v285
    %v2252 = vunpack.c.l.b16 %v286
    %v2253 = vunpack.c.h.b16 %v286
    %v2254 = vunpack.c.l.b16 %v287
    %v2255 = vunpack.c.h.b16 %v287
    %v2256 = vunpack.c.l.b16 %v288
    %v2257 = vunpack.c.h.b16 %v288
    %v2258 = vunpack.c.l.b16 %v289
    %v2259 = vunpack.c.h.b16 %v289
    %v2260 = vunpack.c.l.b16 %v290
    %v2261 = vunpack.c.h.b16 %v290
    %v2262 = vunpack.c.l.b16 %v291
    %v2263 = vunpack.c.h.b16 %v291
    %v2264 = vunpack.c.l.b16 %v292
    %v2265 = vunpack.c.h.b16 %v292
    %v2266 = vunpack.c.l.b16 %v293
    %v2267 = vunpack.c.h.b16 %v293
    %v2268 = vunpack.c.l.b16 %v294
    %v2269 = vunpack.c.h.b16 %v294
    %v2270 = vunpack.c.l.b16 %v295
    %v2271 = vunpack.c.h.b16 %v295
    %v2272 = vunpack.c.l.b16 %v296
    %v2273 = vunpack.c.h.b16 %v296
    %v2274 = vunpack.c.l.b16 %v297
    %v2275 = vunpack.c.h.b16 %v297
    %v2276 = vunpack.c.l.b16 %v298
    %v2277 = vunpack.c.h.b16 %v298
    %v2278 = vunpack.c.l.b16 %v299
    %v2279 = vunpack.c.h.b16 %v299
    %v2280 = vunpack.c.l.b16 %v300
    %v2281 = vunpack.c.h.b16 %v300
    %v2282 = vunpack.c.l.b16 %v301
    %v2283 = vunpack.c.h.b16 %v301
    %v2284 = vunpack.c.l.b16 %v302
    %v2285 = vunpack.c.h.b16 %v302
    %v2286 = vunpack.c.l.b16 %v303
    %v2287 = vunpack.c.h.b16 %v303
    %v2288 = vunpack.c.l.b16 %v304
    %v2289 = vunpack.c.h.b16 %v304
    %v2290 = vunpack.c.l.b16 %v305
    %v2291 = vunpack.c.h.b16 %v305
    %v2292 = vunpack.c.l.b16 %v306
    %v2293 = vunpack.c.h.b16 %v306
    %v2294 = vunpack.c.l.b16 %v307
    %v2295 = vunpack.c.h.b16 %v307
    %v2296 = vunpack.c.l.b16 %v308
    %v2297 = vunpack.c.h.b16 %v308
    %v2298 = vunpack.c.l.b16 %v309
    %v2299 = vunpack.c.h.b16 %v309
    %v2300 = vunpack.c.l.b16 %v310
    %v2301 = vunpack.c.h.b16 %v310
    %v2302 = vunpack.c.l.b16 %v311
    %v2303 = vunpack.c.h.b16 %v311
    %v2304 = vunpack.c.l.b16 %v312
    %v2305 = vunpack.c.h.b16 %v312
    %v2306 = vunpack.c.l.b16 %v313
    %v2307 = vunpack.c.h.b16 %v313
    %v2308 = vunpack.c.l.b16 %v314
    %v2309 = vunpack.c.h.b16 %v314
    %v2310 = vunpack.c.l.b16 %v315
    %v2311 = vunpack.c.h.b16 %v315
    %v2312 = vunpack.c.l.b16 %v316
    %v2313 = vunpack.c.h.b16 %v316
    %v2314 = vunpack.c.l.b16 %v317
    %v2315 = vunpack.c.h.b16 %v317
    %v2316 = vunpack.c.l.b16 %v318
    %v2317 = vunpack.c.h.b16 %v318
    %v2318 = vunpack.c.l.b16 %v319
    %v2319 = vunpack.c.h.b16 %v319
    %v2320 = vunpack.c.l.b16 %v320
    %v2321 = vunpack.c.h.b16 %v320
    %v2322 = vunpack.c.l.b16 %v321
    %v2323 = vunpack.c.h.b16 %v321
    %v2324 = vunpack.c.l.b16 %v322
    %v2325 = vunpack.c.h.b16 %v322
    %v2326 = vunpack.c.l.b16 %v323
    %v2327 = vunpack.c.h.b16 %v323
    %v2328 = vunpack.c.l.b16 %v324
    %v2329 = vunpack.c.h.b16 %v324
    %v2330 = vunpack.c.l.b16 %v325
    %v2331 = vunpack.c.h.b16 %v325
    %v2332 = vunpack.c.l.b16 %v326
    %v2333 = vunpack.c.h.b16 %v326
    %v2334 = vunpack.c.l.b16 %v327
    %v2335 = vunpack.c.h.b16 %v327
    %v2336 = vunpack.c.l.b16 %v328
    %v2337 = vunpack.c.h.b16 %v328
    %v2338 = vunpack.c.l.b16 %v329
    %v2339 = vunpack.c.h.b16 %v329
    %v2340 = vunpack.c.l.b16 %v330
    %v2341 = vunpack.c.h.b16 %v330
    %v2342 = vunpack.c.l.b16 %v331
    %v2343 = vunpack.c.h.b16 %v331
    %v2344 = vunpack.c.l.b16 %v332
    %v2345 = vunpack.c.h.b16 %v332
    %v2346 = vunpack.c.l.b16 %v333
    %v2347 = vunpack.c.h.b16 %v333
    %v2348 = vunpack.c.l.b16 %v334
    %v2349 = vunpack.c.h.b16 %v334
    %v2350 = vunpack.c.l.b16 %v335
    %v2351 = vunpack.c.h.b16 %v335
    %v2352 = vunpack.c.l.b16 %v336
    %v2353 = vunpack.c.h.b16 %v336
    %v2354 = vunpack.c.l.b16 %v337
    %v2355 = vunpack.c.h.b16 %v337
    %v2356 = vunpack.c.l.b16 %v338
    %v2357 = vunpack.c.h.b16 %v338
    %v2358 = vunpack.c.l.b16 %v339
    %v2359 = vunpack.c.h.b16 %v339
    %v2360 = vunpack.c.l.b16 %v340
    %v2361 = vunpack.c.h.b16 %v340
    %v2362 = vunpack.c.l.b16 %v341
    %v2363 = vunpack.c.h.b16 %v341
    %v2364 = vunpack.c.l.b16 %v342
    %v2365 = vunpack.c.h.b16 %v342
    %v2366 = vunpack.c.l.b16 %v343
    %v2367 = vunpack.c.h.b16 %v343
    %v2368 = vunpack.c.l.b16 %v344
    %v2369 = vunpack.c.h.b16 %v344
    %v2370 = vunpack.c.l.b16 %v345
    %v2371 = vunpack.c.h.b16 %v345
    %v2372 = vunpack.c.l.b16 %v346
    %v2373 = vunpack.c.h.b16 %v346
    %v2374 = vunpack.c.l.b16 %v347
    %v2375 = vunpack.c.h.b16 %v347
    %v2376 = vunpack.c.l.b16 %v348
    %v2377 = vunpack.c.h.b16 %v348
    %v2378 = vunpack.c.l.b16 %v349
    %v2379 = vunpack.c.h.b16 %v349
    %v2380 = vunpack.c.l.b16 %v350
    %v2381 = vunpack.c.h.b16 %v350
    %v2382 = vunpack.c.l.b16 %v351
    %v2383 = vunpack.c.h.b16 %v351
    %v2384 = vunpack.c.l.b16 %v352
    %v2385 = vunpack.c.h.b16 %v352
    %v2386 = vunpack.c.l.b16 %v353
    %v2387 = vunpack.c.h.b16 %v353
    %v2388 = vunpack.c.l.b16 %v354
    %v2389 = vunpack.c.h.b16 %v354
    %v2390 = vunpack.c.l.b16 %v355
    %v2391 = vunpack.c.h.b16 %v355
    %v2392 = vunpack.c.l.b16 %v356
    %v2393 = vunpack.c.h.b16 %v356
    %v2394 = vunpack.c.l.b16 %v357
    %v2395 = vunpack.c.h.b16 %v357
    %v2396 = vunpack.c.l.b16 %v358
    %v2397 = vunpack.c.h.b16 %v358
    %v2398 = vunpack.c.l.b16 %v359
    %v2399 = vunpack.c.h.b16 %v359
    %v2400 = vunpack.c.l.b16 %v360
    %v2401 = vunpack.c.h.b16 %v360
    %v2402 = vunpack.c.l.b16 %v361
    %v2403 = vunpack.c.h.b16 %v361
    %v2404 = vunpack.c.l.b16 %v362
    %v2405 = vunpack.c.h.b16 %v362
    %v2406 = vunpack.c.l.b16 %v363
    %v2407 = vunpack.c.h.b16 %v363
    %v2408 = vunpack.c.l.b16 %v364
    %v2409 = vunpack.c.h.b16 %v364
    %v2410 = vunpack.c.l.b16 %v365
    %v2411 = vunpack.c.h.b16 %v365
    %v2412 = vunpack.c.l.b16 %v366
    %v2413 = vunpack.c.h.b16 %v366
    %v2414 = vunpack.c.l.b16 %v367
    %v2415 = vunpack.c.h.b16 %v367
    %v2416 = vunpack.c.l.b16 %v368
    %v2417 = vunpack.c.h.b16 %v368
    %v2418 = vunpack.c.l.b16 %v369
    %v2419 = vunpack.c.h.b16 %v369
    %v2420 = vunpack.c.l.b16 %v370
    %v2421 = vunpack.c.h.b16 %v370
    %v2422 = vunpack.c.l.b16 %v371
    %v2423 = vunpack.c.h.b16 %v371
    %v2424 = vunpack.c.l.b16 %v372
    %v2425 = vunpack.c.h.b16 %v372
    %v2426 = vunpack.c.l.b16 %v373
    %v2427 = vunpack.c.h.b16 %v373
    %v2428 = vunpack.c.l.b16 %v374
    %v2429 = vunpack.c.h.b16 %v374
    %v2430 = vunpack.c.l.b16 %v375
    %v2431 = vunpack.c.h.b16 %v375
    %v2432 = vunpack.c.l.b16 %v376
    %v2433 = vunpack.c.h.b16 %v376
    %v2434 = vunpack.c.l.b16 %v377
    %v2435 = vunpack.c.h.b16 %v377
    %v2436 = vunpack.c.l.b16 %v378
    %v2437 = vunpack.c.h.b16 %v378
    %v2438 = vunpack.c.l.b16 %v379
    %v2439 = vunpack.c.h.b16 %v379
    %v2440 = vunpack.c.l.b16 %v380
    %v2441 = vunpack.c.h.b16 %v380
    %v2442 = vunpack.c.l.b16 %v381
    %v2443 = vunpack.c.h.b16 %v381
    %v2444 = vunpack.c.l.b16 %v382
    %v2445 = vunpack.c.h.b16 %v382
    %v2446 = vunpack.c.l.b16 %v383
    %v2447 = vunpack.c.h.b16 %v383
    %v2448 = vunpack.c.l.b16 %v384
    %v2449 = vunpack.c.h.b16 %v384
    %v2450 = vunpack.c.l.b16 %v385
    %v2451 = vunpack.c.h.b16 %v385
    %v2452 = vunpack.c.l.b16 %v386
    %v2453 = vunpack.c.h.b16 %v386
    %v2454 = vunpack.c.l.b16 %v387
    %v2455 = vunpack.c.h.b16 %v387
    %v2456 = vunpack.c.l.b16 %v388
    %v2457 = vunpack.c.h.b16 %v388
    %v2458 = vunpack.c.l.b16 %v389
    %v2459 = vunpack.c.h.b16 %v389
    %v2460 = vunpack.c.l.b16 %v390
    %v2461 = vunpack.c.h.b16 %v390
    %v2462 = vunpack.c.l.b16 %v391
    %v2463 = vunpack.c.h.b16 %v391
    %v2464 = vunpack.c.l.b16 %v392
    %v2465 = vunpack.c.h.b16 %v392
    %v2466 = vunpack.c.l.b16 %v393
    %v2467 = vunpack.c.h.b16 %v393
    %v2468 = vunpack.c.l.b16 %v394
    %v2469 = vunpack.c.h.b16 %v394
    %v2470 = vunpack.c.l.b16 %v395
    %v2471 = vunpack.c.h.b16 %v395
    %v2472 = vunpack.c.l.b16 %v396
    %v2473 = vunpack.c.h.b16 %v396
    %v2474 = vunpack.c.l.b16 %v397
    %v2475 = vunpack.c.h.b16 %v397
    %v2476 = vunpack.c.l.b16 %v398
    %v2477 = vunpack.c.h.b16 %v398
    %v2478 = vunpack.c.l.b16 %v399
    %v2479 = vunpack.c.h.b16 %v399
    %v2480 = vunpack.c.l.b16 %v400
    %v2481 = vunpack.c.h.b16 %v400
    %v2482 = vunpack.c.l.b16 %v401
    %v2483 = vunpack.c.h.b16 %v401
    %v2484 = vunpack.c.l.b16 %v402
    %v2485 = vunpack.c.h.b16 %v402
    %v2486 = vunpack.c.l.b16 %v403
    %v2487 = vunpack.c.h.b16 %v403
    %v2488 = vunpack.c.l.b16 %v404
    %v2489 = vunpack.c.h.b16 %v404
    %v2490 = vunpack.c.l.b16 %v405
    %v2491 = vunpack.c.h.b16 %v405
    %v2492 = vunpack.c.l.b16 %v406
    %v2493 = vunpack.c.h.b16 %v406
    %v2494 = vunpack.c.l.b16 %v407
    %v2495 = vunpack.c.h.b16 %v407
    %v2496 = vunpack.c.l.b16 %v408
    %v2497 = vunpack.c.h.b16 %v408
    %v2498 = vunpack.c.l.b16 %v409
    %v2499 = vunpack.c.h.b16 %v409
    %v2500 = vunpack.c.l.b16 %v410
    %v2501 = vunpack.c.h.b16 %v410
    %v2502 = vunpack.c.l.b16 %v411
    %v2503 = vunpack.c.h.b16 %v411
    %v2504 = vunpack.c.l.b16 %v412
    %v2505 = vunpack.c.h.b16 %v412
    %v2506 = vunpack.c.l.b16 %v413
    %v2507 = vunpack.c.h.b16 %v413
    %v2508 = vunpack.c.l.b16 %v414
    %v2509 = vunpack.c.h.b16 %v414
    %v2510 = vunpack.c.l.b16 %v415
    %v2511 = vunpack.c.h.b16 %v415
    %v2512 = vunpack.c.l.b16 %v416
    %v2513 = vunpack.c.h.b16 %v416
    %v2514 = vunpack.c.l.b16 %v417
    %v2515 = vunpack.c.h.b16 %v417
    %v2516 = vunpack.c.l.b16 %v418
    %v2517 = vunpack.c.h.b16 %v418
    %v2518 = vunpack.c.l.b16 %v419
    %v2519 = vunpack.c.h.b16 %v419
    %v2520 = vunpack.c.l.b16 %v420
    %v2521 = vunpack.c.h.b16 %v420
    %v2522 = vunpack.c.l.b16 %v421
    %v2523 = vunpack.c.h.b16 %v421
    %v2524 = vunpack.c.l.b16 %v422
    %v2525 = vunpack.c.h.b16 %v422
    %v2526 = vunpack.c.l.b16 %v423
    %v2527 = vunpack.c.h.b16 %v423
    %v2528 = vunpack.c.l.b16 %v424
    %v2529 = vunpack.c.h.b16 %v424
    %v2530 = vunpack.c.l.b16 %v425
    %v2531 = vunpack.c.h.b16 %v425
    %v2532 = vunpack.c.l.b16 %v426
    %v2533 = vunpack.c.h.b16 %v426
    %v2534 = vunpack.c.l.b16 %v427
    %v2535 = vunpack.c.h.b16 %v427
    %v2536 = vunpack.c.l.b16 %v428
    %v2537 = vunpack.c.h.b16 %v428
    %v2538 = vunpack.c.l.b16 %v429
    %v2539 = vunpack.c.h.b16 %v429
    %v2540 = vunpack.c.l.b16 %v430
    %v2541 = vunpack.c.h.b16 %v430
    %v2542 = vunpack.c.l.b16 %v431
    %v2543 = vunpack.c.h.b16 %v431
    %v2544 = vunpack.c.l.b16 %v432
    %v2545 = vunpack.c.h.b16 %v432
    %v2546 = vunpack.c.l.b16 %v433
    %v2547 = vunpack.c.h.b16 %v433
    %v2548 = vunpack.c.l.b16 %v434
    %v2549 = vunpack.c.h.b16 %v434
    %v2550 = vunpack.c.l.b16 %v435
    %v2551 = vunpack.c.h.b16 %v435
    %v2552 = vunpack.c.l.b16 %v436
    %v2553 = vunpack.c.h.b16 %v436
    %v2554 = vunpack.c.l.b16 %v437
    %v2555 = vunpack.c.h.b16 %v437
    %v2556 = vunpack.c.l.b16 %v438
    %v2557 = vunpack.c.h.b16 %v438
    %v2558 = vunpack.c.l.b16 %v439
    %v2559 = vunpack.c.h.b16 %v439
    %v2560 = vunpack.c.l.b16 %v440
    %v2561 = vunpack.c.h.b16 %v440
    %v2562 = vunpack.c.l.b16 %v441
    %v2563 = vunpack.c.h.b16 %v441
    %v2564 = vunpack.c.l.b16 %v442
    %v2565 = vunpack.c.h.b16 %v442
    %v2566 = vunpack.c.l.b16 %v443
    %v2567 = vunpack.c.h.b16 %v443
    %v2568 = vunpack.c.l.b16 %v444
    %v2569 = vunpack.c.h.b16 %v444
    %v2570 = vunpack.c.l.b16 %v445
    %v2571 = vunpack.c.h.b16 %v445
    %v2572 = vunpack.c.l.b16 %v446
    %v2573 = vunpack.c.h.b16 %v446
    %v2574 = vunpack.c.l.b16 %v447
    %v2575 = vunpack.c.h.b16 %v447
    %v2576 = vunpack.c.l.b16 %v448
    %v2577 = vunpack.c.h.b16 %v448
    %v2578 = vunpack.c.l.b16 %v449
    %v2579 = vunpack.c.h.b16 %v449
    %v2580 = vunpack.c.l.b16 %v450
    %v2581 = vunpack.c.h.b16 %v450
    %v2582 = vunpack.c.l.b16 %v451
    %v2583 = vunpack.c.h.b16 %v451
    %v2584 = vunpack.c.l.b16 %v452
    %v2585 = vunpack.c.h.b16 %v452
    %v2586 = vunpack.c.l.b16 %v453
    %v2587 = vunpack.c.h.b16 %v453
    %v2588 = vunpack.c.l.b16 %v454
    %v2589 = vunpack.c.h.b16 %v454
    %v2590 = vunpack.c.l.b16 %v455
    %v2591 = vunpack.c.h.b16 %v455
    %v2592 = vunpack.c.l.b16 %v456
    %v2593 = vunpack.c.h.b16 %v456
    %v2594 = vunpack.c.l.b16 %v457
    %v2595 = vunpack.c.h.b16 %v457
    %v2596 = vunpack.c.l.b16 %v458
    %v2597 = vunpack.c.h.b16 %v458
    %v2598 = vunpack.c.l.b16 %v459
    %v2599 = vunpack.c.h.b16 %v459
    %v2600 = vunpack.c.l.b16 %v460
    %v2601 = vunpack.c.h.b16 %v460
    %v2602 = vunpack.c.l.b16 %v461
    %v2603 = vunpack.c.h.b16 %v461
    %v2604 = vunpack.c.l.b16 %v462
    %v2605 = vunpack.c.h.b16 %v462
    %v2606 = vunpack.c.l.b16 %v463
    %v2607 = vunpack.c.h.b16 %v463
    %v2608 = vunpack.c.l.b16 %v464
    %v2609 = vunpack.c.h.b16 %v464
    %v2610 = vunpack.c.l.b16 %v465
    %v2611 = vunpack.c.h.b16 %v465
    %v2612 = vunpack.c.l.b16 %v466
    %v2613 = vunpack.c.h.b16 %v466
    %v2614 = vunpack.c.l.b16 %v467
    %v2615 = vunpack.c.h.b16 %v467
    %v2616 = vunpack.c.l.b16 %v468
    %v2617 = vunpack.c.h.b16 %v468
    %v2618 = vunpack.c.l.b16 %v469
    %v2619 = vunpack.c.h.b16 %v469
    %v2620 = vunpack.c.l.b16 %v470
    %v2621 = vunpack.c.h.b16 %v470
    %v2622 = vunpack.c.l.b16 %v471
    %v2623 = vunpack.c.h.b16 %v471
    %v2624 = vunpack.c.l.b16 %v472
    %v2625 = vunpack.c.h.b16 %v472
    %v2626 = vunpack.c.l.b16 %v473
    %v2627 = vunpack.c.h.b16 %v473
    %v2628 = vunpack.c.l.b16 %v474
    %v2629 = vunpack.c.h.b16 %v474
    %v2630 = vunpack.c.l.b16 %v475
    %v2631 = vunpack.c.h.b16 %v475
    %v2632 = vunpack.c.l.b16 %v476
    %v2633 = vunpack.c.h.b16 %v476
    %v2634 = vunpack.c.l.b16 %v477
    %v2635 = vunpack.c.h.b16 %v477
    %v2636 = vunpack.c.l.b16 %v478
    %v2637 = vunpack.c.h.b16 %v478
    %v2638 = vunpack.c.l.b16 %v479
    %v2639 = vunpack.c.h.b16 %v479
    %v2640 = vunpack.c.l.b16 %v480
    %v2641 = vunpack.c.h.b16 %v480
    %v2642 = vunpack.c.l.b16 %v481
    %v2643 = vunpack.c.h.b16 %v481
    %v2644 = vunpack.c.l.b16 %v482
    %v2645 = vunpack.c.h.b16 %v482
    %v2646 = vunpack.c.l.b16 %v483
    %v2647 = vunpack.c.h.b16 %v483
    %v2648 = vunpack.c.l.b16 %v484
    %v2649 = vunpack.c.h.b16 %v484
    %v2650 = vunpack.c.l.b16 %v485
    %v2651 = vunpack.c.h.b16 %v485
    %v2652 = vunpack.c.l.b16 %v486
    %v2653 = vunpack.c.h.b16 %v486
    %v2654 = vunpack.c.l.b16 %v487
    %v2655 = vunpack.c.h.b16 %v487
    %v2656 = vunpack.c.l.b16 %v488
    %v2657 = vunpack.c.h.b16 %v488
    %v2658 = vunpack.c.l.b16 %v489
    %v2659 = vunpack.c.h.b16 %v489
    %v2660 = vunpack.c.l.b16 %v490
    %v2661 = vunpack.c.h.b16 %v490
    %v2662 = vunpack.c.l.b16 %v491
    %v2663 = vunpack.c.h.b16 %v491
    %v2664 = vunpack.c.l.b16 %v492
    %v2665 = vunpack.c.h.b16 %v492
    %v2666 = vunpack.c.l.b16 %v493
    %v2667 = vunpack.c.h.b16 %v493
    %v2668 = vunpack.c.l.b16 %v494
    %v2669 = vunpack.c.h.b16 %v494
    %v2670 = vunpack.c.l.b16 %v495
    %v2671 = vunpack.c.h.b16 %v495
    %v2672 = vunpack.c.l.b16 %v496
    %v2673 = vunpack.c.h.b16 %v496
    %v2674 = vunpack.c.l.b16 %v497
    %v2675 = vunpack.c.h.b16 %v497
    %v2676 = vunpack.c.l.b16 %v498
    %v2677 = vunpack.c.h.b16 %v498
    %v2678 = vunpack.c.l.b16 %v499
    %v2679 = vunpack.c.h.b16 %v499
    %v2680 = vunpack.c.l.b16 %v500
    %v2681 = vunpack.c.h.b16 %v500
    %v2682 = vunpack.c.l.b16 %v501
    %v2683 = vunpack.c.h.b16 %v501
    %v2684 = vunpack.c.l.b16 %v502
    %v2685 = vunpack.c.h.b16 %v502
    %v2686 = vunpack.c.l.b16 %v503
    %v2687 = vunpack.c.h.b16 %v503
    %v2688 = vunpack.c.l.b16 %v504
    %v2689 = vunpack.c.h.b16 %v504
    %v2690 = vunpack.c.l.b16 %v505
    %v2691 = vunpack.c.h.b16 %v505
    %v2692 = vunpack.c.l.b16 %v506
    %v2693 = vunpack.c.h.b16 %v506
    %v2694 = vunpack.c.l.b16 %v507
    %v2695 = vunpack.c.h.b16 %v507
    %v2696 = vunpack.c.l.b16 %v508
    %v2697 = vunpack.c.h.b16 %v508
    %v2698 = vunpack.c.l.b16 %v509
    %v2699 = vunpack.c.h.b16 %v509
    %v2700 = vunpack.c.l.b16 %v510
    %v2701 = vunpack.c.h.b16 %v510
    %v2702 = vunpack.c.l.b16 %v511
    %v2703 = vunpack.c.h.b16 %v511
    %v2704 = vunpack.c.l.b16 %v512
    %v2705 = vunpack.c.h.b16 %v512
    %v2706 = vunpack.c.l.b16 %v513
    %v2707 = vunpack.c.h.b16 %v513
    %v2708 = vunpack.c.l.b16 %v514
    %v2709 = vunpack.c.h.b16 %v514
    %v2710 = vunpack.c.l.b16 %v515
    %v2711 = vunpack.c.h.b16 %v515
    %v2712 = vunpack.c.l.b16 %v516
    %v2713 = vunpack.c.h.b16 %v516
    %v2714 = vunpack.c.l.b16 %v517
    %v2715 = vunpack.c.h.b16 %v517
    %v2716 = vunpack.c.l.b16 %v518
    %v2717 = vunpack.c.h.b16 %v518
    %v2718 = vunpack.c.l.b16 %v519
    %v2719 = vunpack.c.h.b16 %v519
    %v2720 = vunpack.c.l.b16 %v520
    %v2721 = vunpack.c.h.b16 %v520
    %v2722 = vunpack.c.l.b16 %v521
    %v2723 = vunpack.c.h.b16 %v521
    %v2724 = vunpack.c.l.b16 %v522
    %v2725 = vunpack.c.h.b16 %v522
    %v2726 = vunpack.c.l.b16 %v523
    %v2727 = vunpack.c.h.b16 %v523
    %v2728 = vunpack.c.l.b16 %v524
    %v2729 = vunpack.c.h.b16 %v524
    %v2730 = vunpack.c.l.b16 %v525
    %v2731 = vunpack.c.h.b16 %v525
    %v2732 = vunpack.c.l.b16 %v526
    %v2733 = vunpack.c.h.b16 %v526
    %v2734 = vunpack.c.l.b16 %v527
    %v2735 = vunpack.c.h.b16 %v527
    %v2736 = vunpack.c.l.b16 %v528
    %v2737 = vunpack.c.h.b16 %v528
    %v2738 = vunpack.c.l.b16 %v529
    %v2739 = vunpack.c.h.b16 %v529
    %v2740 = vunpack.c.l.b16 %v530
    %v2741 = vunpack.c.h.b16 %v530
    %v2742 = vunpack.c.l.b16 %v531
    %v2743 = vunpack.c.h.b16 %v531
    %v2744 = vunpack.c.l.b16 %v532
    %v2745 = vunpack.c.h.b16 %v532
    %v2746 = vunpack.c.l.b16 %v533
    %v2747 = vunpack.c.h.b16 %v533
    %v2748 = vunpack.c.l.b16 %v534
    %v2749 = vunpack.c.h.b16 %v534
    %v2750 = vunpack.c.l.b16 %v535
    %v2751 = vunpack.c.h.b16 %v535
    %v2752 = vunpack.c.l.b16 %v536
    %v2753 = vunpack.c.h.b16 %v536
    %v2754 = vunpack.c.l.b16 %v537
    %v2755 = vunpack.c.h.b16 %v537
    %v2756 = vunpack.c.l.b16 %v538
    %v2757 = vunpack.c.h.b16 %v538
    %v2758 = vunpack.c.l.b16 %v539
    %v2759 = vunpack.c.h.b16 %v539
    %v2760 = vunpack.c.l.b16 %v540
    %v2761 = vunpack.c.h.b16 %v540
    %v2762 = vunpack.c.l.b16 %v541
    %v2763 = vunpack.c.h.b16 %v541
    %v2764 = vunpack.c.l.b16 %v542
    %v2765 = vunpack.c.h.b16 %v542
    %v2766 = vunpack.c.l.b16 %v543
    %v2767 = vunpack.c.h.b16 %v543
    %v2768 = vunpack.c.l.b16 %v544
    %v2769 = vunpack.c.h.b16 %v544
    %v2770 = vunpack.c.l.b16 %v545
    %v2771 = vunpack.c.h.b16 %v545
    %v2772 = vunpack.c.l.b16 %v546
    %v2773 = vunpack.c.h.b16 %v546
    %v2774 = vunpack.c.l.b16 %v547
    %v2775 = vunpack.c.h.b16 %v547
    %v2776 = vunpack.c.l.b16 %v548
    %v2777 = vunpack.c.h.b16 %v548
    %v2778 = vunpack.c.l.b16 %v549
    %v2779 = vunpack.c.h.b16 %v549
    %v2780 = vunpack.c.l.b16 %v550
    %v2781 = vunpack.c.h.b16 %v550
    %v2782 = vunpack.c.l.b16 %v551
    %v2783 = vunpack.c.h.b16 %v551
    %v2784 = vunpack.c.l.b16 %v552
    %v2785 = vunpack.c.h.b16 %v552
    %v2786 = vunpack.c.l.b16 %v553
    %v2787 = vunpack.c.h.b16 %v553
    %v2788 = vunpack.c.l.b16 %v554
    %v2789 = vunpack.c.h.b16 %v554
    %v2790 = vunpack.c.l.b16 %v555
    %v2791 = vunpack.c.h.b16 %v555
    %v2792 = vunpack.c.l.b16 %v556
    %v2793 = vunpack.c.h.b16 %v556
    %v2794 = vunpack.c.l.b16 %v557
    %v2795 = vunpack.c.h.b16 %v557
    %v2796 = vunpack.c.l.b16 %v558
    %v2797 = vunpack.c.h.b16 %v558
    %v2798 = vunpack.c.l.b16 %v559
    %v2799 = vunpack.c.h.b16 %v559
    %v2800 = vunpack.c.l.b16 %v560
    %v2801 = vunpack.c.h.b16 %v560
    %v2802 = vunpack.c.l.b16 %v561
    %v2803 = vunpack.c.h.b16 %v561
    %v2804 = vunpack.c.l.b16 %v562
    %v2805 = vunpack.c.h.b16 %v562
    %v2806 = vunpack.c.l.b16 %v563
    %v2807 = vunpack.c.h.b16 %v563
    %v2808 = vunpack.c.l.b16 %v564
    %v2809 = vunpack.c.h.b16 %v564
    %v2810 = vunpack.c.l.b16 %v565
    %v2811 = vunpack.c.h.b16 %v565
    %v2812 = vunpack.c.l.b16 %v566
    %v2813 = vunpack.c.h.b16 %v566
    %v2814 = vunpack.c.l.b16 %v567
    %v2815 = vunpack.c.h.b16 %v567
    %v2816 = vunpack.c.l.b16 %v568
    %v2817 = vunpack.c.h.b16 %v568
    %v2818 = vunpack.c.l.b16 %v569
    %v2819 = vunpack.c.h.b16 %v569
    %v2820 = vunpack.c.l.b16 %v570
    %v2821 = vunpack.c.h.b16 %v570
    %v2822 = vunpack.c.l.b16 %v571
    %v2823 = vunpack.c.h.b16 %v571
    %v2824 = vunpack.c.l.b16 %v572
    %v2825 = vunpack.c.h.b16 %v572
    %v2826 = vunpack.c.l.b16 %v573
    %v2827 = vunpack.c.h.b16 %v573
    %v2828 = vunpack.c.l.b16 %v574
    %v2829 = vunpack.c.h.b16 %v574
    %v2830 = vunpack.c.l.b16 %v575
    %v2831 = vunpack.c.h.b16 %v575
    %v2832 = vunpack.c.l.b16 %v576
    %v2833 = vunpack.c.h.b16 %v576
    %v2834 = vunpack.c.l.b16 %v577
    %v2835 = vunpack.c.h.b16 %v577
    %v2836 = vunpack.c.l.b16 %v578
    %v2837 = vunpack.c.h.b16 %v578
    %v2838 = vunpack.c.l.b16 %v579
    %v2839 = vunpack.c.h.b16 %v579
    %v2840 = vunpack.c.l.b16 %v580
    %v2841 = vunpack.c.h.b16 %v580
    %v2842 = vunpack.c.l.b16 %v581
    %v2843 = vunpack.c.h.b16 %v581
    %v2844 = vunpack.c.l.b16 %v582
    %v2845 = vunpack.c.h.b16 %v582
    %v2846 = vunpack.c.l.b16 %v583
    %v2847 = vunpack.c.h.b16 %v583
    %v2848 = vunpack.c.l.b16 %v584
    %v2849 = vunpack.c.h.b16 %v584
    %v2850 = vunpack.c.l.b16 %v585
    %v2851 = vunpack.c.h.b16 %v585
    %v2852 = vunpack.c.l.b16 %v586
    %v2853 = vunpack.c.h.b16 %v586
    %v2854 = vunpack.c.l.b16 %v587
    %v2855 = vunpack.c.h.b16 %v587
    %v2856 = vunpack.c.l.b16 %v588
    %v2857 = vunpack.c.h.b16 %v588
    %v2858 = vunpack.c.l.b16 %v589
    %v2859 = vunpack.c.h.b16 %v589
    %v2860 = vunpack.c.l.b16 %v590
    %v2861 = vunpack.c.h.b16 %v590
    %v2862 = vunpack.c.l.b16 %v591
    %v2863 = vunpack.c.h.b16 %v591
    %v2864 = vunpack.c.l.b16 %v592
    %v2865 = vunpack.c.h.b16 %v592
    %v2866 = vunpack.c.l.b16 %v593
    %v2867 = vunpack.c.h.b16 %v593
    %v2868 = vunpack.c.l.b16 %v594
    %v2869 = vunpack.c.h.b16 %v594
    %v2870 = vunpack.c.l.b16 %v595
    %v2871 = vunpack.c.h.b16 %v595
    %v2872 = vunpack.c.l.b16 %v596
    %v2873 = vunpack.c.h.b16 %v596
    %v2874 = vunpack.c.l.b16 %v597
    %v2875 = vunpack.c.h.b16 %v597
    %v2876 = vunpack.c.l.b16 %v598
    %v2877 = vunpack.c.h.b16 %v598
    %v2878 = vunpack.c.l.b16 %v599
    %v2879 = vunpack.c.h.b16 %v599
    %v2880 = vunpack.c.l.b16 %v600
    %v2881 = vunpack.c.h.b16 %v600
    %v2882 = vunpack.c.l.b16 %v601
    %v2883 = vunpack.c.h.b16 %v601
    %v2884 = vunpack.c.l.b16 %v602
    %v2885 = vunpack.c.h.b16 %v602
    %v2886 = vunpack.c.l.b16 %v603
    %v2887 = vunpack.c.h.b16 %v603
    %v2888 = vunpack.c.l.b16 %v604
    %v2889 = vunpack.c.h.b16 %v604
    %v2890 = vunpack.c.l.b16 %v605
    %v2891 = vunpack.c.h.b16 %v605
    %v2892 = vunpack.c.l.b16 %v606
    %v2893 = vunpack.c.h.b16 %v606
    %v2894 = vunpack.c.l.b16 %v607
    %v2895 = vunpack.c.h.b16 %v607
    %v2896 = vunpack.c.l.b16 %v608
    %v2897 = vunpack.c.h.b16 %v608
    %v2898 = vunpack.c.l.b16 %v609
    %v2899 = vunpack.c.h.b16 %v609
    %v2900 = vunpack.c.l.b16 %v610
    %v2901 = vunpack.c.h.b16 %v610
    %v2902 = vunpack.c.l.b16 %v611
    %v2903 = vunpack.c.h.b16 %v611
    %v2904 = vunpack.c.l.b16 %v612
    %v2905 = vunpack.c.h.b16 %v612
    %v2906 = vunpack.c.l.b16 %v613
    %v2907 = vunpack.c.h.b16 %v613
    %v2908 = vunpack.c.l.b16 %v614
    %v2909 = vunpack.c.h.b16 %v614
    %v2910 = vunpack.c.l.b16 %v615
    %v2911 = vunpack.c.h.b16 %v615
    %v2912 = vunpack.c.l.b16 %v616
    %v2913 = vunpack.c.h.b16 %v616
    %v2914 = vunpack.c.l.b16 %v617
    %v2915 = vunpack.c.h.b16 %v617
    %v2916 = vunpack.c.l.b16 %v618
    %v2917 = vunpack.c.h.b16 %v618
    %v2918 = vunpack.c.l.b16 %v619
    %v2919 = vunpack.c.h.b16 %v619
    %v2920 = vunpack.c.l.b16 %v620
    %v2921 = vunpack.c.h.b16 %v620
    %v2922 = vunpack.c.l.b16 %v621
    %v2923 = vunpack.c.h.b16 %v621
    %v2924 = vunpack.c.l.b16 %v622
    %v2925 = vunpack.c.h.b16 %v622
    %v2926 = vunpack.c.l.b16 %v623
    %v2927 = vunpack.c.h.b16 %v623
    %v2928 = vunpack.c.l.b16 %v624
    %v2929 = vunpack.c.h.b16 %v624
    %v2930 = vunpack.c.l.b16 %v625
    %v2931 = vunpack.c.h.b16 %v625
    %v2932 = vunpack.c.l.b16 %v626
    %v2933 = vunpack.c.h.b16 %v626
    %v2934 = vunpack.c.l.b16 %v627
    %v2935 = vunpack.c.h.b16 %v627
    %v2936 = vunpack.c.l.b16 %v628
    %v2937 = vunpack.c.h.b16 %v628
    %v2938 = vunpack.c.l.b16 %v629
    %v2939 = vunpack.c.h.b16 %v629
    %v2940 = vunpack.c.l.b16 %v630
    %v2941 = vunpack.c.h.b16 %v630
    %v2942 = vunpack.c.l.b16 %v631
    %v2943 = vunpack.c.h.b16 %v631
    %v2944 = vunpack.c.l.b16 %v632
    %v2945 = vunpack.c.h.b16 %v632
    %v2946 = vunpack.c.l.b16 %v633
    %v2947 = vunpack.c.h.b16 %v633
    %v2948 = vunpack.c.l.b16 %v634
    %v2949 = vunpack.c.h.b16 %v634
    %v2950 = vunpack.c.l.b16 %v635
    %v2951 = vunpack.c.h.b16 %v635
    %v2952 = vunpack.c.l.b16 %v636
    %v2953 = vunpack.c.h.b16 %v636
    %v2954 = vunpack.c.l.b16 %v637
    %v2955 = vunpack.c.h.b16 %v637
    %v2956 = vunpack.c.l.b16 %v638
    %v2957 = vunpack.c.h.b16 %v638
    %v2958 = vunpack.c.l.b16 %v639
    %v2959 = vunpack.c.h.b16 %v639
    %v2960 = vunpack.c.l.b16 %v640
    %v2961 = vunpack.c.h.b16 %v640
    %v2962 = vunpack.c.l.b16 %v641
    %v2963 = vunpack.c.h.b16 %v641
    %v2964 = vunpack.c.l.b16 %v642
    %v2965 = vunpack.c.h.b16 %v642
    %v2966 = vunpack.c.l.b16 %v643
    %v2967 = vunpack.c.h.b16 %v643
    %v2968 = vunpack.c.l.b16 %v644
    %v2969 = vunpack.c.h.b16 %v644
    %v2970 = vunpack.c.l.b16 %v645
    %v2971 = vunpack.c.h.b16 %v645
    %v2972 = vunpack.c.l.b16 %v646
    %v2973 = vunpack.c.h.b16 %v646
    %v2974 = vunpack.c.l.b16 %v647
    %v2975 = vunpack.c.h.b16 %v647
    %v2976 = vunpack.c.l.b16 %v648
    %v2977 = vunpack.c.h.b16 %v648
    %v2978 = vunpack.c.l.b16 %v649
    %v2979 = vunpack.c.h.b16 %v649
    %v2980 = vunpack.c.l.b16 %v650
    %v2981 = vunpack.c.h.b16 %v650
    %v2982 = vunpack.c.l.b16 %v651
    %v2983 = vunpack.c.h.b16 %v651
    %v2984 = vunpack.c.l.b16 %v652
    %v2985 = vunpack.c.h.b16 %v652
    %v2986 = vunpack.c.l.b16 %v653
    %v2987 = vunpack.c.h.b16 %v653
    %v2988 = vunpack.c.l.b16 %v654
    %v2989 = vunpack.c.h.b16 %v654
    %v2990 = vunpack.c.l.b16 %v655
    %v2991 = vunpack.c.h.b16 %v655
    %v2992 = vunpack.c.l.b16 %v656
    %v2993 = vunpack.c.h.b16 %v656
    %v2994 = vunpack.c.l.b16 %v657
    %v2995 = vunpack.c.h.b16 %v657
    %v2996 = vunpack.c.l.b16 %v658
    %v2997 = vunpack.c.h.b16 %v658
    %v2998 = vunpack.c.l.b16 %v659
    %v2999 = vunpack.c.h.b16 %v659
    %v3000 = vunpack.c.l.b16 %v660
    %v3001 = vunpack.c.h.b16 %v660
    %v3002 = vunpack.c.l.b16 %v661
    %v3003 = vunpack.c.h.b16 %v661
    %v3004 = vunpack.c.l.b16 %v662
    %v3005 = vunpack.c.h.b16 %v662
    %v3006 = vunpack.c.l.b16 %v663
    %v3007 = vunpack.c.h.b16 %v663
    %v3008 = vunpack.c.l.b16 %v664
    %v3009 = vunpack.c.h.b16 %v664
    %v3010 = vunpack.c.l.b16 %v665
    %v3011 = vunpack.c.h.b16 %v665
    %v3012 = vunpack.c.l.b16 %v666
    %v3013 = vunpack.c.h.b16 %v666
    %v3014 = vunpack.c.l.b16 %v667
    %v3015 = vunpack.c.h.b16 %v667
    %v3016 = vunpack.c.l.b16 %v668
    %v3017 = vunpack.c.h.b16 %v668
    %v3018 = vunpack.c.l.b16 %v669
    %v3019 = vunpack.c.h.b16 %v669
    %v3020 = vunpack.c.l.b16 %v670
    %v3021 = vunpack.c.h.b16 %v670
    %v3022 = vunpack.c.l.b16 %v671
    %v3023 = vunpack.c.h.b16 %v671
    %v3024 = vunpack.c.l.b16 %v672
    %v3025 = vunpack.c.h.b16 %v672
    %v3026 = vunpack.c.l.b16 %v673
    %v3027 = vunpack.c.h.b16 %v673
    %v3028 = vunpack.c.l.b16 %v674
    %v3029 = vunpack.c.h.b16 %v674
    %v3030 = vunpack.c.l.b16 %v675
    %v3031 = vunpack.c.h.b16 %v675
    %v3032 = vunpack.c.l.b16 %v676
    %v3033 = vunpack.c.h.b16 %v676
    %v3034 = vunpack.c.l.b16 %v677
    %v3035 = vunpack.c.h.b16 %v677
    %v3036 = vunpack.c.l.b16 %v678
    %v3037 = vunpack.c.h.b16 %v678
    %v3038 = vunpack.c.l.b16 %v679
    %v3039 = vunpack.c.h.b16 %v679
    %v3040 = vunpack.c.l.b16 %v680
    %v3041 = vunpack.c.h.b16 %v680
    %v3042 = vunpack.c.l.b16 %v681
    %v3043 = vunpack.c.h.b16 %v681
    %v3044 = vunpack.c.l.b16 %v682
    %v3045 = vunpack.c.h.b16 %v682
    %v3046 = vunpack.c.l.b16 %v683
    %v3047 = vunpack.c.h.b16 %v683
    %v3048 = vunpack.c.l.b16 %v684
    %v3049 = vunpack.c.h.b16 %v684
    %v3050 = vunpack.c.l.b16 %v685
    %v3051 = vunpack.c.h.b16 %v685
    %v3052 = vunpack.c.l.b16 %v686
    %v3053 = vunpack.c.h.b16 %v686
    %v3054 = vunpack.c.l.b16 %v687
    %v3055 = vunpack.c.h.b16 %v687
    %v3056 = vunpack.c.l.b16 %v688
    %v3057 = vunpack.c.h.b16 %v688
    %v3058 = vunpack.c.l.b16 %v689
    %v3059 = vunpack.c.h.b16 %v689
    %v3060 = vunpack.c.l.b16 %v690
    %v3061 = vunpack.c.h.b16 %v690
    %v3062 = vunpack.c.l.b16 %v691
    %v3063 = vunpack.c.h.b16 %v691
    %v3064 = vunpack.c.l.b16 %v692
    %v3065 = vunpack.c.h.b16 %v692
    %v3066 = vunpack.c.l.b16 %v693
    %v3067 = vunpack.c.h.b16 %v693
    %v3068 = vunpack.c.l.b16 %v694
    %v3069 = vunpack.c.h.b16 %v694
    %v3070 = vunpack.c.l.b16 %v695
    %v3071 = vunpack.c.h.b16 %v695
    %v3072 = vunpack.c.l.b16 %v696
    %v3073 = vunpack.c.h.b16 %v696
    %v3074 = vunpack.c.l.b16 %v697
    %v3075 = vunpack.c.h.b16 %v697
    %v3076 = vunpack.c.l.b16 %v698
    %v3077 = vunpack.c.h.b16 %v698
    %v3078 = vunpack.c.l.b16 %v699
    %v3079 = vunpack.c.h.b16 %v699
    %v3080 = vunpack.c.l.b16 %v700
    %v3081 = vunpack.c.h.b16 %v700
    %v3082 = vunpack.c.l.b16 %v701
    %v3083 = vunpack.c.h.b16 %v701
    %v3084 = vunpack.c.l.b16 %v702
    %v3085 = vunpack.c.h.b16 %v702
    %v3086 = vunpack.c.l.b16 %v703
    %v3087 = vunpack.c.h.b16 %v703
    %v3088 = vunpack.c.l.b16 %v704
    %v3089 = vunpack.c.h.b16 %v704
    %v3090 = vunpack.c.l.b16 %v705
    %v3091 = vunpack.c.h.b16 %v705
    %v3092 = vunpack.c.l.b16 %v706
    %v3093 = vunpack.c.h.b16 %v706
    %v3094 = vunpack.c.l.b16 %v707
    %v3095 = vunpack.c.h.b16 %v707
    %v3096 = vunpack.c.l.b16 %v708
    %v3097 = vunpack.c.h.b16 %v708
    %v3098 = vunpack.c.l.b16 %v709
    %v3099 = vunpack.c.h.b16 %v709
    %v3100 = vunpack.c.l.b16 %v710
    %v3101 = vunpack.c.h.b16 %v710
    %v3102 = vunpack.c.l.b16 %v711
    %v3103 = vunpack.c.h.b16 %v711
    %v3104 = vunpack.c.l.b16 %v712
    %v3105 = vunpack.c.h.b16 %v712
    %v3106 = vunpack.c.l.b16 %v713
    %v3107 = vunpack.c.h.b16 %v713
    %v3108 = vunpack.c.l.b16 %v714
    %v3109 = vunpack.c.h.b16 %v714
    %v3110 = vunpack.c.l.b16 %v715
    %v3111 = vunpack.c.h.b16 %v715
    %v3112 = vunpack.c.l.b16 %v716
    %v3113 = vunpack.c.h.b16 %v716
    %v3114 = vunpack.c.l.b16 %v717
    %v3115 = vunpack.c.h.b16 %v717
    %v3116 = vunpack.c.l.b16 %v718
    %v3117 = vunpack.c.h.b16 %v718
    %v3118 = vunpack.c.l.b16 %v719
    %v3119 = vunpack.c.h.b16 %v719
    %v3120 = vunpack.c.l.b16 %v720
    %v3121 = vunpack.c.h.b16 %v720
    %v3122 = vunpack.c.l.b16 %v721
    %v3123 = vunpack.c.h.b16 %v721
    %v3124 = vunpack.c.l.b16 %v722
    %v3125 = vunpack.c.h.b16 %v722
    %v3126 = vunpack.c.l.b16 %v723
    %v3127 = vunpack.c.h.b16 %v723
    %v3128 = vunpack.c.l.b16 %v724
    %v3129 = vunpack.c.h.b16 %v724
    %v3130 = vunpack.c.l.b16 %v725
    %v3131 = vunpack.c.h.b16 %v725
    %v3132 = vunpack.c.l.b16 %v726
    %v3133 = vunpack.c.h.b16 %v726
    %v3134 = vunpack.c.l.b16 %v727
    %v3135 = vunpack.c.h.b16 %v727
    %v3136 = vunpack.c.l.b16 %v728
    %v3137 = vunpack.c.h.b16 %v728
    %v3138 = vunpack.c.l.b16 %v729
    %v3139 = vunpack.c.h.b16 %v729
    %v3140 = vunpack.c.l.b16 %v730
    %v3141 = vunpack.c.h.b16 %v730
    %v3142 = vunpack.c.l.b16 %v731
    %v3143 = vunpack.c.h.b16 %v731
    %v3144 = vunpack.c.l.b16 %v732
    %v3145 = vunpack.c.h.b16 %v732
    %v3146 = vunpack.c.l.b16 %v733
    %v3147 = vunpack.c.h.b16 %v733
    %v3148 = vunpack.c.l.b16 %v734
    %v3149 = vunpack.c.h.b16 %v734
    %v3150 = vunpack.c.l.b16 %v735
    %v3151 = vunpack.c.h.b16 %v735
    %v3152 = vunpack.c.l.b16 %v736
    %v3153 = vunpack.c.h.b16 %v736
    %v3154 = vunpack.c.l.b16 %v737
    %v3155 = vunpack.c.h.b16 %v737
    %v3156 = vunpack.c.l.b16 %v738
    %v3157 = vunpack.c.h.b16 %v738
    %v3158 = vunpack.c.l.b16 %v739
    %v3159 = vunpack.c.h.b16 %v739
    %v3160 = vunpack.c.l.b16 %v740
    %v3161 = vunpack.c.h.b16 %v740
    %v3162 = vunpack.c.l.b16 %v741
    %v3163 = vunpack.c.h.b16 %v741
    %v3164 = vunpack.c.l.b16 %v742
    %v3165 = vunpack.c.h.b16 %v742
    %v3166 = vunpack.c.l.b16 %v743
    %v3167 = vunpack.c.h.b16 %v743
    %v3168 = vunpack.c.l.b16 %v744
    %v3169 = vunpack.c.h.b16 %v744
    %v3170 = vunpack.c.l.b16 %v745
    %v3171 = vunpack.c.h.b16 %v745
    %v3172 = vunpack.c.l.b16 %v746
    %v3173 = vunpack.c.h.b16 %v746
    %v3174 = vunpack.c.l.b16 %v747
    %v3175 = vunpack.c.h.b16 %v747
    %v3176 = vunpack.c.l.b16 %v748
    %v3177 = vunpack.c.h.b16 %v748
    %v3178 = vunpack.c.l.b16 %v749
    %v3179 = vunpack.c.h.b16 %v749
    %v3180 = vunpack.c.l.b16 %v750
    %v3181 = vunpack.c.h.b16 %v750
    %v3182 = vunpack.c.l.b16 %v751
    %v3183 = vunpack.c.h.b16 %v751
    %v3184 = vunpack.c.l.b16 %v752
    %v3185 = vunpack.c.h.b16 %v752
    %v3186 = vunpack.c.l.b16 %v753
    %v3187 = vunpack.c.h.b16 %v753
    %v3188 = vunpack.c.l.b16 %v754
    %v3189 = vunpack.c.h.b16 %v754
    %v3190 = vunpack.c.l.b16 %v755
    %v3191 = vunpack.c.h.b16 %v755
    %v3192 = vunpack.c.l.b16 %v756
    %v3193 = vunpack.c.h.b16 %v756
    %v3194 = vunpack.c.l.b16 %v757
    %v3195 = vunpack.c.h.b16 %v757
    %v3196 = vunpack.c.l.b16 %v758
    %v3197 = vunpack.c.h.b16 %v758
    %v3198 = vunpack.c.l.b16 %v759
    %v3199 = vunpack.c.h.b16 %v759
    %v3200 = vunpack.c.l.b16 %v760
    %v3201 = vunpack.c.h.b16 %v760
    %v3202 = vunpack.c.l.b16 %v761
    %v3203 = vunpack.c.h.b16 %v761
    %v3204 = vunpack.c.l.b16 %v762
    %v3205 = vunpack.c.h.b16 %v762
    %v3206 = vunpack.c.l.b16 %v763
    %v3207 = vunpack.c.h.b16 %v763
    %v3208 = vunpack.c.l.b16 %v764
    %v3209 = vunpack.c.h.b16 %v764
    %v3210 = vunpack.c.l.b16 %v765
    %v3211 = vunpack.c.h.b16 %v765
    %v3212 = vunpack.c.l.b16 %v766
    %v3213 = vunpack.c.h.b16 %v766
    %v3214 = vunpack.c.l.b16 %v767
    %v3215 = vunpack.c.h.b16 %v767
    %v3216 = vunpack.c.l.b16 %v768
    %v3217 = vunpack.c.h.b16 %v768
    %v3218 = vunpack.c.l.b16 %v769
    %v3219 = vunpack.c.h.b16 %v769
    %v3220 = vunpack.c.l.b16 %v770
    %v3221 = vunpack.c.h.b16 %v770
    %v3222 = vunpack.c.l.b16 %v771
    %v3223 = vunpack.c.h.b16 %v771
    %v3224 = vunpack.c.l.b16 %v772
    %v3225 = vunpack.c.h.b16 %v772
    %v3226 = vunpack.c.l.b16 %v773
    %v3227 = vunpack.c.h.b16 %v773
    %v3228 = vunpack.c.l.b16 %v774
    %v3229 = vunpack.c.h.b16 %v774
    %v3230 = vunpack.c.l.b16 %v775
    %v3231 = vunpack.c.h.b16 %v775
    %v3232 = vunpack.c.l.b16 %v776
    %v3233 = vunpack.c.h.b16 %v776
    %v3234 = vunpack.c.l.b16 %v777
    %v3235 = vunpack.c.h.b16 %v777
    %v3236 = vunpack.c.l.b16 %v778
    %v3237 = vunpack.c.h.b16 %v778
    %v3238 = vunpack.c.l.b16 %v779
    %v3239 = vunpack.c.h.b16 %v779
    %v3240 = vunpack.c.l.b16 %v780
    %v3241 = vunpack.c.h.b16 %v780
    %v3242 = vunpack.c.l.b16 %v781
    %v3243 = vunpack.c.h.b16 %v781
    %v3244 = vunpack.c.l.b16 %v782
    %v3245 = vunpack.c.h.b16 %v782
    %v3246 = vunpack.c.l.b16 %v783
    %v3247 = vunpack.c.h.b16 %v783
    %v3248 = vunpack.c.l.b16 %v784
    %v3249 = vunpack.c.h.b16 %v784
    %v3250 = vunpack.c.l.b16 %v785
    %v3251 = vunpack.c.h.b16 %v785
    %v3252 = vunpack.c.l.b16 %v786
    %v3253 = vunpack.c.h.b16 %v786
    %v3254 = vunpack.c.l.b16 %v787
    %v3255 = vunpack.c.h.b16 %v787
    %v3256 = vunpack.c.l.b16 %v788
    %v3257 = vunpack.c.h.b16 %v788
    %v3258 = vunpack.c.l.b16 %v789
    %v3259 = vunpack.c.h.b16 %v789
    %v3260 = vunpack.c.l.b16 %v790
    %v3261 = vunpack.c.h.b16 %v790
    %v3262 = vunpack.c.l.b16 %v791
    %v3263 = vunpack.c.h.b16 %v791
    %v3264 = vunpack.c.l.b16 %v792
    %v3265 = vunpack.c.h.b16 %v792
    %v3266 = vunpack.c.l.b16 %v793
    %v3267 = vunpack.c.h.b16 %v793
    %v3268 = vunpack.c.l.b16 %v794
    %v3269 = vunpack.c.h.b16 %v794
    %v3270 = vunpack.c.l.b16 %v795
    %v3271 = vunpack.c.h.b16 %v795
    %v3272 = vunpack.c.l.b16 %v796
    %v3273 = vunpack.c.h.b16 %v796
    %v3274 = vunpack.c.l.b16 %v797
    %v3275 = vunpack.c.h.b16 %v797
    %v3276 = vunpack.c.l.b16 %v798
    %v3277 = vunpack.c.h.b16 %v798
    %v3278 = vunpack.c.l.b16 %v799
    %v3279 = vunpack.c.h.b16 %v799
    %v3280 = vunpack.c.l.b16 %v800
    %v3281 = vunpack.c.h.b16 %v800
    %v3282 = vunpack.c.l.b16 %v801
    %v3283 = vunpack.c.h.b16 %v801
    %v3284 = vunpack.c.l.b16 %v802
    %v3285 = vunpack.c.h.b16 %v802
    %v3286 = vunpack.c.l.b16 %v803
    %v3287 = vunpack.c.h.b16 %v803
    %v3288 = vunpack.c.l.b16 %v804
    %v3289 = vunpack.c.h.b16 %v804
    %v3290 = vunpack.c.l.b16 %v805
    %v3291 = vunpack.c.h.b16 %v805
    %v3292 = vunpack.c.l.b16 %v806
    %v3293 = vunpack.c.h.b16 %v806
    %v3294 = vunpack.c.l.b16 %v807
    %v3295 = vunpack.c.h.b16 %v807
    %v3296 = vunpack.c.l.b16 %v808
    %v3297 = vunpack.c.h.b16 %v808
    %v3298 = vunpack.c.l.b16 %v809
    %v3299 = vunpack.c.h.b16 %v809
    %v3300 = vunpack.c.l.b16 %v810
    %v3301 = vunpack.c.h.b16 %v810
    %v3302 = vunpack.c.l.b16 %v811
    %v3303 = vunpack.c.h.b16 %v811
    %v3304 = vunpack.c.l.b16 %v812
    %v3305 = vunpack.c.h.b16 %v812
    %v3306 = vunpack.c.l.b16 %v813
    %v3307 = vunpack.c.h.b16 %v813
    %v3308 = vunpack.c.l.b16 %v814
    %v3309 = vunpack.c.h.b16 %v814
    %v3310 = vunpack.c.l.b16 %v815
    %v3311 = vunpack.c.h.b16 %v815
    %v3312 = vpack.c.b16 %v1752, %v1744
    %v3313 = vpack.c.b16 %v1753, %v1745
    %v3314 = vpack.c.b16 %v1754, %v1746
    %v3315 = vpack.c.b16 %v1755, %v1747
    %v3316 = vpack.c.b16 %v1756, %v1748
    %v3317 = vpack.c.b16 %v1757, %v1749
    %v3318 = vpack.c.b16 %v1758, %v1750
    %v3319 = vpack.c.b16 %v1759, %v1751
    %v3320 = vpack.c.b16 %v1768, %v1760
    %v3321 = vpack.c.b16 %v1769, %v1761
    %v3322 = vpack.c.b16 %v1770, %v1762
    %v3323 = vpack.c.b16 %v1771, %v1763
    %v3324 = vpack.c.b16 %v1772, %v1764
    %v3325 = vpack.c.b16 %v1773, %v1765
    %v3326 = vpack.c.b16 %v1774, %v1766
    %v3327 = vpack.c.b16 %v1775, %v1767
    %v3328 = vpack.c.b16 %v1784, %v1776
    %v3329 = vpack.c.b16 %v1785, %v1777
    %v3330 = vpack.c.b16 %v1786, %v1778
    %v3331 = vpack.c.b16 %v1787, %v1779
    %v3332 = vpack.c.b16 %v1788, %v1780
    %v3333 = vpack.c.b16 %v1789, %v1781
    %v3334 = vpack.c.b16 %v1790, %v1782
    %v3335 = vpack.c.b16 %v1791, %v1783
    %v3336 = vpack.c.b16 %v1800, %v1792
    %v3337 = vpack.c.b16 %v1801, %v1793
    %v3338 = vpack.c.b16 %v1802, %v1794
    %v3339 = vpack.c.b16 %v1803, %v1795
    %v3340 = vpack.c.b16 %v1804, %v1796
    %v3341 = vpack.c.b16 %v1805, %v1797
    %v3342 = vpack.c.b16 %v1806, %v1798
    %v3343 = vpack.c.b16 %v1807, %v1799
    %v3344 = vpack.c.b16 %v1816, %v1808
    %v3345 = vpack.c.b16 %v1817, %v1809
    %v3346 = vpack.c.b16 %v1818, %v1810
    %v3347 = vpack.c.b16 %v1819, %v1811
    %v3348 = vpack.c.b16 %v1820, %v1812
    %v3349 = vpack.c.b16 %v1821, %v1813
    %v3350 = vpack.c.b16 %v1822, %v1814
    %v3351 = vpack.c.b16 %v1823, %v1815
    %v3352 = vpack.c.b16 %v1832, %v1824
    %v3353 = vpack.c.b16 %v1833, %v1825
    %v3354 = vpack.c.b16 %v1834, %v1826
    %v3355 = vpack.c.b16 %v1835, %v1827
    %v3356 = vpack.c.b16 %v1836, %v1828
    %v3357 = vpack.c.b16 %v1837, %v1829
    %v3358 = vpack.c.b16 %v1838, %v1830
    %v3359 = vpack.c.b16 %v1839, %v1831
    %v3360 = vpack.c.b16 %v1848, %v1840
    %v3361 = vpack.c.b16 %v1849, %v1841
    %v3362 = vpack.c.b16 %v1850, %v1842
    %v3363 = vpack.c.b16 %v1851, %v1843
    %v3364 = vpack.c.b16 %v1852, %v1844
    %v3365 = vpack.c.b16 %v1853, %v1845
    %v3366 = vpack.c.b16 %v1854, %v1846
    %v3367 = vpack.c.b16 %v1855, %v1847
    %v3368 = vpack.c.b16 %v1864, %v1856
    %v3369 = vpack.c.b16 %v1865, %v1857
    %v3370 = vpack.c.b16 %v1866, %v1858
    %v3371 = vpack.c.b16 %v1867, %v1859
    %v3372 = vpack.c.b16 %v1868, %v1860
    %v3373 = vpack.c.b16 %v1869, %v1861
    %v3374 = vpack.c.b16 %v1870, %v1862
    %v3375 = vpack.c.b16 %v1871, %v1863
    %v3376 = vpack.c.b16 %v1880, %v1872
    %v3377 = vpack.c.b16 %v1881, %v1873
    %v3378 = vpack.c.b16 %v1882, %v1874
    %v3379 = vpack.c.b16 %v1883, %v1875
    %v3380 = vpack.c.b16 %v1884, %v1876
    %v3381 = vpack.c.b16 %v1885, %v1877
    %v3382 = vpack.c.b16 %v1886, %v1878
    %v3383 = vpack.c.b16 %v1887, %v1879
    %v3384 = vpack.c.b16 %v1896, %v1888
    %v3385 = vpack.c.b16 %v1897, %v1889
    %v3386 = vpack.c.b16 %v1898, %v1890
    %v3387 = vpack.c.b16 %v1899, %v1891
    %v3388 = vpack.c.b16 %v1900, %v1892
    %v3389 = vpack.c.b16 %v1901, %v1893
    %v3390 = vpack.c.b16 %v1902, %v1894
    %v3391 = vpack.c.b16 %v1903, %v1895
    %v3392 = vpack.c.b16 %v1912, %v1904
    %v3393 = vpack.c.b16 %v1913, %v1905
    %v3394 = vpack.c.b16 %v1914, %v1906
    %v3395 = vpack.c.b16 %v1915, %v1907
    %v3396 = vpack.c.b16 %v1916, %v1908
    %v3397 = vpack.c.b16 %v1917, %v1909
    %v3398 = vpack.c.b16 %v1918, %v1910
    %v3399 = vpack.c.b16 %v1919, %v1911
    %v3400 = vpack.c.b16 %v1928, %v1920
    %v3401 = vpack.c.b16 %v1929, %v1921
    %v3402 = vpack.c.b16 %v1930, %v1922
    %v3403 = vpack.c.b16 %v1931, %v1923
    %v3404 = vpack.c.b16 %v1932, %v1924
    %v3405 = vpack.c.b16 %v1933, %v1925
    %v3406 = vpack.c.b16 %v1934, %v1926
    %v3407 = vpack.c.b16 %v1935, %v1927
    %v3408 = vpack.c.b16 %v1944, %v1936
    %v3409 = vpack.c.b16 %v1945, %v1937
    %v3410 = vpack.c.b16 %v1946, %v1938
    %v3411 = vpack.c.b16 %v1947, %v1939
    %v3412 = vpack.c.b16 %v1948, %v1940
    %v3413 = vpack.c.b16 %v1949, %v1941
    %v3414 = vpack.c.b16 %v1950, %v1942
    %v3415 = vpack.c.b16 %v1951, %v1943
    %v3416 = vpack.c.b16 %v1960, %v1952
    %v3417 = vpack.c.b16 %v1961, %v1953
    %v3418 = vpack.c.b16 %v1962, %v1954
    %v3419 = vpack.c.b16 %v1963, %v1955
    %v3420 = vpack.c.b16 %v1964, %v1956
    %v3421 = vpack.c.b16 %v1965, %v1957
    %v3422 = vpack.c.b16 %v1966, %v1958
    %v3423 = vpack.c.b16 %v1967, %v1959
    %v3424 = vpack.c.b16 %v1976, %v1968
    %v3425 = vpack.c.b16 %v1977, %v1969
    %v3426 = vpack.c.b16 %v1978, %v1970
    %v3427 = vpack.c.b16 %v1979, %v1971
    %v3428 = vpack.c.b16 %v1980, %v1972
    %v3429 = vpack.c.b16 %v1981, %v1973
    %v3430 = vpack.c.b16 %v1982, %v1974
    %v3431 = vpack.c.b16 %v1983, %v1975
    %v3432 = vpack.c.b16 %v1992, %v1984
    %v3433 = vpack.c.b16 %v1993, %v1985
    %v3434 = vpack.c.b16 %v1994, %v1986
    %v3435 = vpack.c.b16 %v1995, %v1987
    %v3436 = vpack.c.b16 %v1996, %v1988
    %v3437 = vpack.c.b16 %v1997, %v1989
    %v3438 = vpack.c.b16 %v1998, %v1990
    %v3439 = vpack.c.b16 %v1999, %v1991
    %v3440 = vpack.c.b16 %v2008, %v2000
    %v3441 = vpack.c.b16 %v2009, %v2001
    %v3442 = vpack.c.b16 %v2010, %v2002
    %v3443 = vpack.c.b16 %v2011, %v2003
    %v3444 = vpack.c.b16 %v2012, %v2004
    %v3445 = vpack.c.b16 %v2013, %v2005
    %v3446 = vpack.c.b16 %v2014, %v2006
    %v3447 = vpack.c.b16 %v2015, %v2007
    %v3448 = vpack.c.b16 %v2024, %v2016
    %v3449 = vpack.c.b16 %v2025, %v2017
    %v3450 = vpack.c.b16 %v2026, %v2018
    %v3451 = vpack.c.b16 %v2027, %v2019
    %v3452 = vpack.c.b16 %v2028, %v2020
    %v3453 = vpack.c.b16 %v2029, %v2021
    %v3454 = vpack.c.b16 %v2030, %v2022
    %v3455 = vpack.c.b16 %v2031, %v2023
    %v3456 = vpack.c.b16 %v2040, %v2032
    %v3457 = vpack.c.b16 %v2041, %v2033
    %v3458 = vpack.c.b16 %v2042, %v2034
    %v3459 = vpack.c.b16 %v2043, %v2035
    %v3460 = vpack.c.b16 %v2044, %v2036
    %v3461 = vpack.c.b16 %v2045, %v2037
    %v3462 = vpack.c.b16 %v2046, %v2038
    %v3463 = vpack.c.b16 %v2047, %v2039
    %v3464 = vpack.c.b16 %v2056, %v2048
    %v3465 = vpack.c.b16 %v2057, %v2049
    %v3466 = vpack.c.b16 %v2058, %v2050
    %v3467 = vpack.c.b16 %v2059, %v2051
    %v3468 = vpack.c.b16 %v2060, %v2052
    %v3469 = vpack.c.b16 %v2061, %v2053
    %v3470 = vpack.c.b16 %v2062, %v2054
    %v3471 = vpack.c.b16 %v2063, %v2055
    %v3472 = vpack.c.b16 %v2072, %v2064
    %v3473 = vpack.c.b16 %v2073, %v2065
    %v3474 = vpack.c.b16 %v2074, %v2066
    %v3475 = vpack.c.b16 %v2075, %v2067
    %v3476 = vpack.c.b16 %v2076, %v2068
    %v3477 = vpack.c.b16 %v2077, %v2069
    %v3478 = vpack.c.b16 %v2078, %v2070
    %v3479 = vpack.c.b16 %v2079, %v2071
    %v3480 = vpack.c.b16 %v2088, %v2080
    %v3481 = vpack.c.b16 %v2089, %v2081
    %v3482 = vpack.c.b16 %v2090, %v2082
    %v3483 = vpack.c.b16 %v2091, %v2083
    %v3484 = vpack.c.b16 %v2092, %v2084
    %v3485 = vpack.c.b16 %v2093, %v2085
    %v3486 = vpack.c.b16 %v2094, %v2086
    %v3487 = vpack.c.b16 %v2095, %v2087
    %v3488 = vpack.c.b16 %v2104, %v2096
    %v3489 = vpack.c.b16 %v2105, %v2097
    %v3490 = vpack.c.b16 %v2106, %v2098
    %v3491 = vpack.c.b16 %v2107, %v2099
    %v3492 = vpack.c.b16 %v2108, %v2100
    %v3493 = vpack.c.b16 %v2109, %v2101
    %v3494 = vpack.c.b16 %v2110, %v2102
    %v3495 = vpack.c.b16 %v2111, %v2103
    %v3496 = vpack.c.b16 %v2120, %v2112
    %v3497 = vpack.c.b16 %v2121, %v2113
    %v3498 = vpack.c.b16 %v2122, %v2114
    %v3499 = vpack.c.b16 %v2123, %v2115
    %v3500 = vpack.c.b16 %v2124, %v2116
    %v3501 = vpack.c.b16 %v2125, %v2117
    %v3502 = vpack.c.b16 %v2126, %v2118
    %v3503 = vpack.c.b16 %v2127, %v2119
    %v3504 = vpack.c.b16 %v2136, %v2128
    %v3505 = vpack.c.b16 %v2137, %v2129
    %v3506 = vpack.c.b16 %v2138, %v2130
    %v3507 = vpack.c.b16 %v2139, %v2131
    %v3508 = vpack.c.b16 %v2140, %v2132
    %v3509 = vpack.c.b16 %v2141, %v2133
    %v3510 = vpack.c.b16 %v2142, %v2134
    %v3511 = vpack.c.b16 %v2143, %v2135
    %v3512 = vpack.c.b16 %v2152, %v2144
    %v3513 = vpack.c.b16 %v2153, %v2145
    %v3514 = vpack.c.b16 %v2154, %v2146
    %v3515 = vpack.c.b16 %v2155, %v2147
    %v3516 = vpack.c.b16 %v2156, %v2148
    %v3517 = vpack.c.b16 %v2157, %v2149
    %v3518 = vpack.c.b16 %v2158, %v2150
    %v3519 = vpack.c.b16 %v2159, %v2151
    %v3520 = vpack.c.b16 %v2168, %v2160
    %v3521 = vpack.c.b16 %v2169, %v2161
    %v3522 = vpack.c.b16 %v2170, %v2162
    %v3523 = vpack.c.b16 %v2171, %v2163
    %v3524 = vpack.c.b16 %v2172, %v2164
    %v3525 = vpack.c.b16 %v2173, %v2165
    %v3526 = vpack.c.b16 %v2174, %v2166
    %v3527 = vpack.c.b16 %v2175, %v2167
    %v3528 = vpack.c.b16 %v2184, %v2176
    %v3529 = vpack.c.b16 %v2185, %v2177
    %v3530 = vpack.c.b16 %v2186, %v2178
    %v3531 = vpack.c.b16 %v2187, %v2179
    %v3532 = vpack.c.b16 %v2188, %v2180
    %v3533 = vpack.c.b16 %v2189, %v2181
    %v3534 = vpack.c.b16 %v2190, %v2182
    %v3535 = vpack.c.b16 %v2191, %v2183
    %v3536 = vpack.c.b16 %v2200, %v2192
    %v3537 = vpack.c.b16 %v2201, %v2193
    %v3538 = vpack.c.b16 %v2202, %v2194
    %v3539 = vpack.c.b16 %v2203, %v2195
    %v3540 = vpack.c.b16 %v2204, %v2196
    %v3541 = vpack.c.b16 %v2205, %v2197
    %v3542 = vpack.c.b16 %v2206, %v2198
    %v3543 = vpack.c.b16 %v2207, %v2199
    %v3544 = vpack.c.b16 %v2216, %v2208
    %v3545 = vpack.c.b16 %v2217, %v2209
    %v3546 = vpack.c.b16 %v2218, %v2210
    %v3547 = vpack.c.b16 %v2219, %v2211
    %v3548 = vpack.c.b16 %v2220, %v2212
    %v3549 = vpack.c.b16 %v2221, %v2213
    %v3550 = vpack.c.b16 %v2222, %v2214
    %v3551 = vpack.c.b16 %v2223, %v2215
    %v3552 = vpack.c.b16 %v2232, %v2224
    %v3553 = vpack.c.b16 %v2233, %v2225
    %v3554 = vpack.c.b16 %v2234, %v2226
    %v3555 = vpack.c.b16 %v2235, %v2227
    %v3556 = vpack.c.b16 %v2236, %v2228
    %v3557 = vpack.c.b16 %v2237, %v2229
    %v3558 = vpack.c.b16 %v2238, %v2230
    %v3559 = vpack.c.b16 %v2239, %v2231
    %v3560 = vpack.c.b16 %v2248, %v2240
    %v3561 = vpack.c.b16 %v2249, %v2241
    %v3562 = vpack.c.b16 %v2250, %v2242
    %v3563 = vpack.c.b16 %v2251, %v2243
    %v3564 = vpack.c.b16 %v2252, %v2244
    %v3565 = vpack.c.b16 %v2253, %v2245
    %v3566 = vpack.c.b16 %v2254, %v2246
    %v3567 = vpack.c.b16 %v2255, %v2247
    %v3568 = vpack.c.b16 %v2264, %v2256
    %v3569 = vpack.c.b16 %v2265, %v2257
    %v3570 = vpack.c.b16 %v2266, %v2258
    %v3571 = vpack.c.b16 %v2267, %v2259
    %v3572 = vpack.c.b16 %v2268, %v2260
    %v3573 = vpack.c.b16 %v2269, %v2261
    %v3574 = vpack.c.b16 %v2270, %v2262
    %v3575 = vpack.c.b16 %v2271, %v2263
    %v3576 = vpack.c.b16 %v2280, %v2272
    %v3577 = vpack.c.b16 %v2281, %v2273
    %v3578 = vpack.c.b16 %v2282, %v2274
    %v3579 = vpack.c.b16 %v2283, %v2275
    %v3580 = vpack.c.b16 %v2284, %v2276
    %v3581 = vpack.c.b16 %v2285, %v2277
    %v3582 = vpack.c.b16 %v2286, %v2278
    %v3583 = vpack.c.b16 %v2287, %v2279
    %v3584 = vpack.c.b16 %v2296, %v2288
    %v3585 = vpack.c.b16 %v2297, %v2289
    %v3586 = vpack.c.b16 %v2298, %v2290
    %v3587 = vpack.c.b16 %v2299, %v2291
    %v3588 = vpack.c.b16 %v2300, %v2292
    %v3589 = vpack.c.b16 %v2301, %v2293
    %v3590 = vpack.c.b16 %v2302, %v2294
    %v3591 = vpack.c.b16 %v2303, %v2295
    %v3592 = vpack.c.b16 %v2312, %v2304
    %v3593 = vpack.c.b16 %v2313, %v2305
    %v3594 = vpack.c.b16 %v2314, %v2306
    %v3595 = vpack.c.b16 %v2315, %v2307
    %v3596 = vpack.c.b16 %v2316, %v2308
    %v3597 = vpack.c.b16 %v2317, %v2309
    %v3598 = vpack.c.b16 %v2318, %v2310
    %v3599 = vpack.c.b16 %v2319, %v2311
    %v3600 = vpack.c.b16 %v2328, %v2320
    %v3601 = vpack.c.b16 %v2329, %v2321
    %v3602 = vpack.c.b16 %v2330, %v2322
    %v3603 = vpack.c.b16 %v2331, %v2323
    %v3604 = vpack.c.b16 %v2332, %v2324
    %v3605 = vpack.c.b16 %v2333, %v2325
    %v3606 = vpack.c.b16 %v2334, %v2326
    %v3607 = vpack.c.b16 %v2335, %v2327
    %v3608 = vpack.c.b16 %v2344, %v2336
    %v3609 = vpack.c.b16 %v2345, %v2337
    %v3610 = vpack.c.b16 %v2346, %v2338
    %v3611 = vpack.c.b16 %v2347, %v2339
    %v3612 = vpack.c.b16 %v2348, %v2340
    %v3613 = vpack.c.b16 %v2349, %v2341
    %v3614 = vpack.c.b16 %v2350, %v2342
    %v3615 = vpack.c.b16 %v2351, %v2343
    %v3616 = vpack.c.b16 %v2360, %v2352
    %v3617 = vpack.c.b16 %v2361, %v2353
    %v3618 = vpack.c.b16 %v2362, %v2354
    %v3619 = vpack.c.b16 %v2363, %v2355
    %v3620 = vpack.c.b16 %v2364, %v2356
    %v3621 = vpack.c.b16 %v2365, %v2357
    %v3622 = vpack.c.b16 %v2366, %v2358
    %v3623 = vpack.c.b16 %v2367, %v2359
    %v3624 = vpack.c.b16 %v2376, %v2368
    %v3625 = vpack.c.b16 %v2377, %v2369
    %v3626 = vpack.c.b16 %v2378, %v2370
    %v3627 = vpack.c.b16 %v2379, %v2371
    %v3628 = vpack.c.b16 %v2380, %v2372
    %v3629 = vpack.c.b16 %v2381, %v2373
    %v3630 = vpack.c.b16 %v2382, %v2374
    %v3631 = vpack.c.b16 %v2383, %v2375
    %v3632 = vpack.c.b16 %v2392, %v2384
    %v3633 = vpack.c.b16 %v2393, %v2385
    %v3634 = vpack.c.b16 %v2394, %v2386
    %v3635 = vpack.c.b16 %v2395, %v2387
    %v3636 = vpack.c.b16 %v2396, %v2388
    %v3637 = vpack.c.b16 %v2397, %v2389
    %v3638 = vpack.c.b16 %v2398, %v2390
    %v3639 = vpack.c.b16 %v2399, %v2391
    %v3640 = vpack.c.b16 %v2408, %v2400
    %v3641 = vpack.c.b16 %v2409, %v2401
    %v3642 = vpack.c.b16 %v2410, %v2402
    %v3643 = vpack.c.b16 %v2411, %v2403
    %v3644 = vpack.c.b16 %v2412, %v2404
    %v3645 = vpack.c.b16 %v2413, %v2405
    %v3646 = vpack.c.b16 %v2414, %v2406
    %v3647 = vpack.c.b16 %v2415, %v2407
    %v3648 = vpack.c.b16 %v2424, %v2416
    %v3649 = vpack.c.b16 %v2425, %v2417
    %v3650 = vpack.c.b16 %v2426, %v2418
    %v3651 = vpack.c.b16 %v2427, %v2419
    %v3652 = vpack.c.b16 %v2428, %v2420
    %v3653 = vpack.c.b16 %v2429, %v2421
    %v3654 = vpack.c.b16 %v2430, %v2422
    %v3655 = vpack.c.b16 %v2431, %v2423
    %v3656 = vpack.c.b16 %v2440, %v2432
    %v3657 = vpack.c.b16 %v2441, %v2433
    %v3658 = vpack.c.b16 %v2442, %v2434
    %v3659 = vpack.c.b16 %v2443, %v2435
    %v3660 = vpack.c.b16 %v2444, %v2436
    %v3661 = vpack.c.b16 %v2445, %v2437
    %v3662 = vpack.c.b16 %v2446, %v2438
    %v3663 = vpack.c.b16 %v2447, %v2439
    %v3664 = vpack.c.b16 %v2456, %v2448
    %v3665 = vpack.c.b16 %v2457, %v2449
    %v3666 = vpack.c.b16 %v2458, %v2450
    %v3667 = vpack.c.b16 %v2459, %v2451
    %v3668 = vpack.c.b16 %v2460, %v2452
    %v3669 = vpack.c.b16 %v2461, %v2453
    %v3670 = vpack.c.b16 %v2462, %v2454
    %v3671 = vpack.c.b16 %v2463, %v2455
    %v3672 = vpack.c.b16 %v2472, %v2464
    %v3673 = vpack.c.b16 %v2473, %v2465
    %v3674 = vpack.c.b16 %v2474, %v2466
    %v3675 = vpack.c.b16 %v2475, %v2467
    %v3676 = vpack.c.b16 %v2476, %v2468
    %v3677 = vpack.c.b16 %v2477, %v2469
    %v3678 = vpack.c.b16 %v2478, %v2470
    %v3679 = vpack.c.b16 %v2479, %v2471
    %v3680 = vpack.c.b16 %v2488, %v2480
    %v3681 = vpack.c.b16 %v2489, %v2481
    %v3682 = vpack.c.b16 %v2490, %v2482
    %v3683 = vpack.c.b16 %v2491, %v2483
    %v3684 = vpack.c.b16 %v2492, %v2484
    %v3685 = vpack.c.b16 %v2493, %v2485
    %v3686 = vpack.c.b16 %v2494, %v2486
    %v3687 = vpack.c.b16 %v2495, %v2487
    %v3688 = vpack.c.b16 %v2504, %v2496
    %v3689 = vpack.c.b16 %v2505, %v2497
    %v3690 = vpack.c.b16 %v2506, %v2498
    %v3691 = vpack.c.b16 %v2507, %v2499
    %v3692 = vpack.c.b16 %v2508, %v2500
    %v3693 = vpack.c.b16 %v2509, %v2501
    %v3694 = vpack.c.b16 %v2510, %v2502
    %v3695 = vpack.c.b16 %v2511, %v2503
    %v3696 = vpack.c.b16 %v2520, %v2512
    %v3697 = vpack.c.b16 %v2521, %v2513
    %v3698 = vpack.c.b16 %v2522, %v2514
    %v3699 = vpack.c.b16 %v2523, %v2515
    %v3700 = vpack.c.b16 %v2524, %v2516
    %v3701 = vpack.c.b16 %v2525, %v2517
    %v3702 = vpack.c.b16 %v2526, %v2518
    %v3703 = vpack.c.b16 %v2527, %v2519
    %v3704 = vpack.c.b16 %v2536, %v2528
    %v3705 = vpack.c.b16 %v2537, %v2529
    %v3706 = vpack.c.b16 %v2538, %v2530
    %v3707 = vpack.c.b16 %v2539, %v2531
    %v3708 = vpack.c.b16 %v2540, %v2532
    %v3709 = vpack.c.b16 %v2541, %v2533
    %v3710 = vpack.c.b16 %v2542, %v2534
    %v3711 = vpack.c.b16 %v2543, %v2535
    %v3712 = vpack.c.b16 %v2552, %v2544
    %v3713 = vpack.c.b16 %v2553, %v2545
    %v3714 = vpack.c.b16 %v2554, %v2546
    %v3715 = vpack.c.b16 %v2555, %v2547
    %v3716 = vpack.c.b16 %v2556, %v2548
    %v3717 = vpack.c.b16 %v2557, %v2549
    %v3718 = vpack.c.b16 %v2558, %v2550
    %v3719 = vpack.c.b16 %v2559, %v2551
    %v3720 = vpack.c.b16 %v2568, %v2560
    %v3721 = vpack.c.b16 %v2569, %v2561
    %v3722 = vpack.c.b16 %v2570, %v2562
    %v3723 = vpack.c.b16 %v2571, %v2563
    %v3724 = vpack.c.b16 %v2572, %v2564
    %v3725 = vpack.c.b16 %v2573, %v2565
    %v3726 = vpack.c.b16 %v2574, %v2566
    %v3727 = vpack.c.b16 %v2575, %v2567
    %v3728 = vpack.c.b16 %v2584, %v2576
    %v3729 = vpack.c.b16 %v2585, %v2577
    %v3730 = vpack.c.b16 %v2586, %v2578
    %v3731 = vpack.c.b16 %v2587, %v2579
    %v3732 = vpack.c.b16 %v2588, %v2580
    %v3733 = vpack.c.b16 %v2589, %v2581
    %v3734 = vpack.c.b16 %v2590, %v2582
    %v3735 = vpack.c.b16 %v2591, %v2583
    %v3736 = vpack.c.b16 %v2600, %v2592
    %v3737 = vpack.c.b16 %v2601, %v2593
    %v3738 = vpack.c.b16 %v2602, %v2594
    %v3739 = vpack.c.b16 %v2603, %v2595
    %v3740 = vpack.c.b16 %v2604, %v2596
    %v3741 = vpack.c.b16 %v2605, %v2597
    %v3742 = vpack.c.b16 %v2606, %v2598
    %v3743 = vpack.c.b16 %v2607, %v2599
    %v3744 = vpack.c.b16 %v2616, %v2608
    %v3745 = vpack.c.b16 %v2617, %v2609
    %v3746 = vpack.c.b16 %v2618, %v2610
    %v3747 = vpack.c.b16 %v2619, %v2611
    %v3748 = vpack.c.b16 %v2620, %v2612
    %v3749 = vpack.c.b16 %v2621, %v2613
    %v3750 = vpack.c.b16 %v2622, %v2614
    %v3751 = vpack.c.b16 %v2623, %v2615
    %v3752 = vpack.c.b16 %v2632, %v2624
    %v3753 = vpack.c.b16 %v2633, %v2625
    %v3754 = vpack.c.b16 %v2634, %v2626
    %v3755 = vpack.c.b16 %v2635, %v2627
    %v3756 = vpack.c.b16 %v2636, %v2628
    %v3757 = vpack.c.b16 %v2637, %v2629
    %v3758 = vpack.c.b16 %v2638, %v2630
    %v3759 = vpack.c.b16 %v2639, %v2631
    %v3760 = vpack.c.b16 %v2648, %v2640
    %v3761 = vpack.c.b16 %v2649, %v2641
    %v3762 = vpack.c.b16 %v2650, %v2642
    %v3763 = vpack.c.b16 %v2651, %v2643
    %v3764 = vpack.c.b16 %v2652, %v2644
    %v3765 = vpack.c.b16 %v2653, %v2645
    %v3766 = vpack.c.b16 %v2654, %v2646
    %v3767 = vpack.c.b16 %v2655, %v2647
    %v3768 = vpack.c.b16 %v2664, %v2656
    %v3769 = vpack.c.b16 %v2665, %v2657
    %v3770 = vpack.c.b16 %v2666, %v2658
    %v3771 = vpack.c.b16 %v2667, %v2659
    %v3772 = vpack.c.b16 %v2668, %v2660
    %v3773 = vpack.c.b16 %v2669, %v2661
    %v3774 = vpack.c.b16 %v2670, %v2662
    %v3775 = vpack.c.b16 %v2671, %v2663
    %v3776 = vpack.c.b16 %v2680, %v2672
    %v3777 = vpack.c.b16 %v2681, %v2673
    %v3778 = vpack.c.b16 %v2682, %v2674
    %v3779 = vpack.c.b16 %v2683, %v2675
    %v3780 = vpack.c.b16 %v2684, %v2676
    %v3781 = vpack.c.b16 %v2685, %v2677
    %v3782 = vpack.c.b16 %v2686, %v2678
    %v3783 = vpack.c.b16 %v2687, %v2679
    %v3784 = vpack.c.b16 %v2696, %v2688
    %v3785 = vpack.c.b16 %v2697, %v2689
    %v3786 = vpack.c.b16 %v2698, %v2690
    %v3787 = vpack.c.b16 %v2699, %v2691
    %v3788 = vpack.c.b16 %v2700, %v2692
    %v3789 = vpack.c.b16 %v2701, %v2693
    %v3790 = vpack.c.b16 %v2702, %v2694
    %v3791 = vpack.c.b16 %v2703, %v2695
    %v3792 = vpack.c.b16 %v2712, %v2704
    %v3793 = vpack.c.b16 %v2713, %v2705
    %v3794 = vpack.c.b16 %v2714, %v2706
    %v3795 = vpack.c.b16 %v2715, %v2707
    %v3796 = vpack.c.b16 %v2716, %v2708
    %v3797 = vpack.c.b16 %v2717, %v2709
    %v3798 = vpack.c.b16 %v2718, %v2710
    %v3799 = vpack.c.b16 %v2719, %v2711
    %v3800 = vpack.c.b16 %v2728, %v2720
    %v3801 = vpack.c.b16 %v2729, %v2721
    %v3802 = vpack.c.b16 %v2730, %v2722
    %v3803 = vpack.c.b16 %v2731, %v2723
    %v3804 = vpack.c.b16 %v2732, %v2724
    %v3805 = vpack.c.b16 %v2733, %v2725
    %v3806 = vpack.c.b16 %v2734, %v2726
    %v3807 = vpack.c.b16 %v2735, %v2727
    %v3808 = vpack.c.b16 %v2744, %v2736
    %v3809 = vpack.c.b16 %v2745, %v2737
    %v3810 = vpack.c.b16 %v2746, %v2738
    %v3811 = vpack.c.b16 %v2747, %v2739
    %v3812 = vpack.c.b16 %v2748, %v2740
    %v3813 = vpack.c.b16 %v2749, %v2741
    %v3814 = vpack.c.b16 %v2750, %v2742
    %v3815 = vpack.c.b16 %v2751, %v2743
    %v3816 = vpack.c.b16 %v2760, %v2752
    %v3817 = vpack.c.b16 %v2761, %v2753
    %v3818 = vpack.c.b16 %v2762, %v2754
    %v3819 = vpack.c.b16 %v2763, %v2755
    %v3820 = vpack.c.b16 %v2764, %v2756
    %v3821 = vpack.c.b16 %v2765, %v2757
    %v3822 = vpack.c.b16 %v2766, %v2758
    %v3823 = vpack.c.b16 %v2767, %v2759
    %v3824 = vpack.c.b16 %v2776, %v2768
    %v3825 = vpack.c.b16 %v2777, %v2769
    %v3826 = vpack.c.b16 %v2778, %v2770
    %v3827 = vpack.c.b16 %v2779, %v2771
    %v3828 = vpack.c.b16 %v2780, %v2772
    %v3829 = vpack.c.b16 %v2781, %v2773
    %v3830 = vpack.c.b16 %v2782, %v2774
    %v3831 = vpack.c.b16 %v2783, %v2775
    %v3832 = vpack.c.b16 %v2792, %v2784
    %v3833 = vpack.c.b16 %v2793, %v2785
    %v3834 = vpack.c.b16 %v2794, %v2786
    %v3835 = vpack.c.b16 %v2795, %v2787
    %v3836 = vpack.c.b16 %v2796, %v2788
    %v3837 = vpack.c.b16 %v2797, %v2789
    %v3838 = vpack.c.b16 %v2798, %v2790
    %v3839 = vpack.c.b16 %v2799, %v2791
    %v3840 = vpack.c.b16 %v2808, %v2800
    %v3841 = vpack.c.b16 %v2809, %v2801
    %v3842 = vpack.c.b16 %v2810, %v2802
    %v3843 = vpack.c.b16 %v2811, %v2803
    %v3844 = vpack.c.b16 %v2812, %v2804
    %v3845 = vpack.c.b16 %v2813, %v2805
    %v3846 = vpack.c.b16 %v2814, %v2806
    %v3847 = vpack.c.b16 %v2815, %v2807
    %v3848 = vpack.c.b16 %v2824, %v2816
    %v3849 = vpack.c.b16 %v2825, %v2817
    %v3850 = vpack.c.b16 %v2826, %v2818
    %v3851 = vpack.c.b16 %v2827, %v2819
    %v3852 = vpack.c.b16 %v2828, %v2820
    %v3853 = vpack.c.b16 %v2829, %v2821
    %v3854 = vpack.c.b16 %v2830, %v2822
    %v3855 = vpack.c.b16 %v2831, %v2823
    %v3856 = vpack.c.b16 %v2840, %v2832
    %v3857 = vpack.c.b16 %v2841, %v2833
    %v3858 = vpack.c.b16 %v2842, %v2834
    %v3859 = vpack.c.b16 %v2843, %v2835
    %v3860 = vpack.c.b16 %v2844, %v2836
    %v3861 = vpack.c.b16 %v2845, %v2837
    %v3862 = vpack.c.b16 %v2846, %v2838
    %v3863 = vpack.c.b16 %v2847, %v2839
    %v3864 = vpack.c.b16 %v2856, %v2848
    %v3865 = vpack.c.b16 %v2857, %v2849
    %v3866 = vpack.c.b16 %v2858, %v2850
    %v3867 = vpack.c.b16 %v2859, %v2851
    %v3868 = vpack.c.b16 %v2860, %v2852
    %v3869 = vpack.c.b16 %v2861, %v2853
    %v3870 = vpack.c.b16 %v2862, %v2854
    %v3871 = vpack.c.b16 %v2863, %v2855
    %v3872 = vpack.c.b16 %v2872, %v2864
    %v3873 = vpack.c.b16 %v2873, %v2865
    %v3874 = vpack.c.b16 %v2874, %v2866
    %v3875 = vpack.c.b16 %v2875, %v2867
    %v3876 = vpack.c.b16 %v2876, %v2868
    %v3877 = vpack.c.b16 %v2877, %v2869
    %v3878 = vpack.c.b16 %v2878, %v2870
    %v3879 = vpack.c.b16 %v2879, %v2871
    %v3880 = vpack.c.b16 %v2888, %v2880
    %v3881 = vpack.c.b16 %v2889, %v2881
    %v3882 = vpack.c.b16 %v2890, %v2882
    %v3883 = vpack.c.b16 %v2891, %v2883
    %v3884 = vpack.c.b16 %v2892, %v2884
    %v3885 = vpack.c.b16 %v2893, %v2885
    %v3886 = vpack.c.b16 %v2894, %v2886
    %v3887 = vpack.c.b16 %v2895, %v2887
    %v3888 = vpack.c.b16 %v2904, %v2896
    %v3889 = vpack.c.b16 %v2905, %v2897
    %v3890 = vpack.c.b16 %v2906, %v2898
    %v3891 = vpack.c.b16 %v2907, %v2899
    %v3892 = vpack.c.b16 %v2908, %v2900
    %v3893 = vpack.c.b16 %v2909, %v2901
    %v3894 = vpack.c.b16 %v2910, %v2902
    %v3895 = vpack.c.b16 %v2911, %v2903
    %v3896 = vpack.c.b16 %v2920, %v2912
    %v3897 = vpack.c.b16 %v2921, %v2913
    %v3898 = vpack.c.b16 %v2922, %v2914
    %v3899 = vpack.c.b16 %v2923, %v2915
    %v3900 = vpack.c.b16 %v2924, %v2916
    %v3901 = vpack.c.b16 %v2925, %v2917
    %v3902 = vpack.c.b16 %v2926, %v2918
    %v3903 = vpack.c.b16 %v2927, %v2919
    %v3904 = vpack.c.b16 %v2936, %v2928
    %v3905 = vpack.c.b16 %v2937, %v2929
    %v3906 = vpack.c.b16 %v2938, %v2930
    %v3907 = vpack.c.b16 %v2939, %v2931
    %v3908 = vpack.c.b16 %v2940, %v2932
    %v3909 = vpack.c.b16 %v2941, %v2933
    %v3910 = vpack.c.b16 %v2942, %v2934
    %v3911 = vpack.c.b16 %v2943, %v2935
    %v3912 = vpack.c.b16 %v2952, %v2944
    %v3913 = vpack.c.b16 %v2953, %v2945
    %v3914 = vpack.c.b16 %v2954, %v2946
    %v3915 = vpack.c.b16 %v2955, %v2947
    %v3916 = vpack.c.b16 %v2956, %v2948
    %v3917 = vpack.c.b16 %v2957, %v2949
    %v3918 = vpack.c.b16 %v2958, %v2950
    %v3919 = vpack.c.b16 %v2959, %v2951
    %v3920 = vpack.c.b16 %v2968, %v2960
    %v3921 = vpack.c.b16 %v2969, %v2961
    %v3922 = vpack.c.b16 %v2970, %v2962
    %v3923 = vpack.c.b16 %v2971, %v2963
    %v3924 = vpack.c.b16 %v2972, %v2964
    %v3925 = vpack.c.b16 %v2973, %v2965
    %v3926 = vpack.c.b16 %v2974, %v2966
    %v3927 = vpack.c.b16 %v2975, %v2967
    %v3928 = vpack.c.b16 %v2984, %v2976
    %v3929 = vpack.c.b16 %v2985, %v2977
    %v3930 = vpack.c.b16 %v2986, %v2978
    %v3931 = vpack.c.b16 %v2987, %v2979
    %v3932 = vpack.c.b16 %v2988, %v2980
    %v3933 = vpack.c.b16 %v2989, %v2981
    %v3934 = vpack.c.b16 %v2990, %v2982
    %v3935 = vpack.c.b16 %v2991, %v2983
    %v3936 = vpack.c.b16 %v3000, %v2992
    %v3937 = vpack.c.b16 %v3001, %v2993
    %v3938 = vpack.c.b16 %v3002, %v2994
    %v3939 = vpack.c.b16 %v3003, %v2995
    %v3940 = vpack.c.b16 %v3004, %v2996
    %v3941 = vpack.c.b16 %v3005, %v2997
    %v3942 = vpack.c.b16 %v3006, %v2998
    %v3943 = vpack.c.b16 %v3007, %v2999
    %v3944 = vpack.c.b16 %v3016, %v3008
    %v3945 = vpack.c.b16 %v3017, %v3009
    %v3946 = vpack.c.b16 %v3018, %v3010
    %v3947 = vpack.c.b16 %v3019, %v3011
    %v3948 = vpack.c.b16 %v3020, %v3012
    %v3949 = vpack.c.b16 %v3021, %v3013
    %v3950 = vpack.c.b16 %v3022, %v3014
    %v3951 = vpack.c.b16 %v3023, %v3015
    %v3952 = vpack.c.b16 %v3032, %v3024
    %v3953 = vpack.c.b16 %v3033, %v3025
    %v3954 = vpack.c.b16 %v3034, %v3026
    %v3955 = vpack.c.b16 %v3035, %v3027
    %v3956 = vpack.c.b16 %v3036, %v3028
    %v3957 = vpack.c.b16 %v3037, %v3029
    %v3958 = vpack.c.b16 %v3038, %v3030
    %v3959 = vpack.c.b16 %v3039, %v3031
    %v3960 = vpack.c.b16 %v3048, %v3040
    %v3961 = vpack.c.b16 %v3049, %v3041
    %v3962 = vpack.c.b16 %v3050, %v3042
    %v3963 = vpack.c.b16 %v3051, %v3043
    %v3964 = vpack.c.b16 %v3052, %v3044
    %v3965 = vpack.c.b16 %v3053, %v3045
    %v3966 = vpack.c.b16 %v3054, %v3046
    %v3967 = vpack.c.b16 %v3055, %v3047
    %v3968 = vpack.c.b16 %v3064, %v3056
    %v3969 = vpack.c.b16 %v3065, %v3057
    %v3970 = vpack.c.b16 %v3066, %v3058
    %v3971 = vpack.c.b16 %v3067, %v3059
    %v3972 = vpack.c.b16 %v3068, %v3060
    %v3973 = vpack.c.b16 %v3069, %v3061
    %v3974 = vpack.c.b16 %v3070, %v3062
    %v3975 = vpack.c.b16 %v3071, %v3063
    %v3976 = vpack.c.b16 %v3080, %v3072
    %v3977 = vpack.c.b16 %v3081, %v3073
    %v3978 = vpack.c.b16 %v3082, %v3074
    %v3979 = vpack.c.b16 %v3083, %v3075
    %v3980 = vpack.c.b16 %v3084, %v3076
    %v3981 = vpack.c.b16 %v3085, %v3077
    %v3982 = vpack.c.b16 %v3086, %v3078
    %v3983 = vpack.c.b16 %v3087, %v3079
    %v3984 = vpack.c.b16 %v3096, %v3088
    %v3985 = vpack.c.b16 %v3097, %v3089
    %v3986 = vpack.c.b16 %v3098, %v3090
    %v3987 = vpack.c.b16 %v3099, %v3091
    %v3988 = vpack.c.b16 %v3100, %v3092
    %v3989 = vpack.c.b16 %v3101, %v3093
    %v3990 = vpack.c.b16 %v3102, %v3094
    %v3991 = vpack.c.b16 %v3103, %v3095
    %v3992 = vpack.c.b16 %v3112, %v3104
    %v3993 = vpack.c.b16 %v3113, %v3105
    %v3994 = vpack.c.b16 %v3114, %v3106
    %v3995 = vpack.c.b16 %v3115, %v3107
    %v3996 = vpack.c.b16 %v3116, %v3108
    %v3997 = vpack.c.b16 %v3117, %v3109
    %v3998 = vpack.c.b16 %v3118, %v3110
    %v3999 = vpack.c.b16 %v3119, %v3111
    %v4000 = vpack.c.b16 %v3128, %v3120
    %v4001 = vpack.c.b16 %v3129, %v3121
    %v4002 = vpack.c.b16 %v3130, %v3122
    %v4003 = vpack.c.b16 %v3131, %v3123
    %v4004 = vpack.c.b16 %v3132, %v3124
    %v4005 = vpack.c.b16 %v3133, %v3125
    %v4006 = vpack.c.b16 %v3134, %v3126
    %v4007 = vpack.c.b16 %v3135, %v3127
    %v4008 = vpack.c.b16 %v3144, %v3136
    %v4009 = vpack.c.b16 %v3145, %v3137
    %v4010 = vpack.c.b16 %v3146, %v3138
    %v4011 = vpack.c.b16 %v3147, %v3139
    %v4012 = vpack.c.b16 %v3148, %v3140
    %v4013 = vpack.c.b16 %v3149, %v3141
    %v4014 = vpack.c.b16 %v3150, %v3142
    %v4015 = vpack.c.b16 %v3151, %v3143
    %v4016 = vpack.c.b16 %v3160, %v3152
    %v4017 = vpack.c.b16 %v3161, %v3153
    %v4018 = vpack.c.b16 %v3162, %v3154
    %v4019 = vpack.c.b16 %v3163, %v3155
    %v4020 = vpack.c.b16 %v3164, %v3156
    %v4021 = vpack.c.b16 %v3165, %v3157
    %v4022 = vpack.c.b16 %v3166, %v3158
    %v4023 = vpack.c.b16 %v3167, %v3159
    %v4024 = vpack.c.b16 %v3176, %v3168
    %v4025 = vpack.c.b16 %v3177, %v3169
    %v4026 = vpack.c.b16 %v3178, %v3170
    %v4027 = vpack.c.b16 %v3179, %v3171
    %v4028 = vpack.c.b16 %v3180, %v3172
    %v4029 = vpack.c.b16 %v3181, %v3173
    %v4030 = vpack.c.b16 %v3182, %v3174
    %v4031 = vpack.c.b16 %v3183, %v3175
    %v4032 = vpack.c.b16 %v3192, %v3184
    %v4033 = vpack.c.b16 %v3193, %v3185
    %v4034 = vpack.c.b16 %v3194, %v3186
    %v4035 = vpack.c.b16 %v3195, %v3187
    %v4036 = vpack.c.b16 %v3196, %v3188
    %v4037 = vpack.c.b16 %v3197, %v3189
    %v4038 = vpack.c.b16 %v3198, %v3190
    %v4039 = vpack.c.b16 %v3199, %v3191
    %v4040 = vpack.c.b16 %v3208, %v3200
    %v4041 = vpack.c.b16 %v3209, %v3201
    %v4042 = vpack.c.b16 %v3210, %v3202
    %v4043 = vpack.c.b16 %v3211, %v3203
    %v4044 = vpack.c.b16 %v3212, %v3204
    %v4045 = vpack.c.b16 %v3213, %v3205
    %v4046 = vpack.c.b16 %v3214, %v3206
    %v4047 = vpack.c.b16 %v3215, %v3207
    %v4048 = vpack.c.b16 %v3224, %v3216
    %v4049 = vpack.c.b16 %v3225, %v3217
    %v4050 = vpack.c.b16 %v3226, %v3218
    %v4051 = vpack.c.b16 %v3227, %v3219
    %v4052 = vpack.c.b16 %v3228, %v3220
    %v4053 = vpack.c.b16 %v3229, %v3221
    %v4054 = vpack.c.b16 %v3230, %v3222
    %v4055 = vpack.c.b16 %v3231, %v3223
    %v4056 = vpack.c.b16 %v3240, %v3232
    %v4057 = vpack.c.b16 %v3241, %v3233
    %v4058 = vpack.c.b16 %v3242, %v3234
    %v4059 = vpack.c.b16 %v3243, %v3235
    %v4060 = vpack.c.b16 %v3244, %v3236
    %v4061 = vpack.c.b16 %v3245, %v3237
    %v4062 = vpack.c.b16 %v3246, %v3238
    %v4063 = vpack.c.b16 %v3247, %v3239
    %v4064 = vpack.c.b16 %v3256, %v3248
    %v4065 = vpack.c.b16 %v3257, %v3249
    %v4066 = vpack.c.b16 %v3258, %v3250
    %v4067 = vpack.c.b16 %v3259, %v3251
    %v4068 = vpack.c.b16 %v3260, %v3252
    %v4069 = vpack.c.b16 %v3261, %v3253
    %v4070 = vpack.c.b16 %v3262, %v3254
    %v4071 = vpack.c.b16 %v3263, %v3255
    %v4072 = vpack.c.b16 %v3272, %v3264
    %v4073 = vpack.c.b16 %v3273, %v3265
    %v4074 = vpack.c.b16 %v3274, %v3266
    %v4075 = vpack.c.b16 %v3275, %v3267
    %v4076 = vpack.c.b16 %v3276, %v3268
    %v4077 = vpack.c.b16 %v3277, %v3269
    %v4078 = vpack.c.b16 %v3278, %v3270
    %v4079 = vpack.c.b16 %v3279, %v3271
    %v4080 = vpack.c.b16 %v3288, %v3280
    %v4081 = vpack.c.b16 %v3289, %v3281
    %v4082 = vpack.c.b16 %v3290, %v3282
    %v4083 = vpack.c.b16 %v3291, %v3283
    %v4084 = vpack.c.b16 %v3292, %v3284
    %v4085 = vpack.c.b16 %v3293, %v3285
    %v4086 = vpack.c.b16 %v3294, %v3286
    %v4087 = vpack.c.b16 %v3295, %v3287
    %v4088 = vpack.c.b16 %v3304, %v3296
    %v4089 = vpack.c.b16 %v3305, %v3297
    %v4090 = vpack.c.b16 %v3306, %v3298
    %v4091 = vpack.c.b16 %v3307, %v3299
    %v4092 = vpack.c.b16 %v3308, %v3300
    %v4093 = vpack.c.b16 %v3309, %v3301
    %v4094 = vpack.c.b16 %v3310, %v3302
    %v4095 = vpack.c.b16 %v3311, %v3303
    %vm4880 = vcmask 261120
    %v4882 = vsel %vm4880, %v938, 0
    %4884 = vmatprep.subr.bf16.mxu0 %v3313
    %4885 = vmatpush1.bf16.msra.mxu0 %v3312
    %4886 = vmatprep.subr.bf16.mxu0 %v3321
    %4887 = vmatpush1.bf16.msra.mxu0 %v3320
    %4888 = vmatprep.subr.bf16.mxu0 %v3329
    %4889 = vmatpush1.bf16.msra.mxu0 %v3328
    %4890 = vmatprep.subr.bf16.mxu0 %v3337
    %4891 = vmatpush1.bf16.msra.mxu0 %v3336
    %4892 = vmatprep.subr.bf16.mxu0 %v3345
    %4893 = vmatpush1.bf16.msra.mxu0 %v3344
    %4894 = vmatprep.subr.bf16.mxu0 %v3353
    %4895 = vmatpush1.bf16.msra.mxu0 %v3352
    %4896 = vmatprep.subr.bf16.mxu0 %v3361
    %4897 = vmatpush1.bf16.msra.mxu0 %v3360
    %4898 = vmatprep.subr.bf16.mxu0 %v3369
    %4899 = vmatpush1.bf16.msra.mxu0 %v3368
    %4900 = vmatprep.subr.bf16.mxu0 %v3377
    %4901 = vmatpush1.bf16.msra.mxu0 %v3376
    %4902 = vmatprep.subr.bf16.mxu0 %v3385
    %4903 = vmatpush1.bf16.msra.mxu0 %v3384
    %4904 = vmatprep.subr.bf16.mxu0 %v3393
    %4905 = vmatpush1.bf16.msra.mxu0 %v3392
    %4906 = vmatprep.subr.bf16.mxu0 %v3401
    %4907 = vmatpush1.bf16.msra.mxu0 %v3400
    %4908 = vmatprep.subr.bf16.mxu0 %v3409
    %4909 = vmatpush1.bf16.msra.mxu0 %v3408
    %4910 = vmatprep.subr.bf16.mxu0 %v3417
    %4911 = vmatpush1.bf16.msra.mxu0 %v3416
    %4912 = vmatprep.subr.bf16.mxu0 %v3425
    %4913 = vmatpush1.bf16.msra.mxu0 %v3424
    %4914 = vmatprep.subr.bf16.mxu0 %v3433
    %4915 = vmatpush1.bf16.msra.mxu0 %v3432
    %4916 = vmatprep.mubr.bf16.mxu0 %v897
    %4917 = vmatmul.mubr.bf16.gmra.mrb[0].mxu0 %v883
    %v4918 = vpop.f32.mrb[0].mxu0
    %v4919 = vadd.f32 %v821, %v4918
    %v4920 = vpop.f32.mrb[0].mxu0
    %v4921 = vadd.f32 %v825, %v4920
    %v4922 = vpop.f32.mrb[0].mxu0
    %v4923 = vpop.f32.mrb[0].mxu0
    %4924 = vdwg.mxu0
    %4925 = vmatprep.subr.bf16.mxu0 %v3441
    %4926 = vmatpush1.bf16.msra.mxu0 %v3440
    %4927 = vmatprep.subr.bf16.mxu0 %v3449
    %4928 = vmatpush1.bf16.msra.mxu0 %v3448
    %4929 = vmatprep.subr.bf16.mxu0 %v3457
    %4930 = vmatpush1.bf16.msra.mxu0 %v3456
    %4931 = vmatprep.subr.bf16.mxu0 %v3465
    %4932 = vmatpush1.bf16.msra.mxu0 %v3464
    %4933 = vmatprep.subr.bf16.mxu0 %v3473
    %4934 = vmatpush1.bf16.msra.mxu0 %v3472
    %4935 = vmatprep.subr.bf16.mxu0 %v3481
    %4936 = vmatpush1.bf16.msra.mxu0 %v3480
    %4937 = vmatprep.subr.bf16.mxu0 %v3489
    %4938 = vmatpush1.bf16.msra.mxu0 %v3488
    %4939 = vmatprep.subr.bf16.mxu0 %v3497
    %4940 = vmatpush1.bf16.msra.mxu0 %v3496
    %4941 = vmatprep.subr.bf16.mxu0 %v3505
    %4942 = vmatpush1.bf16.msra.mxu0 %v3504
    %4943 = vmatprep.subr.bf16.mxu0 %v3513
    %4944 = vmatpush1.bf16.msra.mxu0 %v3512
    %4945 = vmatprep.subr.bf16.mxu0 %v3521
    %4946 = vmatpush1.bf16.msra.mxu0 %v3520
    %4947 = vmatprep.subr.bf16.mxu0 %v3529
    %4948 = vmatpush1.bf16.msra.mxu0 %v3528
    %4949 = vmatprep.subr.bf16.mxu0 %v3537
    %4950 = vmatpush1.bf16.msra.mxu0 %v3536
    %4951 = vmatprep.subr.bf16.mxu0 %v3545
    %4952 = vmatpush1.bf16.msra.mxu0 %v3544
    %4953 = vmatprep.subr.bf16.mxu0 %v3553
    %4954 = vmatpush1.bf16.msra.mxu0 %v3552
    %4955 = vmatprep.subr.bf16.mxu0 %v3561
    %4956 = vmatpush1.bf16.msra.mxu0 %v3560
    %4957 = vmatprep.mubr.bf16.mxu0 %v907
    %4958 = vmatmul.mubr.bf16.gmra.mrb[0].mxu0 %v905
    %v4959 = vpop.f32.mrb[0].mxu0
    %v4960 = vadd.f32 %v4919, %v4959
    %v4961 = vpop.f32.mrb[0].mxu0
    %v4962 = vadd.f32 %v4921, %v4961
    %v4963 = vpop.f32.mrb[0].mxu0
    %v4964 = vpop.f32.mrb[0].mxu0
    %4965 = vdwg.mxu0
    %4966 = vmatprep.subr.bf16.mxu0 %v3569
    %4967 = vmatpush1.bf16.msra.mxu0 %v3568
    %4968 = vmatprep.subr.bf16.mxu0 %v3577
    %4969 = vmatpush1.bf16.msra.mxu0 %v3576
    %4970 = vmatprep.subr.bf16.mxu0 %v3585
    %4971 = vmatpush1.bf16.msra.mxu0 %v3584
    %4972 = vmatprep.subr.bf16.mxu0 %v3593
    %4973 = vmatpush1.bf16.msra.mxu0 %v3592
    %4974 = vmatprep.subr.bf16.mxu0 %v3601
    %4975 = vmatpush1.bf16.msra.mxu0 %v3600
    %4976 = vmatprep.subr.bf16.mxu0 %v3609
    %4977 = vmatpush1.bf16.msra.mxu0 %v3608
    %4978 = vmatprep.subr.bf16.mxu0 %v3617
    %4979 = vmatpush1.bf16.msra.mxu0 %v3616
    %4980 = vmatprep.subr.bf16.mxu0 %v3625
    %4981 = vmatpush1.bf16.msra.mxu0 %v3624
    %4982 = vmatprep.subr.bf16.mxu0 %v3633
    %4983 = vmatpush1.bf16.msra.mxu0 %v3632
    %4984 = vmatprep.subr.bf16.mxu0 %v3641
    %4985 = vmatpush1.bf16.msra.mxu0 %v3640
    %4986 = vmatprep.subr.bf16.mxu0 %v3649
    %4987 = vmatpush1.bf16.msra.mxu0 %v3648
    %4988 = vmatprep.subr.bf16.mxu0 %v3657
    %4989 = vmatpush1.bf16.msra.mxu0 %v3656
    %4990 = vmatprep.subr.bf16.mxu0 %v3665
    %4991 = vmatpush1.bf16.msra.mxu0 %v3664
    %4992 = vmatprep.subr.bf16.mxu0 %v3673
    %4993 = vmatpush1.bf16.msra.mxu0 %v3672
    %4994 = vmatprep.subr.bf16.mxu0 %v3681
    %4995 = vmatpush1.bf16.msra.mxu0 %v3680
    %4996 = vmatprep.subr.bf16.mxu0 %v3689
    %4997 = vmatpush1.bf16.msra.mxu0 %v3688
    %4998 = vmatprep.mubr.bf16.mxu0 %v904
    %4999 = vmatmul.mubr.bf16.gmra.mrb[0].mxu0 %v890
    %v5000 = vpop.f32.mrb[0].mxu0
    %v5001 = vadd.f32 %v4960, %v5000
    %v5002 = vpop.f32.mrb[0].mxu0
    %v5003 = vadd.f32 %v4962, %v5002
    %v5004 = vpop.f32.mrb[0].mxu0
    %v5005 = vpop.f32.mrb[0].mxu0
    %5006 = vdwg.mxu0
    %5007 = vmatprep.subr.bf16.mxu0 %v3697
    %5008 = vmatpush1.bf16.msra.mxu0 %v3696
    %5009 = vmatprep.subr.bf16.mxu0 %v3705
    %5010 = vmatpush1.bf16.msra.mxu0 %v3704
    %5011 = vmatprep.subr.bf16.mxu0 %v3713
    %5012 = vmatpush1.bf16.msra.mxu0 %v3712
    %5013 = vmatprep.subr.bf16.mxu0 %v3721
    %5014 = vmatpush1.bf16.msra.mxu0 %v3720
    %5015 = vmatprep.subr.bf16.mxu0 %v3729
    %5016 = vmatpush1.bf16.msra.mxu0 %v3728
    %5017 = vmatprep.subr.bf16.mxu0 %v3737
    %5018 = vmatpush1.bf16.msra.mxu0 %v3736
    %5019 = vmatprep.subr.bf16.mxu0 %v3745
    %5020 = vmatpush1.bf16.msra.mxu0 %v3744
    %5021 = vmatprep.subr.bf16.mxu0 %v3753
    %5022 = vmatpush1.bf16.msra.mxu0 %v3752
    %5023 = vmatprep.subr.bf16.mxu0 %v3761
    %5024 = vmatpush1.bf16.msra.mxu0 %v3760
    %5025 = vmatprep.subr.bf16.mxu0 %v3769
    %5026 = vmatpush1.bf16.msra.mxu0 %v3768
    %5027 = vmatprep.subr.bf16.mxu0 %v3777
    %5028 = vmatpush1.bf16.msra.mxu0 %v3776
    %5029 = vmatprep.subr.bf16.mxu0 %v3785
    %5030 = vmatpush1.bf16.msra.mxu0 %v3784
    %5031 = vmatprep.subr.bf16.mxu0 %v3793
    %5032 = vmatpush1.bf16.msra.mxu0 %v3792
    %5033 = vmatprep.subr.bf16.mxu0 %v3801
    %5034 = vmatpush1.bf16.msra.mxu0 %v3800
    %5035 = vmatprep.subr.bf16.mxu0 %v3809
    %5036 = vmatpush1.bf16.msra.mxu0 %v3808
    %5037 = vmatprep.subr.bf16.mxu0 %v3817
    %5038 = vmatpush1.bf16.msra.mxu0 %v3816
    %5039 = vmatprep.mubr.bf16.mxu0 %v908
    %5040 = vmatmul.mubr.bf16.gmra.mrb[0].mxu0 %v906
    %v5041 = vpop.f32.mrb[0].mxu0
    %v5042 = vadd.f32 %v5001, %v5041
    %v5043 = vpop.f32.mrb[0].mxu0
    %v5044 = vadd.f32 %v5003, %v5043
    %v5045 = vpop.f32.mrb[0].mxu0
    %v5046 = vpop.f32.mrb[0].mxu0
    %5047 = vdwg.mxu0
    %5048 = vmatprep.subr.bf16.mxu0 %v3825
    %5049 = vmatpush1.bf16.msra.mxu0 %v3824
    %5050 = vmatprep.subr.bf16.mxu0 %v3833
    %5051 = vmatpush1.bf16.msra.mxu0 %v3832
    %5052 = vmatprep.subr.bf16.mxu0 %v3841
    %5053 = vmatpush1.bf16.msra.mxu0 %v3840
    %5054 = vmatprep.subr.bf16.mxu0 %v3849
    %5055 = vmatpush1.bf16.msra.mxu0 %v3848
    %5056 = vmatprep.subr.bf16.mxu0 %v3857
    %5057 = vmatpush1.bf16.msra.mxu0 %v3856
    %5058 = vmatprep.subr.bf16.mxu0 %v3865
    %5059 = vmatpush1.bf16.msra.mxu0 %v3864
    %5060 = vmatprep.subr.bf16.mxu0 %v3873
    %5061 = vmatpush1.bf16.msra.mxu0 %v3872
    %5062 = vmatprep.subr.bf16.mxu0 %v3881
    %5063 = vmatpush1.bf16.msra.mxu0 %v3880
    %5064 = vmatprep.subr.bf16.mxu0 %v3889
    %5065 = vmatpush1.bf16.msra.mxu0 %v3888
    %5066 = vmatprep.subr.bf16.mxu0 %v3897
    %5067 = vmatpush1.bf16.msra.mxu0 %v3896
    %5068 = vmatprep.subr.bf16.mxu0 %v3905
    %5069 = vmatpush1.bf16.msra.mxu0 %v3904
    %5070 = vmatprep.subr.bf16.mxu0 %v3913
    %5071 = vmatpush1.bf16.msra.mxu0 %v3912
    %5072 = vmatprep.subr.bf16.mxu0 %v3921
    %5073 = vmatpush1.bf16.msra.mxu0 %v3920
    %5074 = vmatprep.subr.bf16.mxu0 %v3929
    %5075 = vmatpush1.bf16.msra.mxu0 %v3928
    %5076 = vmatprep.subr.bf16.mxu0 %v3937
    %5077 = vmatpush1.bf16.msra.mxu0 %v3936
    %5078 = vmatprep.subr.bf16.mxu0 %v3945
    %5079 = vmatpush1.bf16.msra.mxu0 %v3944
    %5080 = vmatprep.mubr.bf16.mxu0 %v945
    %5081 = vmatmul.mubr.bf16.gmra.mrb[0].mxu0 %v931
    %v5082 = vpop.f32.mrb[0].mxu0
    %v5083 = vadd.f32 %v5042, %v5082
    %v5084 = vpop.f32.mrb[0].mxu0
    %v5085 = vadd.f32 %v5044, %v5084
    %v5086 = vpop.f32.mrb[0].mxu0
    %v5087 = vpop.f32.mrb[0].mxu0
    %5088 = vdwg.mxu0
    %5089 = vmatprep.subr.bf16.mxu0 %v3953
    %5090 = vmatpush1.bf16.msra.mxu0 %v3952
    %5091 = vmatprep.subr.bf16.mxu0 %v3961
    %5092 = vmatpush1.bf16.msra.mxu0 %v3960
    %5093 = vmatprep.subr.bf16.mxu0 %v3969
    %5094 = vmatpush1.bf16.msra.mxu0 %v3968
    %5095 = vmatprep.subr.bf16.mxu0 %v3977
    %5096 = vmatpush1.bf16.msra.mxu0 %v3976
    %5097 = vmatprep.subr.bf16.mxu0 %v3985
    %5098 = vmatpush1.bf16.msra.mxu0 %v3984
    %5099 = vmatprep.subr.bf16.mxu0 %v3993
    %5100 = vmatpush1.bf16.msra.mxu0 %v3992
    %5101 = vmatprep.subr.bf16.mxu0 %v4001
    %5102 = vmatpush1.bf16.msra.mxu0 %v4000
    %5103 = vmatprep.subr.bf16.mxu0 %v4009
    %5104 = vmatpush1.bf16.msra.mxu0 %v4008
    %5105 = vmatprep.subr.bf16.mxu0 %v4017
    %5106 = vmatpush1.bf16.msra.mxu0 %v4016
    %5107 = vmatprep.subr.bf16.mxu0 %v4025
    %5108 = vmatpush1.bf16.msra.mxu0 %v4024
    %5109 = vmatprep.subr.bf16.mxu0 %v4033
    %5110 = vmatpush1.bf16.msra.mxu0 %v4032
    %5111 = vmatprep.subr.bf16.mxu0 %v4041
    %5112 = vmatpush1.bf16.msra.mxu0 %v4040
    %5113 = vmatprep.subr.bf16.mxu0 %v4049
    %5114 = vmatpush1.bf16.msra.mxu0 %v4048
    %5115 = vmatprep.subr.bf16.mxu0 %v4057
    %5116 = vmatpush1.bf16.msra.mxu0 %v4056
    %5117 = vmatprep.subr.bf16.mxu0 %v4065
    %5118 = vmatpush1.bf16.msra.mxu0 %v4064
    %5119 = vmatprep.subr.bf16.mxu0 %v4073
    %5120 = vmatpush1.bf16.msra.mxu0 %v4072
    %5121 = vmatprep.mubr.bf16.mxu0 %v947
    %5122 = vmatmul.mubr.bf16.gmra.mrb[0].mxu0 %v946
    %v5123 = vpop.f32.mrb[0].mxu0
    %v5124 = vadd.f32 %v5083, %v5123
    %v5125 = vpop.f32.mrb[0].mxu0
    %v5126 = vadd.f32 %v5085, %v5125
    %v5127 = vpop.f32.mrb[0].mxu0
    %v5128 = vpop.f32.mrb[0].mxu0
    %5129 = vdwg.mxu0
    %5130 = vmatprep.subr.bf16.mxu0 %v4081
    %5131 = vmatpush1.bf16.msra.mxu0 %v4080
    %5132 = vmatprep.subr.bf16.mxu0 %v4089
    %5133 = vmatpush1.bf16.msra.mxu0 %v4088
    %5134 = vmatprep.subr.bf16.mxu0 0
    %5135 = vmatpush1.bf16.msra.mxu0 0
    %5136 = vmatprep.subr.bf16.mxu0 0
    %5137 = vmatpush1.bf16.msra.mxu0 0
    %5138 = vmatprep.subr.bf16.mxu0 0
    %5139 = vmatpush1.bf16.msra.mxu0 0
    %5140 = vmatprep.subr.bf16.mxu0 0
    %5141 = vmatpush1.bf16.msra.mxu0 0
    %5142 = vmatprep.subr.bf16.mxu0 0
    %5143 = vmatpush1.bf16.msra.mxu0 0
    %5144 = vmatprep.subr.bf16.mxu0 0
    %5145 = vmatpush1.bf16.msra.mxu0 0
    %5146 = vmatprep.subr.bf16.mxu0 0
    %5147 = vmatpush1.bf16.msra.mxu0 0
    %5148 = vmatprep.subr.bf16.mxu0 0
    %5149 = vmatpush1.bf16.msra.mxu0 0
    %5150 = vmatprep.subr.bf16.mxu0 0
    %5151 = vmatpush1.bf16.msra.mxu0 0
    %5152 = vmatprep.subr.bf16.mxu0 0
    %5153 = vmatpush1.bf16.msra.mxu0 0
    %5154 = vmatprep.subr.bf16.mxu0 0
    %5155 = vmatpush1.bf16.msra.mxu0 0
    %5156 = vmatprep.subr.bf16.mxu0 0
    %5157 = vmatpush1.bf16.msra.mxu0 0
    %5158 = vmatprep.subr.bf16.mxu0 0
    %5159 = vmatpush1.bf16.msra.mxu0 0
    %5160 = vmatprep.subr.bf16.mxu0 0
    %5161 = vmatpush1.bf16.msra.mxu0 0
    %5162 = vmatprep.mubr.bf16.mxu0 0
    %5163 = vmatmul.mubr.bf16.gmra.mrb[0].mxu0 %v4882
    %v5164 = vpop.f32.mrb[0].mxu0
    %v5165 = vadd.f32 %v5124, %v5164
    %v5166 = vpop.f32.mrb[0].mxu0
    %v5167 = vadd.f32 %v5126, %v5166
    %v5168 = vpop.f32.mrb[0].mxu0
    %v5169 = vpop.f32.mrb[0].mxu0
    %5170 = vdwg.mxu0
    %5171 = vmatprep.subr.bf16.mxu0 %v3315
    %5172 = vmatpush1.bf16.msra.mxu0 %v3314
    %5173 = vmatprep.subr.bf16.mxu0 %v3323
    %5174 = vmatpush1.bf16.msra.mxu0 %v3322
    %5175 = vmatprep.subr.bf16.mxu0 %v3331
    %5176 = vmatpush1.bf16.msra.mxu0 %v3330
    %5177 = vmatprep.subr.bf16.mxu0 %v3339
    %5178 = vmatpush1.bf16.msra.mxu0 %v3338
    %5179 = vmatprep.subr.bf16.mxu0 %v3347
    %5180 = vmatpush1.bf16.msra.mxu0 %v3346
    %5181 = vmatprep.subr.bf16.mxu0 %v3355
    %5182 = vmatpush1.bf16.msra.mxu0 %v3354
    %5183 = vmatprep.subr.bf16.mxu0 %v3363
    %5184 = vmatpush1.bf16.msra.mxu0 %v3362
    %5185 = vmatprep.subr.bf16.mxu0 %v3371
    %5186 = vmatpush1.bf16.msra.mxu0 %v3370
    %5187 = vmatprep.subr.bf16.mxu0 %v3379
    %5188 = vmatpush1.bf16.msra.mxu0 %v3378
    %5189 = vmatprep.subr.bf16.mxu0 %v3387
    %5190 = vmatpush1.bf16.msra.mxu0 %v3386
    %5191 = vmatprep.subr.bf16.mxu0 %v3395
    %5192 = vmatpush1.bf16.msra.mxu0 %v3394
    %5193 = vmatprep.subr.bf16.mxu0 %v3403
    %5194 = vmatpush1.bf16.msra.mxu0 %v3402
    %5195 = vmatprep.subr.bf16.mxu0 %v3411
    %5196 = vmatpush1.bf16.msra.mxu0 %v3410
    %5197 = vmatprep.subr.bf16.mxu0 %v3419
    %5198 = vmatpush1.bf16.msra.mxu0 %v3418
    %5199 = vmatprep.subr.bf16.mxu0 %v3427
    %5200 = vmatpush1.bf16.msra.mxu0 %v3426
    %5201 = vmatprep.subr.bf16.mxu0 %v3435
    %5202 = vmatpush1.bf16.msra.mxu0 %v3434
    %5203 = vmatprep.mubr.bf16.mxu0 %v897
    %5204 = vmatmul.mubr.bf16.gmra.mrb[0].mxu0 %v883
    %v5205 = vpop.f32.mrb[0].mxu0
    %v5206 = vadd.f32 %v829, %v5205
    %v5207 = vpop.f32.mrb[0].mxu0
    %v5208 = vadd.f32 %v833, %v5207
    %v5209 = vpop.f32.mrb[0].mxu0
    %v5210 = vpop.f32.mrb[0].mxu0
    %5211 = vdwg.mxu0
    %5212 = vmatprep.subr.bf16.mxu0 %v3443
    %5213 = vmatpush1.bf16.msra.mxu0 %v3442
    %5214 = vmatprep.subr.bf16.mxu0 %v3451
    %5215 = vmatpush1.bf16.msra.mxu0 %v3450
    %5216 = vmatprep.subr.bf16.mxu0 %v3459
    %5217 = vmatpush1.bf16.msra.mxu0 %v3458
    %5218 = vmatprep.subr.bf16.mxu0 %v3467
    %5219 = vmatpush1.bf16.msra.mxu0 %v3466
    %5220 = vmatprep.subr.bf16.mxu0 %v3475
    %5221 = vmatpush1.bf16.msra.mxu0 %v3474
    %5222 = vmatprep.subr.bf16.mxu0 %v3483
    %5223 = vmatpush1.bf16.msra.mxu0 %v3482
    %5224 = vmatprep.subr.bf16.mxu0 %v3491
    %5225 = vmatpush1.bf16.msra.mxu0 %v3490
    %5226 = vmatprep.subr.bf16.mxu0 %v3499
    %5227 = vmatpush1.bf16.msra.mxu0 %v3498
    %5228 = vmatprep.subr.bf16.mxu0 %v3507
    %5229 = vmatpush1.bf16.msra.mxu0 %v3506
    %5230 = vmatprep.subr.bf16.mxu0 %v3515
    %5231 = vmatpush1.bf16.msra.mxu0 %v3514
    %5232 = vmatprep.subr.bf16.mxu0 %v3523
    %5233 = vmatpush1.bf16.msra.mxu0 %v3522
    %5234 = vmatprep.subr.bf16.mxu0 %v3531
    %5235 = vmatpush1.bf16.msra.mxu0 %v3530
    %5236 = vmatprep.subr.bf16.mxu0 %v3539
    %5237 = vmatpush1.bf16.msra.mxu0 %v3538
    %5238 = vmatprep.subr.bf16.mxu0 %v3547
    %5239 = vmatpush1.bf16.msra.mxu0 %v3546
    %5240 = vmatprep.subr.bf16.mxu0 %v3555
    %5241 = vmatpush1.bf16.msra.mxu0 %v3554
    %5242 = vmatprep.subr.bf16.mxu0 %v3563
    %5243 = vmatpush1.bf16.msra.mxu0 %v3562
    %5244 = vmatprep.mubr.bf16.mxu0 %v907
    %5245 = vmatmul.mubr.bf16.gmra.mrb[0].mxu0 %v905
    %v5246 = vpop.f32.mrb[0].mxu0
    %v5247 = vadd.f32 %v5206, %v5246
    %v5248 = vpop.f32.mrb[0].mxu0
    %v5249 = vadd.f32 %v5208, %v5248
    %v5250 = vpop.f32.mrb[0].mxu0
    %v5251 = vpop.f32.mrb[0].mxu0
    %5252 = vdwg.mxu0
    %5253 = vmatprep.subr.bf16.mxu0 %v3571
    %5254 = vmatpush1.bf16.msra.mxu0 %v3570
    %5255 = vmatprep.subr.bf16.mxu0 %v3579
    %5256 = vmatpush1.bf16.msra.mxu0 %v3578
    %5257 = vmatprep.subr.bf16.mxu0 %v3587
    %5258 = vmatpush1.bf16.msra.mxu0 %v3586
    %5259 = vmatprep.subr.bf16.mxu0 %v3595
    %5260 = vmatpush1.bf16.msra.mxu0 %v3594
    %5261 = vmatprep.subr.bf16.mxu0 %v3603
    %5262 = vmatpush1.bf16.msra.mxu0 %v3602
    %5263 = vmatprep.subr.bf16.mxu0 %v3611
    %5264 = vmatpush1.bf16.msra.mxu0 %v3610
    %5265 = vmatprep.subr.bf16.mxu0 %v3619
    %5266 = vmatpush1.bf16.msra.mxu0 %v3618
    %5267 = vmatprep.subr.bf16.mxu0 %v3627
    %5268 = vmatpush1.bf16.msra.mxu0 %v3626
    %5269 = vmatprep.subr.bf16.mxu0 %v3635
    %5270 = vmatpush1.bf16.msra.mxu0 %v3634
    %5271 = vmatprep.subr.bf16.mxu0 %v3643
    %5272 = vmatpush1.bf16.msra.mxu0 %v3642
    %5273 = vmatprep.subr.bf16.mxu0 %v3651
    %5274 = vmatpush1.bf16.msra.mxu0 %v3650
    %5275 = vmatprep.subr.bf16.mxu0 %v3659
    %5276 = vmatpush1.bf16.msra.mxu0 %v3658
    %5277 = vmatprep.subr.bf16.mxu0 %v3667
    %5278 = vmatpush1.bf16.msra.mxu0 %v3666
    %5279 = vmatprep.subr.bf16.mxu0 %v3675
    %5280 = vmatpush1.bf16.msra.mxu0 %v3674
    %5281 = vmatprep.subr.bf16.mxu0 %v3683
    %5282 = vmatpush1.bf16.msra.mxu0 %v3682
    %5283 = vmatprep.subr.bf16.mxu0 %v3691
    %5284 = vmatpush1.bf16.msra.mxu0 %v3690
    %5285 = vmatprep.mubr.bf16.mxu0 %v904
    %5286 = vmatmul.mubr.bf16.gmra.mrb[0].mxu0 %v890
    %v5287 = vpop.f32.mrb[0].mxu0
    %v5288 = vadd.f32 %v5247, %v5287
    %v5289 = vpop.f32.mrb[0].mxu0
    %v5290 = vadd.f32 %v5249, %v5289
    %v5291 = vpop.f32.mrb[0].mxu0
    %v5292 = vpop.f32.mrb[0].mxu0
    %5293 = vdwg.mxu0
    %5294 = vmatprep.subr.bf16.mxu0 %v3699
    %5295 = vmatpush1.bf16.msra.mxu0 %v3698
    %5296 = vmatprep.subr.bf16.mxu0 %v3707
    %5297 = vmatpush1.bf16.msra.mxu0 %v3706
    %5298 = vmatprep.subr.bf16.mxu0 %v3715
    %5299 = vmatpush1.bf16.msra.mxu0 %v3714
    %5300 = vmatprep.subr.bf16.mxu0 %v3723
    %5301 = vmatpush1.bf16.msra.mxu0 %v3722
    %5302 = vmatprep.subr.bf16.mxu0 %v3731
    %5303 = vmatpush1.bf16.msra.mxu0 %v3730
    %5304 = vmatprep.subr.bf16.mxu0 %v3739
    %5305 = vmatpush1.bf16.msra.mxu0 %v3738
    %5306 = vmatprep.subr.bf16.mxu0 %v3747
    %5307 = vmatpush1.bf16.msra.mxu0 %v3746
    %5308 = vmatprep.subr.bf16.mxu0 %v3755
    %5309 = vmatpush1.bf16.msra.mxu0 %v3754
    %5310 = vmatprep.subr.bf16.mxu0 %v3763
    %5311 = vmatpush1.bf16.msra.mxu0 %v3762
    %5312 = vmatprep.subr.bf16.mxu0 %v3771
    %5313 = vmatpush1.bf16.msra.mxu0 %v3770
    %5314 = vmatprep.subr.bf16.mxu0 %v3779
    %5315 = vmatpush1.bf16.msra.mxu0 %v3778
    %5316 = vmatprep.subr.bf16.mxu0 %v3787
    %5317 = vmatpush1.bf16.msra.mxu0 %v3786
    %5318 = vmatprep.subr.bf16.mxu0 %v3795
    %5319 = vmatpush1.bf16.msra.mxu0 %v3794
    %5320 = vmatprep.subr.bf16.mxu0 %v3803
    %5321 = vmatpush1.bf16.msra.mxu0 %v3802
    %5322 = vmatprep.subr.bf16.mxu0 %v3811
    %5323 = vmatpush1.bf16.msra.mxu0 %v3810
    %5324 = vmatprep.subr.bf16.mxu0 %v3819
    %5325 = vmatpush1.bf16.msra.mxu0 %v3818
    %5326 = vmatprep.mubr.bf16.mxu0 %v908
    %5327 = vmatmul.mubr.bf16.gmra.mrb[0].mxu0 %v906
    %v5328 = vpop.f32.mrb[0].mxu0
    %v5329 = vadd.f32 %v5288, %v5328
    %v5330 = vpop.f32.mrb[0].mxu0
    %v5331 = vadd.f32 %v5290, %v5330
    %v5332 = vpop.f32.mrb[0].mxu0
    %v5333 = vpop.f32.mrb[0].mxu0
    %5334 = vdwg.mxu0
    %5335 = vmatprep.subr.bf16.mxu0 %v3827
    %5336 = vmatpush1.bf16.msra.mxu0 %v3826
    %5337 = vmatprep.subr.bf16.mxu0 %v3835
    %5338 = vmatpush1.bf16.msra.mxu0 %v3834
    %5339 = vmatprep.subr.bf16.mxu0 %v3843
    %5340 = vmatpush1.bf16.msra.mxu0 %v3842
    %5341 = vmatprep.subr.bf16.mxu0 %v3851
    %5342 = vmatpush1.bf16.msra.mxu0 %v3850
    %5343 = vmatprep.subr.bf16.mxu0 %v3859
    %5344 = vmatpush1.bf16.msra.mxu0 %v3858
    %5345 = vmatprep.subr.bf16.mxu0 %v3867
    %5346 = vmatpush1.bf16.msra.mxu0 %v3866
    %5347 = vmatprep.subr.bf16.mxu0 %v3875
    %5348 = vmatpush1.bf16.msra.mxu0 %v3874
    %5349 = vmatprep.subr.bf16.mxu0 %v3883
    %5350 = vmatpush1.bf16.msra.mxu0 %v3882
    %5351 = vmatprep.subr.bf16.mxu0 %v3891
    %5352 = vmatpush1.bf16.msra.mxu0 %v3890
    %5353 = vmatprep.subr.bf16.mxu0 %v3899
    %5354 = vmatpush1.bf16.msra.mxu0 %v3898
    %5355 = vmatprep.subr.bf16.mxu0 %v3907
    %5356 = vmatpush1.bf16.msra.mxu0 %v3906
    %5357 = vmatprep.subr.bf16.mxu0 %v3915
    %5358 = vmatpush1.bf16.msra.mxu0 %v3914
    %5359 = vmatprep.subr.bf16.mxu0 %v3923
    %5360 = vmatpush1.bf16.msra.mxu0 %v3922
    %5361 = vmatprep.subr.bf16.mxu0 %v3931
    %5362 = vmatpush1.bf16.msra.mxu0 %v3930
    %5363 = vmatprep.subr.bf16.mxu0 %v3939
    %5364 = vmatpush1.bf16.msra.mxu0 %v3938
    %5365 = vmatprep.subr.bf16.mxu0 %v3947
    %5366 = vmatpush1.bf16.msra.mxu0 %v3946
    %5367 = vmatprep.mubr.bf16.mxu0 %v945
    %5368 = vmatmul.mubr.bf16.gmra.mrb[0].mxu0 %v931
    %v5369 = vpop.f32.mrb[0].mxu0
    %v5370 = vadd.f32 %v5329, %v5369
    %v5371 = vpop.f32.mrb[0].mxu0
    %v5372 = vadd.f32 %v5331, %v5371
    %v5373 = vpop.f32.mrb[0].mxu0
    %v5374 = vpop.f32.mrb[0].mxu0
    %5375 = vdwg.mxu0
    %5376 = vmatprep.subr.bf16.mxu0 %v3955
    %5377 = vmatpush1.bf16.msra.mxu0 %v3954
    %5378 = vmatprep.subr.bf16.mxu0 %v3963
    %5379 = vmatpush1.bf16.msra.mxu0 %v3962
    %5380 = vmatprep.subr.bf16.mxu0 %v3971
    %5381 = vmatpush1.bf16.msra.mxu0 %v3970
    %5382 = vmatprep.subr.bf16.mxu0 %v3979
    %5383 = vmatpush1.bf16.msra.mxu0 %v3978
    %5384 = vmatprep.subr.bf16.mxu0 %v3987
    %5385 = vmatpush1.bf16.msra.mxu0 %v3986
    %5386 = vmatprep.subr.bf16.mxu0 %v3995
    %5387 = vmatpush1.bf16.msra.mxu0 %v3994
    %5388 = vmatprep.subr.bf16.mxu0 %v4003
    %5389 = vmatpush1.bf16.msra.mxu0 %v4002
    %5390 = vmatprep.subr.bf16.mxu0 %v4011
    %5391 = vmatpush1.bf16.msra.mxu0 %v4010
    %5392 = vmatprep.subr.bf16.mxu0 %v4019
    %5393 = vmatpush1.bf16.msra.mxu0 %v4018
    %5394 = vmatprep.subr.bf16.mxu0 %v4027
    %5395 = vmatpush1.bf16.msra.mxu0 %v4026
    %5396 = vmatprep.subr.bf16.mxu0 %v4035
    %5397 = vmatpush1.bf16.msra.mxu0 %v4034
    %5398 = vmatprep.subr.bf16.mxu0 %v4043
    %5399 = vmatpush1.bf16.msra.mxu0 %v4042
    %5400 = vmatprep.subr.bf16.mxu0 %v4051
    %5401 = vmatpush1.bf16.msra.mxu0 %v4050
    %5402 = vmatprep.subr.bf16.mxu0 %v4059
    %5403 = vmatpush1.bf16.msra.mxu0 %v4058
    %5404 = vmatprep.subr.bf16.mxu0 %v4067
    %5405 = vmatpush1.bf16.msra.mxu0 %v4066
    %5406 = vmatprep.subr.bf16.mxu0 %v4075
    %5407 = vmatpush1.bf16.msra.mxu0 %v4074
    %5408 = vmatprep.mubr.bf16.mxu0 %v947
    %5409 = vmatmul.mubr.bf16.gmra.mrb[0].mxu0 %v946
    %v5410 = vpop.f32.mrb[0].mxu0
    %v5411 = vadd.f32 %v5370, %v5410
    %v5412 = vpop.f32.mrb[0].mxu0
    %v5413 = vadd.f32 %v5372, %v5412
    %v5414 = vpop.f32.mrb[0].mxu0
    %v5415 = vpop.f32.mrb[0].mxu0
    %5416 = vdwg.mxu0
    %5417 = vmatprep.subr.bf16.mxu0 %v4083
    %5418 = vmatpush1.bf16.msra.mxu0 %v4082
    %5419 = vmatprep.subr.bf16.mxu0 %v4091
    %5420 = vmatpush1.bf16.msra.mxu0 %v4090
    %5421 = vmatprep.subr.bf16.mxu0 0
    %5422 = vmatpush1.bf16.msra.mxu0 0
    %5423 = vmatprep.subr.bf16.mxu0 0
    %5424 = vmatpush1.bf16.msra.mxu0 0
    %5425 = vmatprep.subr.bf16.mxu0 0
    %5426 = vmatpush1.bf16.msra.mxu0 0
    %5427 = vmatprep.subr.bf16.mxu0 0
    %5428 = vmatpush1.bf16.msra.mxu0 0
    %5429 = vmatprep.subr.bf16.mxu0 0
    %5430 = vmatpush1.bf16.msra.mxu0 0
    %5431 = vmatprep.subr.bf16.mxu0 0
    %5432 = vmatpush1.bf16.msra.mxu0 0
    %5433 = vmatprep.subr.bf16.mxu0 0
    %5434 = vmatpush1.bf16.msra.mxu0 0
    %5435 = vmatprep.subr.bf16.mxu0 0
    %5436 = vmatpush1.bf16.msra.mxu0 0
    %5437 = vmatprep.subr.bf16.mxu0 0
    %5438 = vmatpush1.bf16.msra.mxu0 0
    %5439 = vmatprep.subr.bf16.mxu0 0
    %5440 = vmatpush1.bf16.msra.mxu0 0
    %5441 = vmatprep.subr.bf16.mxu0 0
    %5442 = vmatpush1.bf16.msra.mxu0 0
    %5443 = vmatprep.subr.bf16.mxu0 0
    %5444 = vmatpush1.bf16.msra.mxu0 0
    %5445 = vmatprep.subr.bf16.mxu0 0
    %5446 = vmatpush1.bf16.msra.mxu0 0
    %5447 = vmatprep.subr.bf16.mxu0 0
    %5448 = vmatpush1.bf16.msra.mxu0 0
    %5449 = vmatprep.mubr.bf16.mxu0 0
    %5450 = vmatmul.mubr.bf16.gmra.mrb[0].mxu0 %v4882
    %v5451 = vpop.f32.mrb[0].mxu0
    %v5452 = vadd.f32 %v5411, %v5451
    %v5453 = vpop.f32.mrb[0].mxu0
    %v5454 = vadd.f32 %v5413, %v5453
    %v5455 = vpop.f32.mrb[0].mxu0
    %v5456 = vpop.f32.mrb[0].mxu0
    %5457 = vdwg.mxu0
    %5458 = vmatprep.subr.bf16.mxu0 %v3317
    %5459 = vmatpush1.bf16.msra.mxu0 %v3316
    %5460 = vmatprep.subr.bf16.mxu0 %v3325
    %5461 = vmatpush1.bf16.msra.mxu0 %v3324
    %5462 = vmatprep.subr.bf16.mxu0 %v3333
    %5463 = vmatpush1.bf16.msra.mxu0 %v3332
    %5464 = vmatprep.subr.bf16.mxu0 %v3341
    %5465 = vmatpush1.bf16.msra.mxu0 %v3340
    %5466 = vmatprep.subr.bf16.mxu0 %v3349
    %5467 = vmatpush1.bf16.msra.mxu0 %v3348
    %5468 = vmatprep.subr.bf16.mxu0 %v3357
    %5469 = vmatpush1.bf16.msra.mxu0 %v3356
    %5470 = vmatprep.subr.bf16.mxu0 %v3365
    %5471 = vmatpush1.bf16.msra.mxu0 %v3364
    %5472 = vmatprep.subr.bf16.mxu0 %v3373
    %5473 = vmatpush1.bf16.msra.mxu0 %v3372
    %5474 = vmatprep.subr.bf16.mxu0 %v3381
    %5475 = vmatpush1.bf16.msra.mxu0 %v3380
    %5476 = vmatprep.subr.bf16.mxu0 %v3389
    %5477 = vmatpush1.bf16.msra.mxu0 %v3388
    %5478 = vmatprep.subr.bf16.mxu0 %v3397
    %5479 = vmatpush1.bf16.msra.mxu0 %v3396
    %5480 = vmatprep.subr.bf16.mxu0 %v3405
    %5481 = vmatpush1.bf16.msra.mxu0 %v3404
    %5482 = vmatprep.subr.bf16.mxu0 %v3413
    %5483 = vmatpush1.bf16.msra.mxu0 %v3412
    %5484 = vmatprep.subr.bf16.mxu0 %v3421
    %5485 = vmatpush1.bf16.msra.mxu0 %v3420
    %5486 = vmatprep.subr.bf16.mxu0 %v3429
    %5487 = vmatpush1.bf16.msra.mxu0 %v3428
    %5488 = vmatprep.subr.bf16.mxu0 %v3437
    %5489 = vmatpush1.bf16.msra.mxu0 %v3436
    %5490 = vmatprep.mubr.bf16.mxu0 %v897
    %5491 = vmatmul.mubr.bf16.gmra.mrb[0].mxu0 %v883
    %v5492 = vpop.f32.mrb[0].mxu0
    %v5493 = vadd.f32 %v837, %v5492
    %v5494 = vpop.f32.mrb[0].mxu0
    %v5495 = vadd.f32 %v841, %v5494
    %v5496 = vpop.f32.mrb[0].mxu0
    %v5497 = vpop.f32.mrb[0].mxu0
    %5498 = vdwg.mxu0
    %5499 = vmatprep.subr.bf16.mxu0 %v3445
    %5500 = vmatpush1.bf16.msra.mxu0 %v3444
    %5501 = vmatprep.subr.bf16.mxu0 %v3453
    %5502 = vmatpush1.bf16.msra.mxu0 %v3452
    %5503 = vmatprep.subr.bf16.mxu0 %v3461
    %5504 = vmatpush1.bf16.msra.mxu0 %v3460
    %5505 = vmatprep.subr.bf16.mxu0 %v3469
    %5506 = vmatpush1.bf16.msra.mxu0 %v3468
    %5507 = vmatprep.subr.bf16.mxu0 %v3477
    %5508 = vmatpush1.bf16.msra.mxu0 %v3476
    %5509 = vmatprep.subr.bf16.mxu0 %v3485
    %5510 = vmatpush1.bf16.msra.mxu0 %v3484
    %5511 = vmatprep.subr.bf16.mxu0 %v3493
    %5512 = vmatpush1.bf16.msra.mxu0 %v3492
    %5513 = vmatprep.subr.bf16.mxu0 %v3501
    %5514 = vmatpush1.bf16.msra.mxu0 %v3500
    %5515 = vmatprep.subr.bf16.mxu0 %v3509
    %5516 = vmatpush1.bf16.msra.mxu0 %v3508
    %5517 = vmatprep.subr.bf16.mxu0 %v3517
    %5518 = vmatpush1.bf16.msra.mxu0 %v3516
    %5519 = vmatprep.subr.bf16.mxu0 %v3525
    %5520 = vmatpush1.bf16.msra.mxu0 %v3524
    %5521 = vmatprep.subr.bf16.mxu0 %v3533
    %5522 = vmatpush1.bf16.msra.mxu0 %v3532
    %5523 = vmatprep.subr.bf16.mxu0 %v3541
    %5524 = vmatpush1.bf16.msra.mxu0 %v3540
    %5525 = vmatprep.subr.bf16.mxu0 %v3549
    %5526 = vmatpush1.bf16.msra.mxu0 %v3548
    %5527 = vmatprep.subr.bf16.mxu0 %v3557
    %5528 = vmatpush1.bf16.msra.mxu0 %v3556
    %5529 = vmatprep.subr.bf16.mxu0 %v3565
    %5530 = vmatpush1.bf16.msra.mxu0 %v3564
    %5531 = vmatprep.mubr.bf16.mxu0 %v907
    %5532 = vmatmul.mubr.bf16.gmra.mrb[0].mxu0 %v905
    %v5533 = vpop.f32.mrb[0].mxu0
    %v5534 = vadd.f32 %v5493, %v5533
    %v5535 = vpop.f32.mrb[0].mxu0
    %v5536 = vadd.f32 %v5495, %v5535
    %v5537 = vpop.f32.mrb[0].mxu0
    %v5538 = vpop.f32.mrb[0].mxu0
    %5539 = vdwg.mxu0
    %5540 = vmatprep.subr.bf16.mxu0 %v3573
    %5541 = vmatpush1.bf16.msra.mxu0 %v3572
    %5542 = vmatprep.subr.bf16.mxu0 %v3581
    %5543 = vmatpush1.bf16.msra.mxu0 %v3580
    %5544 = vmatprep.subr.bf16.mxu0 %v3589
    %5545 = vmatpush1.bf16.msra.mxu0 %v3588
    %5546 = vmatprep.subr.bf16.mxu0 %v3597
    %5547 = vmatpush1.bf16.msra.mxu0 %v3596
    %5548 = vmatprep.subr.bf16.mxu0 %v3605
    %5549 = vmatpush1.bf16.msra.mxu0 %v3604
    %5550 = vmatprep.subr.bf16.mxu0 %v3613
    %5551 = vmatpush1.bf16.msra.mxu0 %v3612
    %5552 = vmatprep.subr.bf16.mxu0 %v3621
    %5553 = vmatpush1.bf16.msra.mxu0 %v3620
    %5554 = vmatprep.subr.bf16.mxu0 %v3629
    %5555 = vmatpush1.bf16.msra.mxu0 %v3628
    %5556 = vmatprep.subr.bf16.mxu0 %v3637
    %5557 = vmatpush1.bf16.msra.mxu0 %v3636
    %5558 = vmatprep.subr.bf16.mxu0 %v3645
    %5559 = vmatpush1.bf16.msra.mxu0 %v3644
    %5560 = vmatprep.subr.bf16.mxu0 %v3653
    %5561 = vmatpush1.bf16.msra.mxu0 %v3652
    %5562 = vmatprep.subr.bf16.mxu0 %v3661
    %5563 = vmatpush1.bf16.msra.mxu0 %v3660
    %5564 = vmatprep.subr.bf16.mxu0 %v3669
    %5565 = vmatpush1.bf16.msra.mxu0 %v3668
    %5566 = vmatprep.subr.bf16.mxu0 %v3677
    %5567 = vmatpush1.bf16.msra.mxu0 %v3676
    %5568 = vmatprep.subr.bf16.mxu0 %v3685
    %5569 = vmatpush1.bf16.msra.mxu0 %v3684
    %5570 = vmatprep.subr.bf16.mxu0 %v3693
    %5571 = vmatpush1.bf16.msra.mxu0 %v3692
    %5572 = vmatprep.mubr.bf16.mxu0 %v904
    %5573 = vmatmul.mubr.bf16.gmra.mrb[0].mxu0 %v890
    %v5574 = vpop.f32.mrb[0].mxu0
    %v5575 = vadd.f32 %v5534, %v5574
    %v5576 = vpop.f32.mrb[0].mxu0
    %v5577 = vadd.f32 %v5536, %v5576
    %v5578 = vpop.f32.mrb[0].mxu0
    %v5579 = vpop.f32.mrb[0].mxu0
    %5580 = vdwg.mxu0
    %5581 = vmatprep.subr.bf16.mxu0 %v3701
    %5582 = vmatpush1.bf16.msra.mxu0 %v3700
    %5583 = vmatprep.subr.bf16.mxu0 %v3709
    %5584 = vmatpush1.bf16.msra.mxu0 %v3708
    %5585 = vmatprep.subr.bf16.mxu0 %v3717
    %5586 = vmatpush1.bf16.msra.mxu0 %v3716
    %5587 = vmatprep.subr.bf16.mxu0 %v3725
    %5588 = vmatpush1.bf16.msra.mxu0 %v3724
    %5589 = vmatprep.subr.bf16.mxu0 %v3733
    %5590 = vmatpush1.bf16.msra.mxu0 %v3732
    %5591 = vmatprep.subr.bf16.mxu0 %v3741
    %5592 = vmatpush1.bf16.msra.mxu0 %v3740
    %5593 = vmatprep.subr.bf16.mxu0 %v3749
    %5594 = vmatpush1.bf16.msra.mxu0 %v3748
    %5595 = vmatprep.subr.bf16.mxu0 %v3757
    %5596 = vmatpush1.bf16.msra.mxu0 %v3756
    %5597 = vmatprep.subr.bf16.mxu0 %v3765
    %5598 = vmatpush1.bf16.msra.mxu0 %v3764
    %5599 = vmatprep.subr.bf16.mxu0 %v3773
    %5600 = vmatpush1.bf16.msra.mxu0 %v3772
    %5601 = vmatprep.subr.bf16.mxu0 %v3781
    %5602 = vmatpush1.bf16.msra.mxu0 %v3780
    %5603 = vmatprep.subr.bf16.mxu0 %v3789
    %5604 = vmatpush1.bf16.msra.mxu0 %v3788
    %5605 = vmatprep.subr.bf16.mxu0 %v3797
    %5606 = vmatpush1.bf16.msra.mxu0 %v3796
    %5607 = vmatprep.subr.bf16.mxu0 %v3805
    %5608 = vmatpush1.bf16.msra.mxu0 %v3804
    %5609 = vmatprep.subr.bf16.mxu0 %v3813
    %5610 = vmatpush1.bf16.msra.mxu0 %v3812
    %5611 = vmatprep.subr.bf16.mxu0 %v3821
    %5612 = vmatpush1.bf16.msra.mxu0 %v3820
    %5613 = vmatprep.mubr.bf16.mxu0 %v908
    %5614 = vmatmul.mubr.bf16.gmra.mrb[0].mxu0 %v906
    %v5615 = vpop.f32.mrb[0].mxu0
    %v5616 = vadd.f32 %v5575, %v5615
    %v5617 = vpop.f32.mrb[0].mxu0
    %v5618 = vadd.f32 %v5577, %v5617
    %v5619 = vpop.f32.mrb[0].mxu0
    %v5620 = vpop.f32.mrb[0].mxu0
    %5621 = vdwg.mxu0
    %5622 = vmatprep.subr.bf16.mxu0 %v3829
    %5623 = vmatpush1.bf16.msra.mxu0 %v3828
    %5624 = vmatprep.subr.bf16.mxu0 %v3837
    %5625 = vmatpush1.bf16.msra.mxu0 %v3836
    %5626 = vmatprep.subr.bf16.mxu0 %v3845
    %5627 = vmatpush1.bf16.msra.mxu0 %v3844
    %5628 = vmatprep.subr.bf16.mxu0 %v3853
    %5629 = vmatpush1.bf16.msra.mxu0 %v3852
    %5630 = vmatprep.subr.bf16.mxu0 %v3861
    %5631 = vmatpush1.bf16.msra.mxu0 %v3860
    %5632 = vmatprep.subr.bf16.mxu0 %v3869
    %5633 = vmatpush1.bf16.msra.mxu0 %v3868
    %5634 = vmatprep.subr.bf16.mxu0 %v3877
    %5635 = vmatpush1.bf16.msra.mxu0 %v3876
    %5636 = vmatprep.subr.bf16.mxu0 %v3885
    %5637 = vmatpush1.bf16.msra.mxu0 %v3884
    %5638 = vmatprep.subr.bf16.mxu0 %v3893
    %5639 = vmatpush1.bf16.msra.mxu0 %v3892
    %5640 = vmatprep.subr.bf16.mxu0 %v3901
    %5641 = vmatpush1.bf16.msra.mxu0 %v3900
    %5642 = vmatprep.subr.bf16.mxu0 %v3909
    %5643 = vmatpush1.bf16.msra.mxu0 %v3908
    %5644 = vmatprep.subr.bf16.mxu0 %v3917
    %5645 = vmatpush1.bf16.msra.mxu0 %v3916
    %5646 = vmatprep.subr.bf16.mxu0 %v3925
    %5647 = vmatpush1.bf16.msra.mxu0 %v3924
    %5648 = vmatprep.subr.bf16.mxu0 %v3933
    %5649 = vmatpush1.bf16.msra.mxu0 %v3932
    %5650 = vmatprep.subr.bf16.mxu0 %v3941
    %5651 = vmatpush1.bf16.msra.mxu0 %v3940
    %5652 = vmatprep.subr.bf16.mxu0 %v3949
    %5653 = vmatpush1.bf16.msra.mxu0 %v3948
    %5654 = vmatprep.mubr.bf16.mxu0 %v945
    %5655 = vmatmul.mubr.bf16.gmra.mrb[0].mxu0 %v931
    %v5656 = vpop.f32.mrb[0].mxu0
    %v5657 = vadd.f32 %v5616, %v5656
    %v5658 = vpop.f32.mrb[0].mxu0
    %v5659 = vadd.f32 %v5618, %v5658
    %v5660 = vpop.f32.mrb[0].mxu0
    %v5661 = vpop.f32.mrb[0].mxu0
    %5662 = vdwg.mxu0
    %5663 = vmatprep.subr.bf16.mxu0 %v3957
    %5664 = vmatpush1.bf16.msra.mxu0 %v3956
    %5665 = vmatprep.subr.bf16.mxu0 %v3965
    %5666 = vmatpush1.bf16.msra.mxu0 %v3964
    %5667 = vmatprep.subr.bf16.mxu0 %v3973
    %5668 = vmatpush1.bf16.msra.mxu0 %v3972
    %5669 = vmatprep.subr.bf16.mxu0 %v3981
    %5670 = vmatpush1.bf16.msra.mxu0 %v3980
    %5671 = vmatprep.subr.bf16.mxu0 %v3989
    %5672 = vmatpush1.bf16.msra.mxu0 %v3988
    %5673 = vmatprep.subr.bf16.mxu0 %v3997
    %5674 = vmatpush1.bf16.msra.mxu0 %v3996
    %5675 = vmatprep.subr.bf16.mxu0 %v4005
    %5676 = vmatpush1.bf16.msra.mxu0 %v4004
    %5677 = vmatprep.subr.bf16.mxu0 %v4013
    %5678 = vmatpush1.bf16.msra.mxu0 %v4012
    %5679 = vmatprep.subr.bf16.mxu0 %v4021
    %5680 = vmatpush1.bf16.msra.mxu0 %v4020
    %5681 = vmatprep.subr.bf16.mxu0 %v4029
    %5682 = vmatpush1.bf16.msra.mxu0 %v4028
    %5683 = vmatprep.subr.bf16.mxu0 %v4037
    %5684 = vmatpush1.bf16.msra.mxu0 %v4036
    %5685 = vmatprep.subr.bf16.mxu0 %v4045
    %5686 = vmatpush1.bf16.msra.mxu0 %v4044
    %5687 = vmatprep.subr.bf16.mxu0 %v4053
    %5688 = vmatpush1.bf16.msra.mxu0 %v4052
    %5689 = vmatprep.subr.bf16.mxu0 %v4061
    %5690 = vmatpush1.bf16.msra.mxu0 %v4060
    %5691 = vmatprep.subr.bf16.mxu0 %v4069
    %5692 = vmatpush1.bf16.msra.mxu0 %v4068
    %5693 = vmatprep.subr.bf16.mxu0 %v4077
    %5694 = vmatpush1.bf16.msra.mxu0 %v4076
    %5695 = vmatprep.mubr.bf16.mxu0 %v947
    %5696 = vmatmul.mubr.bf16.gmra.mrb[0].mxu0 %v946
    %v5697 = vpop.f32.mrb[0].mxu0
    %v5698 = vadd.f32 %v5657, %v5697
    %v5699 = vpop.f32.mrb[0].mxu0
    %v5700 = vadd.f32 %v5659, %v5699
    %v5701 = vpop.f32.mrb[0].mxu0
    %v5702 = vpop.f32.mrb[0].mxu0
    %5703 = vdwg.mxu0
    %5704 = vmatprep.subr.bf16.mxu0 %v4085
    %5705 = vmatpush1.bf16.msra.mxu0 %v4084
    %5706 = vmatprep.subr.bf16.mxu0 %v4093
    %5707 = vmatpush1.bf16.msra.mxu0 %v4092
    %5708 = vmatprep.subr.bf16.mxu0 0
    %5709 = vmatpush1.bf16.msra.mxu0 0
    %5710 = vmatprep.subr.bf16.mxu0 0
    %5711 = vmatpush1.bf16.msra.mxu0 0
    %5712 = vmatprep.subr.bf16.mxu0 0
    %5713 = vmatpush1.bf16.msra.mxu0 0
    %5714 = vmatprep.subr.bf16.mxu0 0
    %5715 = vmatpush1.bf16.msra.mxu0 0
    %5716 = vmatprep.subr.bf16.mxu0 0
    %5717 = vmatpush1.bf16.msra.mxu0 0
    %5718 = vmatprep.subr.bf16.mxu0 0
    %5719 = vmatpush1.bf16.msra.mxu0 0
    %5720 = vmatprep.subr.bf16.mxu0 0
    %5721 = vmatpush1.bf16.msra.mxu0 0
    %5722 = vmatprep.subr.bf16.mxu0 0
    %5723 = vmatpush1.bf16.msra.mxu0 0
    %5724 = vmatprep.subr.bf16.mxu0 0
    %5725 = vmatpush1.bf16.msra.mxu0 0
    %5726 = vmatprep.subr.bf16.mxu0 0
    %5727 = vmatpush1.bf16.msra.mxu0 0
    %5728 = vmatprep.subr.bf16.mxu0 0
    %5729 = vmatpush1.bf16.msra.mxu0 0
    %5730 = vmatprep.subr.bf16.mxu0 0
    %5731 = vmatpush1.bf16.msra.mxu0 0
    %5732 = vmatprep.subr.bf16.mxu0 0
    %5733 = vmatpush1.bf16.msra.mxu0 0
    %5734 = vmatprep.subr.bf16.mxu0 0
    %5735 = vmatpush1.bf16.msra.mxu0 0
    %5736 = vmatprep.mubr.bf16.mxu0 0
    %5737 = vmatmul.mubr.bf16.gmra.mrb[0].mxu0 %v4882
    %v5738 = vpop.f32.mrb[0].mxu0
    %v5739 = vadd.f32 %v5698, %v5738
    %v5740 = vpop.f32.mrb[0].mxu0
    %v5741 = vadd.f32 %v5700, %v5740
    %v5742 = vpop.f32.mrb[0].mxu0
    %v5743 = vpop.f32.mrb[0].mxu0
    %5744 = vdwg.mxu0
    %5745 = vmatprep.subr.bf16.mxu0 %v3319
    %5746 = vmatpush1.bf16.msra.mxu0 %v3318
    %5747 = vmatprep.subr.bf16.mxu0 %v3327
    %5748 = vmatpush1.bf16.msra.mxu0 %v3326
    %5749 = vmatprep.subr.bf16.mxu0 %v3335
    %5750 = vmatpush1.bf16.msra.mxu0 %v3334
    %5751 = vmatprep.subr.bf16.mxu0 %v3343
    %5752 = vmatpush1.bf16.msra.mxu0 %v3342
    %5753 = vmatprep.subr.bf16.mxu0 %v3351
    %5754 = vmatpush1.bf16.msra.mxu0 %v3350
    %5755 = vmatprep.subr.bf16.mxu0 %v3359
    %5756 = vmatpush1.bf16.msra.mxu0 %v3358
    %5757 = vmatprep.subr.bf16.mxu0 %v3367
    %5758 = vmatpush1.bf16.msra.mxu0 %v3366
    %5759 = vmatprep.subr.bf16.mxu0 %v3375
    %5760 = vmatpush1.bf16.msra.mxu0 %v3374
    %5761 = vmatprep.subr.bf16.mxu0 %v3383
    %5762 = vmatpush1.bf16.msra.mxu0 %v3382
    %5763 = vmatprep.subr.bf16.mxu0 %v3391
    %5764 = vmatpush1.bf16.msra.mxu0 %v3390
    %5765 = vmatprep.subr.bf16.mxu0 %v3399
    %5766 = vmatpush1.bf16.msra.mxu0 %v3398
    %5767 = vmatprep.subr.bf16.mxu0 %v3407
    %5768 = vmatpush1.bf16.msra.mxu0 %v3406
    %5769 = vmatprep.subr.bf16.mxu0 %v3415
    %5770 = vmatpush1.bf16.msra.mxu0 %v3414
    %5771 = vmatprep.subr.bf16.mxu0 %v3423
    %5772 = vmatpush1.bf16.msra.mxu0 %v3422
    %5773 = vmatprep.subr.bf16.mxu0 %v3431
    %5774 = vmatpush1.bf16.msra.mxu0 %v3430
    %5775 = vmatprep.subr.bf16.mxu0 %v3439
    %5776 = vmatpush1.bf16.msra.mxu0 %v3438
    %5777 = vmatprep.mubr.bf16.mxu0 %v897
    %5778 = vmatmul.mubr.bf16.gmra.mrb[0].mxu0 %v883
    %v5779 = vpop.f32.mrb[0].mxu0
    %v5780 = vadd.f32 %v845, %v5779
    %v5781 = vpop.f32.mrb[0].mxu0
    %v5782 = vadd.f32 %v849, %v5781
    %v5783 = vpop.f32.mrb[0].mxu0
    %v5784 = vpop.f32.mrb[0].mxu0
    %5785 = vdwg.mxu0
    %5786 = vmatprep.subr.bf16.mxu0 %v3447
    %5787 = vmatpush1.bf16.msra.mxu0 %v3446
    %5788 = vmatprep.subr.bf16.mxu0 %v3455
    %5789 = vmatpush1.bf16.msra.mxu0 %v3454
    %5790 = vmatprep.subr.bf16.mxu0 %v3463
    %5791 = vmatpush1.bf16.msra.mxu0 %v3462
    %5792 = vmatprep.subr.bf16.mxu0 %v3471
    %5793 = vmatpush1.bf16.msra.mxu0 %v3470
    %5794 = vmatprep.subr.bf16.mxu0 %v3479
    %5795 = vmatpush1.bf16.msra.mxu0 %v3478
    %5796 = vmatprep.subr.bf16.mxu0 %v3487
    %5797 = vmatpush1.bf16.msra.mxu0 %v3486
    %5798 = vmatprep.subr.bf16.mxu0 %v3495
    %5799 = vmatpush1.bf16.msra.mxu0 %v3494
    %5800 = vmatprep.subr.bf16.mxu0 %v3503
    %5801 = vmatpush1.bf16.msra.mxu0 %v3502
    %5802 = vmatprep.subr.bf16.mxu0 %v3511
    %5803 = vmatpush1.bf16.msra.mxu0 %v3510
    %5804 = vmatprep.subr.bf16.mxu0 %v3519
    %5805 = vmatpush1.bf16.msra.mxu0 %v3518
    %5806 = vmatprep.subr.bf16.mxu0 %v3527
    %5807 = vmatpush1.bf16.msra.mxu0 %v3526
    %5808 = vmatprep.subr.bf16.mxu0 %v3535
    %5809 = vmatpush1.bf16.msra.mxu0 %v3534
    %5810 = vmatprep.subr.bf16.mxu0 %v3543
    %5811 = vmatpush1.bf16.msra.mxu0 %v3542
    %5812 = vmatprep.subr.bf16.mxu0 %v3551
    %5813 = vmatpush1.bf16.msra.mxu0 %v3550
    %5814 = vmatprep.subr.bf16.mxu0 %v3559
    %5815 = vmatpush1.bf16.msra.mxu0 %v3558
    %5816 = vmatprep.subr.bf16.mxu0 %v3567
    %5817 = vmatpush1.bf16.msra.mxu0 %v3566
    %5818 = vmatprep.mubr.bf16.mxu0 %v907
    %5819 = vmatmul.mubr.bf16.gmra.mrb[0].mxu0 %v905
    %v5820 = vpop.f32.mrb[0].mxu0
    %v5821 = vadd.f32 %v5780, %v5820
    %v5822 = vpop.f32.mrb[0].mxu0
    %v5823 = vadd.f32 %v5782, %v5822
    %v5824 = vpop.f32.mrb[0].mxu0
    %v5825 = vpop.f32.mrb[0].mxu0
    %5826 = vdwg.mxu0
    %5827 = vmatprep.subr.bf16.mxu0 %v3575
    %5828 = vmatpush1.bf16.msra.mxu0 %v3574
    %5829 = vmatprep.subr.bf16.mxu0 %v3583
    %5830 = vmatpush1.bf16.msra.mxu0 %v3582
    %5831 = vmatprep.subr.bf16.mxu0 %v3591
    %5832 = vmatpush1.bf16.msra.mxu0 %v3590
    %5833 = vmatprep.subr.bf16.mxu0 %v3599
    %5834 = vmatpush1.bf16.msra.mxu0 %v3598
    %5835 = vmatprep.subr.bf16.mxu0 %v3607
    %5836 = vmatpush1.bf16.msra.mxu0 %v3606
    %5837 = vmatprep.subr.bf16.mxu0 %v3615
    %5838 = vmatpush1.bf16.msra.mxu0 %v3614
    %5839 = vmatprep.subr.bf16.mxu0 %v3623
    %5840 = vmatpush1.bf16.msra.mxu0 %v3622
    %5841 = vmatprep.subr.bf16.mxu0 %v3631
    %5842 = vmatpush1.bf16.msra.mxu0 %v3630
    %5843 = vmatprep.subr.bf16.mxu0 %v3639
    %5844 = vmatpush1.bf16.msra.mxu0 %v3638
    %5845 = vmatprep.subr.bf16.mxu0 %v3647
    %5846 = vmatpush1.bf16.msra.mxu0 %v3646
    %5847 = vmatprep.subr.bf16.mxu0 %v3655
    %5848 = vmatpush1.bf16.msra.mxu0 %v3654
    %5849 = vmatprep.subr.bf16.mxu0 %v3663
    %5850 = vmatpush1.bf16.msra.mxu0 %v3662
    %5851 = vmatprep.subr.bf16.mxu0 %v3671
    %5852 = vmatpush1.bf16.msra.mxu0 %v3670
    %5853 = vmatprep.subr.bf16.mxu0 %v3679
    %5854 = vmatpush1.bf16.msra.mxu0 %v3678
    %5855 = vmatprep.subr.bf16.mxu0 %v3687
    %5856 = vmatpush1.bf16.msra.mxu0 %v3686
    %5857 = vmatprep.subr.bf16.mxu0 %v3695
    %5858 = vmatpush1.bf16.msra.mxu0 %v3694
    %5859 = vmatprep.mubr.bf16.mxu0 %v904
    %5860 = vmatmul.mubr.bf16.gmra.mrb[0].mxu0 %v890
    %v5861 = vpop.f32.mrb[0].mxu0
    %v5862 = vadd.f32 %v5821, %v5861
    %v5863 = vpop.f32.mrb[0].mxu0
    %v5864 = vadd.f32 %v5823, %v5863
    %v5865 = vpop.f32.mrb[0].mxu0
    %v5866 = vpop.f32.mrb[0].mxu0
    %5867 = vdwg.mxu0
    %5868 = vmatprep.subr.bf16.mxu0 %v3703
    %5869 = vmatpush1.bf16.msra.mxu0 %v3702
    %5870 = vmatprep.subr.bf16.mxu0 %v3711
    %5871 = vmatpush1.bf16.msra.mxu0 %v3710
    %5872 = vmatprep.subr.bf16.mxu0 %v3719
    %5873 = vmatpush1.bf16.msra.mxu0 %v3718
    %5874 = vmatprep.subr.bf16.mxu0 %v3727
    %5875 = vmatpush1.bf16.msra.mxu0 %v3726
    %5876 = vmatprep.subr.bf16.mxu0 %v3735
    %5877 = vmatpush1.bf16.msra.mxu0 %v3734
    %5878 = vmatprep.subr.bf16.mxu0 %v3743
    %5879 = vmatpush1.bf16.msra.mxu0 %v3742
    %5880 = vmatprep.subr.bf16.mxu0 %v3751
    %5881 = vmatpush1.bf16.msra.mxu0 %v3750
    %5882 = vmatprep.subr.bf16.mxu0 %v3759
    %5883 = vmatpush1.bf16.msra.mxu0 %v3758
    %5884 = vmatprep.subr.bf16.mxu0 %v3767
    %5885 = vmatpush1.bf16.msra.mxu0 %v3766
    %5886 = vmatprep.subr.bf16.mxu0 %v3775
    %5887 = vmatpush1.bf16.msra.mxu0 %v3774
    %5888 = vmatprep.subr.bf16.mxu0 %v3783
    %5889 = vmatpush1.bf16.msra.mxu0 %v3782
    %5890 = vmatprep.subr.bf16.mxu0 %v3791
    %5891 = vmatpush1.bf16.msra.mxu0 %v3790
    %5892 = vmatprep.subr.bf16.mxu0 %v3799
    %5893 = vmatpush1.bf16.msra.mxu0 %v3798
    %5894 = vmatprep.subr.bf16.mxu0 %v3807
    %5895 = vmatpush1.bf16.msra.mxu0 %v3806
    %5896 = vmatprep.subr.bf16.mxu0 %v3815
    %5897 = vmatpush1.bf16.msra.mxu0 %v3814
    %5898 = vmatprep.subr.bf16.mxu0 %v3823
    %5899 = vmatpush1.bf16.msra.mxu0 %v3822
    %5900 = vmatprep.mubr.bf16.mxu0 %v908
    %5901 = vmatmul.mubr.bf16.gmra.mrb[0].mxu0 %v906
    %v5902 = vpop.f32.mrb[0].mxu0
    %v5903 = vadd.f32 %v5862, %v5902
    %v5904 = vpop.f32.mrb[0].mxu0
    %v5905 = vadd.f32 %v5864, %v5904
    %v5906 = vpop.f32.mrb[0].mxu0
    %v5907 = vpop.f32.mrb[0].mxu0
    %5908 = vdwg.mxu0
    %5909 = vmatprep.subr.bf16.mxu0 %v3831
    %5910 = vmatpush1.bf16.msra.mxu0 %v3830
    %5911 = vmatprep.subr.bf16.mxu0 %v3839
    %5912 = vmatpush1.bf16.msra.mxu0 %v3838
    %5913 = vmatprep.subr.bf16.mxu0 %v3847
    %5914 = vmatpush1.bf16.msra.mxu0 %v3846
    %5915 = vmatprep.subr.bf16.mxu0 %v3855
    %5916 = vmatpush1.bf16.msra.mxu0 %v3854
    %5917 = vmatprep.subr.bf16.mxu0 %v3863
    %5918 = vmatpush1.bf16.msra.mxu0 %v3862
    %5919 = vmatprep.subr.bf16.mxu0 %v3871
    %5920 = vmatpush1.bf16.msra.mxu0 %v3870
    %5921 = vmatprep.subr.bf16.mxu0 %v3879
    %5922 = vmatpush1.bf16.msra.mxu0 %v3878
    %5923 = vmatprep.subr.bf16.mxu0 %v3887
    %5924 = vmatpush1.bf16.msra.mxu0 %v3886
    %5925 = vmatprep.subr.bf16.mxu0 %v3895
    %5926 = vmatpush1.bf16.msra.mxu0 %v3894
    %5927 = vmatprep.subr.bf16.mxu0 %v3903
    %5928 = vmatpush1.bf16.msra.mxu0 %v3902
    %5929 = vmatprep.subr.bf16.mxu0 %v3911
    %5930 = vmatpush1.bf16.msra.mxu0 %v3910
    %5931 = vmatprep.subr.bf16.mxu0 %v3919
    %5932 = vmatpush1.bf16.msra.mxu0 %v3918
    %5933 = vmatprep.subr.bf16.mxu0 %v3927
    %5934 = vmatpush1.bf16.msra.mxu0 %v3926
    %5935 = vmatprep.subr.bf16.mxu0 %v3935
    %5936 = vmatpush1.bf16.msra.mxu0 %v3934
    %5937 = vmatprep.subr.bf16.mxu0 %v3943
    %5938 = vmatpush1.bf16.msra.mxu0 %v3942
    %5939 = vmatprep.subr.bf16.mxu0 %v3951
    %5940 = vmatpush1.bf16.msra.mxu0 %v3950
    %5941 = vmatprep.mubr.bf16.mxu0 %v945
    %5942 = vmatmul.mubr.bf16.gmra.mrb[0].mxu0 %v931
    %v5943 = vpop.f32.mrb[0].mxu0
    %v5944 = vadd.f32 %v5903, %v5943
    %v5945 = vpop.f32.mrb[0].mxu0
    %v5946 = vadd.f32 %v5905, %v5945
    %v5947 = vpop.f32.mrb[0].mxu0
    %v5948 = vpop.f32.mrb[0].mxu0
    %5949 = vdwg.mxu0
    %5950 = vmatprep.subr.bf16.mxu0 %v3959
    %5951 = vmatpush1.bf16.msra.mxu0 %v3958
    %5952 = vmatprep.subr.bf16.mxu0 %v3967
    %5953 = vmatpush1.bf16.msra.mxu0 %v3966
    %5954 = vmatprep.subr.bf16.mxu0 %v3975
    %5955 = vmatpush1.bf16.msra.mxu0 %v3974
    %5956 = vmatprep.subr.bf16.mxu0 %v3983
    %5957 = vmatpush1.bf16.msra.mxu0 %v3982
    %5958 = vmatprep.subr.bf16.mxu0 %v3991
    %5959 = vmatpush1.bf16.msra.mxu0 %v3990
    %5960 = vmatprep.subr.bf16.mxu0 %v3999
    %5961 = vmatpush1.bf16.msra.mxu0 %v3998
    %5962 = vmatprep.subr.bf16.mxu0 %v4007
    %5963 = vmatpush1.bf16.msra.mxu0 %v4006
    %5964 = vmatprep.subr.bf16.mxu0 %v4015
    %5965 = vmatpush1.bf16.msra.mxu0 %v4014
    %5966 = vmatprep.subr.bf16.mxu0 %v4023
    %5967 = vmatpush1.bf16.msra.mxu0 %v4022
    %5968 = vmatprep.subr.bf16.mxu0 %v4031
    %5969 = vmatpush1.bf16.msra.mxu0 %v4030
    %5970 = vmatprep.subr.bf16.mxu0 %v4039
    %5971 = vmatpush1.bf16.msra.mxu0 %v4038
    %5972 = vmatprep.subr.bf16.mxu0 %v4047
    %5973 = vmatpush1.bf16.msra.mxu0 %v4046
    %5974 = vmatprep.subr.bf16.mxu0 %v4055
    %5975 = vmatpush1.bf16.msra.mxu0 %v4054
    %5976 = vmatprep.subr.bf16.mxu0 %v4063
    %5977 = vmatpush1.bf16.msra.mxu0 %v4062
    %5978 = vmatprep.subr.bf16.mxu0 %v4071
    %5979 = vmatpush1.bf16.msra.mxu0 %v4070
    %5980 = vmatprep.subr.bf16.mxu0 %v4079
    %5981 = vmatpush1.bf16.msra.mxu0 %v4078
    %5982 = vmatprep.mubr.bf16.mxu0 %v947
    %5983 = vmatmul.mubr.bf16.gmra.mrb[0].mxu0 %v946
    %v5984 = vpop.f32.mrb[0].mxu0
    %v5985 = vadd.f32 %v5944, %v5984
    %v5986 = vpop.f32.mrb[0].mxu0
    %v5987 = vadd.f32 %v5946, %v5986
    %v5988 = vpop.f32.mrb[0].mxu0
    %v5989 = vpop.f32.mrb[0].mxu0
    %5990 = vdwg.mxu0
    %5991 = vmatprep.subr.bf16.mxu0 %v4087
    %5992 = vmatpush1.bf16.msra.mxu0 %v4086
    %5993 = vmatprep.subr.bf16.mxu0 %v4095
    %5994 = vmatpush1.bf16.msra.mxu0 %v4094
    %5995 = vmatprep.subr.bf16.mxu0 0
    %5996 = vmatpush1.bf16.msra.mxu0 0
    %5997 = vmatprep.subr.bf16.mxu0 0
    %5998 = vmatpush1.bf16.msra.mxu0 0
    %5999 = vmatprep.subr.bf16.mxu0 0
    %6000 = vmatpush1.bf16.msra.mxu0 0
    %6001 = vmatprep.subr.bf16.mxu0 0
    %6002 = vmatpush1.bf16.msra.mxu0 0
    %6003 = vmatprep.subr.bf16.mxu0 0
    %6004 = vmatpush1.bf16.msra.mxu0 0
    %6005 = vmatprep.subr.bf16.mxu0 0
    %6006 = vmatpush1.bf16.msra.mxu0 0
    %6007 = vmatprep.subr.bf16.mxu0 0
    %6008 = vmatpush1.bf16.msra.mxu0 0
    %6009 = vmatprep.subr.bf16.mxu0 0
    %6010 = vmatpush1.bf16.msra.mxu0 0
    %6011 = vmatprep.subr.bf16.mxu0 0
    %6012 = vmatpush1.bf16.msra.mxu0 0
    %6013 = vmatprep.subr.bf16.mxu0 0
    %6014 = vmatpush1.bf16.msra.mxu0 0
    %6015 = vmatprep.subr.bf16.mxu0 0
    %6016 = vmatpush1.bf16.msra.mxu0 0
    %6017 = vmatprep.subr.bf16.mxu0 0
    %6018 = vmatpush1.bf16.msra.mxu0 0
    %6019 = vmatprep.subr.bf16.mxu0 0
    %6020 = vmatpush1.bf16.msra.mxu0 0
    %6021 = vmatprep.subr.bf16.mxu0 0
    %6022 = vmatpush1.bf16.msra.mxu0 0
    %6023 = vmatprep.mubr.bf16.mxu0 0
    %6024 = vmatmul.mubr.bf16.gmra.mrb[0].mxu0 %v4882
    %v6025 = vpop.f32.mrb[0].mxu0
    %v6026 = vadd.f32 %v5985, %v6025
    %v6027 = vpop.f32.mrb[0].mxu0
    %v6028 = vadd.f32 %v5987, %v6027
    %v6029 = vpop.f32.mrb[0].mxu0
    %v6030 = vpop.f32.mrb[0].mxu0
    %6031 = vdwg.mxu0
    %v6032 = vmax.f32 %v5165, 0.0
    %v6033 = vmax.f32 %v5167, 0.0
    %v6034 = vmax.f32 %v5452, 0.0
    %v6035 = vmax.f32 %v5454, 0.0
    %v6036 = vmax.f32 %v5739, 0.0
    %v6037 = vmax.f32 %v5741, 0.0
    %v6038 = vmax.f32 %v6026, 0.0
    %v6039 = vmax.f32 %v6028, 0.0
    %v6040 = vld [vmem:[%s3] sm:$0xff]
    %v6041 = vld [vmem:[%s3 + $0x8] sm:$0xff]
    %v6042 = vld [vmem:[%s3 + $0x10] sm:$0xff]
    %v6043 = vld [vmem:[%s3 + $0x18] sm:$0xff]
    %v6044 = vld [vmem:[%s3 + $0x20] sm:$0xff]
    %v6045 = vld [vmem:[%s3 + $0x28] sm:$0xff]
    %v6046 = vld [vmem:[%s3 + $0x30] sm:$0xff]
    %v6047 = vld [vmem:[%s3 + $0x38] sm:$0xff]
    %v6048 = vld [vmem:[%s3 + $0x40] sm:$0xff]
    %v6049 = vld [vmem:[%s3 + $0x48] sm:$0xff]
    %v6050 = vld [vmem:[%s3 + $0x50] sm:$0xff]
    %v6051 = vld [vmem:[%s3 + $0x58] sm:$0xff]
    %v6052 = vld [vmem:[%s3 + $0x60] sm:$0xff]
    %v6053 = vld [vmem:[%s3 + $0x68] sm:$0xff]
    %v6054 = vld [vmem:[%s3 + $0x70] sm:$0xff]
    %v6055 = vld [vmem:[%s3 + $0x78] sm:$0xff]
    %v6056 = vld [vmem:[%s3 + $0x80] sm:$0xff]
    %v6057 = vld [vmem:[%s3 + $0x88] sm:$0xff]
    %v6058 = vld [vmem:[%s3 + $0x90] sm:$0xff]
    %v6059 = vld [vmem:[%s3 + $0x98] sm:$0xff]
    %v6060 = vld [vmem:[%s3 + $0xa0] sm:$0xff]
    %v6061 = vld [vmem:[%s3 + $0xa8] sm:$0xff]
    %v6062 = vld [vmem:[%s3 + $0xb0] sm:$0xff]
    %v6063 = vld [vmem:[%s3 + $0xb8] sm:$0xff]
    %v6064 = vld [vmem:[%s3 + $0xc0] sm:$0xff]
    %v6065 = vld [vmem:[%s3 + $0xc8] sm:$0xff]
    %v6066 = vld [vmem:[%s3 + $0xd0] sm:$0xff]
    %v6067 = vld [vmem:[%s3 + $0xd8] sm:$0xff]
    %v6068 = vld [vmem:[%s3 + $0xe0] sm:$0xff]
    %v6069 = vld [vmem:[%s3 + $0xe8] sm:$0xff]
    %v6070 = vld [vmem:[%s3 + $0xf0] sm:$0xff]
    %v6071 = vld [vmem:[%s3 + $0xf8] sm:$0xff]
    %v6072 = vld [vmem:[%s3 + $0x100] sm:$0xff]
    %v6073 = vld [vmem:[%s3 + $0x108] sm:$0xff]
    %v6074 = vld [vmem:[%s3 + $0x110] sm:$0xff]
    %v6075 = vld [vmem:[%s3 + $0x118] sm:$0xff]
    %v6076 = vld [vmem:[%s3 + $0x120] sm:$0xff]
    %v6077 = vld [vmem:[%s3 + $0x128] sm:$0xff]
    %v6078 = vld [vmem:[%s3 + $0x130] sm:$0xff]
    %v6079 = vld [vmem:[%s3 + $0x138] sm:$0xff]
    %v6080 = vld [vmem:[%s3 + $0x140] sm:$0xff]
    %v6081 = vld [vmem:[%s3 + $0x148] sm:$0xff]
    %v6082 = vld [vmem:[%s3 + $0x150] sm:$0xff]
    %v6083 = vld [vmem:[%s3 + $0x158] sm:$0xff]
    %v6084 = vld [vmem:[%s3 + $0x160] sm:$0xff]
    %v6085 = vld [vmem:[%s3 + $0x168] sm:$0xff]
    %v6086 = vld [vmem:[%s3 + $0x170] sm:$0xff]
    %v6087 = vld [vmem:[%s3 + $0x178] sm:$0xff]
    %v6088 = vld [vmem:[%s3 + $0x180] sm:$0xff]
    %v6089 = vld [vmem:[%s3 + $0x188] sm:$0xff]
    %v6090 = vld [vmem:[%s3 + $0x190] sm:$0xff]
    %v6091 = vld [vmem:[%s3 + $0x198] sm:$0xff]
    %v6092 = vld [vmem:[%s3 + $0x1a0] sm:$0xff]
    %v6093 = vld [vmem:[%s3 + $0x1a8] sm:$0xff]
    %v6094 = vld [vmem:[%s3 + $0x1b0] sm:$0xff]
    %v6095 = vld [vmem:[%s3 + $0x1b8] sm:$0xff]
    %v6096 = vld [vmem:[%s3 + $0x1c0] sm:$0xff]
    %v6097 = vld [vmem:[%s3 + $0x1c8] sm:$0xff]
    %v6098 = vld [vmem:[%s3 + $0x1d0] sm:$0xff]
    %v6099 = vld [vmem:[%s3 + $0x1d8] sm:$0xff]
    %v6100 = vld [vmem:[%s3 + $0x1e0] sm:$0xff]
    %v6101 = vld [vmem:[%s3 + $0x1e8] sm:$0xff]
    %v6102 = vld [vmem:[%s3 + $0x1f0] sm:$0xff]
    %v6103 = vld [vmem:[%s3 + $0x1f8] sm:$0xff]
    %v6104 = vld [vmem:[%s4] sm:$0x1]
    %v6106 = vlaneseq
    %v6107 = vshrl.u32 %v6106, 7
    %v6108 = vsub.s32 0, %v6107
    %v6109 = vrot.slane %v6104, %v6108
    %6111 = vmatprep.subr.mxu0 0.0
    %6112 = vmatpush1.msra.mxu0 %v6040
    %6113 = vmatprep.subr.mxu0 0.0
    %6114 = vmatpush1.msra.mxu0 %v6041
    %6115 = vmatprep.subr.mxu0 0.0
    %6116 = vmatpush1.msra.mxu0 %v6042
    %6117 = vmatprep.subr.mxu0 0.0
    %6118 = vmatpush1.msra.mxu0 %v6043
    %6119 = vmatprep.subr.mxu0 0.0
    %6120 = vmatpush1.msra.mxu0 %v6044
    %6121 = vmatprep.subr.mxu0 0.0
    %6122 = vmatpush1.msra.mxu0 %v6045
    %6123 = vmatprep.subr.mxu0 0.0
    %6124 = vmatpush1.msra.mxu0 %v6046
    %6125 = vmatprep.subr.mxu0 0.0
    %6126 = vmatpush1.msra.mxu0 %v6047
    %6127 = vmatprep.subr.mxu0 0.0
    %6128 = vmatpush1.msra.mxu0 %v6048
    %6129 = vmatprep.subr.mxu0 0.0
    %6130 = vmatpush1.msra.mxu0 %v6049
    %6131 = vmatprep.subr.mxu0 0.0
    %6132 = vmatpush1.msra.mxu0 %v6050
    %6133 = vmatprep.subr.mxu0 0.0
    %6134 = vmatpush1.msra.mxu0 %v6051
    %6135 = vmatprep.subr.mxu0 0.0
    %6136 = vmatpush1.msra.mxu0 %v6052
    %6137 = vmatprep.subr.mxu0 0.0
    %6138 = vmatpush1.msra.mxu0 %v6053
    %6139 = vmatprep.subr.mxu0 0.0
    %6140 = vmatpush1.msra.mxu0 %v6054
    %6141 = vmatprep.subr.mxu0 0.0
    %6142 = vmatpush1.msra.mxu0 %v6055
    %6143 = vmatprep.subr.mxu0 0.0
    %6144 = vmatpush1.msra.mxu0 %v6056
    %6145 = vmatprep.subr.mxu0 0.0
    %6146 = vmatpush1.msra.mxu0 %v6057
    %6147 = vmatprep.subr.mxu0 0.0
    %6148 = vmatpush1.msra.mxu0 %v6058
    %6149 = vmatprep.subr.mxu0 0.0
    %6150 = vmatpush1.msra.mxu0 %v6059
    %6151 = vmatprep.subr.mxu0 0.0
    %6152 = vmatpush1.msra.mxu0 %v6060
    %6153 = vmatprep.subr.mxu0 0.0
    %6154 = vmatpush1.msra.mxu0 %v6061
    %6155 = vmatprep.subr.mxu0 0.0
    %6156 = vmatpush1.msra.mxu0 %v6062
    %6157 = vmatprep.subr.mxu0 0.0
    %6158 = vmatpush1.msra.mxu0 %v6063
    %6159 = vmatprep.subr.mxu0 0.0
    %6160 = vmatpush1.msra.mxu0 %v6064
    %6161 = vmatprep.subr.mxu0 0.0
    %6162 = vmatpush1.msra.mxu0 %v6065
    %6163 = vmatprep.subr.mxu0 0.0
    %6164 = vmatpush1.msra.mxu0 %v6066
    %6165 = vmatprep.subr.mxu0 0.0
    %6166 = vmatpush1.msra.mxu0 %v6067
    %6167 = vmatprep.subr.mxu0 0.0
    %6168 = vmatpush1.msra.mxu0 %v6068
    %6169 = vmatprep.subr.mxu0 0.0
    %6170 = vmatpush1.msra.mxu0 %v6069
    %6171 = vmatprep.subr.mxu0 0.0
    %6172 = vmatpush1.msra.mxu0 %v6070
    %6173 = vmatprep.subr.mxu0 0.0
    %6174 = vmatpush1.msra.mxu0 %v6071
    %6175 = vmatprep.mubr.f32.mxu0 %v6033
    %6176 = vmatmul.mubr.f32.gmra.mrb[0].mxu0 %v6032
    %v6177 = vpop.f32.mrb[0].mxu0
    %v6178 = vadd.f32 %v6109, %v6177
    %v6179 = vpop.f32.mrb[0].mxu0
    %6180 = vdwg.mxu0
    %6181 = vmatprep.subr.mxu0 0.0
    %6182 = vmatpush1.msra.mxu0 %v6072
    %6183 = vmatprep.subr.mxu0 0.0
    %6184 = vmatpush1.msra.mxu0 %v6073
    %6185 = vmatprep.subr.mxu0 0.0
    %6186 = vmatpush1.msra.mxu0 %v6074
    %6187 = vmatprep.subr.mxu0 0.0
    %6188 = vmatpush1.msra.mxu0 %v6075
    %6189 = vmatprep.subr.mxu0 0.0
    %6190 = vmatpush1.msra.mxu0 %v6076
    %6191 = vmatprep.subr.mxu0 0.0
    %6192 = vmatpush1.msra.mxu0 %v6077
    %6193 = vmatprep.subr.mxu0 0.0
    %6194 = vmatpush1.msra.mxu0 %v6078
    %6195 = vmatprep.subr.mxu0 0.0
    %6196 = vmatpush1.msra.mxu0 %v6079
    %6197 = vmatprep.subr.mxu0 0.0
    %6198 = vmatpush1.msra.mxu0 %v6080
    %6199 = vmatprep.subr.mxu0 0.0
    %6200 = vmatpush1.msra.mxu0 %v6081
    %6201 = vmatprep.subr.mxu0 0.0
    %6202 = vmatpush1.msra.mxu0 %v6082
    %6203 = vmatprep.subr.mxu0 0.0
    %6204 = vmatpush1.msra.mxu0 %v6083
    %6205 = vmatprep.subr.mxu0 0.0
    %6206 = vmatpush1.msra.mxu0 %v6084
    %6207 = vmatprep.subr.mxu0 0.0
    %6208 = vmatpush1.msra.mxu0 %v6085
    %6209 = vmatprep.subr.mxu0 0.0
    %6210 = vmatpush1.msra.mxu0 %v6086
    %6211 = vmatprep.subr.mxu0 0.0
    %6212 = vmatpush1.msra.mxu0 %v6087
    %6213 = vmatprep.subr.mxu0 0.0
    %6214 = vmatpush1.msra.mxu0 %v6088
    %6215 = vmatprep.subr.mxu0 0.0
    %6216 = vmatpush1.msra.mxu0 %v6089
    %6217 = vmatprep.subr.mxu0 0.0
    %6218 = vmatpush1.msra.mxu0 %v6090
    %6219 = vmatprep.subr.mxu0 0.0
    %6220 = vmatpush1.msra.mxu0 %v6091
    %6221 = vmatprep.subr.mxu0 0.0
    %6222 = vmatpush1.msra.mxu0 %v6092
    %6223 = vmatprep.subr.mxu0 0.0
    %6224 = vmatpush1.msra.mxu0 %v6093
    %6225 = vmatprep.subr.mxu0 0.0
    %6226 = vmatpush1.msra.mxu0 %v6094
    %6227 = vmatprep.subr.mxu0 0.0
    %6228 = vmatpush1.msra.mxu0 %v6095
    %6229 = vmatprep.subr.mxu0 0.0
    %6230 = vmatpush1.msra.mxu0 %v6096
    %6231 = vmatprep.subr.mxu0 0.0
    %6232 = vmatpush1.msra.mxu0 %v6097
    %6233 = vmatprep.subr.mxu0 0.0
    %6234 = vmatpush1.msra.mxu0 %v6098
    %6235 = vmatprep.subr.mxu0 0.0
    %6236 = vmatpush1.msra.mxu0 %v6099
    %6237 = vmatprep.subr.mxu0 0.0
    %6238 = vmatpush1.msra.mxu0 %v6100
    %6239 = vmatprep.subr.mxu0 0.0
    %6240 = vmatpush1.msra.mxu0 %v6101
    %6241 = vmatprep.subr.mxu0 0.0
    %6242 = vmatpush1.msra.mxu0 %v6102
    %6243 = vmatprep.subr.mxu0 0.0
    %6244 = vmatpush1.msra.mxu0 %v6103
    %6245 = vmatprep.mubr.f32.mxu0 %v6035
    %6246 = vmatmul.mubr.f32.gmra.mrb[0].mxu0 %v6034
    %v6247 = vpop.f32.mrb[0].mxu0
    %v6248 = vadd.f32 %v6178, %v6247
    %v6249 = vpop.f32.mrb[0].mxu0
    %6250 = vdwg.mxu0
    %v6251 = vld [vmem:[%s5] sm:$0xff]
    %v6252 = vld [vmem:[%s5 + $0x8] sm:$0xff]
    %v6253 = vld [vmem:[%s5 + $0x10] sm:$0xff]
    %v6254 = vld [vmem:[%s5 + $0x18] sm:$0xff]
    %v6255 = vld [vmem:[%s5 + $0x20] sm:$0xff]
    %v6256 = vld [vmem:[%s5 + $0x28] sm:$0xff]
    %v6257 = vld [vmem:[%s5 + $0x30] sm:$0xff]
    %v6258 = vld [vmem:[%s5 + $0x38] sm:$0xff]
    %v6259 = vld [vmem:[%s5 + $0x40] sm:$0xff]
    %v6260 = vld [vmem:[%s5 + $0x48] sm:$0xff]
    %v6261 = vld [vmem:[%s5 + $0x50] sm:$0xff]
    %v6262 = vld [vmem:[%s5 + $0x58] sm:$0xff]
    %v6263 = vld [vmem:[%s5 + $0x60] sm:$0xff]
    %v6264 = vld [vmem:[%s5 + $0x68] sm:$0xff]
    %v6265 = vld [vmem:[%s5 + $0x70] sm:$0xff]
    %v6266 = vld [vmem:[%s5 + $0x78] sm:$0xff]
    %v6267 = vld [vmem:[%s5 + $0x80] sm:$0xff]
    %v6268 = vld [vmem:[%s5 + $0x88] sm:$0xff]
    %v6269 = vld [vmem:[%s5 + $0x90] sm:$0xff]
    %v6270 = vld [vmem:[%s5 + $0x98] sm:$0xff]
    %v6271 = vld [vmem:[%s5 + $0xa0] sm:$0xff]
    %v6272 = vld [vmem:[%s5 + $0xa8] sm:$0xff]
    %v6273 = vld [vmem:[%s5 + $0xb0] sm:$0xff]
    %v6274 = vld [vmem:[%s5 + $0xb8] sm:$0xff]
    %v6275 = vld [vmem:[%s5 + $0xc0] sm:$0xff]
    %v6276 = vld [vmem:[%s5 + $0xc8] sm:$0xff]
    %v6277 = vld [vmem:[%s5 + $0xd0] sm:$0xff]
    %v6278 = vld [vmem:[%s5 + $0xd8] sm:$0xff]
    %v6279 = vld [vmem:[%s5 + $0xe0] sm:$0xff]
    %v6280 = vld [vmem:[%s5 + $0xe8] sm:$0xff]
    %v6281 = vld [vmem:[%s5 + $0xf0] sm:$0xff]
    %v6282 = vld [vmem:[%s5 + $0xf8] sm:$0xff]
    %v6283 = vld [vmem:[%s5 + $0x100] sm:$0xff]
    %v6284 = vld [vmem:[%s5 + $0x108] sm:$0xff]
    %v6285 = vld [vmem:[%s5 + $0x110] sm:$0xff]
    %v6286 = vld [vmem:[%s5 + $0x118] sm:$0xff]
    %v6287 = vld [vmem:[%s5 + $0x120] sm:$0xff]
    %v6288 = vld [vmem:[%s5 + $0x128] sm:$0xff]
    %v6289 = vld [vmem:[%s5 + $0x130] sm:$0xff]
    %v6290 = vld [vmem:[%s5 + $0x138] sm:$0xff]
    %v6291 = vld [vmem:[%s5 + $0x140] sm:$0xff]
    %v6292 = vld [vmem:[%s5 + $0x148] sm:$0xff]
    %v6293 = vld [vmem:[%s5 + $0x150] sm:$0xff]
    %v6294 = vld [vmem:[%s5 + $0x158] sm:$0xff]
    %v6295 = vld [vmem:[%s5 + $0x160] sm:$0xff]
    %v6296 = vld [vmem:[%s5 + $0x168] sm:$0xff]
    %v6297 = vld [vmem:[%s5 + $0x170] sm:$0xff]
    %v6298 = vld [vmem:[%s5 + $0x178] sm:$0xff]
    %v6299 = vld [vmem:[%s5 + $0x180] sm:$0xff]
    %v6300 = vld [vmem:[%s5 + $0x188] sm:$0xff]
    %v6301 = vld [vmem:[%s5 + $0x190] sm:$0xff]
    %v6302 = vld [vmem:[%s5 + $0x198] sm:$0xff]
    %v6303 = vld [vmem:[%s5 + $0x1a0] sm:$0xff]
    %v6304 = vld [vmem:[%s5 + $0x1a8] sm:$0xff]
    %v6305 = vld [vmem:[%s5 + $0x1b0] sm:$0xff]
    %v6306 = vld [vmem:[%s5 + $0x1b8] sm:$0xff]
    %v6307 = vld [vmem:[%s5 + $0x1c0] sm:$0xff]
    %v6308 = vld [vmem:[%s5 + $0x1c8] sm:$0xff]
    %v6309 = vld [vmem:[%s5 + $0x1d0] sm:$0xff]
    %v6310 = vld [vmem:[%s5 + $0x1d8] sm:$0xff]
    %v6311 = vld [vmem:[%s5 + $0x1e0] sm:$0xff]
    %v6312 = vld [vmem:[%s5 + $0x1e8] sm:$0xff]
    %v6313 = vld [vmem:[%s5 + $0x1f0] sm:$0xff]
    %v6314 = vld [vmem:[%s5 + $0x1f8] sm:$0xff]
    %v6315 = vld [vmem:[#allocation2] sm:$0x1]
    %v6317 = vlaneseq
    %v6318 = vshrl.u32 %v6317, 7
    %v6319 = vsub.s32 0, %v6318
    %v6320 = vrot.slane %v6315, %v6319
    %6322 = vmatprep.subr.mxu0 0.0
    %6323 = vmatpush1.msra.mxu0 %v6251
    %6324 = vmatprep.subr.mxu0 0.0
    %6325 = vmatpush1.msra.mxu0 %v6252
    %6326 = vmatprep.subr.mxu0 0.0
    %6327 = vmatpush1.msra.mxu0 %v6253
    %6328 = vmatprep.subr.mxu0 0.0
    %6329 = vmatpush1.msra.mxu0 %v6254
    %6330 = vmatprep.subr.mxu0 0.0
    %6331 = vmatpush1.msra.mxu0 %v6255
    %6332 = vmatprep.subr.mxu0 0.0
    %6333 = vmatpush1.msra.mxu0 %v6256
    %6334 = vmatprep.subr.mxu0 0.0
    %6335 = vmatpush1.msra.mxu0 %v6257
    %6336 = vmatprep.subr.mxu0 0.0
    %6337 = vmatpush1.msra.mxu0 %v6258
    %6338 = vmatprep.subr.mxu0 0.0
    %6339 = vmatpush1.msra.mxu0 %v6259
    %6340 = vmatprep.subr.mxu0 0.0
    %6341 = vmatpush1.msra.mxu0 %v6260
    %6342 = vmatprep.subr.mxu0 0.0
    %6343 = vmatpush1.msra.mxu0 %v6261
    %6344 = vmatprep.subr.mxu0 0.0
    %6345 = vmatpush1.msra.mxu0 %v6262
    %6346 = vmatprep.subr.mxu0 0.0
    %6347 = vmatpush1.msra.mxu0 %v6263
    %6348 = vmatprep.subr.mxu0 0.0
    %6349 = vmatpush1.msra.mxu0 %v6264
    %6350 = vmatprep.subr.mxu0 0.0
    %6351 = vmatpush1.msra.mxu0 %v6265
    %6352 = vmatprep.subr.mxu0 0.0
    %6353 = vmatpush1.msra.mxu0 %v6266
    %6354 = vmatprep.subr.mxu0 0.0
    %6355 = vmatpush1.msra.mxu0 %v6267
    %6356 = vmatprep.subr.mxu0 0.0
    %6357 = vmatpush1.msra.mxu0 %v6268
    %6358 = vmatprep.subr.mxu0 0.0
    %6359 = vmatpush1.msra.mxu0 %v6269
    %6360 = vmatprep.subr.mxu0 0.0
    %6361 = vmatpush1.msra.mxu0 %v6270
    %6362 = vmatprep.subr.mxu0 0.0
    %6363 = vmatpush1.msra.mxu0 %v6271
    %6364 = vmatprep.subr.mxu0 0.0
    %6365 = vmatpush1.msra.mxu0 %v6272
    %6366 = vmatprep.subr.mxu0 0.0
    %6367 = vmatpush1.msra.mxu0 %v6273
    %6368 = vmatprep.subr.mxu0 0.0
    %6369 = vmatpush1.msra.mxu0 %v6274
    %6370 = vmatprep.subr.mxu0 0.0
    %6371 = vmatpush1.msra.mxu0 %v6275
    %6372 = vmatprep.subr.mxu0 0.0
    %6373 = vmatpush1.msra.mxu0 %v6276
    %6374 = vmatprep.subr.mxu0 0.0
    %6375 = vmatpush1.msra.mxu0 %v6277
    %6376 = vmatprep.subr.mxu0 0.0
    %6377 = vmatpush1.msra.mxu0 %v6278
    %6378 = vmatprep.subr.mxu0 0.0
    %6379 = vmatpush1.msra.mxu0 %v6279
    %6380 = vmatprep.subr.mxu0 0.0
    %6381 = vmatpush1.msra.mxu0 %v6280
    %6382 = vmatprep.subr.mxu0 0.0
    %6383 = vmatpush1.msra.mxu0 %v6281
    %6384 = vmatprep.subr.mxu0 0.0
    %6385 = vmatpush1.msra.mxu0 %v6282
    %6386 = vmatprep.mubr.f32.mxu0 %v6037
    %6387 = vmatmul.mubr.f32.gmra.mrb[0].mxu0 %v6036
    %v6388 = vpop.f32.mrb[0].mxu0
    %v6389 = vadd.f32 %v6320, %v6388
    %v6390 = vpop.f32.mrb[0].mxu0
    %6391 = vdwg.mxu0
    %6392 = vmatprep.subr.mxu0 0.0
    %6393 = vmatpush1.msra.mxu0 %v6283
    %6394 = vmatprep.subr.mxu0 0.0
    %6395 = vmatpush1.msra.mxu0 %v6284
    %6396 = vmatprep.subr.mxu0 0.0
    %6397 = vmatpush1.msra.mxu0 %v6285
    %6398 = vmatprep.subr.mxu0 0.0
    %6399 = vmatpush1.msra.mxu0 %v6286
    %6400 = vmatprep.subr.mxu0 0.0
    %6401 = vmatpush1.msra.mxu0 %v6287
    %6402 = vmatprep.subr.mxu0 0.0
    %6403 = vmatpush1.msra.mxu0 %v6288
    %6404 = vmatprep.subr.mxu0 0.0
    %6405 = vmatpush1.msra.mxu0 %v6289
    %6406 = vmatprep.subr.mxu0 0.0
    %6407 = vmatpush1.msra.mxu0 %v6290
    %6408 = vmatprep.subr.mxu0 0.0
    %6409 = vmatpush1.msra.mxu0 %v6291
    %6410 = vmatprep.subr.mxu0 0.0
    %6411 = vmatpush1.msra.mxu0 %v6292
    %6412 = vmatprep.subr.mxu0 0.0
    %6413 = vmatpush1.msra.mxu0 %v6293
    %6414 = vmatprep.subr.mxu0 0.0
    %6415 = vmatpush1.msra.mxu0 %v6294
    %6416 = vmatprep.subr.mxu0 0.0
    %6417 = vmatpush1.msra.mxu0 %v6295
    %6418 = vmatprep.subr.mxu0 0.0
    %6419 = vmatpush1.msra.mxu0 %v6296
    %6420 = vmatprep.subr.mxu0 0.0
    %6421 = vmatpush1.msra.mxu0 %v6297
    %6422 = vmatprep.subr.mxu0 0.0
    %6423 = vmatpush1.msra.mxu0 %v6298
    %6424 = vmatprep.subr.mxu0 0.0
    %6425 = vmatpush1.msra.mxu0 %v6299
    %6426 = vmatprep.subr.mxu0 0.0
    %6427 = vmatpush1.msra.mxu0 %v6300
    %6428 = vmatprep.subr.mxu0 0.0
    %6429 = vmatpush1.msra.mxu0 %v6301
    %6430 = vmatprep.subr.mxu0 0.0
    %6431 = vmatpush1.msra.mxu0 %v6302
    %6432 = vmatprep.subr.mxu0 0.0
    %6433 = vmatpush1.msra.mxu0 %v6303
    %6434 = vmatprep.subr.mxu0 0.0
    %6435 = vmatpush1.msra.mxu0 %v6304
    %6436 = vmatprep.subr.mxu0 0.0
    %6437 = vmatpush1.msra.mxu0 %v6305
    %6438 = vmatprep.subr.mxu0 0.0
    %6439 = vmatpush1.msra.mxu0 %v6306
    %6440 = vmatprep.subr.mxu0 0.0
    %6441 = vmatpush1.msra.mxu0 %v6307
    %6442 = vmatprep.subr.mxu0 0.0
    %6443 = vmatpush1.msra.mxu0 %v6308
    %6444 = vmatprep.subr.mxu0 0.0
    %6445 = vmatpush1.msra.mxu0 %v6309
    %6446 = vmatprep.subr.mxu0 0.0
    %6447 = vmatpush1.msra.mxu0 %v6310
    %6448 = vmatprep.subr.mxu0 0.0
    %6449 = vmatpush1.msra.mxu0 %v6311
    %6450 = vmatprep.subr.mxu0 0.0
    %6451 = vmatpush1.msra.mxu0 %v6312
    %6452 = vmatprep.subr.mxu0 0.0
    %6453 = vmatpush1.msra.mxu0 %v6313
    %6454 = vmatprep.subr.mxu0 0.0
    %6455 = vmatpush1.msra.mxu0 %v6314
    %6456 = vmatprep.mubr.f32.mxu0 %v6039
    %6457 = vmatmul.mubr.f32.gmra.mrb[0].mxu0 %v6038
    %v6458 = vpop.f32.mrb[0].mxu0
    %v6459 = vadd.f32 %v6389, %v6458
    %v6460 = vpop.f32.mrb[0].mxu0
    %6461 = vdwg.mxu0
    %6463 = vset.pattern.permute.xlu0 0
    %6464 = vperm.xlu0 %6463, %v6459
    %v6465 = vpop.permute.xlu0 %6464
    %v6467 = vadd.f32 %v6465, %v6248
    %vm6468 = vcmask 41984
    %v6469 = vsel %vm6468, %v6248, 0.0
    %6470 = vadd.xlane.f32.xlu0 %v6469
    %v6471 = vpop.xlane.xlu0 %6470
    %v6472 = vrot.slane %v6471, 4
    %v6473 = vadd.f32 %v6471, %v6472
    %v6474 = vrot.slane %v6473, 2
    %v6475 = vadd.f32 %v6473, %v6474
    %v6476 = vrot.slane %v6475, 1
    %v6477 = vadd.f32 %v6475, %v6476
    %s6478 = vtos %v6477
    %v6479 = vstv %s6478
    %v6480 = vrcp.pop 12.0
    %v6481 = vmul.f32 %v6479, %v6480
    %v6482 = vsub.f32 %v6467, %v6481
    %6483 = vst.msk [vmem:[#allocation3] sm:$0x3] %vm6468, %v6482
    // Predicated region
    $region30: #{qnetwork_forward.7} parent=1 // pred_check
      _
    $region31: #{qnetwork_forward.7} parent=1 // pred_check_branch
      %6485 = sbr.rel (0) target = $region33
    $region32: #{qnetwork_forward.7} parent=1 // pred_region
      %s6487 = ssub.s32 32, 32
      %6488 = vsyncadd [#allocation4], %s6487
      %s6490 = sshll.u32 [#allocation3], 4
      %s6491 = int_to_ptr.vmem [resolvable:$true] %s6490
      %6493 = dma.vmem_to_hbm [thread:$0]  %s6491, 32, %s7, [#allocation4]
    $region33: #{qnetwork_forward.7} parent=1 // pred_fallthru
      _
    // Predicated region
    $region34: #{qnetwork_forward.7} parent=1 // pred_check
      _
    $region35: #{qnetwork_forward.7} parent=1 // pred_check_branch
      %6495 = sbr.rel (0) target = $region37
    $region36: #{qnetwork_forward.7} parent=1 // pred_region
      %6496 = dma.done [#allocation4], 32
    $region37: #{qnetwork_forward.7} parent=1 // pred_fallthru
      _
    %6497 = vsyncpa [#allocation4], 1

</llo_original>
